<compile_context>
chip_gen: v7x
topology: tpu7x:2x2x1
jax: 0.10.0
libtpu: 0.0.40
codegen_flags: <defaults>
</compile_context>

<pallas_src>
import math

import jax
import jax.numpy as jnp
import numpy as np
from jax.experimental import pallas as pl
from jax.experimental.pallas import tpu as pltpu


# -----------------------------------------------------------------------------
# Host-side structural matrices (pure parameter preprocessing, done once).
# -----------------------------------------------------------------------------
_HAAR_SIGNS = {(0, 0): (1, 1, 1, 1), (0, 1): (1, -1, 1, -1),
               (1, 0): (1, 1, -1, -1), (1, 1): (1, -1, -1, 1)}


def _haar_band_matrix(hs, ws, band):
    """(hs*ws, hwo) matrix mapping a row-major image to one Haar band."""
    ho, wo = hs // 2, ws // 2
    d = np.zeros((hs * ws, ho * wo), np.float32)
    for i in range(hs):
        for j in range(ws):
            p_in = i * ws + j
            p_out = (i // 2) * wo + (j // 2)
            d[p_in, p_out] = 0.5 * _HAAR_SIGNS[(i % 2, j % 2)][band]
    return d


def _conv3x3_matrix(hs, ws, w9, ccond):
    """3x3 same-pad conv (1 input channel) as a (HW, ccond*HW) matmul matrix."""
    hw = hs * ws
    m = np.zeros((hw, ccond * hw), np.float32)
    cols = np.arange(ccond) * hw
    for pi in range(hs):
        for pj in range(ws):
            p = pi * ws + pj
            for di in (-1, 0, 1):
                for dj in (-1, 0, 1):
                    qi, qj = pi + di, pj + dj
                    if 0 <= qi < hs and 0 <= qj < ws:
                        q = qi * ws + qj
                        tap = (di + 1) * 3 + (dj + 1)
                        m[q, cols + p] = w9[tap]
    return m


def _mix(slabs, w, bias=None):
    """Per-pixel channel mixing: out[co] = sum_ci w[ci,co]*slabs[ci] (+ bias[co]).

    `w` / `bias` are host numpy; coefficients are baked as scalar immediates,
    so this lowers to VPU FMAs on (B, hwo) lane slabs — no kron-with-identity
    matmul, no weight DMA, no MXU weight push."""
    w = np.asarray(w, np.float32)
    cin, cout = w.shape
    out = []
    for co in range(cout):
        acc = None
        for ci in range(cin):
            coef = float(w[ci, co])
            if coef == 0.0:
                continue
            term = slabs[ci] * coef
            acc = term if acc is None else acc + term
        if acc is None:
            acc = jnp.zeros_like(slabs[0])
        if bias is not None:
            b = float(np.asarray(bias, np.float32).reshape(-1)[co])
            if b != 0.0:
                acc = acc + b
        out.append(acc)
    return out


def _expand_cond_level(glow_p, cond_p, h_in, w_in):
    """Expand one conditional level: bf16 structural matrices + scalar tables."""
    ho, wo = h_in // 2, w_in // 2
    hwo = ho * wo
    w_perm = np.asarray(glow_p["w_perm"], np.float32)
    cin = w_perm.shape[0]
    wconv = np.asarray(cond_p["w"], np.float32)          # (9, ccond) for C == 1
    ccond = wconv.shape[-1]
    mats = [jnp.asarray(_haar_band_matrix(h_in, w_in, b), jnp.bfloat16)
            for b in range(4)]                            # D_low, D_h1, D_h2, D_h3
    mats.append(jnp.asarray(_conv3x3_matrix(ho, wo, wconv, ccond), jnp.bfloat16))
    static = dict(
        hwo=hwo, cin=cin, c1=cin // 2, c2=cin - cin // 2, ccond=ccond,
        an_bias=np.asarray(glow_p["an_bias"], np.float32).reshape(-1),
        an_scale=np.exp(np.asarray(glow_p["an_logs"], np.float32)).reshape(-1),
        w_perm=w_perm,
        w1=np.concatenate([np.asarray(glow_p["w1z"], np.float32),
                           np.asarray(glow_p["w1c"], np.float32)], axis=0),
        b1=np.asarray(glow_p["b1"], np.float32).reshape(-1),
        w2_shift=np.asarray(glow_p["w2_shift"], np.float32),
        b2_shift=np.asarray(glow_p["b2_shift"], np.float32).reshape(-1),
        w2_scale=np.asarray(glow_p["w2_scale"], np.float32),
        b2_scale=np.asarray(glow_p["b2_scale"], np.float32).reshape(-1),
        b_conv=np.asarray(cond_p["b"], np.float32).reshape(-1),
    )
    return mats, static


def _expand_base(glow_p, hwb, repeat):
    """Base flow: no structural matrices at all, only scalar tables."""
    w_perm = np.asarray(glow_p["w_perm"], np.float32)
    cin = w_perm.shape[0]
    an_logs = np.asarray(glow_p["an_logs"], np.float32).reshape(-1)
    return dict(
        hwo=hwb, cin=cin, c1=cin // 2, c2=cin - cin // 2, repeat=repeat,
        an_bias=np.asarray(glow_p["an_bias"], np.float32).reshape(-1),
        an_scale=np.exp(an_logs),
        w_perm=w_perm,
        w1=np.asarray(glow_p["w1z"], np.float32),
        b1=np.asarray(glow_p["b1"], np.float32).reshape(-1),
        w2_shift=np.asarray(glow_p["w2_shift"], np.float32),
        b2_shift=np.asarray(glow_p["b2_shift"], np.float32).reshape(-1),
        w2_scale=np.asarray(glow_p["w2_scale"], np.float32),
        b2_scale=np.asarray(glow_p["b2_scale"], np.float32).reshape(-1),
        # ActNorm + invertible-1x1-conv log-dets are parameter-only constants.
        c0=float(hwb * (np.sum(an_logs) + float(np.asarray(glow_p["slogdet_w"])))),
        inv=1.0 / (math.log(2.0) * cin * hwb),            # bits/dim normaliser
    )


# -----------------------------------------------------------------------------
# The single fused kernel: all levels + base flow + likelihood.
# -----------------------------------------------------------------------------
def _make_fused_kernel(level_static, base_static):
    n_lvl = len(level_static)
    f32, bf16 = jnp.float32, jnp.bfloat16

    def kernel(*refs):
        x_ref = refs[0]
        mat_refs = refs[1:1 + 5 * n_lvl]
        lat_refs = refs[1 + 5 * n_lvl:1 + 5 * n_lvl + n_lvl + 1]
        lik_ref = refs[1 + 5 * n_lvl + n_lvl + 1]

        cur = x_ref[...]                                  # (B, H*W) f32, lanes = pixels
        for li, sd in enumerate(level_static):
            dl_ref, d1_ref, d2_ref, d3_ref, mc_ref = mat_refs[5 * li:5 * li + 5]
            hwo, c1, c2 = sd["hwo"], sd["c1"], sd["c2"]

            # Haar DWT: one bf16 dot per band -> lane-dense per-channel slabs.
            cur_b = cur.astype(bf16)
            low = jnp.dot(cur_b, dl_ref[...], preferred_element_type=f32)
            zc = [jnp.dot(cur_b, d_ref[...], preferred_element_type=f32)
                  for d_ref in (d1_ref, d2_ref, d3_ref)]

            # ActNorm (per-channel scalar immediates).
            zc = [(zc[k] + float(sd["an_bias"][k])) * float(sd["an_scale"][k])
                  for k in range(sd["cin"])]

            # Invertible 1x1 conv as cin x cin VPU FMAs (no kron(W, I) matmul).
            zp = _mix(zc, sd["w_perm"])
            z1, z2 = zp[:c1], zp[c1:]

            # Conditioning net: 3x3 conv as one bf16 matmul, then bias + ReLU
            # per cond channel (static lane windows of the dot result).
            cond_full = jnp.dot(low.astype(bf16), mc_ref[...],
                                preferred_element_type=f32)
            cond = [jnp.maximum(cond_full[:, c * hwo:(c + 1) * hwo]
                                + float(sd["b_conv"][c]), 0.0)
                    for c in range(sd["ccond"])]

            # Conditional affine coupling: tiny per-pixel MLP as VPU FMAs,
            # coupling input is a slab list (no lane concatenation).
            h = [jnp.maximum(t, 0.0) for t in _mix(z1 + cond, sd["w1"], sd["b1"])]
            shift = _mix(h, sd["w2_shift"], sd["b2_shift"])
            s = [jax.nn.sigmoid(t + 2.0)
                 for t in _mix(h, sd["w2_scale"], sd["b2_scale"])]
            z2 = [(z2[j] + shift[j]) * s[j] for j in range(c2)]

            # Per-channel stores into this level's own (lane-0-based) output.
            lat_ref = lat_refs[li]
            for c, slab in enumerate(z1 + z2):
                lat_ref[:, c * hwo:(c + 1) * hwo] = slab
            cur = low

        # ---- unconditional base flow on the lowest-frequency band ----
        sb = base_static
        hwb, c1, c2 = sb["hwo"], sb["c1"], sb["c2"]
        # imShape[0] == 1 -> channel duplication; reuse the slab (no concat).
        zc = [cur] * sb["cin"] if sb["repeat"] else [cur]
        zc = [(zc[k] + float(sb["an_bias"][k])) * float(sb["an_scale"][k])
              for k in range(sb["cin"])]
        zp = _mix(zc, sb["w_perm"])
        z1, z2 = zp[:c1], zp[c1:]
        h = [jnp.maximum(t, 0.0) for t in _mix(z1, sb["w1"], sb["b1"])]
        shift = _mix(h, sb["w2_shift"], sb["b2_shift"])
        s = [jax.nn.sigmoid(t + 2.0) for t in _mix(h, sb["w2_scale"], sb["b2_scale"])]
        z2 = [(z2[j] + shift[j]) * s[j] for j in range(c2)]

        lat = z1 + z2
        base_ref = lat_refs[n_lvl]
        for c, slab in enumerate(lat):
            base_ref[:, c * hwb:(c + 1) * hwb] = slab

        # Likelihood of the base flow (WaveletFlow.forward returns the last
        # processed flow's likelihood, i.e. the base flow's, when partial=-1):
        #   objective = log-prior + coupling log-det + folded param-only const.
        log2pi = math.log(2.0 * math.pi)
        ld = sum(jnp.sum(jnp.log(t), axis=1, keepdims=True) for t in s)
        lp = sum(jnp.sum(-0.5 * (t * t + log2pi), axis=1, keepdims=True) for t in lat)
        lik = -(lp + ld + sb["c0"]) * sb["inv"]           # bits/dim NLL, (B, 1)
        lik_ref[...] = jnp.broadcast_to(lik, lik_ref.shape)

    return kernel


# -----------------------------------------------------------------------------
# Builder: expands parameters, creates the fused pallas_call and a jitted wrapper.
# -----------------------------------------------------------------------------
def build_waveletflow(params, batch, im_shape):
    c_im, h_im, w_im = im_shape
    if c_im != 1:
        # TODO(synk): im_channels > 1 needs per-channel Haar band interleaving
        # matching the reference Dwt; test config uses imShape[0] = 1.
        raise NotImplementedError("fused kernel currently supports im_channels == 1")

    n_levels = params["n_levels"]
    base_level = params["base_level"]

    mats, level_static, shapes = [], [], []
    h_cur, w_cur = h_im, w_im
    for level in range(n_levels, base_level, -1):
        m, sd = _expand_cond_level(params["flows"][level], params["cond"][level],
                                   h_cur, w_cur)
        mats += m
        level_static.append(sd)
        h_cur //= 2
        w_cur //= 2
        shapes.append((sd["cin"], h_cur, w_cur))

    hwb = h_cur * w_cur
    base_static = _expand_base(params["flows"][base_level], hwb, repeat=(c_im == 1))
    shapes.append((base_static["cin"], h_cur, w_cur))

    kernel = _make_fused_kernel(level_static, base_static)

    out_shape = tuple(jax.ShapeDtypeStruct((batch, c * h * w), jnp.float32)
                      for (c, h, w) in shapes)
    out_shape = out_shape + (jax.ShapeDtypeStruct((batch, 128), jnp.float32),)

    fused = pl.pallas_call(
        kernel,
        out_shape=out_shape,
        compiler_params=pltpu.CompilerParams(vmem_limit_bytes=32 * 1024 * 1024),
    )

    def forward(x, ops):
        outs = fused(x.reshape(batch, c_im * h_im * w_im), *ops)
        latents = [outs[i].reshape(batch, c, h, w)
                   for i, (c, h, w) in enumerate(shapes)]
        return {"latent": latents, "likelihood": outs[-1][:, 0]}

    return jax.jit(forward), mats


# -----------------------------------------------------------------------------
# Deterministic synthetic parameters (same structure as the previous version).
# -----------------------------------------------------------------------------
def init_glow_params(key, cin, ccond, hid=16):
    c1 = cin // 2
    c2 = cin - c1
    ks = jax.random.split(key, 6)
    w_perm, _ = jnp.linalg.qr(jax.random.normal(ks[2], (cin, cin), jnp.float32))
    _, slogdet_w = jnp.linalg.slogdet(w_perm)
    return {
        "an_bias": 0.10 * jax.random.normal(ks[0], (1, cin), jnp.float32),
        "an_logs": 0.05 * jax.random.normal(ks[1], (1, cin), jnp.float32),
        "w_perm": w_perm.astype(jnp.float32),
        "slogdet_w": slogdet_w.astype(jnp.float32),
        "w1z": 0.3 * jax.random.normal(ks[3], (c1, hid), jnp.float32) / math.sqrt(max(c1, 1)),
        "w1c": 0.3 * jax.random.normal(ks[4], (ccond, hid), jnp.float32) / math.sqrt(max(ccond, 1)),
        "b1": jnp.zeros((1, hid), jnp.float32),
        "w2_shift": 0.3 * jax.random.normal(ks[5], (hid, c2), jnp.float32) / math.sqrt(hid),
        "b2_shift": jnp.zeros((1, c2), jnp.float32),
        "w2_scale": 0.3 * jax.random.normal(jax.random.fold_in(key, 7),
                                            (hid, c2), jnp.float32) / math.sqrt(hid),
        "b2_scale": jnp.zeros((1, c2), jnp.float32),
    }


def init_cond_params(key, cin, ccond):
    return {
        "w": 0.3 * jax.random.normal(key, (9 * cin, ccond), jnp.float32) / math.sqrt(9 * cin),
        "b": jnp.zeros((1, ccond), jnp.float32),
    }


# -----------------------------------------------------------------------------
if __name__ == "__main__":
    B, C, H, W = 2, 1, 16, 16          # cf.imShape = (1, 16, 16)
    n_levels, base_level = 4, 1        # cf.nLevels = 4, cf.baseLevel = 1
    cond_channels = 8

    key = jax.random.PRNGKey(0)
    x = jax.random.normal(jax.random.fold_in(key, 123), (B, C, H, W), jnp.float32)

    flows, conds = {}, {}
    keys = jax.random.split(key, 2 * (n_levels + 1) + 2)
    ki = 0
    for level in range(base_level + 1, n_levels + 1):
        flows[level] = init_glow_params(keys[ki], cin=3 * C, ccond=cond_channels)
        ki += 1
        conds[level] = init_cond_params(keys[ki], cin=C, ccond=cond_channels)
        ki += 1
    base_cin = 2 * C if C == 1 else C
    flows[base_level] = init_glow_params(keys[ki], cin=base_cin, ccond=1)

    params = {
        "n_levels": n_levels,
        "base_level": base_level,
        "im_channels": C,
        "flows": flows,
        "cond": conds,
    }

    forward, operands = build_waveletflow(params, batch=B, im_shape=(C, H, W))
    out = forward(x, operands)
    jax.block_until_ready(out)

    assert len(out["latent"]) == n_levels - base_level + 1
    assert out["latent"][0].shape == (B, 3 * C, 8, 8)
    assert out["latent"][-1].shape == (B, base_cin, 2, 2)
    assert out["likelihood"].shape == (B,)
    assert bool(jnp.all(jnp.isfinite(out["likelihood"])))
    assert all(bool(jnp.all(jnp.isfinite(l))) for l in out["latent"])
    print("KERNEL_OK")
</pallas_src>

<mosaic_0001>
module attributes {stable_mosaic.version = 11 : i64} {
  func.func @kernel(%arg0: memref<2x256xf32, #tpu.memory_space<vmem>>, %arg1: memref<256x64xbf16, #tpu.memory_space<vmem>>, %arg2: memref<256x64xbf16, #tpu.memory_space<vmem>>, %arg3: memref<256x64xbf16, #tpu.memory_space<vmem>>, %arg4: memref<256x64xbf16, #tpu.memory_space<vmem>>, %arg5: memref<64x512xbf16, #tpu.memory_space<vmem>>, %arg6: memref<64x16xbf16, #tpu.memory_space<vmem>>, %arg7: memref<64x16xbf16, #tpu.memory_space<vmem>>, %arg8: memref<64x16xbf16, #tpu.memory_space<vmem>>, %arg9: memref<64x16xbf16, #tpu.memory_space<vmem>>, %arg10: memref<16x128xbf16, #tpu.memory_space<vmem>>, %arg11: memref<16x4xbf16, #tpu.memory_space<vmem>>, %arg12: memref<16x4xbf16, #tpu.memory_space<vmem>>, %arg13: memref<16x4xbf16, #tpu.memory_space<vmem>>, %arg14: memref<16x4xbf16, #tpu.memory_space<vmem>>, %arg15: memref<4x32xbf16, #tpu.memory_space<vmem>>, %arg16: memref<2x192xf32, #tpu.memory_space<vmem>>, %arg17: memref<2x48xf32, #tpu.memory_space<vmem>>, %arg18: memref<2x12xf32, #tpu.memory_space<vmem>>, %arg19: memref<2x8xf32, #tpu.memory_space<vmem>>, %arg20: memref<2x128xf32, #tpu.memory_space<vmem>>) attributes {dimension_semantics = [], scalar_prefetch = 0 : i64, scratch_operands = 0 : i64, tpu.core_type = #tpu.core_type<tc>} {
    %c0 = arith.constant 0 : index
    %c0_0 = arith.constant 0 : index
    %0 = vector.load %arg0[%c0, %c0_0] : memref<2x256xf32, #tpu.memory_space<vmem>>, vector<2x256xf32>
    %1 = arith.truncf %0 : vector<2x256xf32> to vector<2x256xbf16>
    %c0_1 = arith.constant 0 : index
    %c0_2 = arith.constant 0 : index
    %2 = vector.load %arg1[%c0_1, %c0_2] : memref<256x64xbf16, #tpu.memory_space<vmem>>, vector<256x64xbf16>
    %cst = arith.constant dense<0.000000e+00> : vector<2x64xf32>
    %3 = tpu.matmul %1, %2, %cst {dimension_numbers = #tpu.dot_dimension_numbers<[1], [0], [0], [1], [0, 0, 1, 1], [], []>} : vector<2x256xbf16>, vector<256x64xbf16>, vector<2x64xf32> -> vector<2x64xf32>
    %c0_3 = arith.constant 0 : index
    %c0_4 = arith.constant 0 : index
    %4 = vector.load %arg2[%c0_3, %c0_4] : memref<256x64xbf16, #tpu.memory_space<vmem>>, vector<256x64xbf16>
    %cst_5 = arith.constant dense<0.000000e+00> : vector<2x64xf32>
    %5 = tpu.matmul %1, %4, %cst_5 {dimension_numbers = #tpu.dot_dimension_numbers<[1], [0], [0], [1], [0, 0, 1, 1], [], []>} : vector<2x256xbf16>, vector<256x64xbf16>, vector<2x64xf32> -> vector<2x64xf32>
    %c0_6 = arith.constant 0 : index
    %c0_7 = arith.constant 0 : index
    %6 = vector.load %arg3[%c0_6, %c0_7] : memref<256x64xbf16, #tpu.memory_space<vmem>>, vector<256x64xbf16>
    %cst_8 = arith.constant dense<0.000000e+00> : vector<2x64xf32>
    %7 = tpu.matmul %1, %6, %cst_8 {dimension_numbers = #tpu.dot_dimension_numbers<[1], [0], [0], [1], [0, 0, 1, 1], [], []>} : vector<2x256xbf16>, vector<256x64xbf16>, vector<2x64xf32> -> vector<2x64xf32>
    %c0_9 = arith.constant 0 : index
    %c0_10 = arith.constant 0 : index
    %8 = vector.load %arg4[%c0_9, %c0_10] : memref<256x64xbf16, #tpu.memory_space<vmem>>, vector<256x64xbf16>
    %cst_11 = arith.constant dense<0.000000e+00> : vector<2x64xf32>
    %9 = tpu.matmul %1, %8, %cst_11 {dimension_numbers = #tpu.dot_dimension_numbers<[1], [0], [0], [1], [0, 0, 1, 1], [], []>} : vector<2x256xbf16>, vector<256x64xbf16>, vector<2x64xf32> -> vector<2x64xf32>
    %cst_12 = arith.constant 0.0865561142 : f32
    %10 = vector.broadcast %cst_12 : f32 to vector<2x64xf32>
    %11 = arith.addf %5, %10 : vector<2x64xf32>
    %cst_13 = arith.constant 1.01399958 : f32
    %12 = vector.broadcast %cst_13 : f32 to vector<2x64xf32>
    %13 = arith.mulf %11, %12 : vector<2x64xf32>
    %cst_14 = arith.constant -0.127533719 : f32
    %14 = vector.broadcast %cst_14 : f32 to vector<2x64xf32>
    %15 = arith.addf %7, %14 : vector<2x64xf32>
    %cst_15 = arith.constant 1.0314256 : f32
    %16 = vector.broadcast %cst_15 : f32 to vector<2x64xf32>
    %17 = arith.mulf %15, %16 : vector<2x64xf32>
    %cst_16 = arith.constant -0.0245362502 : f32
    %18 = vector.broadcast %cst_16 : f32 to vector<2x64xf32>
    %19 = arith.addf %9, %18 : vector<2x64xf32>
    %cst_17 = arith.constant 0.9406991 : f32
    %20 = vector.broadcast %cst_17 : f32 to vector<2x64xf32>
    %21 = arith.mulf %19, %20 : vector<2x64xf32>
    %cst_18 = arith.constant -0.818237543 : f32
    %22 = vector.broadcast %cst_18 : f32 to vector<2x64xf32>
    %23 = arith.mulf %13, %22 : vector<2x64xf32>
    %cst_19 = arith.constant -4.29026171E-4 : f32
    %24 = vector.broadcast %cst_19 : f32 to vector<2x64xf32>
    %25 = arith.mulf %17, %24 : vector<2x64xf32>
    %26 = arith.addf %23, %25 : vector<2x64xf32>
    %cst_20 = arith.constant -0.574880064 : f32
    %27 = vector.broadcast %cst_20 : f32 to vector<2x64xf32>
    %28 = arith.mulf %21, %27 : vector<2x64xf32>
    %29 = arith.addf %26, %28 : vector<2x64xf32>
    %cst_21 = arith.constant 0.41967994 : f32
    %30 = vector.broadcast %cst_21 : f32 to vector<2x64xf32>
    %31 = arith.mulf %13, %30 : vector<2x64xf32>
    %cst_22 = arith.constant -0.683860361 : f32
    %32 = vector.broadcast %cst_22 : f32 to vector<2x64xf32>
    %33 = arith.mulf %17, %32 : vector<2x64xf32>
    %34 = arith.addf %31, %33 : vector<2x64xf32>
    %cst_23 = arith.constant -0.596828043 : f32
    %35 = vector.broadcast %cst_23 : f32 to vector<2x64xf32>
    %36 = arith.mulf %21, %35 : vector<2x64xf32>
    %37 = arith.addf %34, %36 : vector<2x64xf32>
    %cst_24 = arith.constant -0.392881602 : f32
    %38 = vector.broadcast %cst_24 : f32 to vector<2x64xf32>
    %39 = arith.mulf %13, %38 : vector<2x64xf32>
    %cst_25 = arith.constant -0.729612767 : f32
    %40 = vector.broadcast %cst_25 : f32 to vector<2x64xf32>
    %41 = arith.mulf %17, %40 : vector<2x64xf32>
    %42 = arith.addf %39, %41 : vector<2x64xf32>
    %cst_26 = arith.constant 0.559740365 : f32
    %43 = vector.broadcast %cst_26 : f32 to vector<2x64xf32>
    %44 = arith.mulf %21, %43 : vector<2x64xf32>
    %45 = arith.addf %42, %44 : vector<2x64xf32>
    %46 = arith.truncf %3 : vector<2x64xf32> to vector<2x64xbf16>
    %c0_27 = arith.constant 0 : index
    %c0_28 = arith.constant 0 : index
    %47 = vector.load %arg5[%c0_27, %c0_28] : memref<64x512xbf16, #tpu.memory_space<vmem>>, vector<64x512xbf16>
    %cst_29 = arith.constant dense<0.000000e+00> : vector<2x512xf32>
    %48 = tpu.matmul %46, %47, %cst_29 {dimension_numbers = #tpu.dot_dimension_numbers<[1], [0], [0], [1], [0, 0, 1, 1], [], []>} : vector<2x64xbf16>, vector<64x512xbf16>, vector<2x512xf32> -> vector<2x512xf32>
    %49 = vector.extract_strided_slice %48 {offsets = [0, 0], sizes = [2, 64], strides = [1, 1]} : vector<2x512xf32> to vector<2x64xf32>
    %cst_30 = arith.constant 0.000000e+00 : f32
    %50 = vector.broadcast %cst_30 : f32 to vector<2x64xf32>
    %51 = arith.addf %49, %50 : vector<2x64xf32>
    %cst_31 = arith.constant 0.000000e+00 : f32
    %52 = vector.broadcast %cst_31 : f32 to vector<2x64xf32>
    %53 = arith.maximumf %51, %52 : vector<2x64xf32>
    %54 = vector.extract_strided_slice %48 {offsets = [0, 64], sizes = [2, 64], strides = [1, 1]} : vector<2x512xf32> to vector<2x64xf32>
    %cst_32 = arith.constant 0.000000e+00 : f32
    %55 = vector.broadcast %cst_32 : f32 to vector<2x64xf32>
    %56 = arith.addf %54, %55 : vector<2x64xf32>
    %cst_33 = arith.constant 0.000000e+00 : f32
    %57 = vector.broadcast %cst_33 : f32 to vector<2x64xf32>
    %58 = arith.maximumf %56, %57 : vector<2x64xf32>
    %59 = vector.extract_strided_slice %48 {offsets = [0, 128], sizes = [2, 64], strides = [1, 1]} : vector<2x512xf32> to vector<2x64xf32>
    %cst_34 = arith.constant 0.000000e+00 : f32
    %60 = vector.broadcast %cst_34 : f32 to vector<2x64xf32>
    %61 = arith.addf %59, %60 : vector<2x64xf32>
    %cst_35 = arith.constant 0.000000e+00 : f32
    %62 = vector.broadcast %cst_35 : f32 to vector<2x64xf32>
    %63 = arith.maximumf %61, %62 : vector<2x64xf32>
    %64 = vector.extract_strided_slice %48 {offsets = [0, 192], sizes = [2, 64], strides = [1, 1]} : vector<2x512xf32> to vector<2x64xf32>
    %cst_36 = arith.constant 0.000000e+00 : f32
    %65 = vector.broadcast %cst_36 : f32 to vector<2x64xf32>
    %66 = arith.addf %64, %65 : vector<2x64xf32>
    %cst_37 = arith.constant 0.000000e+00 : f32
    %67 = vector.broadcast %cst_37 : f32 to vector<2x64xf32>
    %68 = arith.maximumf %66, %67 : vector<2x64xf32>
    %69 = vector.extract_strided_slice %48 {offsets = [0, 256], sizes = [2, 64], strides = [1, 1]} : vector<2x512xf32> to vector<2x64xf32>
    %cst_38 = arith.constant 0.000000e+00 : f32
    %70 = vector.broadcast %cst_38 : f32 to vector<2x64xf32>
    %71 = arith.addf %69, %70 : vector<2x64xf32>
    %cst_39 = arith.constant 0.000000e+00 : f32
    %72 = vector.broadcast %cst_39 : f32 to vector<2x64xf32>
    %73 = arith.maximumf %71, %72 : vector<2x64xf32>
    %74 = vector.extract_strided_slice %48 {offsets = [0, 320], sizes = [2, 64], strides = [1, 1]} : vector<2x512xf32> to vector<2x64xf32>
    %cst_40 = arith.constant 0.000000e+00 : f32
    %75 = vector.broadcast %cst_40 : f32 to vector<2x64xf32>
    %76 = arith.addf %74, %75 : vector<2x64xf32>
    %cst_41 = arith.constant 0.000000e+00 : f32
    %77 = vector.broadcast %cst_41 : f32 to vector<2x64xf32>
    %78 = arith.maximumf %76, %77 : vector<2x64xf32>
    %79 = vector.extract_strided_slice %48 {offsets = [0, 384], sizes = [2, 64], strides = [1, 1]} : vector<2x512xf32> to vector<2x64xf32>
    %cst_42 = arith.constant 0.000000e+00 : f32
    %80 = vector.broadcast %cst_42 : f32 to vector<2x64xf32>
    %81 = arith.addf %79, %80 : vector<2x64xf32>
    %cst_43 = arith.constant 0.000000e+00 : f32
    %82 = vector.broadcast %cst_43 : f32 to vector<2x64xf32>
    %83 = arith.maximumf %81, %82 : vector<2x64xf32>
    %84 = vector.extract_strided_slice %48 {offsets = [0, 448], sizes = [2, 64], strides = [1, 1]} : vector<2x512xf32> to vector<2x64xf32>
    %cst_44 = arith.constant 0.000000e+00 : f32
    %85 = vector.broadcast %cst_44 : f32 to vector<2x64xf32>
    %86 = arith.addf %84, %85 : vector<2x64xf32>
    %cst_45 = arith.constant 0.000000e+00 : f32
    %87 = vector.broadcast %cst_45 : f32 to vector<2x64xf32>
    %88 = arith.maximumf %86, %87 : vector<2x64xf32>
    %cst_46 = arith.constant 0.0852698609 : f32
    %89 = vector.broadcast %cst_46 : f32 to vector<2x64xf32>
    %90 = arith.mulf %29, %89 : vector<2x64xf32>
    %cst_47 = arith.constant -0.0782516896 : f32
    %91 = vector.broadcast %cst_47 : f32 to vector<2x64xf32>
    %92 = arith.mulf %53, %91 : vector<2x64xf32>
    %93 = arith.addf %90, %92 : vector<2x64xf32>
    %cst_48 = arith.constant -0.0685374364 : f32
    %94 = vector.broadcast %cst_48 : f32 to vector<2x64xf32>
    %95 = arith.mulf %58, %94 : vector<2x64xf32>
    %96 = arith.addf %93, %95 : vector<2x64xf32>
    %cst_49 = arith.constant 0.0913289487 : f32
    %97 = vector.broadcast %cst_49 : f32 to vector<2x64xf32>
    %98 = arith.mulf %63, %97 : vector<2x64xf32>
    %99 = arith.addf %96, %98 : vector<2x64xf32>
    %cst_50 = arith.constant 0.0336821713 : f32
    %100 = vector.broadcast %cst_50 : f32 to vector<2x64xf32>
    %101 = arith.mulf %68, %100 : vector<2x64xf32>
    %102 = arith.addf %99, %101 : vector<2x64xf32>
    %cst_51 = arith.constant -0.156694904 : f32
    %103 = vector.broadcast %cst_51 : f32 to vector<2x64xf32>
    %104 = arith.mulf %73, %103 : vector<2x64xf32>
    %105 = arith.addf %102, %104 : vector<2x64xf32>
    %cst_52 = arith.constant -0.0550852939 : f32
    %106 = vector.broadcast %cst_52 : f32 to vector<2x64xf32>
    %107 = arith.mulf %78, %106 : vector<2x64xf32>
    %108 = arith.addf %105, %107 : vector<2x64xf32>
    %cst_53 = arith.constant -0.0415868238 : f32
    %109 = vector.broadcast %cst_53 : f32 to vector<2x64xf32>
    %110 = arith.mulf %83, %109 : vector<2x64xf32>
    %111 = arith.addf %108, %110 : vector<2x64xf32>
    %cst_54 = arith.constant 0.03035409 : f32
    %112 = vector.broadcast %cst_54 : f32 to vector<2x64xf32>
    %113 = arith.mulf %88, %112 : vector<2x64xf32>
    %114 = arith.addf %111, %113 : vector<2x64xf32>
    %cst_55 = arith.constant 0.151102737 : f32
    %115 = vector.broadcast %cst_55 : f32 to vector<2x64xf32>
    %116 = arith.mulf %29, %115 : vector<2x64xf32>
    %cst_56 = arith.constant -0.0748654082 : f32
    %117 = vector.broadcast %cst_56 : f32 to vector<2x64xf32>
    %118 = arith.mulf %53, %117 : vector<2x64xf32>
    %119 = arith.addf %116, %118 : vector<2x64xf32>
    %cst_57 = arith.constant 0.084456183 : f32
    %120 = vector.broadcast %cst_57 : f32 to vector<2x64xf32>
    %121 = arith.mulf %58, %120 : vector<2x64xf32>
    %122 = arith.addf %119, %121 : vector<2x64xf32>
    %cst_58 = arith.constant -0.0384845473 : f32
    %123 = vector.broadcast %cst_58 : f32 to vector<2x64xf32>
    %124 = arith.mulf %63, %123 : vector<2x64xf32>
    %125 = arith.addf %122, %124 : vector<2x64xf32>
    %cst_59 = arith.constant -0.19087033 : f32
    %126 = vector.broadcast %cst_59 : f32 to vector<2x64xf32>
    %127 = arith.mulf %68, %126 : vector<2x64xf32>
    %128 = arith.addf %125, %127 : vector<2x64xf32>
    %cst_60 = arith.constant 0.0873722434 : f32
    %129 = vector.broadcast %cst_60 : f32 to vector<2x64xf32>
    %130 = arith.mulf %73, %129 : vector<2x64xf32>
    %131 = arith.addf %128, %130 : vector<2x64xf32>
    %cst_61 = arith.constant -0.00750811864 : f32
    %132 = vector.broadcast %cst_61 : f32 to vector<2x64xf32>
    %133 = arith.mulf %78, %132 : vector<2x64xf32>
    %134 = arith.addf %131, %133 : vector<2x64xf32>
    %cst_62 = arith.constant -0.0960073396 : f32
    %135 = vector.broadcast %cst_62 : f32 to vector<2x64xf32>
    %136 = arith.mulf %83, %135 : vector<2x64xf32>
    %137 = arith.addf %134, %136 : vector<2x64xf32>
    %cst_63 = arith.constant -0.0739762932 : f32
    %138 = vector.broadcast %cst_63 : f32 to vector<2x64xf32>
    %139 = arith.mulf %88, %138 : vector<2x64xf32>
    %140 = arith.addf %137, %139 : vector<2x64xf32>
    %cst_64 = arith.constant -0.180212423 : f32
    %141 = vector.broadcast %cst_64 : f32 to vector<2x64xf32>
    %142 = arith.mulf %29, %141 : vector<2x64xf32>
    %cst_65 = arith.constant -0.0388769694 : f32
    %143 = vector.broadcast %cst_65 : f32 to vector<2x64xf32>
    %144 = arith.mulf %53, %143 : vector<2x64xf32>
    %145 = arith.addf %142, %144 : vector<2x64xf32>
    %cst_66 = arith.constant 0.191967458 : f32
    %146 = vector.broadcast %cst_66 : f32 to vector<2x64xf32>
    %147 = arith.mulf %58, %146 : vector<2x64xf32>
    %148 = arith.addf %145, %147 : vector<2x64xf32>
    %cst_67 = arith.constant -0.0600547977 : f32
    %149 = vector.broadcast %cst_67 : f32 to vector<2x64xf32>
    %150 = arith.mulf %63, %149 : vector<2x64xf32>
    %151 = arith.addf %148, %150 : vector<2x64xf32>
    %cst_68 = arith.constant -0.0412235186 : f32
    %152 = vector.broadcast %cst_68 : f32 to vector<2x64xf32>
    %153 = arith.mulf %68, %152 : vector<2x64xf32>
    %154 = arith.addf %151, %153 : vector<2x64xf32>
    %cst_69 = arith.constant -0.104735531 : f32
    %155 = vector.broadcast %cst_69 : f32 to vector<2x64xf32>
    %156 = arith.mulf %73, %155 : vector<2x64xf32>
    %157 = arith.addf %154, %156 : vector<2x64xf32>
    %cst_70 = arith.constant -0.075805746 : f32
    %158 = vector.broadcast %cst_70 : f32 to vector<2x64xf32>
    %159 = arith.mulf %78, %158 : vector<2x64xf32>
    %160 = arith.addf %157, %159 : vector<2x64xf32>
    %cst_71 = arith.constant -1.613550e-01 : f32
    %161 = vector.broadcast %cst_71 : f32 to vector<2x64xf32>
    %162 = arith.mulf %83, %161 : vector<2x64xf32>
    %163 = arith.addf %160, %162 : vector<2x64xf32>
    %cst_72 = arith.constant -0.0319430269 : f32
    %164 = vector.broadcast %cst_72 : f32 to vector<2x64xf32>
    %165 = arith.mulf %88, %164 : vector<2x64xf32>
    %166 = arith.addf %163, %165 : vector<2x64xf32>
    %cst_73 = arith.constant -0.636637151 : f32
    %167 = vector.broadcast %cst_73 : f32 to vector<2x64xf32>
    %168 = arith.mulf %29, %167 : vector<2x64xf32>
    %cst_74 = arith.constant 0.183220804 : f32
    %169 = vector.broadcast %cst_74 : f32 to vector<2x64xf32>
    %170 = arith.mulf %53, %169 : vector<2x64xf32>
    %171 = arith.addf %168, %170 : vector<2x64xf32>
    %cst_75 = arith.constant -0.0802559927 : f32
    %172 = vector.broadcast %cst_75 : f32 to vector<2x64xf32>
    %173 = arith.mulf %58, %172 : vector<2x64xf32>
    %174 = arith.addf %171, %173 : vector<2x64xf32>
    %cst_76 = arith.constant -1.282100e-01 : f32
    %175 = vector.broadcast %cst_76 : f32 to vector<2x64xf32>
    %176 = arith.mulf %63, %175 : vector<2x64xf32>
    %177 = arith.addf %174, %176 : vector<2x64xf32>
    %cst_77 = arith.constant -0.280636281 : f32
    %178 = vector.broadcast %cst_77 : f32 to vector<2x64xf32>
    %179 = arith.mulf %68, %178 : vector<2x64xf32>
    %180 = arith.addf %177, %179 : vector<2x64xf32>
    %cst_78 = arith.constant 0.150951564 : f32
    %181 = vector.broadcast %cst_78 : f32 to vector<2x64xf32>
    %182 = arith.mulf %73, %181 : vector<2x64xf32>
    %183 = arith.addf %180, %182 : vector<2x64xf32>
    %cst_79 = arith.constant -0.0729851946 : f32
    %184 = vector.broadcast %cst_79 : f32 to vector<2x64xf32>
    %185 = arith.mulf %78, %184 : vector<2x64xf32>
    %186 = arith.addf %183, %185 : vector<2x64xf32>
    %cst_80 = arith.constant -0.146572381 : f32
    %187 = vector.broadcast %cst_80 : f32 to vector<2x64xf32>
    %188 = arith.mulf %83, %187 : vector<2x64xf32>
    %189 = arith.addf %186, %188 : vector<2x64xf32>
    %cst_81 = arith.constant 0.00671479664 : f32
    %190 = vector.broadcast %cst_81 : f32 to vector<2x64xf32>
    %191 = arith.mulf %88, %190 : vector<2x64xf32>
    %192 = arith.addf %189, %191 : vector<2x64xf32>
    %cst_82 = arith.constant -0.187144339 : f32
    %193 = vector.broadcast %cst_82 : f32 to vector<2x64xf32>
    %194 = arith.mulf %29, %193 : vector<2x64xf32>
    %cst_83 = arith.constant -0.0600014254 : f32
    %195 = vector.broadcast %cst_83 : f32 to vector<2x64xf32>
    %196 = arith.mulf %53, %195 : vector<2x64xf32>
    %197 = arith.addf %194, %196 : vector<2x64xf32>
    %cst_84 = arith.constant 0.049400948 : f32
    %198 = vector.broadcast %cst_84 : f32 to vector<2x64xf32>
    %199 = arith.mulf %58, %198 : vector<2x64xf32>
    %200 = arith.addf %197, %199 : vector<2x64xf32>
    %cst_85 = arith.constant -0.0473855287 : f32
    %201 = vector.broadcast %cst_85 : f32 to vector<2x64xf32>
    %202 = arith.mulf %63, %201 : vector<2x64xf32>
    %203 = arith.addf %200, %202 : vector<2x64xf32>
    %cst_86 = arith.constant -0.0815130472 : f32
    %204 = vector.broadcast %cst_86 : f32 to vector<2x64xf32>
    %205 = arith.mulf %68, %204 : vector<2x64xf32>
    %206 = arith.addf %203, %205 : vector<2x64xf32>
    %cst_87 = arith.constant -0.156391054 : f32
    %207 = vector.broadcast %cst_87 : f32 to vector<2x64xf32>
    %208 = arith.mulf %73, %207 : vector<2x64xf32>
    %209 = arith.addf %206, %208 : vector<2x64xf32>
    %cst_88 = arith.constant -0.050115265 : f32
    %210 = vector.broadcast %cst_88 : f32 to vector<2x64xf32>
    %211 = arith.mulf %78, %210 : vector<2x64xf32>
    %212 = arith.addf %209, %211 : vector<2x64xf32>
    %cst_89 = arith.constant -0.0308754779 : f32
    %213 = vector.broadcast %cst_89 : f32 to vector<2x64xf32>
    %214 = arith.mulf %83, %213 : vector<2x64xf32>
    %215 = arith.addf %212, %214 : vector<2x64xf32>
    %cst_90 = arith.constant -0.0437592156 : f32
    %216 = vector.broadcast %cst_90 : f32 to vector<2x64xf32>
    %217 = arith.mulf %88, %216 : vector<2x64xf32>
    %218 = arith.addf %215, %217 : vector<2x64xf32>
    %cst_91 = arith.constant 0.153191224 : f32
    %219 = vector.broadcast %cst_91 : f32 to vector<2x64xf32>
    %220 = arith.mulf %29, %219 : vector<2x64xf32>
    %cst_92 = arith.constant 0.122483641 : f32
    %221 = vector.broadcast %cst_92 : f32 to vector<2x64xf32>
    %222 = arith.mulf %53, %221 : vector<2x64xf32>
    %223 = arith.addf %220, %222 : vector<2x64xf32>
    %cst_93 = arith.constant -0.179674983 : f32
    %224 = vector.broadcast %cst_93 : f32 to vector<2x64xf32>
    %225 = arith.mulf %58, %224 : vector<2x64xf32>
    %226 = arith.addf %223, %225 : vector<2x64xf32>
    %cst_94 = arith.constant 0.0132104596 : f32
    %227 = vector.broadcast %cst_94 : f32 to vector<2x64xf32>
    %228 = arith.mulf %63, %227 : vector<2x64xf32>
    %229 = arith.addf %226, %228 : vector<2x64xf32>
    %cst_95 = arith.constant 0.170180857 : f32
    %230 = vector.broadcast %cst_95 : f32 to vector<2x64xf32>
    %231 = arith.mulf %68, %230 : vector<2x64xf32>
    %232 = arith.addf %229, %231 : vector<2x64xf32>
    %cst_96 = arith.constant -0.119944051 : f32
    %233 = vector.broadcast %cst_96 : f32 to vector<2x64xf32>
    %234 = arith.mulf %73, %233 : vector<2x64xf32>
    %235 = arith.addf %232, %234 : vector<2x64xf32>
    %cst_97 = arith.constant -0.0320556387 : f32
    %236 = vector.broadcast %cst_97 : f32 to vector<2x64xf32>
    %237 = arith.mulf %78, %236 : vector<2x64xf32>
    %238 = arith.addf %235, %237 : vector<2x64xf32>
    %cst_98 = arith.constant -0.0661537051 : f32
    %239 = vector.broadcast %cst_98 : f32 to vector<2x64xf32>
    %240 = arith.mulf %83, %239 : vector<2x64xf32>
    %241 = arith.addf %238, %240 : vector<2x64xf32>
    %cst_99 = arith.constant 0.126052782 : f32
    %242 = vector.broadcast %cst_99 : f32 to vector<2x64xf32>
    %243 = arith.mulf %88, %242 : vector<2x64xf32>
    %244 = arith.addf %241, %243 : vector<2x64xf32>
    %cst_100 = arith.constant 0.250100076 : f32
    %245 = vector.broadcast %cst_100 : f32 to vector<2x64xf32>
    %246 = arith.mulf %29, %245 : vector<2x64xf32>
    %cst_101 = arith.constant 0.081234999 : f32
    %247 = vector.broadcast %cst_101 : f32 to vector<2x64xf32>
    %248 = arith.mulf %53, %247 : vector<2x64xf32>
    %249 = arith.addf %246, %248 : vector<2x64xf32>
    %cst_102 = arith.constant 0.0424329489 : f32
    %250 = vector.broadcast %cst_102 : f32 to vector<2x64xf32>
    %251 = arith.mulf %58, %250 : vector<2x64xf32>
    %252 = arith.addf %249, %251 : vector<2x64xf32>
    %cst_103 = arith.constant 0.100236364 : f32
    %253 = vector.broadcast %cst_103 : f32 to vector<2x64xf32>
    %254 = arith.mulf %63, %253 : vector<2x64xf32>
    %255 = arith.addf %252, %254 : vector<2x64xf32>
    %cst_104 = arith.constant -0.141014367 : f32
    %256 = vector.broadcast %cst_104 : f32 to vector<2x64xf32>
    %257 = arith.mulf %68, %256 : vector<2x64xf32>
    %258 = arith.addf %255, %257 : vector<2x64xf32>
    %cst_105 = arith.constant -0.127589583 : f32
    %259 = vector.broadcast %cst_105 : f32 to vector<2x64xf32>
    %260 = arith.mulf %73, %259 : vector<2x64xf32>
    %261 = arith.addf %258, %260 : vector<2x64xf32>
    %cst_106 = arith.constant -0.0808589681 : f32
    %262 = vector.broadcast %cst_106 : f32 to vector<2x64xf32>
    %263 = arith.mulf %78, %262 : vector<2x64xf32>
    %264 = arith.addf %261, %263 : vector<2x64xf32>
    %cst_107 = arith.constant 0.0511857718 : f32
    %265 = vector.broadcast %cst_107 : f32 to vector<2x64xf32>
    %266 = arith.mulf %83, %265 : vector<2x64xf32>
    %267 = arith.addf %264, %266 : vector<2x64xf32>
    %cst_108 = arith.constant 0.0315979049 : f32
    %268 = vector.broadcast %cst_108 : f32 to vector<2x64xf32>
    %269 = arith.mulf %88, %268 : vector<2x64xf32>
    %270 = arith.addf %267, %269 : vector<2x64xf32>
    %cst_109 = arith.constant -0.574194729 : f32
    %271 = vector.broadcast %cst_109 : f32 to vector<2x64xf32>
    %272 = arith.mulf %29, %271 : vector<2x64xf32>
    %cst_110 = arith.constant 0.146009013 : f32
    %273 = vector.broadcast %cst_110 : f32 to vector<2x64xf32>
    %274 = arith.mulf %53, %273 : vector<2x64xf32>
    %275 = arith.addf %272, %274 : vector<2x64xf32>
    %cst_111 = arith.constant -6.405010e-02 : f32
    %276 = vector.broadcast %cst_111 : f32 to vector<2x64xf32>
    %277 = arith.mulf %58, %276 : vector<2x64xf32>
    %278 = arith.addf %275, %277 : vector<2x64xf32>
    %cst_112 = arith.constant 0.040057715 : f32
    %279 = vector.broadcast %cst_112 : f32 to vector<2x64xf32>
    %280 = arith.mulf %63, %279 : vector<2x64xf32>
    %281 = arith.addf %278, %280 : vector<2x64xf32>
    %cst_113 = arith.constant 0.0701050311 : f32
    %282 = vector.broadcast %cst_113 : f32 to vector<2x64xf32>
    %283 = arith.mulf %68, %282 : vector<2x64xf32>
    %284 = arith.addf %281, %283 : vector<2x64xf32>
    %cst_114 = arith.constant -0.113528557 : f32
    %285 = vector.broadcast %cst_114 : f32 to vector<2x64xf32>
    %286 = arith.mulf %73, %285 : vector<2x64xf32>
    %287 = arith.addf %284, %286 : vector<2x64xf32>
    %cst_115 = arith.constant 0.144892693 : f32
    %288 = vector.broadcast %cst_115 : f32 to vector<2x64xf32>
    %289 = arith.mulf %78, %288 : vector<2x64xf32>
    %290 = arith.addf %287, %289 : vector<2x64xf32>
    %cst_116 = arith.constant -0.128841817 : f32
    %291 = vector.broadcast %cst_116 : f32 to vector<2x64xf32>
    %292 = arith.mulf %83, %291 : vector<2x64xf32>
    %293 = arith.addf %290, %292 : vector<2x64xf32>
    %cst_117 = arith.constant -0.0420892201 : f32
    %294 = vector.broadcast %cst_117 : f32 to vector<2x64xf32>
    %295 = arith.mulf %88, %294 : vector<2x64xf32>
    %296 = arith.addf %293, %295 : vector<2x64xf32>
    %cst_118 = arith.constant 0.00719392579 : f32
    %297 = vector.broadcast %cst_118 : f32 to vector<2x64xf32>
    %298 = arith.mulf %29, %297 : vector<2x64xf32>
    %cst_119 = arith.constant 0.106170833 : f32
    %299 = vector.broadcast %cst_119 : f32 to vector<2x64xf32>
    %300 = arith.mulf %53, %299 : vector<2x64xf32>
    %301 = arith.addf %298, %300 : vector<2x64xf32>
    %cst_120 = arith.constant -0.0402147919 : f32
    %302 = vector.broadcast %cst_120 : f32 to vector<2x64xf32>
    %303 = arith.mulf %58, %302 : vector<2x64xf32>
    %304 = arith.addf %301, %303 : vector<2x64xf32>
    %cst_121 = arith.constant 0.136437356 : f32
    %305 = vector.broadcast %cst_121 : f32 to vector<2x64xf32>
    %306 = arith.mulf %63, %305 : vector<2x64xf32>
    %307 = arith.addf %304, %306 : vector<2x64xf32>
    %cst_122 = arith.constant -0.0740561411 : f32
    %308 = vector.broadcast %cst_122 : f32 to vector<2x64xf32>
    %309 = arith.mulf %68, %308 : vector<2x64xf32>
    %310 = arith.addf %307, %309 : vector<2x64xf32>
    %cst_123 = arith.constant 0.0796826854 : f32
    %311 = vector.broadcast %cst_123 : f32 to vector<2x64xf32>
    %312 = arith.mulf %73, %311 : vector<2x64xf32>
    %313 = arith.addf %310, %312 : vector<2x64xf32>
    %cst_124 = arith.constant 0.0621562302 : f32
    %314 = vector.broadcast %cst_124 : f32 to vector<2x64xf32>
    %315 = arith.mulf %78, %314 : vector<2x64xf32>
    %316 = arith.addf %313, %315 : vector<2x64xf32>
    %cst_125 = arith.constant 0.0257109012 : f32
    %317 = vector.broadcast %cst_125 : f32 to vector<2x64xf32>
    %318 = arith.mulf %83, %317 : vector<2x64xf32>
    %319 = arith.addf %316, %318 : vector<2x64xf32>
    %cst_126 = arith.constant 0.0644888952 : f32
    %320 = vector.broadcast %cst_126 : f32 to vector<2x64xf32>
    %321 = arith.mulf %88, %320 : vector<2x64xf32>
    %322 = arith.addf %319, %321 : vector<2x64xf32>
    %cst_127 = arith.constant 0.335782647 : f32
    %323 = vector.broadcast %cst_127 : f32 to vector<2x64xf32>
    %324 = arith.mulf %29, %323 : vector<2x64xf32>
    %cst_128 = arith.constant -0.111526854 : f32
    %325 = vector.broadcast %cst_128 : f32 to vector<2x64xf32>
    %326 = arith.mulf %53, %325 : vector<2x64xf32>
    %327 = arith.addf %324, %326 : vector<2x64xf32>
    %cst_129 = arith.constant 0.0101402225 : f32
    %328 = vector.broadcast %cst_129 : f32 to vector<2x64xf32>
    %329 = arith.mulf %58, %328 : vector<2x64xf32>
    %330 = arith.addf %327, %329 : vector<2x64xf32>
    %cst_130 = arith.constant -0.133419946 : f32
    %331 = vector.broadcast %cst_130 : f32 to vector<2x64xf32>
    %332 = arith.mulf %63, %331 : vector<2x64xf32>
    %333 = arith.addf %330, %332 : vector<2x64xf32>
    %cst_131 = arith.constant 0.2251333 : f32
    %334 = vector.broadcast %cst_131 : f32 to vector<2x64xf32>
    %335 = arith.mulf %68, %334 : vector<2x64xf32>
    %336 = arith.addf %333, %335 : vector<2x64xf32>
    %cst_132 = arith.constant 0.01041729 : f32
    %337 = vector.broadcast %cst_132 : f32 to vector<2x64xf32>
    %338 = arith.mulf %73, %337 : vector<2x64xf32>
    %339 = arith.addf %336, %338 : vector<2x64xf32>
    %cst_133 = arith.constant -0.0549040213 : f32
    %340 = vector.broadcast %cst_133 : f32 to vector<2x64xf32>
    %341 = arith.mulf %78, %340 : vector<2x64xf32>
    %342 = arith.addf %339, %341 : vector<2x64xf32>
    %cst_134 = arith.constant 0.00235604448 : f32
    %343 = vector.broadcast %cst_134 : f32 to vector<2x64xf32>
    %344 = arith.mulf %83, %343 : vector<2x64xf32>
    %345 = arith.addf %342, %344 : vector<2x64xf32>
    %cst_135 = arith.constant 0.0740582644 : f32
    %346 = vector.broadcast %cst_135 : f32 to vector<2x64xf32>
    %347 = arith.mulf %88, %346 : vector<2x64xf32>
    %348 = arith.addf %345, %347 : vector<2x64xf32>
    %cst_136 = arith.constant 0.384308279 : f32
    %349 = vector.broadcast %cst_136 : f32 to vector<2x64xf32>
    %350 = arith.mulf %29, %349 : vector<2x64xf32>
    %cst_137 = arith.constant -0.075604327 : f32
    %351 = vector.broadcast %cst_137 : f32 to vector<2x64xf32>
    %352 = arith.mulf %53, %351 : vector<2x64xf32>
    %353 = arith.addf %350, %352 : vector<2x64xf32>
    %cst_138 = arith.constant -0.00761307031 : f32
    %354 = vector.broadcast %cst_138 : f32 to vector<2x64xf32>
    %355 = arith.mulf %58, %354 : vector<2x64xf32>
    %356 = arith.addf %353, %355 : vector<2x64xf32>
    %cst_139 = arith.constant -0.105798781 : f32
    %357 = vector.broadcast %cst_139 : f32 to vector<2x64xf32>
    %358 = arith.mulf %63, %357 : vector<2x64xf32>
    %359 = arith.addf %356, %358 : vector<2x64xf32>
    %cst_140 = arith.constant 1.155660e-01 : f32
    %360 = vector.broadcast %cst_140 : f32 to vector<2x64xf32>
    %361 = arith.mulf %68, %360 : vector<2x64xf32>
    %362 = arith.addf %359, %361 : vector<2x64xf32>
    %cst_141 = arith.constant 0.0600889735 : f32
    %363 = vector.broadcast %cst_141 : f32 to vector<2x64xf32>
    %364 = arith.mulf %73, %363 : vector<2x64xf32>
    %365 = arith.addf %362, %364 : vector<2x64xf32>
    %cst_142 = arith.constant -0.0241150521 : f32
    %366 = vector.broadcast %cst_142 : f32 to vector<2x64xf32>
    %367 = arith.mulf %78, %366 : vector<2x64xf32>
    %368 = arith.addf %365, %367 : vector<2x64xf32>
    %cst_143 = arith.constant -0.0461638533 : f32
    %369 = vector.broadcast %cst_143 : f32 to vector<2x64xf32>
    %370 = arith.mulf %83, %369 : vector<2x64xf32>
    %371 = arith.addf %368, %370 : vector<2x64xf32>
    %cst_144 = arith.constant 0.0807955116 : f32
    %372 = vector.broadcast %cst_144 : f32 to vector<2x64xf32>
    %373 = arith.mulf %88, %372 : vector<2x64xf32>
    %374 = arith.addf %371, %373 : vector<2x64xf32>
    %cst_145 = arith.constant -0.285420954 : f32
    %375 = vector.broadcast %cst_145 : f32 to vector<2x64xf32>
    %376 = arith.mulf %29, %375 : vector<2x64xf32>
    %cst_146 = arith.constant 0.0343159661 : f32
    %377 = vector.broadcast %cst_146 : f32 to vector<2x64xf32>
    %378 = arith.mulf %53, %377 : vector<2x64xf32>
    %379 = arith.addf %376, %378 : vector<2x64xf32>
    %cst_147 = arith.constant -0.0858729929 : f32
    %380 = vector.broadcast %cst_147 : f32 to vector<2x64xf32>
    %381 = arith.mulf %58, %380 : vector<2x64xf32>
    %382 = arith.addf %379, %381 : vector<2x64xf32>
    %cst_148 = arith.constant 0.00399686256 : f32
    %383 = vector.broadcast %cst_148 : f32 to vector<2x64xf32>
    %384 = arith.mulf %63, %383 : vector<2x64xf32>
    %385 = arith.addf %382, %384 : vector<2x64xf32>
    %cst_149 = arith.constant -0.0925405323 : f32
    %386 = vector.broadcast %cst_149 : f32 to vector<2x64xf32>
    %387 = arith.mulf %68, %386 : vector<2x64xf32>
    %388 = arith.addf %385, %387 : vector<2x64xf32>
    %cst_150 = arith.constant -0.0438103601 : f32
    %389 = vector.broadcast %cst_150 : f32 to vector<2x64xf32>
    %390 = arith.mulf %73, %389 : vector<2x64xf32>
    %391 = arith.addf %388, %390 : vector<2x64xf32>
    %cst_151 = arith.constant -0.0256876461 : f32
    %392 = vector.broadcast %cst_151 : f32 to vector<2x64xf32>
    %393 = arith.mulf %78, %392 : vector<2x64xf32>
    %394 = arith.addf %391, %393 : vector<2x64xf32>
    %cst_152 = arith.constant 0.0298075341 : f32
    %395 = vector.broadcast %cst_152 : f32 to vector<2x64xf32>
    %396 = arith.mulf %83, %395 : vector<2x64xf32>
    %397 = arith.addf %394, %396 : vector<2x64xf32>
    %cst_153 = arith.constant -0.0110882837 : f32
    %398 = vector.broadcast %cst_153 : f32 to vector<2x64xf32>
    %399 = arith.mulf %88, %398 : vector<2x64xf32>
    %400 = arith.addf %397, %399 : vector<2x64xf32>
    %cst_154 = arith.constant 0.177840501 : f32
    %401 = vector.broadcast %cst_154 : f32 to vector<2x64xf32>
    %402 = arith.mulf %29, %401 : vector<2x64xf32>
    %cst_155 = arith.constant -0.0792729482 : f32
    %403 = vector.broadcast %cst_155 : f32 to vector<2x64xf32>
    %404 = arith.mulf %53, %403 : vector<2x64xf32>
    %405 = arith.addf %402, %404 : vector<2x64xf32>
    %cst_156 = arith.constant 0.0931109041 : f32
    %406 = vector.broadcast %cst_156 : f32 to vector<2x64xf32>
    %407 = arith.mulf %58, %406 : vector<2x64xf32>
    %408 = arith.addf %405, %407 : vector<2x64xf32>
    %cst_157 = arith.constant 0.0174825639 : f32
    %409 = vector.broadcast %cst_157 : f32 to vector<2x64xf32>
    %410 = arith.mulf %63, %409 : vector<2x64xf32>
    %411 = arith.addf %408, %410 : vector<2x64xf32>
    %cst_158 = arith.constant -0.0794437825 : f32
    %412 = vector.broadcast %cst_158 : f32 to vector<2x64xf32>
    %413 = arith.mulf %68, %412 : vector<2x64xf32>
    %414 = arith.addf %411, %413 : vector<2x64xf32>
    %cst_159 = arith.constant -0.0215827562 : f32
    %415 = vector.broadcast %cst_159 : f32 to vector<2x64xf32>
    %416 = arith.mulf %73, %415 : vector<2x64xf32>
    %417 = arith.addf %414, %416 : vector<2x64xf32>
    %cst_160 = arith.constant -0.0335220881 : f32
    %418 = vector.broadcast %cst_160 : f32 to vector<2x64xf32>
    %419 = arith.mulf %78, %418 : vector<2x64xf32>
    %420 = arith.addf %417, %419 : vector<2x64xf32>
    %cst_161 = arith.constant 0.130145252 : f32
    %421 = vector.broadcast %cst_161 : f32 to vector<2x64xf32>
    %422 = arith.mulf %83, %421 : vector<2x64xf32>
    %423 = arith.addf %420, %422 : vector<2x64xf32>
    %cst_162 = arith.constant 0.00156273437 : f32
    %424 = vector.broadcast %cst_162 : f32 to vector<2x64xf32>
    %425 = arith.mulf %88, %424 : vector<2x64xf32>
    %426 = arith.addf %423, %425 : vector<2x64xf32>
    %cst_163 = arith.constant 0.210183471 : f32
    %427 = vector.broadcast %cst_163 : f32 to vector<2x64xf32>
    %428 = arith.mulf %29, %427 : vector<2x64xf32>
    %cst_164 = arith.constant -0.0609094352 : f32
    %429 = vector.broadcast %cst_164 : f32 to vector<2x64xf32>
    %430 = arith.mulf %53, %429 : vector<2x64xf32>
    %431 = arith.addf %428, %430 : vector<2x64xf32>
    %cst_165 = arith.constant 0.08233767 : f32
    %432 = vector.broadcast %cst_165 : f32 to vector<2x64xf32>
    %433 = arith.mulf %58, %432 : vector<2x64xf32>
    %434 = arith.addf %431, %433 : vector<2x64xf32>
    %cst_166 = arith.constant 0.0783862397 : f32
    %435 = vector.broadcast %cst_166 : f32 to vector<2x64xf32>
    %436 = arith.mulf %63, %435 : vector<2x64xf32>
    %437 = arith.addf %434, %436 : vector<2x64xf32>
    %cst_167 = arith.constant -0.175006896 : f32
    %438 = vector.broadcast %cst_167 : f32 to vector<2x64xf32>
    %439 = arith.mulf %68, %438 : vector<2x64xf32>
    %440 = arith.addf %437, %439 : vector<2x64xf32>
    %cst_168 = arith.constant -0.0541262068 : f32
    %441 = vector.broadcast %cst_168 : f32 to vector<2x64xf32>
    %442 = arith.mulf %73, %441 : vector<2x64xf32>
    %443 = arith.addf %440, %442 : vector<2x64xf32>
    %cst_169 = arith.constant 0.0201218855 : f32
    %444 = vector.broadcast %cst_169 : f32 to vector<2x64xf32>
    %445 = arith.mulf %78, %444 : vector<2x64xf32>
    %446 = arith.addf %443, %445 : vector<2x64xf32>
    %cst_170 = arith.constant 0.0492802709 : f32
    %447 = vector.broadcast %cst_170 : f32 to vector<2x64xf32>
    %448 = arith.mulf %83, %447 : vector<2x64xf32>
    %449 = arith.addf %446, %448 : vector<2x64xf32>
    %cst_171 = arith.constant 0.0716697052 : f32
    %450 = vector.broadcast %cst_171 : f32 to vector<2x64xf32>
    %451 = arith.mulf %88, %450 : vector<2x64xf32>
    %452 = arith.addf %449, %451 : vector<2x64xf32>
    %cst_172 = arith.constant -0.0497182868 : f32
    %453 = vector.broadcast %cst_172 : f32 to vector<2x64xf32>
    %454 = arith.mulf %29, %453 : vector<2x64xf32>
    %cst_173 = arith.constant 0.177053347 : f32
    %455 = vector.broadcast %cst_173 : f32 to vector<2x64xf32>
    %456 = arith.mulf %53, %455 : vector<2x64xf32>
    %457 = arith.addf %454, %456 : vector<2x64xf32>
    %cst_174 = arith.constant 0.0425740257 : f32
    %458 = vector.broadcast %cst_174 : f32 to vector<2x64xf32>
    %459 = arith.mulf %58, %458 : vector<2x64xf32>
    %460 = arith.addf %457, %459 : vector<2x64xf32>
    %cst_175 = arith.constant -0.141097456 : f32
    %461 = vector.broadcast %cst_175 : f32 to vector<2x64xf32>
    %462 = arith.mulf %63, %461 : vector<2x64xf32>
    %463 = arith.addf %460, %462 : vector<2x64xf32>
    %cst_176 = arith.constant 0.179722473 : f32
    %464 = vector.broadcast %cst_176 : f32 to vector<2x64xf32>
    %465 = arith.mulf %68, %464 : vector<2x64xf32>
    %466 = arith.addf %463, %465 : vector<2x64xf32>
    %cst_177 = arith.constant 0.0595687851 : f32
    %467 = vector.broadcast %cst_177 : f32 to vector<2x64xf32>
    %468 = arith.mulf %73, %467 : vector<2x64xf32>
    %469 = arith.addf %466, %468 : vector<2x64xf32>
    %cst_178 = arith.constant 0.0578502789 : f32
    %470 = vector.broadcast %cst_178 : f32 to vector<2x64xf32>
    %471 = arith.mulf %78, %470 : vector<2x64xf32>
    %472 = arith.addf %469, %471 : vector<2x64xf32>
    %cst_179 = arith.constant -0.0745112672 : f32
    %473 = vector.broadcast %cst_179 : f32 to vector<2x64xf32>
    %474 = arith.mulf %83, %473 : vector<2x64xf32>
    %475 = arith.addf %472, %474 : vector<2x64xf32>
    %cst_180 = arith.constant -0.240594536 : f32
    %476 = vector.broadcast %cst_180 : f32 to vector<2x64xf32>
    %477 = arith.mulf %88, %476 : vector<2x64xf32>
    %478 = arith.addf %475, %477 : vector<2x64xf32>
    %cst_181 = arith.constant 0.255336791 : f32
    %479 = vector.broadcast %cst_181 : f32 to vector<2x64xf32>
    %480 = arith.mulf %29, %479 : vector<2x64xf32>
    %cst_182 = arith.constant -0.064895682 : f32
    %481 = vector.broadcast %cst_182 : f32 to vector<2x64xf32>
    %482 = arith.mulf %53, %481 : vector<2x64xf32>
    %483 = arith.addf %480, %482 : vector<2x64xf32>
    %cst_183 = arith.constant 8.965360e-02 : f32
    %484 = vector.broadcast %cst_183 : f32 to vector<2x64xf32>
    %485 = arith.mulf %58, %484 : vector<2x64xf32>
    %486 = arith.addf %483, %485 : vector<2x64xf32>
    %cst_184 = arith.constant -0.0827353448 : f32
    %487 = vector.broadcast %cst_184 : f32 to vector<2x64xf32>
    %488 = arith.mulf %63, %487 : vector<2x64xf32>
    %489 = arith.addf %486, %488 : vector<2x64xf32>
    %cst_185 = arith.constant -0.11372827 : f32
    %490 = vector.broadcast %cst_185 : f32 to vector<2x64xf32>
    %491 = arith.mulf %68, %490 : vector<2x64xf32>
    %492 = arith.addf %489, %491 : vector<2x64xf32>
    %cst_186 = arith.constant 0.0322787613 : f32
    %493 = vector.broadcast %cst_186 : f32 to vector<2x64xf32>
    %494 = arith.mulf %73, %493 : vector<2x64xf32>
    %495 = arith.addf %492, %494 : vector<2x64xf32>
    %cst_187 = arith.constant 0.082591936 : f32
    %496 = vector.broadcast %cst_187 : f32 to vector<2x64xf32>
    %497 = arith.mulf %78, %496 : vector<2x64xf32>
    %498 = arith.addf %495, %497 : vector<2x64xf32>
    %cst_188 = arith.constant 0.00606160332 : f32
    %499 = vector.broadcast %cst_188 : f32 to vector<2x64xf32>
    %500 = arith.mulf %83, %499 : vector<2x64xf32>
    %501 = arith.addf %498, %500 : vector<2x64xf32>
    %cst_189 = arith.constant 0.083660461 : f32
    %502 = vector.broadcast %cst_189 : f32 to vector<2x64xf32>
    %503 = arith.mulf %88, %502 : vector<2x64xf32>
    %504 = arith.addf %501, %503 : vector<2x64xf32>
    %cst_190 = arith.constant 0.000000e+00 : f32
    %505 = vector.broadcast %cst_190 : f32 to vector<2x64xf32>
    %506 = arith.maximumf %114, %505 : vector<2x64xf32>
    %cst_191 = arith.constant 0.000000e+00 : f32
    %507 = vector.broadcast %cst_191 : f32 to vector<2x64xf32>
    %508 = arith.maximumf %140, %507 : vector<2x64xf32>
    %cst_192 = arith.constant 0.000000e+00 : f32
    %509 = vector.broadcast %cst_192 : f32 to vector<2x64xf32>
    %510 = arith.maximumf %166, %509 : vector<2x64xf32>
    %cst_193 = arith.constant 0.000000e+00 : f32
    %511 = vector.broadcast %cst_193 : f32 to vector<2x64xf32>
    %512 = arith.maximumf %192, %511 : vector<2x64xf32>
    %cst_194 = arith.constant 0.000000e+00 : f32
    %513 = vector.broadcast %cst_194 : f32 to vector<2x64xf32>
    %514 = arith.maximumf %218, %513 : vector<2x64xf32>
    %cst_195 = arith.constant 0.000000e+00 : f32
    %515 = vector.broadcast %cst_195 : f32 to vector<2x64xf32>
    %516 = arith.maximumf %244, %515 : vector<2x64xf32>
    %cst_196 = arith.constant 0.000000e+00 : f32
    %517 = vector.broadcast %cst_196 : f32 to vector<2x64xf32>
    %518 = arith.maximumf %270, %517 : vector<2x64xf32>
    %cst_197 = arith.constant 0.000000e+00 : f32
    %519 = vector.broadcast %cst_197 : f32 to vector<2x64xf32>
    %520 = arith.maximumf %296, %519 : vector<2x64xf32>
    %cst_198 = arith.constant 0.000000e+00 : f32
    %521 = vector.broadcast %cst_198 : f32 to vector<2x64xf32>
    %522 = arith.maximumf %322, %521 : vector<2x64xf32>
    %cst_199 = arith.constant 0.000000e+00 : f32
    %523 = vector.broadcast %cst_199 : f32 to vector<2x64xf32>
    %524 = arith.maximumf %348, %523 : vector<2x64xf32>
    %cst_200 = arith.constant 0.000000e+00 : f32
    %525 = vector.broadcast %cst_200 : f32 to vector<2x64xf32>
    %526 = arith.maximumf %374, %525 : vector<2x64xf32>
    %cst_201 = arith.constant 0.000000e+00 : f32
    %527 = vector.broadcast %cst_201 : f32 to vector<2x64xf32>
    %528 = arith.maximumf %400, %527 : vector<2x64xf32>
    %cst_202 = arith.constant 0.000000e+00 : f32
    %529 = vector.broadcast %cst_202 : f32 to vector<2x64xf32>
    %530 = arith.maximumf %426, %529 : vector<2x64xf32>
    %cst_203 = arith.constant 0.000000e+00 : f32
    %531 = vector.broadcast %cst_203 : f32 to vector<2x64xf32>
    %532 = arith.maximumf %452, %531 : vector<2x64xf32>
    %cst_204 = arith.constant 0.000000e+00 : f32
    %533 = vector.broadcast %cst_204 : f32 to vector<2x64xf32>
    %534 = arith.maximumf %478, %533 : vector<2x64xf32>
    %cst_205 = arith.constant 0.000000e+00 : f32
    %535 = vector.broadcast %cst_205 : f32 to vector<2x64xf32>
    %536 = arith.maximumf %504, %535 : vector<2x64xf32>
    %cst_206 = arith.constant 0.0795783996 : f32
    %537 = vector.broadcast %cst_206 : f32 to vector<2x64xf32>
    %538 = arith.mulf %506, %537 : vector<2x64xf32>
    %cst_207 = arith.constant -0.0488499738 : f32
    %539 = vector.broadcast %cst_207 : f32 to vector<2x64xf32>
    %540 = arith.mulf %508, %539 : vector<2x64xf32>
    %541 = arith.addf %538, %540 : vector<2x64xf32>
    %cst_208 = arith.constant -0.00394998863 : f32
    %542 = vector.broadcast %cst_208 : f32 to vector<2x64xf32>
    %543 = arith.mulf %510, %542 : vector<2x64xf32>
    %544 = arith.addf %541, %543 : vector<2x64xf32>
    %cst_209 = arith.constant 0.125816613 : f32
    %545 = vector.broadcast %cst_209 : f32 to vector<2x64xf32>
    %546 = arith.mulf %512, %545 : vector<2x64xf32>
    %547 = arith.addf %544, %546 : vector<2x64xf32>
    %cst_210 = arith.constant 0.107212871 : f32
    %548 = vector.broadcast %cst_210 : f32 to vector<2x64xf32>
    %549 = arith.mulf %514, %548 : vector<2x64xf32>
    %550 = arith.addf %547, %549 : vector<2x64xf32>
    %cst_211 = arith.constant 0.106558464 : f32
    %551 = vector.broadcast %cst_211 : f32 to vector<2x64xf32>
    %552 = arith.mulf %516, %551 : vector<2x64xf32>
    %553 = arith.addf %550, %552 : vector<2x64xf32>
    %cst_212 = arith.constant 0.0729694366 : f32
    %554 = vector.broadcast %cst_212 : f32 to vector<2x64xf32>
    %555 = arith.mulf %518, %554 : vector<2x64xf32>
    %556 = arith.addf %553, %555 : vector<2x64xf32>
    %cst_213 = arith.constant -0.11127907 : f32
    %557 = vector.broadcast %cst_213 : f32 to vector<2x64xf32>
    %558 = arith.mulf %520, %557 : vector<2x64xf32>
    %559 = arith.addf %556, %558 : vector<2x64xf32>
    %cst_214 = arith.constant 0.010303217 : f32
    %560 = vector.broadcast %cst_214 : f32 to vector<2x64xf32>
    %561 = arith.mulf %522, %560 : vector<2x64xf32>
    %562 = arith.addf %559, %561 : vector<2x64xf32>
    %cst_215 = arith.constant 0.0291461293 : f32
    %563 = vector.broadcast %cst_215 : f32 to vector<2x64xf32>
    %564 = arith.mulf %524, %563 : vector<2x64xf32>
    %565 = arith.addf %562, %564 : vector<2x64xf32>
    %cst_216 = arith.constant -0.107741982 : f32
    %566 = vector.broadcast %cst_216 : f32 to vector<2x64xf32>
    %567 = arith.mulf %526, %566 : vector<2x64xf32>
    %568 = arith.addf %565, %567 : vector<2x64xf32>
    %cst_217 = arith.constant -0.0133229746 : f32
    %569 = vector.broadcast %cst_217 : f32 to vector<2x64xf32>
    %570 = arith.mulf %528, %569 : vector<2x64xf32>
    %571 = arith.addf %568, %570 : vector<2x64xf32>
    %cst_218 = arith.constant 0.0445250124 : f32
    %572 = vector.broadcast %cst_218 : f32 to vector<2x64xf32>
    %573 = arith.mulf %530, %572 : vector<2x64xf32>
    %574 = arith.addf %571, %573 : vector<2x64xf32>
    %cst_219 = arith.constant 0.0247262716 : f32
    %575 = vector.broadcast %cst_219 : f32 to vector<2x64xf32>
    %576 = arith.mulf %532, %575 : vector<2x64xf32>
    %577 = arith.addf %574, %576 : vector<2x64xf32>
    %cst_220 = arith.constant 0.0481569655 : f32
    %578 = vector.broadcast %cst_220 : f32 to vector<2x64xf32>
    %579 = arith.mulf %534, %578 : vector<2x64xf32>
    %580 = arith.addf %577, %579 : vector<2x64xf32>
    %cst_221 = arith.constant -0.0985763296 : f32
    %581 = vector.broadcast %cst_221 : f32 to vector<2x64xf32>
    %582 = arith.mulf %536, %581 : vector<2x64xf32>
    %583 = arith.addf %580, %582 : vector<2x64xf32>
    %cst_222 = arith.constant -0.00236252719 : f32
    %584 = vector.broadcast %cst_222 : f32 to vector<2x64xf32>
    %585 = arith.mulf %506, %584 : vector<2x64xf32>
    %cst_223 = arith.constant -0.00532461144 : f32
    %586 = vector.broadcast %cst_223 : f32 to vector<2x64xf32>
    %587 = arith.mulf %508, %586 : vector<2x64xf32>
    %588 = arith.addf %585, %587 : vector<2x64xf32>
    %cst_224 = arith.constant -0.00958634261 : f32
    %589 = vector.broadcast %cst_224 : f32 to vector<2x64xf32>
    %590 = arith.mulf %510, %589 : vector<2x64xf32>
    %591 = arith.addf %588, %590 : vector<2x64xf32>
    %cst_225 = arith.constant -1.413200e-01 : f32
    %592 = vector.broadcast %cst_225 : f32 to vector<2x64xf32>
    %593 = arith.mulf %512, %592 : vector<2x64xf32>
    %594 = arith.addf %591, %593 : vector<2x64xf32>
    %cst_226 = arith.constant -0.0293773115 : f32
    %595 = vector.broadcast %cst_226 : f32 to vector<2x64xf32>
    %596 = arith.mulf %514, %595 : vector<2x64xf32>
    %597 = arith.addf %594, %596 : vector<2x64xf32>
    %cst_227 = arith.constant -0.162926704 : f32
    %598 = vector.broadcast %cst_227 : f32 to vector<2x64xf32>
    %599 = arith.mulf %516, %598 : vector<2x64xf32>
    %600 = arith.addf %597, %599 : vector<2x64xf32>
    %cst_228 = arith.constant -0.00889317226 : f32
    %601 = vector.broadcast %cst_228 : f32 to vector<2x64xf32>
    %602 = arith.mulf %518, %601 : vector<2x64xf32>
    %603 = arith.addf %600, %602 : vector<2x64xf32>
    %cst_229 = arith.constant -0.145899624 : f32
    %604 = vector.broadcast %cst_229 : f32 to vector<2x64xf32>
    %605 = arith.mulf %520, %604 : vector<2x64xf32>
    %606 = arith.addf %603, %605 : vector<2x64xf32>
    %cst_230 = arith.constant -0.00829987694 : f32
    %607 = vector.broadcast %cst_230 : f32 to vector<2x64xf32>
    %608 = arith.mulf %522, %607 : vector<2x64xf32>
    %609 = arith.addf %606, %608 : vector<2x64xf32>
    %cst_231 = arith.constant -0.114124946 : f32
    %610 = vector.broadcast %cst_231 : f32 to vector<2x64xf32>
    %611 = arith.mulf %524, %610 : vector<2x64xf32>
    %612 = arith.addf %609, %611 : vector<2x64xf32>
    %cst_232 = arith.constant -4.107740e-02 : f32
    %613 = vector.broadcast %cst_232 : f32 to vector<2x64xf32>
    %614 = arith.mulf %526, %613 : vector<2x64xf32>
    %615 = arith.addf %612, %614 : vector<2x64xf32>
    %cst_233 = arith.constant -0.00432176935 : f32
    %616 = vector.broadcast %cst_233 : f32 to vector<2x64xf32>
    %617 = arith.mulf %528, %616 : vector<2x64xf32>
    %618 = arith.addf %615, %617 : vector<2x64xf32>
    %cst_234 = arith.constant -0.0142015452 : f32
    %619 = vector.broadcast %cst_234 : f32 to vector<2x64xf32>
    %620 = arith.mulf %530, %619 : vector<2x64xf32>
    %621 = arith.addf %618, %620 : vector<2x64xf32>
    %cst_235 = arith.constant -0.00381830428 : f32
    %622 = vector.broadcast %cst_235 : f32 to vector<2x64xf32>
    %623 = arith.mulf %532, %622 : vector<2x64xf32>
    %624 = arith.addf %621, %623 : vector<2x64xf32>
    %cst_236 = arith.constant 0.00202080351 : f32
    %625 = vector.broadcast %cst_236 : f32 to vector<2x64xf32>
    %626 = arith.mulf %534, %625 : vector<2x64xf32>
    %627 = arith.addf %624, %626 : vector<2x64xf32>
    %cst_237 = arith.constant 0.102400683 : f32
    %628 = vector.broadcast %cst_237 : f32 to vector<2x64xf32>
    %629 = arith.mulf %536, %628 : vector<2x64xf32>
    %630 = arith.addf %627, %629 : vector<2x64xf32>
    %cst_238 = arith.constant -8.965330e-03 : f32
    %631 = vector.broadcast %cst_238 : f32 to vector<2x64xf32>
    %632 = arith.mulf %506, %631 : vector<2x64xf32>
    %cst_239 = arith.constant -0.0397997759 : f32
    %633 = vector.broadcast %cst_239 : f32 to vector<2x64xf32>
    %634 = arith.mulf %508, %633 : vector<2x64xf32>
    %635 = arith.addf %632, %634 : vector<2x64xf32>
    %cst_240 = arith.constant -0.0391738638 : f32
    %636 = vector.broadcast %cst_240 : f32 to vector<2x64xf32>
    %637 = arith.mulf %510, %636 : vector<2x64xf32>
    %638 = arith.addf %635, %637 : vector<2x64xf32>
    %cst_241 = arith.constant -0.0364562236 : f32
    %639 = vector.broadcast %cst_241 : f32 to vector<2x64xf32>
    %640 = arith.mulf %512, %639 : vector<2x64xf32>
    %641 = arith.addf %638, %640 : vector<2x64xf32>
    %cst_242 = arith.constant 6.773930e-02 : f32
    %642 = vector.broadcast %cst_242 : f32 to vector<2x64xf32>
    %643 = arith.mulf %514, %642 : vector<2x64xf32>
    %644 = arith.addf %641, %643 : vector<2x64xf32>
    %cst_243 = arith.constant 0.0554666221 : f32
    %645 = vector.broadcast %cst_243 : f32 to vector<2x64xf32>
    %646 = arith.mulf %516, %645 : vector<2x64xf32>
    %647 = arith.addf %644, %646 : vector<2x64xf32>
    %cst_244 = arith.constant -0.0610400401 : f32
    %648 = vector.broadcast %cst_244 : f32 to vector<2x64xf32>
    %649 = arith.mulf %518, %648 : vector<2x64xf32>
    %650 = arith.addf %647, %649 : vector<2x64xf32>
    %cst_245 = arith.constant -0.107455537 : f32
    %651 = vector.broadcast %cst_245 : f32 to vector<2x64xf32>
    %652 = arith.mulf %520, %651 : vector<2x64xf32>
    %653 = arith.addf %650, %652 : vector<2x64xf32>
    %cst_246 = arith.constant -0.0677201747 : f32
    %654 = vector.broadcast %cst_246 : f32 to vector<2x64xf32>
    %655 = arith.mulf %522, %654 : vector<2x64xf32>
    %656 = arith.addf %653, %655 : vector<2x64xf32>
    %cst_247 = arith.constant 0.00799922272 : f32
    %657 = vector.broadcast %cst_247 : f32 to vector<2x64xf32>
    %658 = arith.mulf %524, %657 : vector<2x64xf32>
    %659 = arith.addf %656, %658 : vector<2x64xf32>
    %cst_248 = arith.constant -0.0149595365 : f32
    %660 = vector.broadcast %cst_248 : f32 to vector<2x64xf32>
    %661 = arith.mulf %526, %660 : vector<2x64xf32>
    %662 = arith.addf %659, %661 : vector<2x64xf32>
    %cst_249 = arith.constant 0.102278493 : f32
    %663 = vector.broadcast %cst_249 : f32 to vector<2x64xf32>
    %664 = arith.mulf %528, %663 : vector<2x64xf32>
    %665 = arith.addf %662, %664 : vector<2x64xf32>
    %cst_250 = arith.constant 0.0625995919 : f32
    %666 = vector.broadcast %cst_250 : f32 to vector<2x64xf32>
    %667 = arith.mulf %530, %666 : vector<2x64xf32>
    %668 = arith.addf %665, %667 : vector<2x64xf32>
    %cst_251 = arith.constant 0.0563010834 : f32
    %669 = vector.broadcast %cst_251 : f32 to vector<2x64xf32>
    %670 = arith.mulf %532, %669 : vector<2x64xf32>
    %671 = arith.addf %668, %670 : vector<2x64xf32>
    %cst_252 = arith.constant 0.00679763826 : f32
    %672 = vector.broadcast %cst_252 : f32 to vector<2x64xf32>
    %673 = arith.mulf %534, %672 : vector<2x64xf32>
    %674 = arith.addf %671, %673 : vector<2x64xf32>
    %cst_253 = arith.constant 0.0938126892 : f32
    %675 = vector.broadcast %cst_253 : f32 to vector<2x64xf32>
    %676 = arith.mulf %536, %675 : vector<2x64xf32>
    %677 = arith.addf %674, %676 : vector<2x64xf32>
    %cst_254 = arith.constant 0.073241137 : f32
    %678 = vector.broadcast %cst_254 : f32 to vector<2x64xf32>
    %679 = arith.mulf %506, %678 : vector<2x64xf32>
    %cst_255 = arith.constant -0.0532808118 : f32
    %680 = vector.broadcast %cst_255 : f32 to vector<2x64xf32>
    %681 = arith.mulf %508, %680 : vector<2x64xf32>
    %682 = arith.addf %679, %681 : vector<2x64xf32>
    %cst_256 = arith.constant -0.0144391125 : f32
    %683 = vector.broadcast %cst_256 : f32 to vector<2x64xf32>
    %684 = arith.mulf %510, %683 : vector<2x64xf32>
    %685 = arith.addf %682, %684 : vector<2x64xf32>
    %cst_257 = arith.constant -0.0324720964 : f32
    %686 = vector.broadcast %cst_257 : f32 to vector<2x64xf32>
    %687 = arith.mulf %512, %686 : vector<2x64xf32>
    %688 = arith.addf %685, %687 : vector<2x64xf32>
    %cst_258 = arith.constant -0.00593247311 : f32
    %689 = vector.broadcast %cst_258 : f32 to vector<2x64xf32>
    %690 = arith.mulf %514, %689 : vector<2x64xf32>
    %691 = arith.addf %688, %690 : vector<2x64xf32>
    %cst_259 = arith.constant -0.154194191 : f32
    %692 = vector.broadcast %cst_259 : f32 to vector<2x64xf32>
    %693 = arith.mulf %516, %692 : vector<2x64xf32>
    %694 = arith.addf %691, %693 : vector<2x64xf32>
    %cst_260 = arith.constant -0.156529725 : f32
    %695 = vector.broadcast %cst_260 : f32 to vector<2x64xf32>
    %696 = arith.mulf %518, %695 : vector<2x64xf32>
    %697 = arith.addf %694, %696 : vector<2x64xf32>
    %cst_261 = arith.constant 0.0326890871 : f32
    %698 = vector.broadcast %cst_261 : f32 to vector<2x64xf32>
    %699 = arith.mulf %520, %698 : vector<2x64xf32>
    %700 = arith.addf %697, %699 : vector<2x64xf32>
    %cst_262 = arith.constant 0.0644589067 : f32
    %701 = vector.broadcast %cst_262 : f32 to vector<2x64xf32>
    %702 = arith.mulf %522, %701 : vector<2x64xf32>
    %703 = arith.addf %700, %702 : vector<2x64xf32>
    %cst_263 = arith.constant -0.0221932828 : f32
    %704 = vector.broadcast %cst_263 : f32 to vector<2x64xf32>
    %705 = arith.mulf %524, %704 : vector<2x64xf32>
    %706 = arith.addf %703, %705 : vector<2x64xf32>
    %cst_264 = arith.constant 0.023400303 : f32
    %707 = vector.broadcast %cst_264 : f32 to vector<2x64xf32>
    %708 = arith.mulf %526, %707 : vector<2x64xf32>
    %709 = arith.addf %706, %708 : vector<2x64xf32>
    %cst_265 = arith.constant 0.00797758531 : f32
    %710 = vector.broadcast %cst_265 : f32 to vector<2x64xf32>
    %711 = arith.mulf %528, %710 : vector<2x64xf32>
    %712 = arith.addf %709, %711 : vector<2x64xf32>
    %cst_266 = arith.constant 0.110203631 : f32
    %713 = vector.broadcast %cst_266 : f32 to vector<2x64xf32>
    %714 = arith.mulf %530, %713 : vector<2x64xf32>
    %715 = arith.addf %712, %714 : vector<2x64xf32>
    %cst_267 = arith.constant -0.113143168 : f32
    %716 = vector.broadcast %cst_267 : f32 to vector<2x64xf32>
    %717 = arith.mulf %532, %716 : vector<2x64xf32>
    %718 = arith.addf %715, %717 : vector<2x64xf32>
    %cst_268 = arith.constant 0.132497117 : f32
    %719 = vector.broadcast %cst_268 : f32 to vector<2x64xf32>
    %720 = arith.mulf %534, %719 : vector<2x64xf32>
    %721 = arith.addf %718, %720 : vector<2x64xf32>
    %cst_269 = arith.constant 0.0861562341 : f32
    %722 = vector.broadcast %cst_269 : f32 to vector<2x64xf32>
    %723 = arith.mulf %536, %722 : vector<2x64xf32>
    %724 = arith.addf %721, %723 : vector<2x64xf32>
    %cst_270 = arith.constant 2.000000e+00 : f32
    %725 = vector.broadcast %cst_270 : f32 to vector<2x64xf32>
    %726 = arith.addf %677, %725 : vector<2x64xf32>
    %727 = arith.negf %726 : vector<2x64xf32>
    %728 = math.exp %727 : vector<2x64xf32>
    %cst_271 = arith.constant 1.000000e+00 : f32
    %729 = vector.broadcast %cst_271 : f32 to vector<2x64xf32>
    %730 = arith.addf %729, %728 : vector<2x64xf32>
    %731 = arith.divf %729, %730 : vector<2x64xf32>
    %cst_272 = arith.constant 2.000000e+00 : f32
    %732 = vector.broadcast %cst_272 : f32 to vector<2x64xf32>
    %733 = arith.addf %724, %732 : vector<2x64xf32>
    %734 = arith.negf %733 : vector<2x64xf32>
    %735 = math.exp %734 : vector<2x64xf32>
    %cst_273 = arith.constant 1.000000e+00 : f32
    %736 = vector.broadcast %cst_273 : f32 to vector<2x64xf32>
    %737 = arith.addf %736, %735 : vector<2x64xf32>
    %738 = arith.divf %736, %737 : vector<2x64xf32>
    %739 = arith.addf %37, %583 : vector<2x64xf32>
    %740 = arith.mulf %739, %731 : vector<2x64xf32>
    %741 = arith.addf %45, %630 : vector<2x64xf32>
    %742 = arith.mulf %741, %738 : vector<2x64xf32>
    %c0_274 = arith.constant 0 : index
    %c0_275 = arith.constant 0 : index
    %743 = vector.load %arg16[%c0_274, %c0_275] : memref<2x192xf32, #tpu.memory_space<vmem>>, vector<2x64xf32>
    tpu.vector_store %arg16[%c0_274, %c0_275], %29 {strides = array<i32>} : memref<2x192xf32, #tpu.memory_space<vmem>>, vector<2x64xf32>,
    %c0_276 = arith.constant 0 : index
    %c64 = arith.constant 64 : index
    %744 = vector.load %arg16[%c0_276, %c64] : memref<2x192xf32, #tpu.memory_space<vmem>>, vector<2x64xf32>
    tpu.vector_store %arg16[%c0_276, %c64], %740 {strides = array<i32>} : memref<2x192xf32, #tpu.memory_space<vmem>>, vector<2x64xf32>,
    %c0_277 = arith.constant 0 : index
    %c128 = arith.constant 128 : index
    %745 = vector.load %arg16[%c0_277, %c128] : memref<2x192xf32, #tpu.memory_space<vmem>>, vector<2x64xf32>
    tpu.vector_store %arg16[%c0_277, %c128], %742 {strides = array<i32>} : memref<2x192xf32, #tpu.memory_space<vmem>>, vector<2x64xf32>,
    %746 = arith.truncf %3 : vector<2x64xf32> to vector<2x64xbf16>
    %c0_278 = arith.constant 0 : index
    %c0_279 = arith.constant 0 : index
    %747 = vector.load %arg6[%c0_278, %c0_279] : memref<64x16xbf16, #tpu.memory_space<vmem>>, vector<64x16xbf16>
    %cst_280 = arith.constant dense<0.000000e+00> : vector<2x16xf32>
    %748 = tpu.matmul %746, %747, %cst_280 {dimension_numbers = #tpu.dot_dimension_numbers<[1], [0], [0], [1], [0, 0, 1, 1], [], []>} : vector<2x64xbf16>, vector<64x16xbf16>, vector<2x16xf32> -> vector<2x16xf32>
    %c0_281 = arith.constant 0 : index
    %c0_282 = arith.constant 0 : index
    %749 = vector.load %arg7[%c0_281, %c0_282] : memref<64x16xbf16, #tpu.memory_space<vmem>>, vector<64x16xbf16>
    %cst_283 = arith.constant dense<0.000000e+00> : vector<2x16xf32>
    %750 = tpu.matmul %746, %749, %cst_283 {dimension_numbers = #tpu.dot_dimension_numbers<[1], [0], [0], [1], [0, 0, 1, 1], [], []>} : vector<2x64xbf16>, vector<64x16xbf16>, vector<2x16xf32> -> vector<2x16xf32>
    %c0_284 = arith.constant 0 : index
    %c0_285 = arith.constant 0 : index
    %751 = vector.load %arg8[%c0_284, %c0_285] : memref<64x16xbf16, #tpu.memory_space<vmem>>, vector<64x16xbf16>
    %cst_286 = arith.constant dense<0.000000e+00> : vector<2x16xf32>
    %752 = tpu.matmul %746, %751, %cst_286 {dimension_numbers = #tpu.dot_dimension_numbers<[1], [0], [0], [1], [0, 0, 1, 1], [], []>} : vector<2x64xbf16>, vector<64x16xbf16>, vector<2x16xf32> -> vector<2x16xf32>
    %c0_287 = arith.constant 0 : index
    %c0_288 = arith.constant 0 : index
    %753 = vector.load %arg9[%c0_287, %c0_288] : memref<64x16xbf16, #tpu.memory_space<vmem>>, vector<64x16xbf16>
    %cst_289 = arith.constant dense<0.000000e+00> : vector<2x16xf32>
    %754 = tpu.matmul %746, %753, %cst_289 {dimension_numbers = #tpu.dot_dimension_numbers<[1], [0], [0], [1], [0, 0, 1, 1], [], []>} : vector<2x64xbf16>, vector<64x16xbf16>, vector<2x16xf32> -> vector<2x16xf32>
    %cst_290 = arith.constant -0.148440301 : f32
    %755 = vector.broadcast %cst_290 : f32 to vector<2x16xf32>
    %756 = arith.addf %750, %755 : vector<2x16xf32>
    %cst_291 = arith.constant 1.03360116 : f32
    %757 = vector.broadcast %cst_291 : f32 to vector<2x16xf32>
    %758 = arith.mulf %756, %757 : vector<2x16xf32>
    %cst_292 = arith.constant -0.0860464424 : f32
    %759 = vector.broadcast %cst_292 : f32 to vector<2x16xf32>
    %760 = arith.addf %752, %759 : vector<2x16xf32>
    %cst_293 = arith.constant 0.98026055 : f32
    %761 = vector.broadcast %cst_293 : f32 to vector<2x16xf32>
    %762 = arith.mulf %760, %761 : vector<2x16xf32>
    %cst_294 = arith.constant -0.0674805939 : f32
    %763 = vector.broadcast %cst_294 : f32 to vector<2x16xf32>
    %764 = arith.addf %754, %763 : vector<2x16xf32>
    %cst_295 = arith.constant 1.03433478 : f32
    %765 = vector.broadcast %cst_295 : f32 to vector<2x16xf32>
    %766 = arith.mulf %764, %765 : vector<2x16xf32>
    %cst_296 = arith.constant -0.949119329 : f32
    %767 = vector.broadcast %cst_296 : f32 to vector<2x16xf32>
    %768 = arith.mulf %758, %767 : vector<2x16xf32>
    %cst_297 = arith.constant 0.311764181 : f32
    %769 = vector.broadcast %cst_297 : f32 to vector<2x16xf32>
    %770 = arith.mulf %762, %769 : vector<2x16xf32>
    %771 = arith.addf %768, %770 : vector<2x16xf32>
    %cst_298 = arith.constant 0.0444471538 : f32
    %772 = vector.broadcast %cst_298 : f32 to vector<2x16xf32>
    %773 = arith.mulf %766, %772 : vector<2x16xf32>
    %774 = arith.addf %771, %773 : vector<2x16xf32>
    %cst_299 = arith.constant -0.083029963 : f32
    %775 = vector.broadcast %cst_299 : f32 to vector<2x16xf32>
    %776 = arith.mulf %758, %775 : vector<2x16xf32>
    %cst_300 = arith.constant -0.383882403 : f32
    %777 = vector.broadcast %cst_300 : f32 to vector<2x16xf32>
    %778 = arith.mulf %762, %777 : vector<2x16xf32>
    %779 = arith.addf %776, %778 : vector<2x16xf32>
    %cst_301 = arith.constant 0.919641315 : f32
    %780 = vector.broadcast %cst_301 : f32 to vector<2x16xf32>
    %781 = arith.mulf %766, %780 : vector<2x16xf32>
    %782 = arith.addf %779, %781 : vector<2x16xf32>
    %cst_302 = arith.constant 0.303773701 : f32
    %783 = vector.broadcast %cst_302 : f32 to vector<2x16xf32>
    %784 = arith.mulf %758, %783 : vector<2x16xf32>
    %cst_303 = arith.constant 0.869158923 : f32
    %785 = vector.broadcast %cst_303 : f32 to vector<2x16xf32>
    %786 = arith.mulf %762, %785 : vector<2x16xf32>
    %787 = arith.addf %784, %786 : vector<2x16xf32>
    %cst_304 = arith.constant 0.390236139 : f32
    %788 = vector.broadcast %cst_304 : f32 to vector<2x16xf32>
    %789 = arith.mulf %766, %788 : vector<2x16xf32>
    %790 = arith.addf %787, %789 : vector<2x16xf32>
    %791 = arith.truncf %748 : vector<2x16xf32> to vector<2x16xbf16>
    %c0_305 = arith.constant 0 : index
    %c0_306 = arith.constant 0 : index
    %792 = vector.load %arg10[%c0_305, %c0_306] : memref<16x128xbf16, #tpu.memory_space<vmem>>, vector<16x128xbf16>
    %cst_307 = arith.constant dense<0.000000e+00> : vector<2x128xf32>
    %793 = tpu.matmul %791, %792, %cst_307 {dimension_numbers = #tpu.dot_dimension_numbers<[1], [0], [0], [1], [0, 0, 1, 1], [], []>} : vector<2x16xbf16>, vector<16x128xbf16>, vector<2x128xf32> -> vector<2x128xf32>
    %794 = vector.extract_strided_slice %793 {offsets = [0, 0], sizes = [2, 16], strides = [1, 1]} : vector<2x128xf32> to vector<2x16xf32>
    %cst_308 = arith.constant 0.000000e+00 : f32
    %795 = vector.broadcast %cst_308 : f32 to vector<2x16xf32>
    %796 = arith.addf %794, %795 : vector<2x16xf32>
    %cst_309 = arith.constant 0.000000e+00 : f32
    %797 = vector.broadcast %cst_309 : f32 to vector<2x16xf32>
    %798 = arith.maximumf %796, %797 : vector<2x16xf32>
    %799 = vector.extract_strided_slice %793 {offsets = [0, 16], sizes = [2, 16], strides = [1, 1]} : vector<2x128xf32> to vector<2x16xf32>
    %cst_310 = arith.constant 0.000000e+00 : f32
    %800 = vector.broadcast %cst_310 : f32 to vector<2x16xf32>
    %801 = arith.addf %799, %800 : vector<2x16xf32>
    %cst_311 = arith.constant 0.000000e+00 : f32
    %802 = vector.broadcast %cst_311 : f32 to vector<2x16xf32>
    %803 = arith.maximumf %801, %802 : vector<2x16xf32>
    %804 = vector.extract_strided_slice %793 {offsets = [0, 32], sizes = [2, 16], strides = [1, 1]} : vector<2x128xf32> to vector<2x16xf32>
    %cst_312 = arith.constant 0.000000e+00 : f32
    %805 = vector.broadcast %cst_312 : f32 to vector<2x16xf32>
    %806 = arith.addf %804, %805 : vector<2x16xf32>
    %cst_313 = arith.constant 0.000000e+00 : f32
    %807 = vector.broadcast %cst_313 : f32 to vector<2x16xf32>
    %808 = arith.maximumf %806, %807 : vector<2x16xf32>
    %809 = vector.extract_strided_slice %793 {offsets = [0, 48], sizes = [2, 16], strides = [1, 1]} : vector<2x128xf32> to vector<2x16xf32>
    %cst_314 = arith.constant 0.000000e+00 : f32
    %810 = vector.broadcast %cst_314 : f32 to vector<2x16xf32>
    %811 = arith.addf %809, %810 : vector<2x16xf32>
    %cst_315 = arith.constant 0.000000e+00 : f32
    %812 = vector.broadcast %cst_315 : f32 to vector<2x16xf32>
    %813 = arith.maximumf %811, %812 : vector<2x16xf32>
    %814 = vector.extract_strided_slice %793 {offsets = [0, 64], sizes = [2, 16], strides = [1, 1]} : vector<2x128xf32> to vector<2x16xf32>
    %cst_316 = arith.constant 0.000000e+00 : f32
    %815 = vector.broadcast %cst_316 : f32 to vector<2x16xf32>
    %816 = arith.addf %814, %815 : vector<2x16xf32>
    %cst_317 = arith.constant 0.000000e+00 : f32
    %817 = vector.broadcast %cst_317 : f32 to vector<2x16xf32>
    %818 = arith.maximumf %816, %817 : vector<2x16xf32>
    %819 = vector.extract_strided_slice %793 {offsets = [0, 80], sizes = [2, 16], strides = [1, 1]} : vector<2x128xf32> to vector<2x16xf32>
    %cst_318 = arith.constant 0.000000e+00 : f32
    %820 = vector.broadcast %cst_318 : f32 to vector<2x16xf32>
    %821 = arith.addf %819, %820 : vector<2x16xf32>
    %cst_319 = arith.constant 0.000000e+00 : f32
    %822 = vector.broadcast %cst_319 : f32 to vector<2x16xf32>
    %823 = arith.maximumf %821, %822 : vector<2x16xf32>
    %824 = vector.extract_strided_slice %793 {offsets = [0, 96], sizes = [2, 16], strides = [1, 1]} : vector<2x128xf32> to vector<2x16xf32>
    %cst_320 = arith.constant 0.000000e+00 : f32
    %825 = vector.broadcast %cst_320 : f32 to vector<2x16xf32>
    %826 = arith.addf %824, %825 : vector<2x16xf32>
    %cst_321 = arith.constant 0.000000e+00 : f32
    %827 = vector.broadcast %cst_321 : f32 to vector<2x16xf32>
    %828 = arith.maximumf %826, %827 : vector<2x16xf32>
    %829 = vector.extract_strided_slice %793 {offsets = [0, 112], sizes = [2, 16], strides = [1, 1]} : vector<2x128xf32> to vector<2x16xf32>
    %cst_322 = arith.constant 0.000000e+00 : f32
    %830 = vector.broadcast %cst_322 : f32 to vector<2x16xf32>
    %831 = arith.addf %829, %830 : vector<2x16xf32>
    %cst_323 = arith.constant 0.000000e+00 : f32
    %832 = vector.broadcast %cst_323 : f32 to vector<2x16xf32>
    %833 = arith.maximumf %831, %832 : vector<2x16xf32>
    %cst_324 = arith.constant 0.0462000221 : f32
    %834 = vector.broadcast %cst_324 : f32 to vector<2x16xf32>
    %835 = arith.mulf %774, %834 : vector<2x16xf32>
    %cst_325 = arith.constant 0.0138978194 : f32
    %836 = vector.broadcast %cst_325 : f32 to vector<2x16xf32>
    %837 = arith.mulf %798, %836 : vector<2x16xf32>
    %838 = arith.addf %835, %837 : vector<2x16xf32>
    %cst_326 = arith.constant -0.0836311579 : f32
    %839 = vector.broadcast %cst_326 : f32 to vector<2x16xf32>
    %840 = arith.mulf %803, %839 : vector<2x16xf32>
    %841 = arith.addf %838, %840 : vector<2x16xf32>
    %cst_327 = arith.constant 0.0212633442 : f32
    %842 = vector.broadcast %cst_327 : f32 to vector<2x16xf32>
    %843 = arith.mulf %808, %842 : vector<2x16xf32>
    %844 = arith.addf %841, %843 : vector<2x16xf32>
    %cst_328 = arith.constant 0.133829936 : f32
    %845 = vector.broadcast %cst_328 : f32 to vector<2x16xf32>
    %846 = arith.mulf %813, %845 : vector<2x16xf32>
    %847 = arith.addf %844, %846 : vector<2x16xf32>
    %cst_329 = arith.constant 0.0518724471 : f32
    %848 = vector.broadcast %cst_329 : f32 to vector<2x16xf32>
    %849 = arith.mulf %818, %848 : vector<2x16xf32>
    %850 = arith.addf %847, %849 : vector<2x16xf32>
    %cst_330 = arith.constant -0.0431411639 : f32
    %851 = vector.broadcast %cst_330 : f32 to vector<2x16xf32>
    %852 = arith.mulf %823, %851 : vector<2x16xf32>
    %853 = arith.addf %850, %852 : vector<2x16xf32>
    %cst_331 = arith.constant -0.0291198473 : f32
    %854 = vector.broadcast %cst_331 : f32 to vector<2x16xf32>
    %855 = arith.mulf %828, %854 : vector<2x16xf32>
    %856 = arith.addf %853, %855 : vector<2x16xf32>
    %cst_332 = arith.constant -0.104852781 : f32
    %857 = vector.broadcast %cst_332 : f32 to vector<2x16xf32>
    %858 = arith.mulf %833, %857 : vector<2x16xf32>
    %859 = arith.addf %856, %858 : vector<2x16xf32>
    %cst_333 = arith.constant 0.410547554 : f32
    %860 = vector.broadcast %cst_333 : f32 to vector<2x16xf32>
    %861 = arith.mulf %774, %860 : vector<2x16xf32>
    %cst_334 = arith.constant 0.0203287695 : f32
    %862 = vector.broadcast %cst_334 : f32 to vector<2x16xf32>
    %863 = arith.mulf %798, %862 : vector<2x16xf32>
    %864 = arith.addf %861, %863 : vector<2x16xf32>
    %cst_335 = arith.constant 0.0922524854 : f32
    %865 = vector.broadcast %cst_335 : f32 to vector<2x16xf32>
    %866 = arith.mulf %803, %865 : vector<2x16xf32>
    %867 = arith.addf %864, %866 : vector<2x16xf32>
    %cst_336 = arith.constant -0.0890187397 : f32
    %868 = vector.broadcast %cst_336 : f32 to vector<2x16xf32>
    %869 = arith.mulf %808, %868 : vector<2x16xf32>
    %870 = arith.addf %867, %869 : vector<2x16xf32>
    %cst_337 = arith.constant 0.0359228104 : f32
    %871 = vector.broadcast %cst_337 : f32 to vector<2x16xf32>
    %872 = arith.mulf %813, %871 : vector<2x16xf32>
    %873 = arith.addf %870, %872 : vector<2x16xf32>
    %cst_338 = arith.constant 0.0418381132 : f32
    %874 = vector.broadcast %cst_338 : f32 to vector<2x16xf32>
    %875 = arith.mulf %818, %874 : vector<2x16xf32>
    %876 = arith.addf %873, %875 : vector<2x16xf32>
    %cst_339 = arith.constant -0.108310923 : f32
    %877 = vector.broadcast %cst_339 : f32 to vector<2x16xf32>
    %878 = arith.mulf %823, %877 : vector<2x16xf32>
    %879 = arith.addf %876, %878 : vector<2x16xf32>
    %cst_340 = arith.constant -0.0292354841 : f32
    %880 = vector.broadcast %cst_340 : f32 to vector<2x16xf32>
    %881 = arith.mulf %828, %880 : vector<2x16xf32>
    %882 = arith.addf %879, %881 : vector<2x16xf32>
    %cst_341 = arith.constant 0.040142037 : f32
    %883 = vector.broadcast %cst_341 : f32 to vector<2x16xf32>
    %884 = arith.mulf %833, %883 : vector<2x16xf32>
    %885 = arith.addf %882, %884 : vector<2x16xf32>
    %cst_342 = arith.constant -0.317032248 : f32
    %886 = vector.broadcast %cst_342 : f32 to vector<2x16xf32>
    %887 = arith.mulf %774, %886 : vector<2x16xf32>
    %cst_343 = arith.constant 0.0406458825 : f32
    %888 = vector.broadcast %cst_343 : f32 to vector<2x16xf32>
    %889 = arith.mulf %798, %888 : vector<2x16xf32>
    %890 = arith.addf %887, %889 : vector<2x16xf32>
    %cst_344 = arith.constant 0.0125466352 : f32
    %891 = vector.broadcast %cst_344 : f32 to vector<2x16xf32>
    %892 = arith.mulf %803, %891 : vector<2x16xf32>
    %893 = arith.addf %890, %892 : vector<2x16xf32>
    %cst_345 = arith.constant 0.137839347 : f32
    %894 = vector.broadcast %cst_345 : f32 to vector<2x16xf32>
    %895 = arith.mulf %808, %894 : vector<2x16xf32>
    %896 = arith.addf %893, %895 : vector<2x16xf32>
    %cst_346 = arith.constant -0.0767547339 : f32
    %897 = vector.broadcast %cst_346 : f32 to vector<2x16xf32>
    %898 = arith.mulf %813, %897 : vector<2x16xf32>
    %899 = arith.addf %896, %898 : vector<2x16xf32>
    %cst_347 = arith.constant -0.0181177668 : f32
    %900 = vector.broadcast %cst_347 : f32 to vector<2x16xf32>
    %901 = arith.mulf %818, %900 : vector<2x16xf32>
    %902 = arith.addf %899, %901 : vector<2x16xf32>
    %cst_348 = arith.constant 0.052444756 : f32
    %903 = vector.broadcast %cst_348 : f32 to vector<2x16xf32>
    %904 = arith.mulf %823, %903 : vector<2x16xf32>
    %905 = arith.addf %902, %904 : vector<2x16xf32>
    %cst_349 = arith.constant -0.105170362 : f32
    %906 = vector.broadcast %cst_349 : f32 to vector<2x16xf32>
    %907 = arith.mulf %828, %906 : vector<2x16xf32>
    %908 = arith.addf %905, %907 : vector<2x16xf32>
    %cst_350 = arith.constant 0.114248835 : f32
    %909 = vector.broadcast %cst_350 : f32 to vector<2x16xf32>
    %910 = arith.mulf %833, %909 : vector<2x16xf32>
    %911 = arith.addf %908, %910 : vector<2x16xf32>
    %cst_351 = arith.constant -0.0745975673 : f32
    %912 = vector.broadcast %cst_351 : f32 to vector<2x16xf32>
    %913 = arith.mulf %774, %912 : vector<2x16xf32>
    %cst_352 = arith.constant 0.321840584 : f32
    %914 = vector.broadcast %cst_352 : f32 to vector<2x16xf32>
    %915 = arith.mulf %798, %914 : vector<2x16xf32>
    %916 = arith.addf %913, %915 : vector<2x16xf32>
    %cst_353 = arith.constant 0.0310960077 : f32
    %917 = vector.broadcast %cst_353 : f32 to vector<2x16xf32>
    %918 = arith.mulf %803, %917 : vector<2x16xf32>
    %919 = arith.addf %916, %918 : vector<2x16xf32>
    %cst_354 = arith.constant 0.27879414 : f32
    %920 = vector.broadcast %cst_354 : f32 to vector<2x16xf32>
    %921 = arith.mulf %808, %920 : vector<2x16xf32>
    %922 = arith.addf %919, %921 : vector<2x16xf32>
    %cst_355 = arith.constant -0.101771638 : f32
    %923 = vector.broadcast %cst_355 : f32 to vector<2x16xf32>
    %924 = arith.mulf %813, %923 : vector<2x16xf32>
    %925 = arith.addf %922, %924 : vector<2x16xf32>
    %cst_356 = arith.constant -0.195330456 : f32
    %926 = vector.broadcast %cst_356 : f32 to vector<2x16xf32>
    %927 = arith.mulf %818, %926 : vector<2x16xf32>
    %928 = arith.addf %925, %927 : vector<2x16xf32>
    %cst_357 = arith.constant 6.739640e-02 : f32
    %929 = vector.broadcast %cst_357 : f32 to vector<2x16xf32>
    %930 = arith.mulf %823, %929 : vector<2x16xf32>
    %931 = arith.addf %928, %930 : vector<2x16xf32>
    %cst_358 = arith.constant 0.150368795 : f32
    %932 = vector.broadcast %cst_358 : f32 to vector<2x16xf32>
    %933 = arith.mulf %828, %932 : vector<2x16xf32>
    %934 = arith.addf %931, %933 : vector<2x16xf32>
    %cst_359 = arith.constant -0.0185204092 : f32
    %935 = vector.broadcast %cst_359 : f32 to vector<2x16xf32>
    %936 = arith.mulf %833, %935 : vector<2x16xf32>
    %937 = arith.addf %934, %936 : vector<2x16xf32>
    %cst_360 = arith.constant 0.138399079 : f32
    %938 = vector.broadcast %cst_360 : f32 to vector<2x16xf32>
    %939 = arith.mulf %774, %938 : vector<2x16xf32>
    %cst_361 = arith.constant 0.0390103646 : f32
    %940 = vector.broadcast %cst_361 : f32 to vector<2x16xf32>
    %941 = arith.mulf %798, %940 : vector<2x16xf32>
    %942 = arith.addf %939, %941 : vector<2x16xf32>
    %cst_362 = arith.constant -0.143054903 : f32
    %943 = vector.broadcast %cst_362 : f32 to vector<2x16xf32>
    %944 = arith.mulf %803, %943 : vector<2x16xf32>
    %945 = arith.addf %942, %944 : vector<2x16xf32>
    %cst_363 = arith.constant -0.0479812324 : f32
    %946 = vector.broadcast %cst_363 : f32 to vector<2x16xf32>
    %947 = arith.mulf %808, %946 : vector<2x16xf32>
    %948 = arith.addf %945, %947 : vector<2x16xf32>
    %cst_364 = arith.constant -0.0184947308 : f32
    %949 = vector.broadcast %cst_364 : f32 to vector<2x16xf32>
    %950 = arith.mulf %813, %949 : vector<2x16xf32>
    %951 = arith.addf %948, %950 : vector<2x16xf32>
    %cst_365 = arith.constant -0.101386532 : f32
    %952 = vector.broadcast %cst_365 : f32 to vector<2x16xf32>
    %953 = arith.mulf %818, %952 : vector<2x16xf32>
    %954 = arith.addf %951, %953 : vector<2x16xf32>
    %cst_366 = arith.constant -0.137848809 : f32
    %955 = vector.broadcast %cst_366 : f32 to vector<2x16xf32>
    %956 = arith.mulf %823, %955 : vector<2x16xf32>
    %957 = arith.addf %954, %956 : vector<2x16xf32>
    %cst_367 = arith.constant -0.185131386 : f32
    %958 = vector.broadcast %cst_367 : f32 to vector<2x16xf32>
    %959 = arith.mulf %828, %958 : vector<2x16xf32>
    %960 = arith.addf %957, %959 : vector<2x16xf32>
    %cst_368 = arith.constant -0.00661033299 : f32
    %961 = vector.broadcast %cst_368 : f32 to vector<2x16xf32>
    %962 = arith.mulf %833, %961 : vector<2x16xf32>
    %963 = arith.addf %960, %962 : vector<2x16xf32>
    %cst_369 = arith.constant 0.941646099 : f32
    %964 = vector.broadcast %cst_369 : f32 to vector<2x16xf32>
    %965 = arith.mulf %774, %964 : vector<2x16xf32>
    %cst_370 = arith.constant -0.0571648479 : f32
    %966 = vector.broadcast %cst_370 : f32 to vector<2x16xf32>
    %967 = arith.mulf %798, %966 : vector<2x16xf32>
    %968 = arith.addf %965, %967 : vector<2x16xf32>
    %cst_371 = arith.constant -0.0438901782 : f32
    %969 = vector.broadcast %cst_371 : f32 to vector<2x16xf32>
    %970 = arith.mulf %803, %969 : vector<2x16xf32>
    %971 = arith.addf %968, %970 : vector<2x16xf32>
    %cst_372 = arith.constant -0.19224371 : f32
    %972 = vector.broadcast %cst_372 : f32 to vector<2x16xf32>
    %973 = arith.mulf %808, %972 : vector<2x16xf32>
    %974 = arith.addf %971, %973 : vector<2x16xf32>
    %cst_373 = arith.constant -0.153435051 : f32
    %975 = vector.broadcast %cst_373 : f32 to vector<2x16xf32>
    %976 = arith.mulf %813, %975 : vector<2x16xf32>
    %977 = arith.addf %974, %976 : vector<2x16xf32>
    %cst_374 = arith.constant -0.00663964357 : f32
    %978 = vector.broadcast %cst_374 : f32 to vector<2x16xf32>
    %979 = arith.mulf %818, %978 : vector<2x16xf32>
    %980 = arith.addf %977, %979 : vector<2x16xf32>
    %cst_375 = arith.constant 0.0857188553 : f32
    %981 = vector.broadcast %cst_375 : f32 to vector<2x16xf32>
    %982 = arith.mulf %823, %981 : vector<2x16xf32>
    %983 = arith.addf %980, %982 : vector<2x16xf32>
    %cst_376 = arith.constant -0.280022651 : f32
    %984 = vector.broadcast %cst_376 : f32 to vector<2x16xf32>
    %985 = arith.mulf %828, %984 : vector<2x16xf32>
    %986 = arith.addf %983, %985 : vector<2x16xf32>
    %cst_377 = arith.constant -0.0951122641 : f32
    %987 = vector.broadcast %cst_377 : f32 to vector<2x16xf32>
    %988 = arith.mulf %833, %987 : vector<2x16xf32>
    %989 = arith.addf %986, %988 : vector<2x16xf32>
    %cst_378 = arith.constant 0.438107252 : f32
    %990 = vector.broadcast %cst_378 : f32 to vector<2x16xf32>
    %991 = arith.mulf %774, %990 : vector<2x16xf32>
    %cst_379 = arith.constant 0.118552953 : f32
    %992 = vector.broadcast %cst_379 : f32 to vector<2x16xf32>
    %993 = arith.mulf %798, %992 : vector<2x16xf32>
    %994 = arith.addf %991, %993 : vector<2x16xf32>
    %cst_380 = arith.constant -0.0475192033 : f32
    %995 = vector.broadcast %cst_380 : f32 to vector<2x16xf32>
    %996 = arith.mulf %803, %995 : vector<2x16xf32>
    %997 = arith.addf %994, %996 : vector<2x16xf32>
    %cst_381 = arith.constant -0.0104054268 : f32
    %998 = vector.broadcast %cst_381 : f32 to vector<2x16xf32>
    %999 = arith.mulf %808, %998 : vector<2x16xf32>
    %1000 = arith.addf %997, %999 : vector<2x16xf32>
    %cst_382 = arith.constant 0.14378354 : f32
    %1001 = vector.broadcast %cst_382 : f32 to vector<2x16xf32>
    %1002 = arith.mulf %813, %1001 : vector<2x16xf32>
    %1003 = arith.addf %1000, %1002 : vector<2x16xf32>
    %cst_383 = arith.constant -0.10773883 : f32
    %1004 = vector.broadcast %cst_383 : f32 to vector<2x16xf32>
    %1005 = arith.mulf %818, %1004 : vector<2x16xf32>
    %1006 = arith.addf %1003, %1005 : vector<2x16xf32>
    %cst_384 = arith.constant 0.0322727524 : f32
    %1007 = vector.broadcast %cst_384 : f32 to vector<2x16xf32>
    %1008 = arith.mulf %823, %1007 : vector<2x16xf32>
    %1009 = arith.addf %1006, %1008 : vector<2x16xf32>
    %cst_385 = arith.constant 0.135547698 : f32
    %1010 = vector.broadcast %cst_385 : f32 to vector<2x16xf32>
    %1011 = arith.mulf %828, %1010 : vector<2x16xf32>
    %1012 = arith.addf %1009, %1011 : vector<2x16xf32>
    %cst_386 = arith.constant 0.108276151 : f32
    %1013 = vector.broadcast %cst_386 : f32 to vector<2x16xf32>
    %1014 = arith.mulf %833, %1013 : vector<2x16xf32>
    %1015 = arith.addf %1012, %1014 : vector<2x16xf32>
    %cst_387 = arith.constant 0.222973689 : f32
    %1016 = vector.broadcast %cst_387 : f32 to vector<2x16xf32>
    %1017 = arith.mulf %774, %1016 : vector<2x16xf32>
    %cst_388 = arith.constant -0.0759368613 : f32
    %1018 = vector.broadcast %cst_388 : f32 to vector<2x16xf32>
    %1019 = arith.mulf %798, %1018 : vector<2x16xf32>
    %1020 = arith.addf %1017, %1019 : vector<2x16xf32>
    %cst_389 = arith.constant -0.11993143 : f32
    %1021 = vector.broadcast %cst_389 : f32 to vector<2x16xf32>
    %1022 = arith.mulf %803, %1021 : vector<2x16xf32>
    %1023 = arith.addf %1020, %1022 : vector<2x16xf32>
    %cst_390 = arith.constant -0.0019540342 : f32
    %1024 = vector.broadcast %cst_390 : f32 to vector<2x16xf32>
    %1025 = arith.mulf %808, %1024 : vector<2x16xf32>
    %1026 = arith.addf %1023, %1025 : vector<2x16xf32>
    %cst_391 = arith.constant 0.243845567 : f32
    %1027 = vector.broadcast %cst_391 : f32 to vector<2x16xf32>
    %1028 = arith.mulf %813, %1027 : vector<2x16xf32>
    %1029 = arith.addf %1026, %1028 : vector<2x16xf32>
    %cst_392 = arith.constant -0.00526794698 : f32
    %1030 = vector.broadcast %cst_392 : f32 to vector<2x16xf32>
    %1031 = arith.mulf %818, %1030 : vector<2x16xf32>
    %1032 = arith.addf %1029, %1031 : vector<2x16xf32>
    %cst_393 = arith.constant -0.106069542 : f32
    %1033 = vector.broadcast %cst_393 : f32 to vector<2x16xf32>
    %1034 = arith.mulf %823, %1033 : vector<2x16xf32>
    %1035 = arith.addf %1032, %1034 : vector<2x16xf32>
    %cst_394 = arith.constant -0.0177336074 : f32
    %1036 = vector.broadcast %cst_394 : f32 to vector<2x16xf32>
    %1037 = arith.mulf %828, %1036 : vector<2x16xf32>
    %1038 = arith.addf %1035, %1037 : vector<2x16xf32>
    %cst_395 = arith.constant -0.0429025926 : f32
    %1039 = vector.broadcast %cst_395 : f32 to vector<2x16xf32>
    %1040 = arith.mulf %833, %1039 : vector<2x16xf32>
    %1041 = arith.addf %1038, %1040 : vector<2x16xf32>
    %cst_396 = arith.constant 0.0390232727 : f32
    %1042 = vector.broadcast %cst_396 : f32 to vector<2x16xf32>
    %1043 = arith.mulf %774, %1042 : vector<2x16xf32>
    %cst_397 = arith.constant -0.102899849 : f32
    %1044 = vector.broadcast %cst_397 : f32 to vector<2x16xf32>
    %1045 = arith.mulf %798, %1044 : vector<2x16xf32>
    %1046 = arith.addf %1043, %1045 : vector<2x16xf32>
    %cst_398 = arith.constant 0.0198756587 : f32
    %1047 = vector.broadcast %cst_398 : f32 to vector<2x16xf32>
    %1048 = arith.mulf %803, %1047 : vector<2x16xf32>
    %1049 = arith.addf %1046, %1048 : vector<2x16xf32>
    %cst_399 = arith.constant 0.0406032428 : f32
    %1050 = vector.broadcast %cst_399 : f32 to vector<2x16xf32>
    %1051 = arith.mulf %808, %1050 : vector<2x16xf32>
    %1052 = arith.addf %1049, %1051 : vector<2x16xf32>
    %cst_400 = arith.constant 0.0318230428 : f32
    %1053 = vector.broadcast %cst_400 : f32 to vector<2x16xf32>
    %1054 = arith.mulf %813, %1053 : vector<2x16xf32>
    %1055 = arith.addf %1052, %1054 : vector<2x16xf32>
    %cst_401 = arith.constant 0.0842120125 : f32
    %1056 = vector.broadcast %cst_401 : f32 to vector<2x16xf32>
    %1057 = arith.mulf %818, %1056 : vector<2x16xf32>
    %1058 = arith.addf %1055, %1057 : vector<2x16xf32>
    %cst_402 = arith.constant 0.177023336 : f32
    %1059 = vector.broadcast %cst_402 : f32 to vector<2x16xf32>
    %1060 = arith.mulf %823, %1059 : vector<2x16xf32>
    %1061 = arith.addf %1058, %1060 : vector<2x16xf32>
    %cst_403 = arith.constant -0.0367320552 : f32
    %1062 = vector.broadcast %cst_403 : f32 to vector<2x16xf32>
    %1063 = arith.mulf %828, %1062 : vector<2x16xf32>
    %1064 = arith.addf %1061, %1063 : vector<2x16xf32>
    %cst_404 = arith.constant -0.0465744026 : f32
    %1065 = vector.broadcast %cst_404 : f32 to vector<2x16xf32>
    %1066 = arith.mulf %833, %1065 : vector<2x16xf32>
    %1067 = arith.addf %1064, %1066 : vector<2x16xf32>
    %cst_405 = arith.constant 0.523424506 : f32
    %1068 = vector.broadcast %cst_405 : f32 to vector<2x16xf32>
    %1069 = arith.mulf %774, %1068 : vector<2x16xf32>
    %cst_406 = arith.constant 0.165568098 : f32
    %1070 = vector.broadcast %cst_406 : f32 to vector<2x16xf32>
    %1071 = arith.mulf %798, %1070 : vector<2x16xf32>
    %1072 = arith.addf %1069, %1071 : vector<2x16xf32>
    %cst_407 = arith.constant 0.00991657562 : f32
    %1073 = vector.broadcast %cst_407 : f32 to vector<2x16xf32>
    %1074 = arith.mulf %803, %1073 : vector<2x16xf32>
    %1075 = arith.addf %1072, %1074 : vector<2x16xf32>
    %cst_408 = arith.constant -0.0742722601 : f32
    %1076 = vector.broadcast %cst_408 : f32 to vector<2x16xf32>
    %1077 = arith.mulf %808, %1076 : vector<2x16xf32>
    %1078 = arith.addf %1075, %1077 : vector<2x16xf32>
    %cst_409 = arith.constant 0.111754656 : f32
    %1079 = vector.broadcast %cst_409 : f32 to vector<2x16xf32>
    %1080 = arith.mulf %813, %1079 : vector<2x16xf32>
    %1081 = arith.addf %1078, %1080 : vector<2x16xf32>
    %cst_410 = arith.constant -0.0606819279 : f32
    %1082 = vector.broadcast %cst_410 : f32 to vector<2x16xf32>
    %1083 = arith.mulf %818, %1082 : vector<2x16xf32>
    %1084 = arith.addf %1081, %1083 : vector<2x16xf32>
    %cst_411 = arith.constant 0.009416176 : f32
    %1085 = vector.broadcast %cst_411 : f32 to vector<2x16xf32>
    %1086 = arith.mulf %823, %1085 : vector<2x16xf32>
    %1087 = arith.addf %1084, %1086 : vector<2x16xf32>
    %cst_412 = arith.constant -0.101781107 : f32
    %1088 = vector.broadcast %cst_412 : f32 to vector<2x16xf32>
    %1089 = arith.mulf %828, %1088 : vector<2x16xf32>
    %1090 = arith.addf %1087, %1089 : vector<2x16xf32>
    %cst_413 = arith.constant -0.00419584289 : f32
    %1091 = vector.broadcast %cst_413 : f32 to vector<2x16xf32>
    %1092 = arith.mulf %833, %1091 : vector<2x16xf32>
    %1093 = arith.addf %1090, %1092 : vector<2x16xf32>
    %cst_414 = arith.constant -0.286527693 : f32
    %1094 = vector.broadcast %cst_414 : f32 to vector<2x16xf32>
    %1095 = arith.mulf %774, %1094 : vector<2x16xf32>
    %cst_415 = arith.constant -0.0882187933 : f32
    %1096 = vector.broadcast %cst_415 : f32 to vector<2x16xf32>
    %1097 = arith.mulf %798, %1096 : vector<2x16xf32>
    %1098 = arith.addf %1095, %1097 : vector<2x16xf32>
    %cst_416 = arith.constant 0.00617097039 : f32
    %1099 = vector.broadcast %cst_416 : f32 to vector<2x16xf32>
    %1100 = arith.mulf %803, %1099 : vector<2x16xf32>
    %1101 = arith.addf %1098, %1100 : vector<2x16xf32>
    %cst_417 = arith.constant 0.0598106571 : f32
    %1102 = vector.broadcast %cst_417 : f32 to vector<2x16xf32>
    %1103 = arith.mulf %808, %1102 : vector<2x16xf32>
    %1104 = arith.addf %1101, %1103 : vector<2x16xf32>
    %cst_418 = arith.constant 0.0125423279 : f32
    %1105 = vector.broadcast %cst_418 : f32 to vector<2x16xf32>
    %1106 = arith.mulf %813, %1105 : vector<2x16xf32>
    %1107 = arith.addf %1104, %1106 : vector<2x16xf32>
    %cst_419 = arith.constant 0.0445667543 : f32
    %1108 = vector.broadcast %cst_419 : f32 to vector<2x16xf32>
    %1109 = arith.mulf %818, %1108 : vector<2x16xf32>
    %1110 = arith.addf %1107, %1109 : vector<2x16xf32>
    %cst_420 = arith.constant 0.137945831 : f32
    %1111 = vector.broadcast %cst_420 : f32 to vector<2x16xf32>
    %1112 = arith.mulf %823, %1111 : vector<2x16xf32>
    %1113 = arith.addf %1110, %1112 : vector<2x16xf32>
    %cst_421 = arith.constant 0.205977082 : f32
    %1114 = vector.broadcast %cst_421 : f32 to vector<2x16xf32>
    %1115 = arith.mulf %828, %1114 : vector<2x16xf32>
    %1116 = arith.addf %1113, %1115 : vector<2x16xf32>
    %cst_422 = arith.constant -0.129402086 : f32
    %1117 = vector.broadcast %cst_422 : f32 to vector<2x16xf32>
    %1118 = arith.mulf %833, %1117 : vector<2x16xf32>
    %1119 = arith.addf %1116, %1118 : vector<2x16xf32>
    %cst_423 = arith.constant -0.199819893 : f32
    %1120 = vector.broadcast %cst_423 : f32 to vector<2x16xf32>
    %1121 = arith.mulf %774, %1120 : vector<2x16xf32>
    %cst_424 = arith.constant 0.0720503107 : f32
    %1122 = vector.broadcast %cst_424 : f32 to vector<2x16xf32>
    %1123 = arith.mulf %798, %1122 : vector<2x16xf32>
    %1124 = arith.addf %1121, %1123 : vector<2x16xf32>
    %cst_425 = arith.constant 0.0416620485 : f32
    %1125 = vector.broadcast %cst_425 : f32 to vector<2x16xf32>
    %1126 = arith.mulf %803, %1125 : vector<2x16xf32>
    %1127 = arith.addf %1124, %1126 : vector<2x16xf32>
    %cst_426 = arith.constant 0.0770768896 : f32
    %1128 = vector.broadcast %cst_426 : f32 to vector<2x16xf32>
    %1129 = arith.mulf %808, %1128 : vector<2x16xf32>
    %1130 = arith.addf %1127, %1129 : vector<2x16xf32>
    %cst_427 = arith.constant -0.0797592625 : f32
    %1131 = vector.broadcast %cst_427 : f32 to vector<2x16xf32>
    %1132 = arith.mulf %813, %1131 : vector<2x16xf32>
    %1133 = arith.addf %1130, %1132 : vector<2x16xf32>
    %cst_428 = arith.constant -0.092617847 : f32
    %1134 = vector.broadcast %cst_428 : f32 to vector<2x16xf32>
    %1135 = arith.mulf %818, %1134 : vector<2x16xf32>
    %1136 = arith.addf %1133, %1135 : vector<2x16xf32>
    %cst_429 = arith.constant 0.0792093277 : f32
    %1137 = vector.broadcast %cst_429 : f32 to vector<2x16xf32>
    %1138 = arith.mulf %823, %1137 : vector<2x16xf32>
    %1139 = arith.addf %1136, %1138 : vector<2x16xf32>
    %cst_430 = arith.constant -0.0380121469 : f32
    %1140 = vector.broadcast %cst_430 : f32 to vector<2x16xf32>
    %1141 = arith.mulf %828, %1140 : vector<2x16xf32>
    %1142 = arith.addf %1139, %1141 : vector<2x16xf32>
    %cst_431 = arith.constant 0.0796973183 : f32
    %1143 = vector.broadcast %cst_431 : f32 to vector<2x16xf32>
    %1144 = arith.mulf %833, %1143 : vector<2x16xf32>
    %1145 = arith.addf %1142, %1144 : vector<2x16xf32>
    %cst_432 = arith.constant 0.156062528 : f32
    %1146 = vector.broadcast %cst_432 : f32 to vector<2x16xf32>
    %1147 = arith.mulf %774, %1146 : vector<2x16xf32>
    %cst_433 = arith.constant -0.00213053869 : f32
    %1148 = vector.broadcast %cst_433 : f32 to vector<2x16xf32>
    %1149 = arith.mulf %798, %1148 : vector<2x16xf32>
    %1150 = arith.addf %1147, %1149 : vector<2x16xf32>
    %cst_434 = arith.constant -0.0368701629 : f32
    %1151 = vector.broadcast %cst_434 : f32 to vector<2x16xf32>
    %1152 = arith.mulf %803, %1151 : vector<2x16xf32>
    %1153 = arith.addf %1150, %1152 : vector<2x16xf32>
    %cst_435 = arith.constant 0.10370861 : f32
    %1154 = vector.broadcast %cst_435 : f32 to vector<2x16xf32>
    %1155 = arith.mulf %808, %1154 : vector<2x16xf32>
    %1156 = arith.addf %1153, %1155 : vector<2x16xf32>
    %cst_436 = arith.constant -0.0179217197 : f32
    %1157 = vector.broadcast %cst_436 : f32 to vector<2x16xf32>
    %1158 = arith.mulf %813, %1157 : vector<2x16xf32>
    %1159 = arith.addf %1156, %1158 : vector<2x16xf32>
    %cst_437 = arith.constant -0.135394037 : f32
    %1160 = vector.broadcast %cst_437 : f32 to vector<2x16xf32>
    %1161 = arith.mulf %818, %1160 : vector<2x16xf32>
    %1162 = arith.addf %1159, %1161 : vector<2x16xf32>
    %cst_438 = arith.constant -0.0576058924 : f32
    %1163 = vector.broadcast %cst_438 : f32 to vector<2x16xf32>
    %1164 = arith.mulf %823, %1163 : vector<2x16xf32>
    %1165 = arith.addf %1162, %1164 : vector<2x16xf32>
    %cst_439 = arith.constant 7.511210e-02 : f32
    %1166 = vector.broadcast %cst_439 : f32 to vector<2x16xf32>
    %1167 = arith.mulf %828, %1166 : vector<2x16xf32>
    %1168 = arith.addf %1165, %1167 : vector<2x16xf32>
    %cst_440 = arith.constant -0.0331376307 : f32
    %1169 = vector.broadcast %cst_440 : f32 to vector<2x16xf32>
    %1170 = arith.mulf %833, %1169 : vector<2x16xf32>
    %1171 = arith.addf %1168, %1170 : vector<2x16xf32>
    %cst_441 = arith.constant 0.384666562 : f32
    %1172 = vector.broadcast %cst_441 : f32 to vector<2x16xf32>
    %1173 = arith.mulf %774, %1172 : vector<2x16xf32>
    %cst_442 = arith.constant 0.156201318 : f32
    %1174 = vector.broadcast %cst_442 : f32 to vector<2x16xf32>
    %1175 = arith.mulf %798, %1174 : vector<2x16xf32>
    %1176 = arith.addf %1173, %1175 : vector<2x16xf32>
    %cst_443 = arith.constant 0.00315376674 : f32
    %1177 = vector.broadcast %cst_443 : f32 to vector<2x16xf32>
    %1178 = arith.mulf %803, %1177 : vector<2x16xf32>
    %1179 = arith.addf %1176, %1178 : vector<2x16xf32>
    %cst_444 = arith.constant -0.0757000223 : f32
    %1180 = vector.broadcast %cst_444 : f32 to vector<2x16xf32>
    %1181 = arith.mulf %808, %1180 : vector<2x16xf32>
    %1182 = arith.addf %1179, %1181 : vector<2x16xf32>
    %cst_445 = arith.constant -0.0568903908 : f32
    %1183 = vector.broadcast %cst_445 : f32 to vector<2x16xf32>
    %1184 = arith.mulf %813, %1183 : vector<2x16xf32>
    %1185 = arith.addf %1182, %1184 : vector<2x16xf32>
    %cst_446 = arith.constant 0.00409255316 : f32
    %1186 = vector.broadcast %cst_446 : f32 to vector<2x16xf32>
    %1187 = arith.mulf %818, %1186 : vector<2x16xf32>
    %1188 = arith.addf %1185, %1187 : vector<2x16xf32>
    %cst_447 = arith.constant -0.114055887 : f32
    %1189 = vector.broadcast %cst_447 : f32 to vector<2x16xf32>
    %1190 = arith.mulf %823, %1189 : vector<2x16xf32>
    %1191 = arith.addf %1188, %1190 : vector<2x16xf32>
    %cst_448 = arith.constant -0.17864418 : f32
    %1192 = vector.broadcast %cst_448 : f32 to vector<2x16xf32>
    %1193 = arith.mulf %828, %1192 : vector<2x16xf32>
    %1194 = arith.addf %1191, %1193 : vector<2x16xf32>
    %cst_449 = arith.constant 0.0654241144 : f32
    %1195 = vector.broadcast %cst_449 : f32 to vector<2x16xf32>
    %1196 = arith.mulf %833, %1195 : vector<2x16xf32>
    %1197 = arith.addf %1194, %1196 : vector<2x16xf32>
    %cst_450 = arith.constant -0.295041174 : f32
    %1198 = vector.broadcast %cst_450 : f32 to vector<2x16xf32>
    %1199 = arith.mulf %774, %1198 : vector<2x16xf32>
    %cst_451 = arith.constant -0.0295329709 : f32
    %1200 = vector.broadcast %cst_451 : f32 to vector<2x16xf32>
    %1201 = arith.mulf %798, %1200 : vector<2x16xf32>
    %1202 = arith.addf %1199, %1201 : vector<2x16xf32>
    %cst_452 = arith.constant -0.123025164 : f32
    %1203 = vector.broadcast %cst_452 : f32 to vector<2x16xf32>
    %1204 = arith.mulf %803, %1203 : vector<2x16xf32>
    %1205 = arith.addf %1202, %1204 : vector<2x16xf32>
    %cst_453 = arith.constant -0.0197286736 : f32
    %1206 = vector.broadcast %cst_453 : f32 to vector<2x16xf32>
    %1207 = arith.mulf %808, %1206 : vector<2x16xf32>
    %1208 = arith.addf %1205, %1207 : vector<2x16xf32>
    %cst_454 = arith.constant -0.0525450148 : f32
    %1209 = vector.broadcast %cst_454 : f32 to vector<2x16xf32>
    %1210 = arith.mulf %813, %1209 : vector<2x16xf32>
    %1211 = arith.addf %1208, %1210 : vector<2x16xf32>
    %cst_455 = arith.constant -0.211504102 : f32
    %1212 = vector.broadcast %cst_455 : f32 to vector<2x16xf32>
    %1213 = arith.mulf %818, %1212 : vector<2x16xf32>
    %1214 = arith.addf %1211, %1213 : vector<2x16xf32>
    %cst_456 = arith.constant 0.051456809 : f32
    %1215 = vector.broadcast %cst_456 : f32 to vector<2x16xf32>
    %1216 = arith.mulf %823, %1215 : vector<2x16xf32>
    %1217 = arith.addf %1214, %1216 : vector<2x16xf32>
    %cst_457 = arith.constant -0.0432547964 : f32
    %1218 = vector.broadcast %cst_457 : f32 to vector<2x16xf32>
    %1219 = arith.mulf %828, %1218 : vector<2x16xf32>
    %1220 = arith.addf %1217, %1219 : vector<2x16xf32>
    %cst_458 = arith.constant 0.0880163908 : f32
    %1221 = vector.broadcast %cst_458 : f32 to vector<2x16xf32>
    %1222 = arith.mulf %833, %1221 : vector<2x16xf32>
    %1223 = arith.addf %1220, %1222 : vector<2x16xf32>
    %cst_459 = arith.constant 0.0695451126 : f32
    %1224 = vector.broadcast %cst_459 : f32 to vector<2x16xf32>
    %1225 = arith.mulf %774, %1224 : vector<2x16xf32>
    %cst_460 = arith.constant 0.183971211 : f32
    %1226 = vector.broadcast %cst_460 : f32 to vector<2x16xf32>
    %1227 = arith.mulf %798, %1226 : vector<2x16xf32>
    %1228 = arith.addf %1225, %1227 : vector<2x16xf32>
    %cst_461 = arith.constant -0.0490232296 : f32
    %1229 = vector.broadcast %cst_461 : f32 to vector<2x16xf32>
    %1230 = arith.mulf %803, %1229 : vector<2x16xf32>
    %1231 = arith.addf %1228, %1230 : vector<2x16xf32>
    %cst_462 = arith.constant 0.0474151745 : f32
    %1232 = vector.broadcast %cst_462 : f32 to vector<2x16xf32>
    %1233 = arith.mulf %808, %1232 : vector<2x16xf32>
    %1234 = arith.addf %1231, %1233 : vector<2x16xf32>
    %cst_463 = arith.constant -0.23508741 : f32
    %1235 = vector.broadcast %cst_463 : f32 to vector<2x16xf32>
    %1236 = arith.mulf %813, %1235 : vector<2x16xf32>
    %1237 = arith.addf %1234, %1236 : vector<2x16xf32>
    %cst_464 = arith.constant -0.193719923 : f32
    %1238 = vector.broadcast %cst_464 : f32 to vector<2x16xf32>
    %1239 = arith.mulf %818, %1238 : vector<2x16xf32>
    %1240 = arith.addf %1237, %1239 : vector<2x16xf32>
    %cst_465 = arith.constant -0.0895917565 : f32
    %1241 = vector.broadcast %cst_465 : f32 to vector<2x16xf32>
    %1242 = arith.mulf %823, %1241 : vector<2x16xf32>
    %1243 = arith.addf %1240, %1242 : vector<2x16xf32>
    %cst_466 = arith.constant -0.0270046424 : f32
    %1244 = vector.broadcast %cst_466 : f32 to vector<2x16xf32>
    %1245 = arith.mulf %828, %1244 : vector<2x16xf32>
    %1246 = arith.addf %1243, %1245 : vector<2x16xf32>
    %cst_467 = arith.constant -0.0549217425 : f32
    %1247 = vector.broadcast %cst_467 : f32 to vector<2x16xf32>
    %1248 = arith.mulf %833, %1247 : vector<2x16xf32>
    %1249 = arith.addf %1246, %1248 : vector<2x16xf32>
    %cst_468 = arith.constant 0.000000e+00 : f32
    %1250 = vector.broadcast %cst_468 : f32 to vector<2x16xf32>
    %1251 = arith.maximumf %859, %1250 : vector<2x16xf32>
    %cst_469 = arith.constant 0.000000e+00 : f32
    %1252 = vector.broadcast %cst_469 : f32 to vector<2x16xf32>
    %1253 = arith.maximumf %885, %1252 : vector<2x16xf32>
    %cst_470 = arith.constant 0.000000e+00 : f32
    %1254 = vector.broadcast %cst_470 : f32 to vector<2x16xf32>
    %1255 = arith.maximumf %911, %1254 : vector<2x16xf32>
    %cst_471 = arith.constant 0.000000e+00 : f32
    %1256 = vector.broadcast %cst_471 : f32 to vector<2x16xf32>
    %1257 = arith.maximumf %937, %1256 : vector<2x16xf32>
    %cst_472 = arith.constant 0.000000e+00 : f32
    %1258 = vector.broadcast %cst_472 : f32 to vector<2x16xf32>
    %1259 = arith.maximumf %963, %1258 : vector<2x16xf32>
    %cst_473 = arith.constant 0.000000e+00 : f32
    %1260 = vector.broadcast %cst_473 : f32 to vector<2x16xf32>
    %1261 = arith.maximumf %989, %1260 : vector<2x16xf32>
    %cst_474 = arith.constant 0.000000e+00 : f32
    %1262 = vector.broadcast %cst_474 : f32 to vector<2x16xf32>
    %1263 = arith.maximumf %1015, %1262 : vector<2x16xf32>
    %cst_475 = arith.constant 0.000000e+00 : f32
    %1264 = vector.broadcast %cst_475 : f32 to vector<2x16xf32>
    %1265 = arith.maximumf %1041, %1264 : vector<2x16xf32>
    %cst_476 = arith.constant 0.000000e+00 : f32
    %1266 = vector.broadcast %cst_476 : f32 to vector<2x16xf32>
    %1267 = arith.maximumf %1067, %1266 : vector<2x16xf32>
    %cst_477 = arith.constant 0.000000e+00 : f32
    %1268 = vector.broadcast %cst_477 : f32 to vector<2x16xf32>
    %1269 = arith.maximumf %1093, %1268 : vector<2x16xf32>
    %cst_478 = arith.constant 0.000000e+00 : f32
    %1270 = vector.broadcast %cst_478 : f32 to vector<2x16xf32>
    %1271 = arith.maximumf %1119, %1270 : vector<2x16xf32>
    %cst_479 = arith.constant 0.000000e+00 : f32
    %1272 = vector.broadcast %cst_479 : f32 to vector<2x16xf32>
    %1273 = arith.maximumf %1145, %1272 : vector<2x16xf32>
    %cst_480 = arith.constant 0.000000e+00 : f32
    %1274 = vector.broadcast %cst_480 : f32 to vector<2x16xf32>
    %1275 = arith.maximumf %1171, %1274 : vector<2x16xf32>
    %cst_481 = arith.constant 0.000000e+00 : f32
    %1276 = vector.broadcast %cst_481 : f32 to vector<2x16xf32>
    %1277 = arith.maximumf %1197, %1276 : vector<2x16xf32>
    %cst_482 = arith.constant 0.000000e+00 : f32
    %1278 = vector.broadcast %cst_482 : f32 to vector<2x16xf32>
    %1279 = arith.maximumf %1223, %1278 : vector<2x16xf32>
    %cst_483 = arith.constant 0.000000e+00 : f32
    %1280 = vector.broadcast %cst_483 : f32 to vector<2x16xf32>
    %1281 = arith.maximumf %1249, %1280 : vector<2x16xf32>
    %cst_484 = arith.constant 0.0830356926 : f32
    %1282 = vector.broadcast %cst_484 : f32 to vector<2x16xf32>
    %1283 = arith.mulf %1251, %1282 : vector<2x16xf32>
    %cst_485 = arith.constant 0.0476011485 : f32
    %1284 = vector.broadcast %cst_485 : f32 to vector<2x16xf32>
    %1285 = arith.mulf %1253, %1284 : vector<2x16xf32>
    %1286 = arith.addf %1283, %1285 : vector<2x16xf32>
    %cst_486 = arith.constant -0.1178445 : f32
    %1287 = vector.broadcast %cst_486 : f32 to vector<2x16xf32>
    %1288 = arith.mulf %1255, %1287 : vector<2x16xf32>
    %1289 = arith.addf %1286, %1288 : vector<2x16xf32>
    %cst_487 = arith.constant -0.0331798978 : f32
    %1290 = vector.broadcast %cst_487 : f32 to vector<2x16xf32>
    %1291 = arith.mulf %1257, %1290 : vector<2x16xf32>
    %1292 = arith.addf %1289, %1291 : vector<2x16xf32>
    %cst_488 = arith.constant -0.0596144684 : f32
    %1293 = vector.broadcast %cst_488 : f32 to vector<2x16xf32>
    %1294 = arith.mulf %1259, %1293 : vector<2x16xf32>
    %1295 = arith.addf %1292, %1294 : vector<2x16xf32>
    %cst_489 = arith.constant -0.0171635654 : f32
    %1296 = vector.broadcast %cst_489 : f32 to vector<2x16xf32>
    %1297 = arith.mulf %1261, %1296 : vector<2x16xf32>
    %1298 = arith.addf %1295, %1297 : vector<2x16xf32>
    %cst_490 = arith.constant -0.0106421662 : f32
    %1299 = vector.broadcast %cst_490 : f32 to vector<2x16xf32>
    %1300 = arith.mulf %1263, %1299 : vector<2x16xf32>
    %1301 = arith.addf %1298, %1300 : vector<2x16xf32>
    %cst_491 = arith.constant -0.051514823 : f32
    %1302 = vector.broadcast %cst_491 : f32 to vector<2x16xf32>
    %1303 = arith.mulf %1265, %1302 : vector<2x16xf32>
    %1304 = arith.addf %1301, %1303 : vector<2x16xf32>
    %cst_492 = arith.constant -0.0592974909 : f32
    %1305 = vector.broadcast %cst_492 : f32 to vector<2x16xf32>
    %1306 = arith.mulf %1267, %1305 : vector<2x16xf32>
    %1307 = arith.addf %1304, %1306 : vector<2x16xf32>
    %cst_493 = arith.constant -0.094911769 : f32
    %1308 = vector.broadcast %cst_493 : f32 to vector<2x16xf32>
    %1309 = arith.mulf %1269, %1308 : vector<2x16xf32>
    %1310 = arith.addf %1307, %1309 : vector<2x16xf32>
    %cst_494 = arith.constant -0.0949641093 : f32
    %1311 = vector.broadcast %cst_494 : f32 to vector<2x16xf32>
    %1312 = arith.mulf %1271, %1311 : vector<2x16xf32>
    %1313 = arith.addf %1310, %1312 : vector<2x16xf32>
    %cst_495 = arith.constant -0.023091672 : f32
    %1314 = vector.broadcast %cst_495 : f32 to vector<2x16xf32>
    %1315 = arith.mulf %1273, %1314 : vector<2x16xf32>
    %1316 = arith.addf %1313, %1315 : vector<2x16xf32>
    %cst_496 = arith.constant -0.0868776366 : f32
    %1317 = vector.broadcast %cst_496 : f32 to vector<2x16xf32>
    %1318 = arith.mulf %1275, %1317 : vector<2x16xf32>
    %1319 = arith.addf %1316, %1318 : vector<2x16xf32>
    %cst_497 = arith.constant -0.0193604138 : f32
    %1320 = vector.broadcast %cst_497 : f32 to vector<2x16xf32>
    %1321 = arith.mulf %1277, %1320 : vector<2x16xf32>
    %1322 = arith.addf %1319, %1321 : vector<2x16xf32>
    %cst_498 = arith.constant -0.0766939148 : f32
    %1323 = vector.broadcast %cst_498 : f32 to vector<2x16xf32>
    %1324 = arith.mulf %1279, %1323 : vector<2x16xf32>
    %1325 = arith.addf %1322, %1324 : vector<2x16xf32>
    %cst_499 = arith.constant -0.181206197 : f32
    %1326 = vector.broadcast %cst_499 : f32 to vector<2x16xf32>
    %1327 = arith.mulf %1281, %1326 : vector<2x16xf32>
    %1328 = arith.addf %1325, %1327 : vector<2x16xf32>
    %cst_500 = arith.constant -0.0887986869 : f32
    %1329 = vector.broadcast %cst_500 : f32 to vector<2x16xf32>
    %1330 = arith.mulf %1251, %1329 : vector<2x16xf32>
    %cst_501 = arith.constant 0.100058012 : f32
    %1331 = vector.broadcast %cst_501 : f32 to vector<2x16xf32>
    %1332 = arith.mulf %1253, %1331 : vector<2x16xf32>
    %1333 = arith.addf %1330, %1332 : vector<2x16xf32>
    %cst_502 = arith.constant -0.0664753839 : f32
    %1334 = vector.broadcast %cst_502 : f32 to vector<2x16xf32>
    %1335 = arith.mulf %1255, %1334 : vector<2x16xf32>
    %1336 = arith.addf %1333, %1335 : vector<2x16xf32>
    %cst_503 = arith.constant 0.159981027 : f32
    %1337 = vector.broadcast %cst_503 : f32 to vector<2x16xf32>
    %1338 = arith.mulf %1257, %1337 : vector<2x16xf32>
    %1339 = arith.addf %1336, %1338 : vector<2x16xf32>
    %cst_504 = arith.constant -0.0754025131 : f32
    %1340 = vector.broadcast %cst_504 : f32 to vector<2x16xf32>
    %1341 = arith.mulf %1259, %1340 : vector<2x16xf32>
    %1342 = arith.addf %1339, %1341 : vector<2x16xf32>
    %cst_505 = arith.constant -0.0235378556 : f32
    %1343 = vector.broadcast %cst_505 : f32 to vector<2x16xf32>
    %1344 = arith.mulf %1261, %1343 : vector<2x16xf32>
    %1345 = arith.addf %1342, %1344 : vector<2x16xf32>
    %cst_506 = arith.constant 0.0329077244 : f32
    %1346 = vector.broadcast %cst_506 : f32 to vector<2x16xf32>
    %1347 = arith.mulf %1263, %1346 : vector<2x16xf32>
    %1348 = arith.addf %1345, %1347 : vector<2x16xf32>
    %cst_507 = arith.constant -0.0535805412 : f32
    %1349 = vector.broadcast %cst_507 : f32 to vector<2x16xf32>
    %1350 = arith.mulf %1265, %1349 : vector<2x16xf32>
    %1351 = arith.addf %1348, %1350 : vector<2x16xf32>
    %cst_508 = arith.constant 0.101538025 : f32
    %1352 = vector.broadcast %cst_508 : f32 to vector<2x16xf32>
    %1353 = arith.mulf %1267, %1352 : vector<2x16xf32>
    %1354 = arith.addf %1351, %1353 : vector<2x16xf32>
    %cst_509 = arith.constant 0.101197474 : f32
    %1355 = vector.broadcast %cst_509 : f32 to vector<2x16xf32>
    %1356 = arith.mulf %1269, %1355 : vector<2x16xf32>
    %1357 = arith.addf %1354, %1356 : vector<2x16xf32>
    %cst_510 = arith.constant -0.0147112301 : f32
    %1358 = vector.broadcast %cst_510 : f32 to vector<2x16xf32>
    %1359 = arith.mulf %1271, %1358 : vector<2x16xf32>
    %1360 = arith.addf %1357, %1359 : vector<2x16xf32>
    %cst_511 = arith.constant 0.0826354324 : f32
    %1361 = vector.broadcast %cst_511 : f32 to vector<2x16xf32>
    %1362 = arith.mulf %1273, %1361 : vector<2x16xf32>
    %1363 = arith.addf %1360, %1362 : vector<2x16xf32>
    %cst_512 = arith.constant -0.144419074 : f32
    %1364 = vector.broadcast %cst_512 : f32 to vector<2x16xf32>
    %1365 = arith.mulf %1275, %1364 : vector<2x16xf32>
    %1366 = arith.addf %1363, %1365 : vector<2x16xf32>
    %cst_513 = arith.constant -0.0729747787 : f32
    %1367 = vector.broadcast %cst_513 : f32 to vector<2x16xf32>
    %1368 = arith.mulf %1277, %1367 : vector<2x16xf32>
    %1369 = arith.addf %1366, %1368 : vector<2x16xf32>
    %cst_514 = arith.constant -0.0566076785 : f32
    %1370 = vector.broadcast %cst_514 : f32 to vector<2x16xf32>
    %1371 = arith.mulf %1279, %1370 : vector<2x16xf32>
    %1372 = arith.addf %1369, %1371 : vector<2x16xf32>
    %cst_515 = arith.constant 0.00527312793 : f32
    %1373 = vector.broadcast %cst_515 : f32 to vector<2x16xf32>
    %1374 = arith.mulf %1281, %1373 : vector<2x16xf32>
    %1375 = arith.addf %1372, %1374 : vector<2x16xf32>
    %cst_516 = arith.constant 0.109184355 : f32
    %1376 = vector.broadcast %cst_516 : f32 to vector<2x16xf32>
    %1377 = arith.mulf %1251, %1376 : vector<2x16xf32>
    %cst_517 = arith.constant 0.0572192818 : f32
    %1378 = vector.broadcast %cst_517 : f32 to vector<2x16xf32>
    %1379 = arith.mulf %1253, %1378 : vector<2x16xf32>
    %1380 = arith.addf %1377, %1379 : vector<2x16xf32>
    %cst_518 = arith.constant -0.0183376651 : f32
    %1381 = vector.broadcast %cst_518 : f32 to vector<2x16xf32>
    %1382 = arith.mulf %1255, %1381 : vector<2x16xf32>
    %1383 = arith.addf %1380, %1382 : vector<2x16xf32>
    %cst_519 = arith.constant 0.0816724821 : f32
    %1384 = vector.broadcast %cst_519 : f32 to vector<2x16xf32>
    %1385 = arith.mulf %1257, %1384 : vector<2x16xf32>
    %1386 = arith.addf %1383, %1385 : vector<2x16xf32>
    %cst_520 = arith.constant 0.108534582 : f32
    %1387 = vector.broadcast %cst_520 : f32 to vector<2x16xf32>
    %1388 = arith.mulf %1259, %1387 : vector<2x16xf32>
    %1389 = arith.addf %1386, %1388 : vector<2x16xf32>
    %cst_521 = arith.constant 0.0989856049 : f32
    %1390 = vector.broadcast %cst_521 : f32 to vector<2x16xf32>
    %1391 = arith.mulf %1261, %1390 : vector<2x16xf32>
    %1392 = arith.addf %1389, %1391 : vector<2x16xf32>
    %cst_522 = arith.constant -0.0345357098 : f32
    %1393 = vector.broadcast %cst_522 : f32 to vector<2x16xf32>
    %1394 = arith.mulf %1263, %1393 : vector<2x16xf32>
    %1395 = arith.addf %1392, %1394 : vector<2x16xf32>
    %cst_523 = arith.constant 0.0167432558 : f32
    %1396 = vector.broadcast %cst_523 : f32 to vector<2x16xf32>
    %1397 = arith.mulf %1265, %1396 : vector<2x16xf32>
    %1398 = arith.addf %1395, %1397 : vector<2x16xf32>
    %cst_524 = arith.constant 0.0829626843 : f32
    %1399 = vector.broadcast %cst_524 : f32 to vector<2x16xf32>
    %1400 = arith.mulf %1267, %1399 : vector<2x16xf32>
    %1401 = arith.addf %1398, %1400 : vector<2x16xf32>
    %cst_525 = arith.constant -0.077977918 : f32
    %1402 = vector.broadcast %cst_525 : f32 to vector<2x16xf32>
    %1403 = arith.mulf %1269, %1402 : vector<2x16xf32>
    %1404 = arith.addf %1401, %1403 : vector<2x16xf32>
    %cst_526 = arith.constant -0.0256730746 : f32
    %1405 = vector.broadcast %cst_526 : f32 to vector<2x16xf32>
    %1406 = arith.mulf %1271, %1405 : vector<2x16xf32>
    %1407 = arith.addf %1404, %1406 : vector<2x16xf32>
    %cst_527 = arith.constant 3.131890e-02 : f32
    %1408 = vector.broadcast %cst_527 : f32 to vector<2x16xf32>
    %1409 = arith.mulf %1273, %1408 : vector<2x16xf32>
    %1410 = arith.addf %1407, %1409 : vector<2x16xf32>
    %cst_528 = arith.constant 0.0976505428 : f32
    %1411 = vector.broadcast %cst_528 : f32 to vector<2x16xf32>
    %1412 = arith.mulf %1275, %1411 : vector<2x16xf32>
    %1413 = arith.addf %1410, %1412 : vector<2x16xf32>
    %cst_529 = arith.constant -0.00846389308 : f32
    %1414 = vector.broadcast %cst_529 : f32 to vector<2x16xf32>
    %1415 = arith.mulf %1277, %1414 : vector<2x16xf32>
    %1416 = arith.addf %1413, %1415 : vector<2x16xf32>
    %cst_530 = arith.constant -0.0525367148 : f32
    %1417 = vector.broadcast %cst_530 : f32 to vector<2x16xf32>
    %1418 = arith.mulf %1279, %1417 : vector<2x16xf32>
    %1419 = arith.addf %1416, %1418 : vector<2x16xf32>
    %cst_531 = arith.constant -0.0705032274 : f32
    %1420 = vector.broadcast %cst_531 : f32 to vector<2x16xf32>
    %1421 = arith.mulf %1281, %1420 : vector<2x16xf32>
    %1422 = arith.addf %1419, %1421 : vector<2x16xf32>
    %cst_532 = arith.constant 0.0407260731 : f32
    %1423 = vector.broadcast %cst_532 : f32 to vector<2x16xf32>
    %1424 = arith.mulf %1251, %1423 : vector<2x16xf32>
    %cst_533 = arith.constant -0.020881936 : f32
    %1425 = vector.broadcast %cst_533 : f32 to vector<2x16xf32>
    %1426 = arith.mulf %1253, %1425 : vector<2x16xf32>
    %1427 = arith.addf %1424, %1426 : vector<2x16xf32>
    %cst_534 = arith.constant -0.0637265071 : f32
    %1428 = vector.broadcast %cst_534 : f32 to vector<2x16xf32>
    %1429 = arith.mulf %1255, %1428 : vector<2x16xf32>
    %1430 = arith.addf %1427, %1429 : vector<2x16xf32>
    %cst_535 = arith.constant -0.107864939 : f32
    %1431 = vector.broadcast %cst_535 : f32 to vector<2x16xf32>
    %1432 = arith.mulf %1257, %1431 : vector<2x16xf32>
    %1433 = arith.addf %1430, %1432 : vector<2x16xf32>
    %cst_536 = arith.constant 0.00369070447 : f32
    %1434 = vector.broadcast %cst_536 : f32 to vector<2x16xf32>
    %1435 = arith.mulf %1259, %1434 : vector<2x16xf32>
    %1436 = arith.addf %1433, %1435 : vector<2x16xf32>
    %cst_537 = arith.constant 0.0928704515 : f32
    %1437 = vector.broadcast %cst_537 : f32 to vector<2x16xf32>
    %1438 = arith.mulf %1261, %1437 : vector<2x16xf32>
    %1439 = arith.addf %1436, %1438 : vector<2x16xf32>
    %cst_538 = arith.constant 0.0439786837 : f32
    %1440 = vector.broadcast %cst_538 : f32 to vector<2x16xf32>
    %1441 = arith.mulf %1263, %1440 : vector<2x16xf32>
    %1442 = arith.addf %1439, %1441 : vector<2x16xf32>
    %cst_539 = arith.constant 0.0930491611 : f32
    %1443 = vector.broadcast %cst_539 : f32 to vector<2x16xf32>
    %1444 = arith.mulf %1265, %1443 : vector<2x16xf32>
    %1445 = arith.addf %1442, %1444 : vector<2x16xf32>
    %cst_540 = arith.constant -0.0311875474 : f32
    %1446 = vector.broadcast %cst_540 : f32 to vector<2x16xf32>
    %1447 = arith.mulf %1267, %1446 : vector<2x16xf32>
    %1448 = arith.addf %1445, %1447 : vector<2x16xf32>
    %cst_541 = arith.constant 0.0932971537 : f32
    %1449 = vector.broadcast %cst_541 : f32 to vector<2x16xf32>
    %1450 = arith.mulf %1269, %1449 : vector<2x16xf32>
    %1451 = arith.addf %1448, %1450 : vector<2x16xf32>
    %cst_542 = arith.constant -0.170357287 : f32
    %1452 = vector.broadcast %cst_542 : f32 to vector<2x16xf32>
    %1453 = arith.mulf %1271, %1452 : vector<2x16xf32>
    %1454 = arith.addf %1451, %1453 : vector<2x16xf32>
    %cst_543 = arith.constant 0.0709167719 : f32
    %1455 = vector.broadcast %cst_543 : f32 to vector<2x16xf32>
    %1456 = arith.mulf %1273, %1455 : vector<2x16xf32>
    %1457 = arith.addf %1454, %1456 : vector<2x16xf32>
    %cst_544 = arith.constant 0.0217221677 : f32
    %1458 = vector.broadcast %cst_544 : f32 to vector<2x16xf32>
    %1459 = arith.mulf %1275, %1458 : vector<2x16xf32>
    %1460 = arith.addf %1457, %1459 : vector<2x16xf32>
    %cst_545 = arith.constant 0.017149061 : f32
    %1461 = vector.broadcast %cst_545 : f32 to vector<2x16xf32>
    %1462 = arith.mulf %1277, %1461 : vector<2x16xf32>
    %1463 = arith.addf %1460, %1462 : vector<2x16xf32>
    %cst_546 = arith.constant -0.0812454298 : f32
    %1464 = vector.broadcast %cst_546 : f32 to vector<2x16xf32>
    %1465 = arith.mulf %1279, %1464 : vector<2x16xf32>
    %1466 = arith.addf %1463, %1465 : vector<2x16xf32>
    %cst_547 = arith.constant 0.0532554463 : f32
    %1467 = vector.broadcast %cst_547 : f32 to vector<2x16xf32>
    %1468 = arith.mulf %1281, %1467 : vector<2x16xf32>
    %1469 = arith.addf %1466, %1468 : vector<2x16xf32>
    %cst_548 = arith.constant 2.000000e+00 : f32
    %1470 = vector.broadcast %cst_548 : f32 to vector<2x16xf32>
    %1471 = arith.addf %1422, %1470 : vector<2x16xf32>
    %1472 = arith.negf %1471 : vector<2x16xf32>
    %1473 = math.exp %1472 : vector<2x16xf32>
    %cst_549 = arith.constant 1.000000e+00 : f32
    %1474 = vector.broadcast %cst_549 : f32 to vector<2x16xf32>
    %1475 = arith.addf %1474, %1473 : vector<2x16xf32>
    %1476 = arith.divf %1474, %1475 : vector<2x16xf32>
    %cst_550 = arith.constant 2.000000e+00 : f32
    %1477 = vector.broadcast %cst_550 : f32 to vector<2x16xf32>
    %1478 = arith.addf %1469, %1477 : vector<2x16xf32>
    %1479 = arith.negf %1478 : vector<2x16xf32>
    %1480 = math.exp %1479 : vector<2x16xf32>
    %cst_551 = arith.constant 1.000000e+00 : f32
    %1481 = vector.broadcast %cst_551 : f32 to vector<2x16xf32>
    %1482 = arith.addf %1481, %1480 : vector<2x16xf32>
    %1483 = arith.divf %1481, %1482 : vector<2x16xf32>
    %1484 = arith.addf %782, %1328 : vector<2x16xf32>
    %1485 = arith.mulf %1484, %1476 : vector<2x16xf32>
    %1486 = arith.addf %790, %1375 : vector<2x16xf32>
    %1487 = arith.mulf %1486, %1483 : vector<2x16xf32>
    %c0_552 = arith.constant 0 : index
    %c0_553 = arith.constant 0 : index
    %1488 = vector.load %arg17[%c0_552, %c0_553] : memref<2x48xf32, #tpu.memory_space<vmem>>, vector<2x16xf32>
    tpu.vector_store %arg17[%c0_552, %c0_553], %774 {strides = array<i32>} : memref<2x48xf32, #tpu.memory_space<vmem>>, vector<2x16xf32>,
    %c0_554 = arith.constant 0 : index
    %c16 = arith.constant 16 : index
    %1489 = vector.load %arg17[%c0_554, %c16] : memref<2x48xf32, #tpu.memory_space<vmem>>, vector<2x16xf32>
    tpu.vector_store %arg17[%c0_554, %c16], %1485 {strides = array<i32>} : memref<2x48xf32, #tpu.memory_space<vmem>>, vector<2x16xf32>,
    %c0_555 = arith.constant 0 : index
    %c32 = arith.constant 32 : index
    %1490 = vector.load %arg17[%c0_555, %c32] : memref<2x48xf32, #tpu.memory_space<vmem>>, vector<2x16xf32>
    tpu.vector_store %arg17[%c0_555, %c32], %1487 {strides = array<i32>} : memref<2x48xf32, #tpu.memory_space<vmem>>, vector<2x16xf32>,
    %1491 = arith.truncf %748 : vector<2x16xf32> to vector<2x16xbf16>
    %c0_556 = arith.constant 0 : index
    %c0_557 = arith.constant 0 : index
    %1492 = vector.load %arg11[%c0_556, %c0_557] : memref<16x4xbf16, #tpu.memory_space<vmem>>, vector<16x4xbf16>
    %cst_558 = arith.constant dense<0.000000e+00> : vector<2x4xf32>
    %1493 = tpu.matmul %1491, %1492, %cst_558 {dimension_numbers = #tpu.dot_dimension_numbers<[1], [0], [0], [1], [0, 0, 1, 1], [], []>} : vector<2x16xbf16>, vector<16x4xbf16>, vector<2x4xf32> -> vector<2x4xf32>
    %c0_559 = arith.constant 0 : index
    %c0_560 = arith.constant 0 : index
    %1494 = vector.load %arg12[%c0_559, %c0_560] : memref<16x4xbf16, #tpu.memory_space<vmem>>, vector<16x4xbf16>
    %cst_561 = arith.constant dense<0.000000e+00> : vector<2x4xf32>
    %1495 = tpu.matmul %1491, %1494, %cst_561 {dimension_numbers = #tpu.dot_dimension_numbers<[1], [0], [0], [1], [0, 0, 1, 1], [], []>} : vector<2x16xbf16>, vector<16x4xbf16>, vector<2x4xf32> -> vector<2x4xf32>
    %c0_562 = arith.constant 0 : index
    %c0_563 = arith.constant 0 : index
    %1496 = vector.load %arg13[%c0_562, %c0_563] : memref<16x4xbf16, #tpu.memory_space<vmem>>, vector<16x4xbf16>
    %cst_564 = arith.constant dense<0.000000e+00> : vector<2x4xf32>
    %1497 = tpu.matmul %1491, %1496, %cst_564 {dimension_numbers = #tpu.dot_dimension_numbers<[1], [0], [0], [1], [0, 0, 1, 1], [], []>} : vector<2x16xbf16>, vector<16x4xbf16>, vector<2x4xf32> -> vector<2x4xf32>
    %c0_565 = arith.constant 0 : index
    %c0_566 = arith.constant 0 : index
    %1498 = vector.load %arg14[%c0_565, %c0_566] : memref<16x4xbf16, #tpu.memory_space<vmem>>, vector<16x4xbf16>
    %cst_567 = arith.constant dense<0.000000e+00> : vector<2x4xf32>
    %1499 = tpu.matmul %1491, %1498, %cst_567 {dimension_numbers = #tpu.dot_dimension_numbers<[1], [0], [0], [1], [0, 0, 1, 1], [], []>} : vector<2x16xbf16>, vector<16x4xbf16>, vector<2x4xf32> -> vector<2x4xf32>
    %cst_568 = arith.constant -0.0574780181 : f32
    %1500 = vector.broadcast %cst_568 : f32 to vector<2x4xf32>
    %1501 = arith.addf %1495, %1500 : vector<2x4xf32>
    %cst_569 = arith.constant 0.93906182 : f32
    %1502 = vector.broadcast %cst_569 : f32 to vector<2x4xf32>
    %1503 = arith.mulf %1501, %1502 : vector<2x4xf32>
    %cst_570 = arith.constant 0.0799836665 : f32
    %1504 = vector.broadcast %cst_570 : f32 to vector<2x4xf32>
    %1505 = arith.addf %1497, %1504 : vector<2x4xf32>
    %cst_571 = arith.constant 0.980120122 : f32
    %1506 = vector.broadcast %cst_571 : f32 to vector<2x4xf32>
    %1507 = arith.mulf %1505, %1506 : vector<2x4xf32>
    %cst_572 = arith.constant -0.0259606875 : f32
    %1508 = vector.broadcast %cst_572 : f32 to vector<2x4xf32>
    %1509 = arith.addf %1499, %1508 : vector<2x4xf32>
    %cst_573 = arith.constant 0.945474863 : f32
    %1510 = vector.broadcast %cst_573 : f32 to vector<2x4xf32>
    %1511 = arith.mulf %1509, %1510 : vector<2x4xf32>
    %cst_574 = arith.constant -0.789507151 : f32
    %1512 = vector.broadcast %cst_574 : f32 to vector<2x4xf32>
    %1513 = arith.mulf %1503, %1512 : vector<2x4xf32>
    %cst_575 = arith.constant -0.211708799 : f32
    %1514 = vector.broadcast %cst_575 : f32 to vector<2x4xf32>
    %1515 = arith.mulf %1507, %1514 : vector<2x4xf32>
    %1516 = arith.addf %1513, %1515 : vector<2x4xf32>
    %cst_576 = arith.constant 0.576071143 : f32
    %1517 = vector.broadcast %cst_576 : f32 to vector<2x4xf32>
    %1518 = arith.mulf %1511, %1517 : vector<2x4xf32>
    %1519 = arith.addf %1516, %1518 : vector<2x4xf32>
    %cst_577 = arith.constant -0.159040481 : f32
    %1520 = vector.broadcast %cst_577 : f32 to vector<2x4xf32>
    %1521 = arith.mulf %1503, %1520 : vector<2x4xf32>
    %cst_578 = arith.constant -0.835988283 : f32
    %1522 = vector.broadcast %cst_578 : f32 to vector<2x4xf32>
    %1523 = arith.mulf %1507, %1522 : vector<2x4xf32>
    %1524 = arith.addf %1521, %1523 : vector<2x4xf32>
    %cst_579 = arith.constant -0.525194943 : f32
    %1525 = vector.broadcast %cst_579 : f32 to vector<2x4xf32>
    %1526 = arith.mulf %1511, %1525 : vector<2x4xf32>
    %1527 = arith.addf %1524, %1526 : vector<2x4xf32>
    %cst_580 = arith.constant 0.592777073 : f32
    %1528 = vector.broadcast %cst_580 : f32 to vector<2x4xf32>
    %1529 = arith.mulf %1503, %1528 : vector<2x4xf32>
    %cst_581 = arith.constant -0.506263793 : f32
    %1530 = vector.broadcast %cst_581 : f32 to vector<2x4xf32>
    %1531 = arith.mulf %1507, %1530 : vector<2x4xf32>
    %1532 = arith.addf %1529, %1531 : vector<2x4xf32>
    %cst_582 = arith.constant 0.626348435 : f32
    %1533 = vector.broadcast %cst_582 : f32 to vector<2x4xf32>
    %1534 = arith.mulf %1511, %1533 : vector<2x4xf32>
    %1535 = arith.addf %1532, %1534 : vector<2x4xf32>
    %1536 = arith.truncf %1493 : vector<2x4xf32> to vector<2x4xbf16>
    %c0_583 = arith.constant 0 : index
    %c0_584 = arith.constant 0 : index
    %1537 = vector.load %arg15[%c0_583, %c0_584] : memref<4x32xbf16, #tpu.memory_space<vmem>>, vector<4x32xbf16>
    %cst_585 = arith.constant dense<0.000000e+00> : vector<2x32xf32>
    %1538 = tpu.matmul %1536, %1537, %cst_585 {dimension_numbers = #tpu.dot_dimension_numbers<[1], [0], [0], [1], [0, 0, 1, 1], [], []>} : vector<2x4xbf16>, vector<4x32xbf16>, vector<2x32xf32> -> vector<2x32xf32>
    %1539 = vector.extract_strided_slice %1538 {offsets = [0, 0], sizes = [2, 4], strides = [1, 1]} : vector<2x32xf32> to vector<2x4xf32>
    %cst_586 = arith.constant 0.000000e+00 : f32
    %1540 = vector.broadcast %cst_586 : f32 to vector<2x4xf32>
    %1541 = arith.addf %1539, %1540 : vector<2x4xf32>
    %cst_587 = arith.constant 0.000000e+00 : f32
    %1542 = vector.broadcast %cst_587 : f32 to vector<2x4xf32>
    %1543 = arith.maximumf %1541, %1542 : vector<2x4xf32>
    %1544 = vector.extract_strided_slice %1538 {offsets = [0, 4], sizes = [2, 4], strides = [1, 1]} : vector<2x32xf32> to vector<2x4xf32>
    %cst_588 = arith.constant 0.000000e+00 : f32
    %1545 = vector.broadcast %cst_588 : f32 to vector<2x4xf32>
    %1546 = arith.addf %1544, %1545 : vector<2x4xf32>
    %cst_589 = arith.constant 0.000000e+00 : f32
    %1547 = vector.broadcast %cst_589 : f32 to vector<2x4xf32>
    %1548 = arith.maximumf %1546, %1547 : vector<2x4xf32>
    %1549 = vector.extract_strided_slice %1538 {offsets = [0, 8], sizes = [2, 4], strides = [1, 1]} : vector<2x32xf32> to vector<2x4xf32>
    %cst_590 = arith.constant 0.000000e+00 : f32
    %1550 = vector.broadcast %cst_590 : f32 to vector<2x4xf32>
    %1551 = arith.addf %1549, %1550 : vector<2x4xf32>
    %cst_591 = arith.constant 0.000000e+00 : f32
    %1552 = vector.broadcast %cst_591 : f32 to vector<2x4xf32>
    %1553 = arith.maximumf %1551, %1552 : vector<2x4xf32>
    %1554 = vector.extract_strided_slice %1538 {offsets = [0, 12], sizes = [2, 4], strides = [1, 1]} : vector<2x32xf32> to vector<2x4xf32>
    %cst_592 = arith.constant 0.000000e+00 : f32
    %1555 = vector.broadcast %cst_592 : f32 to vector<2x4xf32>
    %1556 = arith.addf %1554, %1555 : vector<2x4xf32>
    %cst_593 = arith.constant 0.000000e+00 : f32
    %1557 = vector.broadcast %cst_593 : f32 to vector<2x4xf32>
    %1558 = arith.maximumf %1556, %1557 : vector<2x4xf32>
    %1559 = vector.extract_strided_slice %1538 {offsets = [0, 16], sizes = [2, 4], strides = [1, 1]} : vector<2x32xf32> to vector<2x4xf32>
    %cst_594 = arith.constant 0.000000e+00 : f32
    %1560 = vector.broadcast %cst_594 : f32 to vector<2x4xf32>
    %1561 = arith.addf %1559, %1560 : vector<2x4xf32>
    %cst_595 = arith.constant 0.000000e+00 : f32
    %1562 = vector.broadcast %cst_595 : f32 to vector<2x4xf32>
    %1563 = arith.maximumf %1561, %1562 : vector<2x4xf32>
    %1564 = vector.extract_strided_slice %1538 {offsets = [0, 20], sizes = [2, 4], strides = [1, 1]} : vector<2x32xf32> to vector<2x4xf32>
    %cst_596 = arith.constant 0.000000e+00 : f32
    %1565 = vector.broadcast %cst_596 : f32 to vector<2x4xf32>
    %1566 = arith.addf %1564, %1565 : vector<2x4xf32>
    %cst_597 = arith.constant 0.000000e+00 : f32
    %1567 = vector.broadcast %cst_597 : f32 to vector<2x4xf32>
    %1568 = arith.maximumf %1566, %1567 : vector<2x4xf32>
    %1569 = vector.extract_strided_slice %1538 {offsets = [0, 24], sizes = [2, 4], strides = [1, 1]} : vector<2x32xf32> to vector<2x4xf32>
    %cst_598 = arith.constant 0.000000e+00 : f32
    %1570 = vector.broadcast %cst_598 : f32 to vector<2x4xf32>
    %1571 = arith.addf %1569, %1570 : vector<2x4xf32>
    %cst_599 = arith.constant 0.000000e+00 : f32
    %1572 = vector.broadcast %cst_599 : f32 to vector<2x4xf32>
    %1573 = arith.maximumf %1571, %1572 : vector<2x4xf32>
    %1574 = vector.extract_strided_slice %1538 {offsets = [0, 28], sizes = [2, 4], strides = [1, 1]} : vector<2x32xf32> to vector<2x4xf32>
    %cst_600 = arith.constant 0.000000e+00 : f32
    %1575 = vector.broadcast %cst_600 : f32 to vector<2x4xf32>
    %1576 = arith.addf %1574, %1575 : vector<2x4xf32>
    %cst_601 = arith.constant 0.000000e+00 : f32
    %1577 = vector.broadcast %cst_601 : f32 to vector<2x4xf32>
    %1578 = arith.maximumf %1576, %1577 : vector<2x4xf32>
    %cst_602 = arith.constant 0.101973377 : f32
    %1579 = vector.broadcast %cst_602 : f32 to vector<2x4xf32>
    %1580 = arith.mulf %1519, %1579 : vector<2x4xf32>
    %cst_603 = arith.constant 0.13380532 : f32
    %1581 = vector.broadcast %cst_603 : f32 to vector<2x4xf32>
    %1582 = arith.mulf %1543, %1581 : vector<2x4xf32>
    %1583 = arith.addf %1580, %1582 : vector<2x4xf32>
    %cst_604 = arith.constant -0.00737807574 : f32
    %1584 = vector.broadcast %cst_604 : f32 to vector<2x4xf32>
    %1585 = arith.mulf %1548, %1584 : vector<2x4xf32>
    %1586 = arith.addf %1583, %1585 : vector<2x4xf32>
    %cst_605 = arith.constant -0.0879926682 : f32
    %1587 = vector.broadcast %cst_605 : f32 to vector<2x4xf32>
    %1588 = arith.mulf %1553, %1587 : vector<2x4xf32>
    %1589 = arith.addf %1586, %1588 : vector<2x4xf32>
    %cst_606 = arith.constant -0.102353968 : f32
    %1590 = vector.broadcast %cst_606 : f32 to vector<2x4xf32>
    %1591 = arith.mulf %1558, %1590 : vector<2x4xf32>
    %1592 = arith.addf %1589, %1591 : vector<2x4xf32>
    %cst_607 = arith.constant 0.0343851037 : f32
    %1593 = vector.broadcast %cst_607 : f32 to vector<2x4xf32>
    %1594 = arith.mulf %1563, %1593 : vector<2x4xf32>
    %1595 = arith.addf %1592, %1594 : vector<2x4xf32>
    %cst_608 = arith.constant -0.120553099 : f32
    %1596 = vector.broadcast %cst_608 : f32 to vector<2x4xf32>
    %1597 = arith.mulf %1568, %1596 : vector<2x4xf32>
    %1598 = arith.addf %1595, %1597 : vector<2x4xf32>
    %cst_609 = arith.constant 0.0193875525 : f32
    %1599 = vector.broadcast %cst_609 : f32 to vector<2x4xf32>
    %1600 = arith.mulf %1573, %1599 : vector<2x4xf32>
    %1601 = arith.addf %1598, %1600 : vector<2x4xf32>
    %cst_610 = arith.constant 0.218507826 : f32
    %1602 = vector.broadcast %cst_610 : f32 to vector<2x4xf32>
    %1603 = arith.mulf %1578, %1602 : vector<2x4xf32>
    %1604 = arith.addf %1601, %1603 : vector<2x4xf32>
    %cst_611 = arith.constant 0.310117662 : f32
    %1605 = vector.broadcast %cst_611 : f32 to vector<2x4xf32>
    %1606 = arith.mulf %1519, %1605 : vector<2x4xf32>
    %cst_612 = arith.constant -0.0429243967 : f32
    %1607 = vector.broadcast %cst_612 : f32 to vector<2x4xf32>
    %1608 = arith.mulf %1543, %1607 : vector<2x4xf32>
    %1609 = arith.addf %1606, %1608 : vector<2x4xf32>
    %cst_613 = arith.constant -0.112573169 : f32
    %1610 = vector.broadcast %cst_613 : f32 to vector<2x4xf32>
    %1611 = arith.mulf %1548, %1610 : vector<2x4xf32>
    %1612 = arith.addf %1609, %1611 : vector<2x4xf32>
    %cst_614 = arith.constant 0.0973452106 : f32
    %1613 = vector.broadcast %cst_614 : f32 to vector<2x4xf32>
    %1614 = arith.mulf %1553, %1613 : vector<2x4xf32>
    %1615 = arith.addf %1612, %1614 : vector<2x4xf32>
    %cst_615 = arith.constant -0.017866971 : f32
    %1616 = vector.broadcast %cst_615 : f32 to vector<2x4xf32>
    %1617 = arith.mulf %1558, %1616 : vector<2x4xf32>
    %1618 = arith.addf %1615, %1617 : vector<2x4xf32>
    %cst_616 = arith.constant -0.0598683916 : f32
    %1619 = vector.broadcast %cst_616 : f32 to vector<2x4xf32>
    %1620 = arith.mulf %1563, %1619 : vector<2x4xf32>
    %1621 = arith.addf %1618, %1620 : vector<2x4xf32>
    %cst_617 = arith.constant -0.0833851248 : f32
    %1622 = vector.broadcast %cst_617 : f32 to vector<2x4xf32>
    %1623 = arith.mulf %1568, %1622 : vector<2x4xf32>
    %1624 = arith.addf %1621, %1623 : vector<2x4xf32>
    %cst_618 = arith.constant -0.0858525857 : f32
    %1625 = vector.broadcast %cst_618 : f32 to vector<2x4xf32>
    %1626 = arith.mulf %1573, %1625 : vector<2x4xf32>
    %1627 = arith.addf %1624, %1626 : vector<2x4xf32>
    %cst_619 = arith.constant 0.241733313 : f32
    %1628 = vector.broadcast %cst_619 : f32 to vector<2x4xf32>
    %1629 = arith.mulf %1578, %1628 : vector<2x4xf32>
    %1630 = arith.addf %1627, %1629 : vector<2x4xf32>
    %cst_620 = arith.constant -0.101834871 : f32
    %1631 = vector.broadcast %cst_620 : f32 to vector<2x4xf32>
    %1632 = arith.mulf %1519, %1631 : vector<2x4xf32>
    %cst_621 = arith.constant 7.4368075E-4 : f32
    %1633 = vector.broadcast %cst_621 : f32 to vector<2x4xf32>
    %1634 = arith.mulf %1543, %1633 : vector<2x4xf32>
    %1635 = arith.addf %1632, %1634 : vector<2x4xf32>
    %cst_622 = arith.constant 0.0877305343 : f32
    %1636 = vector.broadcast %cst_622 : f32 to vector<2x4xf32>
    %1637 = arith.mulf %1548, %1636 : vector<2x4xf32>
    %1638 = arith.addf %1635, %1637 : vector<2x4xf32>
    %cst_623 = arith.constant 0.0633311421 : f32
    %1639 = vector.broadcast %cst_623 : f32 to vector<2x4xf32>
    %1640 = arith.mulf %1553, %1639 : vector<2x4xf32>
    %1641 = arith.addf %1638, %1640 : vector<2x4xf32>
    %cst_624 = arith.constant -0.134594649 : f32
    %1642 = vector.broadcast %cst_624 : f32 to vector<2x4xf32>
    %1643 = arith.mulf %1558, %1642 : vector<2x4xf32>
    %1644 = arith.addf %1641, %1643 : vector<2x4xf32>
    %cst_625 = arith.constant -0.0695419684 : f32
    %1645 = vector.broadcast %cst_625 : f32 to vector<2x4xf32>
    %1646 = arith.mulf %1563, %1645 : vector<2x4xf32>
    %1647 = arith.addf %1644, %1646 : vector<2x4xf32>
    %cst_626 = arith.constant -0.0135168768 : f32
    %1648 = vector.broadcast %cst_626 : f32 to vector<2x4xf32>
    %1649 = arith.mulf %1568, %1648 : vector<2x4xf32>
    %1650 = arith.addf %1647, %1649 : vector<2x4xf32>
    %cst_627 = arith.constant 0.0602506474 : f32
    %1651 = vector.broadcast %cst_627 : f32 to vector<2x4xf32>
    %1652 = arith.mulf %1573, %1651 : vector<2x4xf32>
    %1653 = arith.addf %1650, %1652 : vector<2x4xf32>
    %cst_628 = arith.constant -0.193049937 : f32
    %1654 = vector.broadcast %cst_628 : f32 to vector<2x4xf32>
    %1655 = arith.mulf %1578, %1654 : vector<2x4xf32>
    %1656 = arith.addf %1653, %1655 : vector<2x4xf32>
    %cst_629 = arith.constant 0.166956693 : f32
    %1657 = vector.broadcast %cst_629 : f32 to vector<2x4xf32>
    %1658 = arith.mulf %1519, %1657 : vector<2x4xf32>
    %cst_630 = arith.constant -0.0633955225 : f32
    %1659 = vector.broadcast %cst_630 : f32 to vector<2x4xf32>
    %1660 = arith.mulf %1543, %1659 : vector<2x4xf32>
    %1661 = arith.addf %1658, %1660 : vector<2x4xf32>
    %cst_631 = arith.constant -0.00306978892 : f32
    %1662 = vector.broadcast %cst_631 : f32 to vector<2x4xf32>
    %1663 = arith.mulf %1548, %1662 : vector<2x4xf32>
    %1664 = arith.addf %1661, %1663 : vector<2x4xf32>
    %cst_632 = arith.constant 0.103076033 : f32
    %1665 = vector.broadcast %cst_632 : f32 to vector<2x4xf32>
    %1666 = arith.mulf %1553, %1665 : vector<2x4xf32>
    %1667 = arith.addf %1664, %1666 : vector<2x4xf32>
    %cst_633 = arith.constant -3.669840e-02 : f32
    %1668 = vector.broadcast %cst_633 : f32 to vector<2x4xf32>
    %1669 = arith.mulf %1558, %1668 : vector<2x4xf32>
    %1670 = arith.addf %1667, %1669 : vector<2x4xf32>
    %cst_634 = arith.constant 0.103309758 : f32
    %1671 = vector.broadcast %cst_634 : f32 to vector<2x4xf32>
    %1672 = arith.mulf %1563, %1671 : vector<2x4xf32>
    %1673 = arith.addf %1670, %1672 : vector<2x4xf32>
    %cst_635 = arith.constant 0.130943954 : f32
    %1674 = vector.broadcast %cst_635 : f32 to vector<2x4xf32>
    %1675 = arith.mulf %1568, %1674 : vector<2x4xf32>
    %1676 = arith.addf %1673, %1675 : vector<2x4xf32>
    %cst_636 = arith.constant -0.00724140368 : f32
    %1677 = vector.broadcast %cst_636 : f32 to vector<2x4xf32>
    %1678 = arith.mulf %1573, %1677 : vector<2x4xf32>
    %1679 = arith.addf %1676, %1678 : vector<2x4xf32>
    %cst_637 = arith.constant -0.0933582932 : f32
    %1680 = vector.broadcast %cst_637 : f32 to vector<2x4xf32>
    %1681 = arith.mulf %1578, %1680 : vector<2x4xf32>
    %1682 = arith.addf %1679, %1681 : vector<2x4xf32>
    %cst_638 = arith.constant 0.117985167 : f32
    %1683 = vector.broadcast %cst_638 : f32 to vector<2x4xf32>
    %1684 = arith.mulf %1519, %1683 : vector<2x4xf32>
    %cst_639 = arith.constant -0.0146719469 : f32
    %1685 = vector.broadcast %cst_639 : f32 to vector<2x4xf32>
    %1686 = arith.mulf %1543, %1685 : vector<2x4xf32>
    %1687 = arith.addf %1684, %1686 : vector<2x4xf32>
    %cst_640 = arith.constant -0.0483328626 : f32
    %1688 = vector.broadcast %cst_640 : f32 to vector<2x4xf32>
    %1689 = arith.mulf %1548, %1688 : vector<2x4xf32>
    %1690 = arith.addf %1687, %1689 : vector<2x4xf32>
    %cst_641 = arith.constant -0.004573863 : f32
    %1691 = vector.broadcast %cst_641 : f32 to vector<2x4xf32>
    %1692 = arith.mulf %1553, %1691 : vector<2x4xf32>
    %1693 = arith.addf %1690, %1692 : vector<2x4xf32>
    %cst_642 = arith.constant -0.130847126 : f32
    %1694 = vector.broadcast %cst_642 : f32 to vector<2x4xf32>
    %1695 = arith.mulf %1558, %1694 : vector<2x4xf32>
    %1696 = arith.addf %1693, %1695 : vector<2x4xf32>
    %cst_643 = arith.constant -0.190641776 : f32
    %1697 = vector.broadcast %cst_643 : f32 to vector<2x4xf32>
    %1698 = arith.mulf %1563, %1697 : vector<2x4xf32>
    %1699 = arith.addf %1696, %1698 : vector<2x4xf32>
    %cst_644 = arith.constant 0.0267611574 : f32
    %1700 = vector.broadcast %cst_644 : f32 to vector<2x4xf32>
    %1701 = arith.mulf %1568, %1700 : vector<2x4xf32>
    %1702 = arith.addf %1699, %1701 : vector<2x4xf32>
    %cst_645 = arith.constant 0.0668007359 : f32
    %1703 = vector.broadcast %cst_645 : f32 to vector<2x4xf32>
    %1704 = arith.mulf %1573, %1703 : vector<2x4xf32>
    %1705 = arith.addf %1702, %1704 : vector<2x4xf32>
    %cst_646 = arith.constant 0.0700282678 : f32
    %1706 = vector.broadcast %cst_646 : f32 to vector<2x4xf32>
    %1707 = arith.mulf %1578, %1706 : vector<2x4xf32>
    %1708 = arith.addf %1705, %1707 : vector<2x4xf32>
    %cst_647 = arith.constant -0.523154676 : f32
    %1709 = vector.broadcast %cst_647 : f32 to vector<2x4xf32>
    %1710 = arith.mulf %1519, %1709 : vector<2x4xf32>
    %cst_648 = arith.constant -0.0339971669 : f32
    %1711 = vector.broadcast %cst_648 : f32 to vector<2x4xf32>
    %1712 = arith.mulf %1543, %1711 : vector<2x4xf32>
    %1713 = arith.addf %1710, %1712 : vector<2x4xf32>
    %cst_649 = arith.constant -0.0649167076 : f32
    %1714 = vector.broadcast %cst_649 : f32 to vector<2x4xf32>
    %1715 = arith.mulf %1548, %1714 : vector<2x4xf32>
    %1716 = arith.addf %1713, %1715 : vector<2x4xf32>
    %cst_650 = arith.constant 0.0639934391 : f32
    %1717 = vector.broadcast %cst_650 : f32 to vector<2x4xf32>
    %1718 = arith.mulf %1553, %1717 : vector<2x4xf32>
    %1719 = arith.addf %1716, %1718 : vector<2x4xf32>
    %cst_651 = arith.constant -0.0372883677 : f32
    %1720 = vector.broadcast %cst_651 : f32 to vector<2x4xf32>
    %1721 = arith.mulf %1558, %1720 : vector<2x4xf32>
    %1722 = arith.addf %1719, %1721 : vector<2x4xf32>
    %cst_652 = arith.constant 0.0872189998 : f32
    %1723 = vector.broadcast %cst_652 : f32 to vector<2x4xf32>
    %1724 = arith.mulf %1563, %1723 : vector<2x4xf32>
    %1725 = arith.addf %1722, %1724 : vector<2x4xf32>
    %cst_653 = arith.constant 0.0806499049 : f32
    %1726 = vector.broadcast %cst_653 : f32 to vector<2x4xf32>
    %1727 = arith.mulf %1568, %1726 : vector<2x4xf32>
    %1728 = arith.addf %1725, %1727 : vector<2x4xf32>
    %cst_654 = arith.constant -0.0341018103 : f32
    %1729 = vector.broadcast %cst_654 : f32 to vector<2x4xf32>
    %1730 = arith.mulf %1573, %1729 : vector<2x4xf32>
    %1731 = arith.addf %1728, %1730 : vector<2x4xf32>
    %cst_655 = arith.constant -0.0590251759 : f32
    %1732 = vector.broadcast %cst_655 : f32 to vector<2x4xf32>
    %1733 = arith.mulf %1578, %1732 : vector<2x4xf32>
    %1734 = arith.addf %1731, %1733 : vector<2x4xf32>
    %cst_656 = arith.constant -0.534253299 : f32
    %1735 = vector.broadcast %cst_656 : f32 to vector<2x4xf32>
    %1736 = arith.mulf %1519, %1735 : vector<2x4xf32>
    %cst_657 = arith.constant 0.0726894811 : f32
    %1737 = vector.broadcast %cst_657 : f32 to vector<2x4xf32>
    %1738 = arith.mulf %1543, %1737 : vector<2x4xf32>
    %1739 = arith.addf %1736, %1738 : vector<2x4xf32>
    %cst_658 = arith.constant 0.131011218 : f32
    %1740 = vector.broadcast %cst_658 : f32 to vector<2x4xf32>
    %1741 = arith.mulf %1548, %1740 : vector<2x4xf32>
    %1742 = arith.addf %1739, %1741 : vector<2x4xf32>
    %cst_659 = arith.constant -0.142777637 : f32
    %1743 = vector.broadcast %cst_659 : f32 to vector<2x4xf32>
    %1744 = arith.mulf %1553, %1743 : vector<2x4xf32>
    %1745 = arith.addf %1742, %1744 : vector<2x4xf32>
    %cst_660 = arith.constant -0.0418699607 : f32
    %1746 = vector.broadcast %cst_660 : f32 to vector<2x4xf32>
    %1747 = arith.mulf %1558, %1746 : vector<2x4xf32>
    %1748 = arith.addf %1745, %1747 : vector<2x4xf32>
    %cst_661 = arith.constant 0.146762058 : f32
    %1749 = vector.broadcast %cst_661 : f32 to vector<2x4xf32>
    %1750 = arith.mulf %1563, %1749 : vector<2x4xf32>
    %1751 = arith.addf %1748, %1750 : vector<2x4xf32>
    %cst_662 = arith.constant 0.0737545192 : f32
    %1752 = vector.broadcast %cst_662 : f32 to vector<2x4xf32>
    %1753 = arith.mulf %1568, %1752 : vector<2x4xf32>
    %1754 = arith.addf %1751, %1753 : vector<2x4xf32>
    %cst_663 = arith.constant -0.0489992835 : f32
    %1755 = vector.broadcast %cst_663 : f32 to vector<2x4xf32>
    %1756 = arith.mulf %1573, %1755 : vector<2x4xf32>
    %1757 = arith.addf %1754, %1756 : vector<2x4xf32>
    %cst_664 = arith.constant -0.0688564107 : f32
    %1758 = vector.broadcast %cst_664 : f32 to vector<2x4xf32>
    %1759 = arith.mulf %1578, %1758 : vector<2x4xf32>
    %1760 = arith.addf %1757, %1759 : vector<2x4xf32>
    %cst_665 = arith.constant 0.142944619 : f32
    %1761 = vector.broadcast %cst_665 : f32 to vector<2x4xf32>
    %1762 = arith.mulf %1519, %1761 : vector<2x4xf32>
    %cst_666 = arith.constant 0.036332909 : f32
    %1763 = vector.broadcast %cst_666 : f32 to vector<2x4xf32>
    %1764 = arith.mulf %1543, %1763 : vector<2x4xf32>
    %1765 = arith.addf %1762, %1764 : vector<2x4xf32>
    %cst_667 = arith.constant 0.0524481237 : f32
    %1766 = vector.broadcast %cst_667 : f32 to vector<2x4xf32>
    %1767 = arith.mulf %1548, %1766 : vector<2x4xf32>
    %1768 = arith.addf %1765, %1767 : vector<2x4xf32>
    %cst_668 = arith.constant 0.00179492182 : f32
    %1769 = vector.broadcast %cst_668 : f32 to vector<2x4xf32>
    %1770 = arith.mulf %1553, %1769 : vector<2x4xf32>
    %1771 = arith.addf %1768, %1770 : vector<2x4xf32>
    %cst_669 = arith.constant -0.0923106893 : f32
    %1772 = vector.broadcast %cst_669 : f32 to vector<2x4xf32>
    %1773 = arith.mulf %1558, %1772 : vector<2x4xf32>
    %1774 = arith.addf %1771, %1773 : vector<2x4xf32>
    %cst_670 = arith.constant -0.123334788 : f32
    %1775 = vector.broadcast %cst_670 : f32 to vector<2x4xf32>
    %1776 = arith.mulf %1563, %1775 : vector<2x4xf32>
    %1777 = arith.addf %1774, %1776 : vector<2x4xf32>
    %cst_671 = arith.constant 0.00240467489 : f32
    %1778 = vector.broadcast %cst_671 : f32 to vector<2x4xf32>
    %1779 = arith.mulf %1568, %1778 : vector<2x4xf32>
    %1780 = arith.addf %1777, %1779 : vector<2x4xf32>
    %cst_672 = arith.constant 0.0409447961 : f32
    %1781 = vector.broadcast %cst_672 : f32 to vector<2x4xf32>
    %1782 = arith.mulf %1573, %1781 : vector<2x4xf32>
    %1783 = arith.addf %1780, %1782 : vector<2x4xf32>
    %cst_673 = arith.constant 0.0900763496 : f32
    %1784 = vector.broadcast %cst_673 : f32 to vector<2x4xf32>
    %1785 = arith.mulf %1578, %1784 : vector<2x4xf32>
    %1786 = arith.addf %1783, %1785 : vector<2x4xf32>
    %cst_674 = arith.constant -0.179442316 : f32
    %1787 = vector.broadcast %cst_674 : f32 to vector<2x4xf32>
    %1788 = arith.mulf %1519, %1787 : vector<2x4xf32>
    %cst_675 = arith.constant -0.176573813 : f32
    %1789 = vector.broadcast %cst_675 : f32 to vector<2x4xf32>
    %1790 = arith.mulf %1543, %1789 : vector<2x4xf32>
    %1791 = arith.addf %1788, %1790 : vector<2x4xf32>
    %cst_676 = arith.constant -0.050868962 : f32
    %1792 = vector.broadcast %cst_676 : f32 to vector<2x4xf32>
    %1793 = arith.mulf %1548, %1792 : vector<2x4xf32>
    %1794 = arith.addf %1791, %1793 : vector<2x4xf32>
    %cst_677 = arith.constant 0.0494050421 : f32
    %1795 = vector.broadcast %cst_677 : f32 to vector<2x4xf32>
    %1796 = arith.mulf %1553, %1795 : vector<2x4xf32>
    %1797 = arith.addf %1794, %1796 : vector<2x4xf32>
    %cst_678 = arith.constant 0.116649099 : f32
    %1798 = vector.broadcast %cst_678 : f32 to vector<2x4xf32>
    %1799 = arith.mulf %1558, %1798 : vector<2x4xf32>
    %1800 = arith.addf %1797, %1799 : vector<2x4xf32>
    %cst_679 = arith.constant -0.0120936139 : f32
    %1801 = vector.broadcast %cst_679 : f32 to vector<2x4xf32>
    %1802 = arith.mulf %1563, %1801 : vector<2x4xf32>
    %1803 = arith.addf %1800, %1802 : vector<2x4xf32>
    %cst_680 = arith.constant -0.0309228953 : f32
    %1804 = vector.broadcast %cst_680 : f32 to vector<2x4xf32>
    %1805 = arith.mulf %1568, %1804 : vector<2x4xf32>
    %1806 = arith.addf %1803, %1805 : vector<2x4xf32>
    %cst_681 = arith.constant 0.0588289574 : f32
    %1807 = vector.broadcast %cst_681 : f32 to vector<2x4xf32>
    %1808 = arith.mulf %1573, %1807 : vector<2x4xf32>
    %1809 = arith.addf %1806, %1808 : vector<2x4xf32>
    %cst_682 = arith.constant 0.0383322462 : f32
    %1810 = vector.broadcast %cst_682 : f32 to vector<2x4xf32>
    %1811 = arith.mulf %1578, %1810 : vector<2x4xf32>
    %1812 = arith.addf %1809, %1811 : vector<2x4xf32>
    %cst_683 = arith.constant 0.0399843045 : f32
    %1813 = vector.broadcast %cst_683 : f32 to vector<2x4xf32>
    %1814 = arith.mulf %1519, %1813 : vector<2x4xf32>
    %cst_684 = arith.constant 0.1152834 : f32
    %1815 = vector.broadcast %cst_684 : f32 to vector<2x4xf32>
    %1816 = arith.mulf %1543, %1815 : vector<2x4xf32>
    %1817 = arith.addf %1814, %1816 : vector<2x4xf32>
    %cst_685 = arith.constant 0.0858106613 : f32
    %1818 = vector.broadcast %cst_685 : f32 to vector<2x4xf32>
    %1819 = arith.mulf %1548, %1818 : vector<2x4xf32>
    %1820 = arith.addf %1817, %1819 : vector<2x4xf32>
    %cst_686 = arith.constant -0.0242244732 : f32
    %1821 = vector.broadcast %cst_686 : f32 to vector<2x4xf32>
    %1822 = arith.mulf %1553, %1821 : vector<2x4xf32>
    %1823 = arith.addf %1820, %1822 : vector<2x4xf32>
    %cst_687 = arith.constant 0.0259486083 : f32
    %1824 = vector.broadcast %cst_687 : f32 to vector<2x4xf32>
    %1825 = arith.mulf %1558, %1824 : vector<2x4xf32>
    %1826 = arith.addf %1823, %1825 : vector<2x4xf32>
    %cst_688 = arith.constant 0.223974824 : f32
    %1827 = vector.broadcast %cst_688 : f32 to vector<2x4xf32>
    %1828 = arith.mulf %1563, %1827 : vector<2x4xf32>
    %1829 = arith.addf %1826, %1828 : vector<2x4xf32>
    %cst_689 = arith.constant 0.0653922185 : f32
    %1830 = vector.broadcast %cst_689 : f32 to vector<2x4xf32>
    %1831 = arith.mulf %1568, %1830 : vector<2x4xf32>
    %1832 = arith.addf %1829, %1831 : vector<2x4xf32>
    %cst_690 = arith.constant 0.103891775 : f32
    %1833 = vector.broadcast %cst_690 : f32 to vector<2x4xf32>
    %1834 = arith.mulf %1573, %1833 : vector<2x4xf32>
    %1835 = arith.addf %1832, %1834 : vector<2x4xf32>
    %cst_691 = arith.constant 0.0956466197 : f32
    %1836 = vector.broadcast %cst_691 : f32 to vector<2x4xf32>
    %1837 = arith.mulf %1578, %1836 : vector<2x4xf32>
    %1838 = arith.addf %1835, %1837 : vector<2x4xf32>
    %cst_692 = arith.constant -0.0402886234 : f32
    %1839 = vector.broadcast %cst_692 : f32 to vector<2x4xf32>
    %1840 = arith.mulf %1519, %1839 : vector<2x4xf32>
    %cst_693 = arith.constant 0.0793173611 : f32
    %1841 = vector.broadcast %cst_693 : f32 to vector<2x4xf32>
    %1842 = arith.mulf %1543, %1841 : vector<2x4xf32>
    %1843 = arith.addf %1840, %1842 : vector<2x4xf32>
    %cst_694 = arith.constant 0.0805884301 : f32
    %1844 = vector.broadcast %cst_694 : f32 to vector<2x4xf32>
    %1845 = arith.mulf %1548, %1844 : vector<2x4xf32>
    %1846 = arith.addf %1843, %1845 : vector<2x4xf32>
    %cst_695 = arith.constant -0.0817894191 : f32
    %1847 = vector.broadcast %cst_695 : f32 to vector<2x4xf32>
    %1848 = arith.mulf %1553, %1847 : vector<2x4xf32>
    %1849 = arith.addf %1846, %1848 : vector<2x4xf32>
    %cst_696 = arith.constant -0.0562178902 : f32
    %1850 = vector.broadcast %cst_696 : f32 to vector<2x4xf32>
    %1851 = arith.mulf %1558, %1850 : vector<2x4xf32>
    %1852 = arith.addf %1849, %1851 : vector<2x4xf32>
    %cst_697 = arith.constant -0.141175896 : f32
    %1853 = vector.broadcast %cst_697 : f32 to vector<2x4xf32>
    %1854 = arith.mulf %1563, %1853 : vector<2x4xf32>
    %1855 = arith.addf %1852, %1854 : vector<2x4xf32>
    %cst_698 = arith.constant 9.135820e-03 : f32
    %1856 = vector.broadcast %cst_698 : f32 to vector<2x4xf32>
    %1857 = arith.mulf %1568, %1856 : vector<2x4xf32>
    %1858 = arith.addf %1855, %1857 : vector<2x4xf32>
    %cst_699 = arith.constant 0.0799421519 : f32
    %1859 = vector.broadcast %cst_699 : f32 to vector<2x4xf32>
    %1860 = arith.mulf %1573, %1859 : vector<2x4xf32>
    %1861 = arith.addf %1858, %1860 : vector<2x4xf32>
    %cst_700 = arith.constant 0.063512139 : f32
    %1862 = vector.broadcast %cst_700 : f32 to vector<2x4xf32>
    %1863 = arith.mulf %1578, %1862 : vector<2x4xf32>
    %1864 = arith.addf %1861, %1863 : vector<2x4xf32>
    %cst_701 = arith.constant -0.203651696 : f32
    %1865 = vector.broadcast %cst_701 : f32 to vector<2x4xf32>
    %1866 = arith.mulf %1519, %1865 : vector<2x4xf32>
    %cst_702 = arith.constant 0.0998573675 : f32
    %1867 = vector.broadcast %cst_702 : f32 to vector<2x4xf32>
    %1868 = arith.mulf %1543, %1867 : vector<2x4xf32>
    %1869 = arith.addf %1866, %1868 : vector<2x4xf32>
    %cst_703 = arith.constant 0.0646905527 : f32
    %1870 = vector.broadcast %cst_703 : f32 to vector<2x4xf32>
    %1871 = arith.mulf %1548, %1870 : vector<2x4xf32>
    %1872 = arith.addf %1869, %1871 : vector<2x4xf32>
    %cst_704 = arith.constant 0.0975201204 : f32
    %1873 = vector.broadcast %cst_704 : f32 to vector<2x4xf32>
    %1874 = arith.mulf %1553, %1873 : vector<2x4xf32>
    %1875 = arith.addf %1872, %1874 : vector<2x4xf32>
    %cst_705 = arith.constant 0.0385355167 : f32
    %1876 = vector.broadcast %cst_705 : f32 to vector<2x4xf32>
    %1877 = arith.mulf %1558, %1876 : vector<2x4xf32>
    %1878 = arith.addf %1875, %1877 : vector<2x4xf32>
    %cst_706 = arith.constant 0.0465201922 : f32
    %1879 = vector.broadcast %cst_706 : f32 to vector<2x4xf32>
    %1880 = arith.mulf %1563, %1879 : vector<2x4xf32>
    %1881 = arith.addf %1878, %1880 : vector<2x4xf32>
    %cst_707 = arith.constant 0.0944766625 : f32
    %1882 = vector.broadcast %cst_707 : f32 to vector<2x4xf32>
    %1883 = arith.mulf %1568, %1882 : vector<2x4xf32>
    %1884 = arith.addf %1881, %1883 : vector<2x4xf32>
    %cst_708 = arith.constant -0.218635917 : f32
    %1885 = vector.broadcast %cst_708 : f32 to vector<2x4xf32>
    %1886 = arith.mulf %1573, %1885 : vector<2x4xf32>
    %1887 = arith.addf %1884, %1886 : vector<2x4xf32>
    %cst_709 = arith.constant 0.0732217804 : f32
    %1888 = vector.broadcast %cst_709 : f32 to vector<2x4xf32>
    %1889 = arith.mulf %1578, %1888 : vector<2x4xf32>
    %1890 = arith.addf %1887, %1889 : vector<2x4xf32>
    %cst_710 = arith.constant 0.231988698 : f32
    %1891 = vector.broadcast %cst_710 : f32 to vector<2x4xf32>
    %1892 = arith.mulf %1519, %1891 : vector<2x4xf32>
    %cst_711 = arith.constant -0.0672634393 : f32
    %1893 = vector.broadcast %cst_711 : f32 to vector<2x4xf32>
    %1894 = arith.mulf %1543, %1893 : vector<2x4xf32>
    %1895 = arith.addf %1892, %1894 : vector<2x4xf32>
    %cst_712 = arith.constant 0.0126529876 : f32
    %1896 = vector.broadcast %cst_712 : f32 to vector<2x4xf32>
    %1897 = arith.mulf %1548, %1896 : vector<2x4xf32>
    %1898 = arith.addf %1895, %1897 : vector<2x4xf32>
    %cst_713 = arith.constant 0.0698223561 : f32
    %1899 = vector.broadcast %cst_713 : f32 to vector<2x4xf32>
    %1900 = arith.mulf %1553, %1899 : vector<2x4xf32>
    %1901 = arith.addf %1898, %1900 : vector<2x4xf32>
    %cst_714 = arith.constant 0.0638072267 : f32
    %1902 = vector.broadcast %cst_714 : f32 to vector<2x4xf32>
    %1903 = arith.mulf %1558, %1902 : vector<2x4xf32>
    %1904 = arith.addf %1901, %1903 : vector<2x4xf32>
    %cst_715 = arith.constant -0.142682955 : f32
    %1905 = vector.broadcast %cst_715 : f32 to vector<2x4xf32>
    %1906 = arith.mulf %1563, %1905 : vector<2x4xf32>
    %1907 = arith.addf %1904, %1906 : vector<2x4xf32>
    %cst_716 = arith.constant -0.118294418 : f32
    %1908 = vector.broadcast %cst_716 : f32 to vector<2x4xf32>
    %1909 = arith.mulf %1568, %1908 : vector<2x4xf32>
    %1910 = arith.addf %1907, %1909 : vector<2x4xf32>
    %cst_717 = arith.constant -0.0835585221 : f32
    %1911 = vector.broadcast %cst_717 : f32 to vector<2x4xf32>
    %1912 = arith.mulf %1573, %1911 : vector<2x4xf32>
    %1913 = arith.addf %1910, %1912 : vector<2x4xf32>
    %cst_718 = arith.constant 0.091104649 : f32
    %1914 = vector.broadcast %cst_718 : f32 to vector<2x4xf32>
    %1915 = arith.mulf %1578, %1914 : vector<2x4xf32>
    %1916 = arith.addf %1913, %1915 : vector<2x4xf32>
    %cst_719 = arith.constant 0.393912345 : f32
    %1917 = vector.broadcast %cst_719 : f32 to vector<2x4xf32>
    %1918 = arith.mulf %1519, %1917 : vector<2x4xf32>
    %cst_720 = arith.constant 0.0633304194 : f32
    %1919 = vector.broadcast %cst_720 : f32 to vector<2x4xf32>
    %1920 = arith.mulf %1543, %1919 : vector<2x4xf32>
    %1921 = arith.addf %1918, %1920 : vector<2x4xf32>
    %cst_721 = arith.constant -0.0755213723 : f32
    %1922 = vector.broadcast %cst_721 : f32 to vector<2x4xf32>
    %1923 = arith.mulf %1548, %1922 : vector<2x4xf32>
    %1924 = arith.addf %1921, %1923 : vector<2x4xf32>
    %cst_722 = arith.constant 0.135591894 : f32
    %1925 = vector.broadcast %cst_722 : f32 to vector<2x4xf32>
    %1926 = arith.mulf %1553, %1925 : vector<2x4xf32>
    %1927 = arith.addf %1924, %1926 : vector<2x4xf32>
    %cst_723 = arith.constant 0.210046366 : f32
    %1928 = vector.broadcast %cst_723 : f32 to vector<2x4xf32>
    %1929 = arith.mulf %1558, %1928 : vector<2x4xf32>
    %1930 = arith.addf %1927, %1929 : vector<2x4xf32>
    %cst_724 = arith.constant 0.126763195 : f32
    %1931 = vector.broadcast %cst_724 : f32 to vector<2x4xf32>
    %1932 = arith.mulf %1563, %1931 : vector<2x4xf32>
    %1933 = arith.addf %1930, %1932 : vector<2x4xf32>
    %cst_725 = arith.constant 0.158775926 : f32
    %1934 = vector.broadcast %cst_725 : f32 to vector<2x4xf32>
    %1935 = arith.mulf %1568, %1934 : vector<2x4xf32>
    %1936 = arith.addf %1933, %1935 : vector<2x4xf32>
    %cst_726 = arith.constant 0.0281742513 : f32
    %1937 = vector.broadcast %cst_726 : f32 to vector<2x4xf32>
    %1938 = arith.mulf %1573, %1937 : vector<2x4xf32>
    %1939 = arith.addf %1936, %1938 : vector<2x4xf32>
    %cst_727 = arith.constant -0.104164198 : f32
    %1940 = vector.broadcast %cst_727 : f32 to vector<2x4xf32>
    %1941 = arith.mulf %1578, %1940 : vector<2x4xf32>
    %1942 = arith.addf %1939, %1941 : vector<2x4xf32>
    %cst_728 = arith.constant -0.358609974 : f32
    %1943 = vector.broadcast %cst_728 : f32 to vector<2x4xf32>
    %1944 = arith.mulf %1519, %1943 : vector<2x4xf32>
    %cst_729 = arith.constant 0.174456149 : f32
    %1945 = vector.broadcast %cst_729 : f32 to vector<2x4xf32>
    %1946 = arith.mulf %1543, %1945 : vector<2x4xf32>
    %1947 = arith.addf %1944, %1946 : vector<2x4xf32>
    %cst_730 = arith.constant 0.0324623547 : f32
    %1948 = vector.broadcast %cst_730 : f32 to vector<2x4xf32>
    %1949 = arith.mulf %1548, %1948 : vector<2x4xf32>
    %1950 = arith.addf %1947, %1949 : vector<2x4xf32>
    %cst_731 = arith.constant -0.0609925389 : f32
    %1951 = vector.broadcast %cst_731 : f32 to vector<2x4xf32>
    %1952 = arith.mulf %1553, %1951 : vector<2x4xf32>
    %1953 = arith.addf %1950, %1952 : vector<2x4xf32>
    %cst_732 = arith.constant 6.20800711E-4 : f32
    %1954 = vector.broadcast %cst_732 : f32 to vector<2x4xf32>
    %1955 = arith.mulf %1558, %1954 : vector<2x4xf32>
    %1956 = arith.addf %1953, %1955 : vector<2x4xf32>
    %cst_733 = arith.constant -0.0903067663 : f32
    %1957 = vector.broadcast %cst_733 : f32 to vector<2x4xf32>
    %1958 = arith.mulf %1563, %1957 : vector<2x4xf32>
    %1959 = arith.addf %1956, %1958 : vector<2x4xf32>
    %cst_734 = arith.constant 0.054113768 : f32
    %1960 = vector.broadcast %cst_734 : f32 to vector<2x4xf32>
    %1961 = arith.mulf %1568, %1960 : vector<2x4xf32>
    %1962 = arith.addf %1959, %1961 : vector<2x4xf32>
    %cst_735 = arith.constant 0.0594318323 : f32
    %1963 = vector.broadcast %cst_735 : f32 to vector<2x4xf32>
    %1964 = arith.mulf %1573, %1963 : vector<2x4xf32>
    %1965 = arith.addf %1962, %1964 : vector<2x4xf32>
    %cst_736 = arith.constant -0.00316421431 : f32
    %1966 = vector.broadcast %cst_736 : f32 to vector<2x4xf32>
    %1967 = arith.mulf %1578, %1966 : vector<2x4xf32>
    %1968 = arith.addf %1965, %1967 : vector<2x4xf32>
    %cst_737 = arith.constant 0.291978329 : f32
    %1969 = vector.broadcast %cst_737 : f32 to vector<2x4xf32>
    %1970 = arith.mulf %1519, %1969 : vector<2x4xf32>
    %cst_738 = arith.constant -0.103424385 : f32
    %1971 = vector.broadcast %cst_738 : f32 to vector<2x4xf32>
    %1972 = arith.mulf %1543, %1971 : vector<2x4xf32>
    %1973 = arith.addf %1970, %1972 : vector<2x4xf32>
    %cst_739 = arith.constant 0.121499591 : f32
    %1974 = vector.broadcast %cst_739 : f32 to vector<2x4xf32>
    %1975 = arith.mulf %1548, %1974 : vector<2x4xf32>
    %1976 = arith.addf %1973, %1975 : vector<2x4xf32>
    %cst_740 = arith.constant 0.195319831 : f32
    %1977 = vector.broadcast %cst_740 : f32 to vector<2x4xf32>
    %1978 = arith.mulf %1553, %1977 : vector<2x4xf32>
    %1979 = arith.addf %1976, %1978 : vector<2x4xf32>
    %cst_741 = arith.constant -0.00499858242 : f32
    %1980 = vector.broadcast %cst_741 : f32 to vector<2x4xf32>
    %1981 = arith.mulf %1558, %1980 : vector<2x4xf32>
    %1982 = arith.addf %1979, %1981 : vector<2x4xf32>
    %cst_742 = arith.constant 0.106819853 : f32
    %1983 = vector.broadcast %cst_742 : f32 to vector<2x4xf32>
    %1984 = arith.mulf %1563, %1983 : vector<2x4xf32>
    %1985 = arith.addf %1982, %1984 : vector<2x4xf32>
    %cst_743 = arith.constant 1.710440e-01 : f32
    %1986 = vector.broadcast %cst_743 : f32 to vector<2x4xf32>
    %1987 = arith.mulf %1568, %1986 : vector<2x4xf32>
    %1988 = arith.addf %1985, %1987 : vector<2x4xf32>
    %cst_744 = arith.constant -0.0302054193 : f32
    %1989 = vector.broadcast %cst_744 : f32 to vector<2x4xf32>
    %1990 = arith.mulf %1573, %1989 : vector<2x4xf32>
    %1991 = arith.addf %1988, %1990 : vector<2x4xf32>
    %cst_745 = arith.constant -0.0379636846 : f32
    %1992 = vector.broadcast %cst_745 : f32 to vector<2x4xf32>
    %1993 = arith.mulf %1578, %1992 : vector<2x4xf32>
    %1994 = arith.addf %1991, %1993 : vector<2x4xf32>
    %cst_746 = arith.constant 0.000000e+00 : f32
    %1995 = vector.broadcast %cst_746 : f32 to vector<2x4xf32>
    %1996 = arith.maximumf %1604, %1995 : vector<2x4xf32>
    %cst_747 = arith.constant 0.000000e+00 : f32
    %1997 = vector.broadcast %cst_747 : f32 to vector<2x4xf32>
    %1998 = arith.maximumf %1630, %1997 : vector<2x4xf32>
    %cst_748 = arith.constant 0.000000e+00 : f32
    %1999 = vector.broadcast %cst_748 : f32 to vector<2x4xf32>
    %2000 = arith.maximumf %1656, %1999 : vector<2x4xf32>
    %cst_749 = arith.constant 0.000000e+00 : f32
    %2001 = vector.broadcast %cst_749 : f32 to vector<2x4xf32>
    %2002 = arith.maximumf %1682, %2001 : vector<2x4xf32>
    %cst_750 = arith.constant 0.000000e+00 : f32
    %2003 = vector.broadcast %cst_750 : f32 to vector<2x4xf32>
    %2004 = arith.maximumf %1708, %2003 : vector<2x4xf32>
    %cst_751 = arith.constant 0.000000e+00 : f32
    %2005 = vector.broadcast %cst_751 : f32 to vector<2x4xf32>
    %2006 = arith.maximumf %1734, %2005 : vector<2x4xf32>
    %cst_752 = arith.constant 0.000000e+00 : f32
    %2007 = vector.broadcast %cst_752 : f32 to vector<2x4xf32>
    %2008 = arith.maximumf %1760, %2007 : vector<2x4xf32>
    %cst_753 = arith.constant 0.000000e+00 : f32
    %2009 = vector.broadcast %cst_753 : f32 to vector<2x4xf32>
    %2010 = arith.maximumf %1786, %2009 : vector<2x4xf32>
    %cst_754 = arith.constant 0.000000e+00 : f32
    %2011 = vector.broadcast %cst_754 : f32 to vector<2x4xf32>
    %2012 = arith.maximumf %1812, %2011 : vector<2x4xf32>
    %cst_755 = arith.constant 0.000000e+00 : f32
    %2013 = vector.broadcast %cst_755 : f32 to vector<2x4xf32>
    %2014 = arith.maximumf %1838, %2013 : vector<2x4xf32>
    %cst_756 = arith.constant 0.000000e+00 : f32
    %2015 = vector.broadcast %cst_756 : f32 to vector<2x4xf32>
    %2016 = arith.maximumf %1864, %2015 : vector<2x4xf32>
    %cst_757 = arith.constant 0.000000e+00 : f32
    %2017 = vector.broadcast %cst_757 : f32 to vector<2x4xf32>
    %2018 = arith.maximumf %1890, %2017 : vector<2x4xf32>
    %cst_758 = arith.constant 0.000000e+00 : f32
    %2019 = vector.broadcast %cst_758 : f32 to vector<2x4xf32>
    %2020 = arith.maximumf %1916, %2019 : vector<2x4xf32>
    %cst_759 = arith.constant 0.000000e+00 : f32
    %2021 = vector.broadcast %cst_759 : f32 to vector<2x4xf32>
    %2022 = arith.maximumf %1942, %2021 : vector<2x4xf32>
    %cst_760 = arith.constant 0.000000e+00 : f32
    %2023 = vector.broadcast %cst_760 : f32 to vector<2x4xf32>
    %2024 = arith.maximumf %1968, %2023 : vector<2x4xf32>
    %cst_761 = arith.constant 0.000000e+00 : f32
    %2025 = vector.broadcast %cst_761 : f32 to vector<2x4xf32>
    %2026 = arith.maximumf %1994, %2025 : vector<2x4xf32>
    %cst_762 = arith.constant 0.0789866745 : f32
    %2027 = vector.broadcast %cst_762 : f32 to vector<2x4xf32>
    %2028 = arith.mulf %1996, %2027 : vector<2x4xf32>
    %cst_763 = arith.constant 0.115613855 : f32
    %2029 = vector.broadcast %cst_763 : f32 to vector<2x4xf32>
    %2030 = arith.mulf %1998, %2029 : vector<2x4xf32>
    %2031 = arith.addf %2028, %2030 : vector<2x4xf32>
    %cst_764 = arith.constant 0.0551837608 : f32
    %2032 = vector.broadcast %cst_764 : f32 to vector<2x4xf32>
    %2033 = arith.mulf %2000, %2032 : vector<2x4xf32>
    %2034 = arith.addf %2031, %2033 : vector<2x4xf32>
    %cst_765 = arith.constant -0.0349758714 : f32
    %2035 = vector.broadcast %cst_765 : f32 to vector<2x4xf32>
    %2036 = arith.mulf %2002, %2035 : vector<2x4xf32>
    %2037 = arith.addf %2034, %2036 : vector<2x4xf32>
    %cst_766 = arith.constant -0.0227155332 : f32
    %2038 = vector.broadcast %cst_766 : f32 to vector<2x4xf32>
    %2039 = arith.mulf %2004, %2038 : vector<2x4xf32>
    %2040 = arith.addf %2037, %2039 : vector<2x4xf32>
    %cst_767 = arith.constant -0.0533303469 : f32
    %2041 = vector.broadcast %cst_767 : f32 to vector<2x4xf32>
    %2042 = arith.mulf %2006, %2041 : vector<2x4xf32>
    %2043 = arith.addf %2040, %2042 : vector<2x4xf32>
    %cst_768 = arith.constant -0.0304131936 : f32
    %2044 = vector.broadcast %cst_768 : f32 to vector<2x4xf32>
    %2045 = arith.mulf %2008, %2044 : vector<2x4xf32>
    %2046 = arith.addf %2043, %2045 : vector<2x4xf32>
    %cst_769 = arith.constant -4.4366761E-4 : f32
    %2047 = vector.broadcast %cst_769 : f32 to vector<2x4xf32>
    %2048 = arith.mulf %2010, %2047 : vector<2x4xf32>
    %2049 = arith.addf %2046, %2048 : vector<2x4xf32>
    %cst_770 = arith.constant -0.0230799932 : f32
    %2050 = vector.broadcast %cst_770 : f32 to vector<2x4xf32>
    %2051 = arith.mulf %2012, %2050 : vector<2x4xf32>
    %2052 = arith.addf %2049, %2051 : vector<2x4xf32>
    %cst_771 = arith.constant 0.181466043 : f32
    %2053 = vector.broadcast %cst_771 : f32 to vector<2x4xf32>
    %2054 = arith.mulf %2014, %2053 : vector<2x4xf32>
    %2055 = arith.addf %2052, %2054 : vector<2x4xf32>
    %cst_772 = arith.constant 0.0878702625 : f32
    %2056 = vector.broadcast %cst_772 : f32 to vector<2x4xf32>
    %2057 = arith.mulf %2016, %2056 : vector<2x4xf32>
    %2058 = arith.addf %2055, %2057 : vector<2x4xf32>
    %cst_773 = arith.constant -0.00838985201 : f32
    %2059 = vector.broadcast %cst_773 : f32 to vector<2x4xf32>
    %2060 = arith.mulf %2018, %2059 : vector<2x4xf32>
    %2061 = arith.addf %2058, %2060 : vector<2x4xf32>
    %cst_774 = arith.constant -0.0892734602 : f32
    %2062 = vector.broadcast %cst_774 : f32 to vector<2x4xf32>
    %2063 = arith.mulf %2020, %2062 : vector<2x4xf32>
    %2064 = arith.addf %2061, %2063 : vector<2x4xf32>
    %cst_775 = arith.constant 0.110556833 : f32
    %2065 = vector.broadcast %cst_775 : f32 to vector<2x4xf32>
    %2066 = arith.mulf %2022, %2065 : vector<2x4xf32>
    %2067 = arith.addf %2064, %2066 : vector<2x4xf32>
    %cst_776 = arith.constant -0.0384375192 : f32
    %2068 = vector.broadcast %cst_776 : f32 to vector<2x4xf32>
    %2069 = arith.mulf %2024, %2068 : vector<2x4xf32>
    %2070 = arith.addf %2067, %2069 : vector<2x4xf32>
    %cst_777 = arith.constant -0.0203144662 : f32
    %2071 = vector.broadcast %cst_777 : f32 to vector<2x4xf32>
    %2072 = arith.mulf %2026, %2071 : vector<2x4xf32>
    %2073 = arith.addf %2070, %2072 : vector<2x4xf32>
    %cst_778 = arith.constant 0.172531471 : f32
    %2074 = vector.broadcast %cst_778 : f32 to vector<2x4xf32>
    %2075 = arith.mulf %1996, %2074 : vector<2x4xf32>
    %cst_779 = arith.constant 0.120742105 : f32
    %2076 = vector.broadcast %cst_779 : f32 to vector<2x4xf32>
    %2077 = arith.mulf %1998, %2076 : vector<2x4xf32>
    %2078 = arith.addf %2075, %2077 : vector<2x4xf32>
    %cst_780 = arith.constant 0.074721314 : f32
    %2079 = vector.broadcast %cst_780 : f32 to vector<2x4xf32>
    %2080 = arith.mulf %2000, %2079 : vector<2x4xf32>
    %2081 = arith.addf %2078, %2080 : vector<2x4xf32>
    %cst_781 = arith.constant -0.0519630238 : f32
    %2082 = vector.broadcast %cst_781 : f32 to vector<2x4xf32>
    %2083 = arith.mulf %2002, %2082 : vector<2x4xf32>
    %2084 = arith.addf %2081, %2083 : vector<2x4xf32>
    %cst_782 = arith.constant 0.0561005734 : f32
    %2085 = vector.broadcast %cst_782 : f32 to vector<2x4xf32>
    %2086 = arith.mulf %2004, %2085 : vector<2x4xf32>
    %2087 = arith.addf %2084, %2086 : vector<2x4xf32>
    %cst_783 = arith.constant -0.0369539186 : f32
    %2088 = vector.broadcast %cst_783 : f32 to vector<2x4xf32>
    %2089 = arith.mulf %2006, %2088 : vector<2x4xf32>
    %2090 = arith.addf %2087, %2089 : vector<2x4xf32>
    %cst_784 = arith.constant 0.0863417387 : f32
    %2091 = vector.broadcast %cst_784 : f32 to vector<2x4xf32>
    %2092 = arith.mulf %2008, %2091 : vector<2x4xf32>
    %2093 = arith.addf %2090, %2092 : vector<2x4xf32>
    %cst_785 = arith.constant 0.0251562279 : f32
    %2094 = vector.broadcast %cst_785 : f32 to vector<2x4xf32>
    %2095 = arith.mulf %2010, %2094 : vector<2x4xf32>
    %2096 = arith.addf %2093, %2095 : vector<2x4xf32>
    %cst_786 = arith.constant 0.0426489227 : f32
    %2097 = vector.broadcast %cst_786 : f32 to vector<2x4xf32>
    %2098 = arith.mulf %2012, %2097 : vector<2x4xf32>
    %2099 = arith.addf %2096, %2098 : vector<2x4xf32>
    %cst_787 = arith.constant -0.0682559162 : f32
    %2100 = vector.broadcast %cst_787 : f32 to vector<2x4xf32>
    %2101 = arith.mulf %2014, %2100 : vector<2x4xf32>
    %2102 = arith.addf %2099, %2101 : vector<2x4xf32>
    %cst_788 = arith.constant -0.0324928239 : f32
    %2103 = vector.broadcast %cst_788 : f32 to vector<2x4xf32>
    %2104 = arith.mulf %2016, %2103 : vector<2x4xf32>
    %2105 = arith.addf %2102, %2104 : vector<2x4xf32>
    %cst_789 = arith.constant 7.752410e-02 : f32
    %2106 = vector.broadcast %cst_789 : f32 to vector<2x4xf32>
    %2107 = arith.mulf %2018, %2106 : vector<2x4xf32>
    %2108 = arith.addf %2105, %2107 : vector<2x4xf32>
    %cst_790 = arith.constant -0.00864083133 : f32
    %2109 = vector.broadcast %cst_790 : f32 to vector<2x4xf32>
    %2110 = arith.mulf %2020, %2109 : vector<2x4xf32>
    %2111 = arith.addf %2108, %2110 : vector<2x4xf32>
    %cst_791 = arith.constant -0.0876541659 : f32
    %2112 = vector.broadcast %cst_791 : f32 to vector<2x4xf32>
    %2113 = arith.mulf %2022, %2112 : vector<2x4xf32>
    %2114 = arith.addf %2111, %2113 : vector<2x4xf32>
    %cst_792 = arith.constant 0.179209262 : f32
    %2115 = vector.broadcast %cst_792 : f32 to vector<2x4xf32>
    %2116 = arith.mulf %2024, %2115 : vector<2x4xf32>
    %2117 = arith.addf %2114, %2116 : vector<2x4xf32>
    %cst_793 = arith.constant -0.0207285751 : f32
    %2118 = vector.broadcast %cst_793 : f32 to vector<2x4xf32>
    %2119 = arith.mulf %2026, %2118 : vector<2x4xf32>
    %2120 = arith.addf %2117, %2119 : vector<2x4xf32>
    %cst_794 = arith.constant -0.0825082585 : f32
    %2121 = vector.broadcast %cst_794 : f32 to vector<2x4xf32>
    %2122 = arith.mulf %1996, %2121 : vector<2x4xf32>
    %cst_795 = arith.constant 0.132467791 : f32
    %2123 = vector.broadcast %cst_795 : f32 to vector<2x4xf32>
    %2124 = arith.mulf %1998, %2123 : vector<2x4xf32>
    %2125 = arith.addf %2122, %2124 : vector<2x4xf32>
    %cst_796 = arith.constant -0.0385038555 : f32
    %2126 = vector.broadcast %cst_796 : f32 to vector<2x4xf32>
    %2127 = arith.mulf %2000, %2126 : vector<2x4xf32>
    %2128 = arith.addf %2125, %2127 : vector<2x4xf32>
    %cst_797 = arith.constant -0.0509208292 : f32
    %2129 = vector.broadcast %cst_797 : f32 to vector<2x4xf32>
    %2130 = arith.mulf %2002, %2129 : vector<2x4xf32>
    %2131 = arith.addf %2128, %2130 : vector<2x4xf32>
    %cst_798 = arith.constant 0.0605251901 : f32
    %2132 = vector.broadcast %cst_798 : f32 to vector<2x4xf32>
    %2133 = arith.mulf %2004, %2132 : vector<2x4xf32>
    %2134 = arith.addf %2131, %2133 : vector<2x4xf32>
    %cst_799 = arith.constant 0.0838427245 : f32
    %2135 = vector.broadcast %cst_799 : f32 to vector<2x4xf32>
    %2136 = arith.mulf %2006, %2135 : vector<2x4xf32>
    %2137 = arith.addf %2134, %2136 : vector<2x4xf32>
    %cst_800 = arith.constant 0.0291463714 : f32
    %2138 = vector.broadcast %cst_800 : f32 to vector<2x4xf32>
    %2139 = arith.mulf %2008, %2138 : vector<2x4xf32>
    %2140 = arith.addf %2137, %2139 : vector<2x4xf32>
    %cst_801 = arith.constant -0.123571351 : f32
    %2141 = vector.broadcast %cst_801 : f32 to vector<2x4xf32>
    %2142 = arith.mulf %2010, %2141 : vector<2x4xf32>
    %2143 = arith.addf %2140, %2142 : vector<2x4xf32>
    %cst_802 = arith.constant 0.012310179 : f32
    %2144 = vector.broadcast %cst_802 : f32 to vector<2x4xf32>
    %2145 = arith.mulf %2012, %2144 : vector<2x4xf32>
    %2146 = arith.addf %2143, %2145 : vector<2x4xf32>
    %cst_803 = arith.constant -0.0322221331 : f32
    %2147 = vector.broadcast %cst_803 : f32 to vector<2x4xf32>
    %2148 = arith.mulf %2014, %2147 : vector<2x4xf32>
    %2149 = arith.addf %2146, %2148 : vector<2x4xf32>
    %cst_804 = arith.constant -0.00898993387 : f32
    %2150 = vector.broadcast %cst_804 : f32 to vector<2x4xf32>
    %2151 = arith.mulf %2016, %2150 : vector<2x4xf32>
    %2152 = arith.addf %2149, %2151 : vector<2x4xf32>
    %cst_805 = arith.constant 0.0458687358 : f32
    %2153 = vector.broadcast %cst_805 : f32 to vector<2x4xf32>
    %2154 = arith.mulf %2018, %2153 : vector<2x4xf32>
    %2155 = arith.addf %2152, %2154 : vector<2x4xf32>
    %cst_806 = arith.constant -0.0403028578 : f32
    %2156 = vector.broadcast %cst_806 : f32 to vector<2x4xf32>
    %2157 = arith.mulf %2020, %2156 : vector<2x4xf32>
    %2158 = arith.addf %2155, %2157 : vector<2x4xf32>
    %cst_807 = arith.constant 0.0240624044 : f32
    %2159 = vector.broadcast %cst_807 : f32 to vector<2x4xf32>
    %2160 = arith.mulf %2022, %2159 : vector<2x4xf32>
    %2161 = arith.addf %2158, %2160 : vector<2x4xf32>
    %cst_808 = arith.constant 0.0955153703 : f32
    %2162 = vector.broadcast %cst_808 : f32 to vector<2x4xf32>
    %2163 = arith.mulf %2024, %2162 : vector<2x4xf32>
    %2164 = arith.addf %2161, %2163 : vector<2x4xf32>
    %cst_809 = arith.constant 0.0125043178 : f32
    %2165 = vector.broadcast %cst_809 : f32 to vector<2x4xf32>
    %2166 = arith.mulf %2026, %2165 : vector<2x4xf32>
    %2167 = arith.addf %2164, %2166 : vector<2x4xf32>
    %cst_810 = arith.constant 0.0883875042 : f32
    %2168 = vector.broadcast %cst_810 : f32 to vector<2x4xf32>
    %2169 = arith.mulf %1996, %2168 : vector<2x4xf32>
    %cst_811 = arith.constant -0.0888882875 : f32
    %2170 = vector.broadcast %cst_811 : f32 to vector<2x4xf32>
    %2171 = arith.mulf %1998, %2170 : vector<2x4xf32>
    %2172 = arith.addf %2169, %2171 : vector<2x4xf32>
    %cst_812 = arith.constant 0.0671992525 : f32
    %2173 = vector.broadcast %cst_812 : f32 to vector<2x4xf32>
    %2174 = arith.mulf %2000, %2173 : vector<2x4xf32>
    %2175 = arith.addf %2172, %2174 : vector<2x4xf32>
    %cst_813 = arith.constant 0.0345055498 : f32
    %2176 = vector.broadcast %cst_813 : f32 to vector<2x4xf32>
    %2177 = arith.mulf %2002, %2176 : vector<2x4xf32>
    %2178 = arith.addf %2175, %2177 : vector<2x4xf32>
    %cst_814 = arith.constant -0.0143141607 : f32
    %2179 = vector.broadcast %cst_814 : f32 to vector<2x4xf32>
    %2180 = arith.mulf %2004, %2179 : vector<2x4xf32>
    %2181 = arith.addf %2178, %2180 : vector<2x4xf32>
    %cst_815 = arith.constant -0.0345269889 : f32
    %2182 = vector.broadcast %cst_815 : f32 to vector<2x4xf32>
    %2183 = arith.mulf %2006, %2182 : vector<2x4xf32>
    %2184 = arith.addf %2181, %2183 : vector<2x4xf32>
    %cst_816 = arith.constant -0.0149814598 : f32
    %2185 = vector.broadcast %cst_816 : f32 to vector<2x4xf32>
    %2186 = arith.mulf %2008, %2185 : vector<2x4xf32>
    %2187 = arith.addf %2184, %2186 : vector<2x4xf32>
    %cst_817 = arith.constant -0.00654931832 : f32
    %2188 = vector.broadcast %cst_817 : f32 to vector<2x4xf32>
    %2189 = arith.mulf %2010, %2188 : vector<2x4xf32>
    %2190 = arith.addf %2187, %2189 : vector<2x4xf32>
    %cst_818 = arith.constant 0.0354960524 : f32
    %2191 = vector.broadcast %cst_818 : f32 to vector<2x4xf32>
    %2192 = arith.mulf %2012, %2191 : vector<2x4xf32>
    %2193 = arith.addf %2190, %2192 : vector<2x4xf32>
    %cst_819 = arith.constant -0.0384496115 : f32
    %2194 = vector.broadcast %cst_819 : f32 to vector<2x4xf32>
    %2195 = arith.mulf %2014, %2194 : vector<2x4xf32>
    %2196 = arith.addf %2193, %2195 : vector<2x4xf32>
    %cst_820 = arith.constant -0.0394500569 : f32
    %2197 = vector.broadcast %cst_820 : f32 to vector<2x4xf32>
    %2198 = arith.mulf %2016, %2197 : vector<2x4xf32>
    %2199 = arith.addf %2196, %2198 : vector<2x4xf32>
    %cst_821 = arith.constant 0.0559553839 : f32
    %2200 = vector.broadcast %cst_821 : f32 to vector<2x4xf32>
    %2201 = arith.mulf %2018, %2200 : vector<2x4xf32>
    %2202 = arith.addf %2199, %2201 : vector<2x4xf32>
    %cst_822 = arith.constant -0.0389976613 : f32
    %2203 = vector.broadcast %cst_822 : f32 to vector<2x4xf32>
    %2204 = arith.mulf %2020, %2203 : vector<2x4xf32>
    %2205 = arith.addf %2202, %2204 : vector<2x4xf32>
    %cst_823 = arith.constant -5.488690e-02 : f32
    %2206 = vector.broadcast %cst_823 : f32 to vector<2x4xf32>
    %2207 = arith.mulf %2022, %2206 : vector<2x4xf32>
    %2208 = arith.addf %2205, %2207 : vector<2x4xf32>
    %cst_824 = arith.constant -0.0526128449 : f32
    %2209 = vector.broadcast %cst_824 : f32 to vector<2x4xf32>
    %2210 = arith.mulf %2024, %2209 : vector<2x4xf32>
    %2211 = arith.addf %2208, %2210 : vector<2x4xf32>
    %cst_825 = arith.constant 9.399240e-02 : f32
    %2212 = vector.broadcast %cst_825 : f32 to vector<2x4xf32>
    %2213 = arith.mulf %2026, %2212 : vector<2x4xf32>
    %2214 = arith.addf %2211, %2213 : vector<2x4xf32>
    %cst_826 = arith.constant 2.000000e+00 : f32
    %2215 = vector.broadcast %cst_826 : f32 to vector<2x4xf32>
    %2216 = arith.addf %2167, %2215 : vector<2x4xf32>
    %2217 = arith.negf %2216 : vector<2x4xf32>
    %2218 = math.exp %2217 : vector<2x4xf32>
    %cst_827 = arith.constant 1.000000e+00 : f32
    %2219 = vector.broadcast %cst_827 : f32 to vector<2x4xf32>
    %2220 = arith.addf %2219, %2218 : vector<2x4xf32>
    %2221 = arith.divf %2219, %2220 : vector<2x4xf32>
    %cst_828 = arith.constant 2.000000e+00 : f32
    %2222 = vector.broadcast %cst_828 : f32 to vector<2x4xf32>
    %2223 = arith.addf %2214, %2222 : vector<2x4xf32>
    %2224 = arith.negf %2223 : vector<2x4xf32>
    %2225 = math.exp %2224 : vector<2x4xf32>
    %cst_829 = arith.constant 1.000000e+00 : f32
    %2226 = vector.broadcast %cst_829 : f32 to vector<2x4xf32>
    %2227 = arith.addf %2226, %2225 : vector<2x4xf32>
    %2228 = arith.divf %2226, %2227 : vector<2x4xf32>
    %2229 = arith.addf %1527, %2073 : vector<2x4xf32>
    %2230 = arith.mulf %2229, %2221 : vector<2x4xf32>
    %2231 = arith.addf %1535, %2120 : vector<2x4xf32>
    %2232 = arith.mulf %2231, %2228 : vector<2x4xf32>
    %c0_830 = arith.constant 0 : index
    %c0_831 = arith.constant 0 : index
    %2233 = vector.load %arg18[%c0_830, %c0_831] : memref<2x12xf32, #tpu.memory_space<vmem>>, vector<2x4xf32>
    tpu.vector_store %arg18[%c0_830, %c0_831], %1519 {strides = array<i32>} : memref<2x12xf32, #tpu.memory_space<vmem>>, vector<2x4xf32>,
    %c0_832 = arith.constant 0 : index
    %c4 = arith.constant 4 : index
    %2234 = vector.load %arg18[%c0_832, %c4] : memref<2x12xf32, #tpu.memory_space<vmem>>, vector<2x4xf32>
    tpu.vector_store %arg18[%c0_832, %c4], %2230 {strides = array<i32>} : memref<2x12xf32, #tpu.memory_space<vmem>>, vector<2x4xf32>,
    %c0_833 = arith.constant 0 : index
    %c8 = arith.constant 8 : index
    %2235 = vector.load %arg18[%c0_833, %c8] : memref<2x12xf32, #tpu.memory_space<vmem>>, vector<2x4xf32>
    tpu.vector_store %arg18[%c0_833, %c8], %2232 {strides = array<i32>} : memref<2x12xf32, #tpu.memory_space<vmem>>, vector<2x4xf32>,
    %cst_834 = arith.constant -0.103372216 : f32
    %2236 = vector.broadcast %cst_834 : f32 to vector<2x4xf32>
    %2237 = arith.addf %1493, %2236 : vector<2x4xf32>
    %cst_835 = arith.constant 0.984222233 : f32
    %2238 = vector.broadcast %cst_835 : f32 to vector<2x4xf32>
    %2239 = arith.mulf %2237, %2238 : vector<2x4xf32>
    %cst_836 = arith.constant 0.094621174 : f32
    %2240 = vector.broadcast %cst_836 : f32 to vector<2x4xf32>
    %2241 = arith.addf %1493, %2240 : vector<2x4xf32>
    %cst_837 = arith.constant 1.04487383 : f32
    %2242 = vector.broadcast %cst_837 : f32 to vector<2x4xf32>
    %2243 = arith.mulf %2241, %2242 : vector<2x4xf32>
    %cst_838 = arith.constant -0.829737663 : f32
    %2244 = vector.broadcast %cst_838 : f32 to vector<2x4xf32>
    %2245 = arith.mulf %2239, %2244 : vector<2x4xf32>
    %cst_839 = arith.constant -0.558153629 : f32
    %2246 = vector.broadcast %cst_839 : f32 to vector<2x4xf32>
    %2247 = arith.mulf %2243, %2246 : vector<2x4xf32>
    %2248 = arith.addf %2245, %2247 : vector<2x4xf32>
    %cst_840 = arith.constant -0.558153629 : f32
    %2249 = vector.broadcast %cst_840 : f32 to vector<2x4xf32>
    %2250 = arith.mulf %2239, %2249 : vector<2x4xf32>
    %cst_841 = arith.constant 0.829737603 : f32
    %2251 = vector.broadcast %cst_841 : f32 to vector<2x4xf32>
    %2252 = arith.mulf %2243, %2251 : vector<2x4xf32>
    %2253 = arith.addf %2250, %2252 : vector<2x4xf32>
    %cst_842 = arith.constant 3.250340e-01 : f32
    %2254 = vector.broadcast %cst_842 : f32 to vector<2x4xf32>
    %2255 = arith.mulf %2248, %2254 : vector<2x4xf32>
    %cst_843 = arith.constant -0.288295716 : f32
    %2256 = vector.broadcast %cst_843 : f32 to vector<2x4xf32>
    %2257 = arith.mulf %2248, %2256 : vector<2x4xf32>
    %cst_844 = arith.constant -0.0901993811 : f32
    %2258 = vector.broadcast %cst_844 : f32 to vector<2x4xf32>
    %2259 = arith.mulf %2248, %2258 : vector<2x4xf32>
    %cst_845 = arith.constant 0.322220653 : f32
    %2260 = vector.broadcast %cst_845 : f32 to vector<2x4xf32>
    %2261 = arith.mulf %2248, %2260 : vector<2x4xf32>
    %cst_846 = arith.constant 0.798636496 : f32
    %2262 = vector.broadcast %cst_846 : f32 to vector<2x4xf32>
    %2263 = arith.mulf %2248, %2262 : vector<2x4xf32>
    %cst_847 = arith.constant 0.141185984 : f32
    %2264 = vector.broadcast %cst_847 : f32 to vector<2x4xf32>
    %2265 = arith.mulf %2248, %2264 : vector<2x4xf32>
    %cst_848 = arith.constant -0.157651082 : f32
    %2266 = vector.broadcast %cst_848 : f32 to vector<2x4xf32>
    %2267 = arith.mulf %2248, %2266 : vector<2x4xf32>
    %cst_849 = arith.constant -0.520122349 : f32
    %2268 = vector.broadcast %cst_849 : f32 to vector<2x4xf32>
    %2269 = arith.mulf %2248, %2268 : vector<2x4xf32>
    %cst_850 = arith.constant 0.178702027 : f32
    %2270 = vector.broadcast %cst_850 : f32 to vector<2x4xf32>
    %2271 = arith.mulf %2248, %2270 : vector<2x4xf32>
    %cst_851 = arith.constant 0.342614889 : f32
    %2272 = vector.broadcast %cst_851 : f32 to vector<2x4xf32>
    %2273 = arith.mulf %2248, %2272 : vector<2x4xf32>
    %cst_852 = arith.constant -0.533173382 : f32
    %2274 = vector.broadcast %cst_852 : f32 to vector<2x4xf32>
    %2275 = arith.mulf %2248, %2274 : vector<2x4xf32>
    %cst_853 = arith.constant 0.161297664 : f32
    %2276 = vector.broadcast %cst_853 : f32 to vector<2x4xf32>
    %2277 = arith.mulf %2248, %2276 : vector<2x4xf32>
    %cst_854 = arith.constant -5.589450e-01 : f32
    %2278 = vector.broadcast %cst_854 : f32 to vector<2x4xf32>
    %2279 = arith.mulf %2248, %2278 : vector<2x4xf32>
    %cst_855 = arith.constant 0.0543022938 : f32
    %2280 = vector.broadcast %cst_855 : f32 to vector<2x4xf32>
    %2281 = arith.mulf %2248, %2280 : vector<2x4xf32>
    %cst_856 = arith.constant 0.169861838 : f32
    %2282 = vector.broadcast %cst_856 : f32 to vector<2x4xf32>
    %2283 = arith.mulf %2248, %2282 : vector<2x4xf32>
    %cst_857 = arith.constant -0.126096442 : f32
    %2284 = vector.broadcast %cst_857 : f32 to vector<2x4xf32>
    %2285 = arith.mulf %2248, %2284 : vector<2x4xf32>
    %cst_858 = arith.constant 0.000000e+00 : f32
    %2286 = vector.broadcast %cst_858 : f32 to vector<2x4xf32>
    %2287 = arith.maximumf %2255, %2286 : vector<2x4xf32>
    %cst_859 = arith.constant 0.000000e+00 : f32
    %2288 = vector.broadcast %cst_859 : f32 to vector<2x4xf32>
    %2289 = arith.maximumf %2257, %2288 : vector<2x4xf32>
    %cst_860 = arith.constant 0.000000e+00 : f32
    %2290 = vector.broadcast %cst_860 : f32 to vector<2x4xf32>
    %2291 = arith.maximumf %2259, %2290 : vector<2x4xf32>
    %cst_861 = arith.constant 0.000000e+00 : f32
    %2292 = vector.broadcast %cst_861 : f32 to vector<2x4xf32>
    %2293 = arith.maximumf %2261, %2292 : vector<2x4xf32>
    %cst_862 = arith.constant 0.000000e+00 : f32
    %2294 = vector.broadcast %cst_862 : f32 to vector<2x4xf32>
    %2295 = arith.maximumf %2263, %2294 : vector<2x4xf32>
    %cst_863 = arith.constant 0.000000e+00 : f32
    %2296 = vector.broadcast %cst_863 : f32 to vector<2x4xf32>
    %2297 = arith.maximumf %2265, %2296 : vector<2x4xf32>
    %cst_864 = arith.constant 0.000000e+00 : f32
    %2298 = vector.broadcast %cst_864 : f32 to vector<2x4xf32>
    %2299 = arith.maximumf %2267, %2298 : vector<2x4xf32>
    %cst_865 = arith.constant 0.000000e+00 : f32
    %2300 = vector.broadcast %cst_865 : f32 to vector<2x4xf32>
    %2301 = arith.maximumf %2269, %2300 : vector<2x4xf32>
    %cst_866 = arith.constant 0.000000e+00 : f32
    %2302 = vector.broadcast %cst_866 : f32 to vector<2x4xf32>
    %2303 = arith.maximumf %2271, %2302 : vector<2x4xf32>
    %cst_867 = arith.constant 0.000000e+00 : f32
    %2304 = vector.broadcast %cst_867 : f32 to vector<2x4xf32>
    %2305 = arith.maximumf %2273, %2304 : vector<2x4xf32>
    %cst_868 = arith.constant 0.000000e+00 : f32
    %2306 = vector.broadcast %cst_868 : f32 to vector<2x4xf32>
    %2307 = arith.maximumf %2275, %2306 : vector<2x4xf32>
    %cst_869 = arith.constant 0.000000e+00 : f32
    %2308 = vector.broadcast %cst_869 : f32 to vector<2x4xf32>
    %2309 = arith.maximumf %2277, %2308 : vector<2x4xf32>
    %cst_870 = arith.constant 0.000000e+00 : f32
    %2310 = vector.broadcast %cst_870 : f32 to vector<2x4xf32>
    %2311 = arith.maximumf %2279, %2310 : vector<2x4xf32>
    %cst_871 = arith.constant 0.000000e+00 : f32
    %2312 = vector.broadcast %cst_871 : f32 to vector<2x4xf32>
    %2313 = arith.maximumf %2281, %2312 : vector<2x4xf32>
    %cst_872 = arith.constant 0.000000e+00 : f32
    %2314 = vector.broadcast %cst_872 : f32 to vector<2x4xf32>
    %2315 = arith.maximumf %2283, %2314 : vector<2x4xf32>
    %cst_873 = arith.constant 0.000000e+00 : f32
    %2316 = vector.broadcast %cst_873 : f32 to vector<2x4xf32>
    %2317 = arith.maximumf %2285, %2316 : vector<2x4xf32>
    %cst_874 = arith.constant 0.00504365796 : f32
    %2318 = vector.broadcast %cst_874 : f32 to vector<2x4xf32>
    %2319 = arith.mulf %2287, %2318 : vector<2x4xf32>
    %cst_875 = arith.constant 0.0241072159 : f32
    %2320 = vector.broadcast %cst_875 : f32 to vector<2x4xf32>
    %2321 = arith.mulf %2289, %2320 : vector<2x4xf32>
    %2322 = arith.addf %2319, %2321 : vector<2x4xf32>
    %cst_876 = arith.constant -0.0982777625 : f32
    %2323 = vector.broadcast %cst_876 : f32 to vector<2x4xf32>
    %2324 = arith.mulf %2291, %2323 : vector<2x4xf32>
    %2325 = arith.addf %2322, %2324 : vector<2x4xf32>
    %cst_877 = arith.constant 0.014885691 : f32
    %2326 = vector.broadcast %cst_877 : f32 to vector<2x4xf32>
    %2327 = arith.mulf %2293, %2326 : vector<2x4xf32>
    %2328 = arith.addf %2325, %2327 : vector<2x4xf32>
    %cst_878 = arith.constant 0.18542555 : f32
    %2329 = vector.broadcast %cst_878 : f32 to vector<2x4xf32>
    %2330 = arith.mulf %2295, %2329 : vector<2x4xf32>
    %2331 = arith.addf %2328, %2330 : vector<2x4xf32>
    %cst_879 = arith.constant -0.0345806442 : f32
    %2332 = vector.broadcast %cst_879 : f32 to vector<2x4xf32>
    %2333 = arith.mulf %2297, %2332 : vector<2x4xf32>
    %2334 = arith.addf %2331, %2333 : vector<2x4xf32>
    %cst_880 = arith.constant -0.00883668474 : f32
    %2335 = vector.broadcast %cst_880 : f32 to vector<2x4xf32>
    %2336 = arith.mulf %2299, %2335 : vector<2x4xf32>
    %2337 = arith.addf %2334, %2336 : vector<2x4xf32>
    %cst_881 = arith.constant -0.0227186289 : f32
    %2338 = vector.broadcast %cst_881 : f32 to vector<2x4xf32>
    %2339 = arith.mulf %2301, %2338 : vector<2x4xf32>
    %2340 = arith.addf %2337, %2339 : vector<2x4xf32>
    %cst_882 = arith.constant 0.14107351 : f32
    %2341 = vector.broadcast %cst_882 : f32 to vector<2x4xf32>
    %2342 = arith.mulf %2303, %2341 : vector<2x4xf32>
    %2343 = arith.addf %2340, %2342 : vector<2x4xf32>
    %cst_883 = arith.constant 0.026572587 : f32
    %2344 = vector.broadcast %cst_883 : f32 to vector<2x4xf32>
    %2345 = arith.mulf %2305, %2344 : vector<2x4xf32>
    %2346 = arith.addf %2343, %2345 : vector<2x4xf32>
    %cst_884 = arith.constant -0.0374055728 : f32
    %2347 = vector.broadcast %cst_884 : f32 to vector<2x4xf32>
    %2348 = arith.mulf %2307, %2347 : vector<2x4xf32>
    %2349 = arith.addf %2346, %2348 : vector<2x4xf32>
    %cst_885 = arith.constant -0.121110797 : f32
    %2350 = vector.broadcast %cst_885 : f32 to vector<2x4xf32>
    %2351 = arith.mulf %2309, %2350 : vector<2x4xf32>
    %2352 = arith.addf %2349, %2351 : vector<2x4xf32>
    %cst_886 = arith.constant -3.987220e-03 : f32
    %2353 = vector.broadcast %cst_886 : f32 to vector<2x4xf32>
    %2354 = arith.mulf %2311, %2353 : vector<2x4xf32>
    %2355 = arith.addf %2352, %2354 : vector<2x4xf32>
    %cst_887 = arith.constant 0.0615900606 : f32
    %2356 = vector.broadcast %cst_887 : f32 to vector<2x4xf32>
    %2357 = arith.mulf %2313, %2356 : vector<2x4xf32>
    %2358 = arith.addf %2355, %2357 : vector<2x4xf32>
    %cst_888 = arith.constant 0.0651056916 : f32
    %2359 = vector.broadcast %cst_888 : f32 to vector<2x4xf32>
    %2360 = arith.mulf %2315, %2359 : vector<2x4xf32>
    %2361 = arith.addf %2358, %2360 : vector<2x4xf32>
    %cst_889 = arith.constant -0.109500878 : f32
    %2362 = vector.broadcast %cst_889 : f32 to vector<2x4xf32>
    %2363 = arith.mulf %2317, %2362 : vector<2x4xf32>
    %2364 = arith.addf %2361, %2363 : vector<2x4xf32>
    %cst_890 = arith.constant 0.0200372841 : f32
    %2365 = vector.broadcast %cst_890 : f32 to vector<2x4xf32>
    %2366 = arith.mulf %2287, %2365 : vector<2x4xf32>
    %cst_891 = arith.constant -0.0442479774 : f32
    %2367 = vector.broadcast %cst_891 : f32 to vector<2x4xf32>
    %2368 = arith.mulf %2289, %2367 : vector<2x4xf32>
    %2369 = arith.addf %2366, %2368 : vector<2x4xf32>
    %cst_892 = arith.constant 4.11877088E-4 : f32
    %2370 = vector.broadcast %cst_892 : f32 to vector<2x4xf32>
    %2371 = arith.mulf %2291, %2370 : vector<2x4xf32>
    %2372 = arith.addf %2369, %2371 : vector<2x4xf32>
    %cst_893 = arith.constant 0.0587681942 : f32
    %2373 = vector.broadcast %cst_893 : f32 to vector<2x4xf32>
    %2374 = arith.mulf %2293, %2373 : vector<2x4xf32>
    %2375 = arith.addf %2372, %2374 : vector<2x4xf32>
    %cst_894 = arith.constant 0.226143539 : f32
    %2376 = vector.broadcast %cst_894 : f32 to vector<2x4xf32>
    %2377 = arith.mulf %2295, %2376 : vector<2x4xf32>
    %2378 = arith.addf %2375, %2377 : vector<2x4xf32>
    %cst_895 = arith.constant 0.0479482226 : f32
    %2379 = vector.broadcast %cst_895 : f32 to vector<2x4xf32>
    %2380 = arith.mulf %2297, %2379 : vector<2x4xf32>
    %2381 = arith.addf %2378, %2380 : vector<2x4xf32>
    %cst_896 = arith.constant 0.0110392822 : f32
    %2382 = vector.broadcast %cst_896 : f32 to vector<2x4xf32>
    %2383 = arith.mulf %2299, %2382 : vector<2x4xf32>
    %2384 = arith.addf %2381, %2383 : vector<2x4xf32>
    %cst_897 = arith.constant -0.0216105394 : f32
    %2385 = vector.broadcast %cst_897 : f32 to vector<2x4xf32>
    %2386 = arith.mulf %2301, %2385 : vector<2x4xf32>
    %2387 = arith.addf %2384, %2386 : vector<2x4xf32>
    %cst_898 = arith.constant 0.0447604246 : f32
    %2388 = vector.broadcast %cst_898 : f32 to vector<2x4xf32>
    %2389 = arith.mulf %2303, %2388 : vector<2x4xf32>
    %2390 = arith.addf %2387, %2389 : vector<2x4xf32>
    %cst_899 = arith.constant 0.0333672799 : f32
    %2391 = vector.broadcast %cst_899 : f32 to vector<2x4xf32>
    %2392 = arith.mulf %2305, %2391 : vector<2x4xf32>
    %2393 = arith.addf %2390, %2392 : vector<2x4xf32>
    %cst_900 = arith.constant -0.13837783 : f32
    %2394 = vector.broadcast %cst_900 : f32 to vector<2x4xf32>
    %2395 = arith.mulf %2307, %2394 : vector<2x4xf32>
    %2396 = arith.addf %2393, %2395 : vector<2x4xf32>
    %cst_901 = arith.constant 0.0695850775 : f32
    %2397 = vector.broadcast %cst_901 : f32 to vector<2x4xf32>
    %2398 = arith.mulf %2309, %2397 : vector<2x4xf32>
    %2399 = arith.addf %2396, %2398 : vector<2x4xf32>
    %cst_902 = arith.constant 0.0211430024 : f32
    %2400 = vector.broadcast %cst_902 : f32 to vector<2x4xf32>
    %2401 = arith.mulf %2311, %2400 : vector<2x4xf32>
    %2402 = arith.addf %2399, %2401 : vector<2x4xf32>
    %cst_903 = arith.constant 0.0855763406 : f32
    %2403 = vector.broadcast %cst_903 : f32 to vector<2x4xf32>
    %2404 = arith.mulf %2313, %2403 : vector<2x4xf32>
    %2405 = arith.addf %2402, %2404 : vector<2x4xf32>
    %cst_904 = arith.constant -0.0486909077 : f32
    %2406 = vector.broadcast %cst_904 : f32 to vector<2x4xf32>
    %2407 = arith.mulf %2315, %2406 : vector<2x4xf32>
    %2408 = arith.addf %2405, %2407 : vector<2x4xf32>
    %cst_905 = arith.constant 0.134300888 : f32
    %2409 = vector.broadcast %cst_905 : f32 to vector<2x4xf32>
    %2410 = arith.mulf %2317, %2409 : vector<2x4xf32>
    %2411 = arith.addf %2408, %2410 : vector<2x4xf32>
    %cst_906 = arith.constant 2.000000e+00 : f32
    %2412 = vector.broadcast %cst_906 : f32 to vector<2x4xf32>
    %2413 = arith.addf %2411, %2412 : vector<2x4xf32>
    %2414 = arith.negf %2413 : vector<2x4xf32>
    %2415 = math.exp %2414 : vector<2x4xf32>
    %cst_907 = arith.constant 1.000000e+00 : f32
    %2416 = vector.broadcast %cst_907 : f32 to vector<2x4xf32>
    %2417 = arith.addf %2416, %2415 : vector<2x4xf32>
    %2418 = arith.divf %2416, %2417 : vector<2x4xf32>
    %2419 = arith.addf %2253, %2364 : vector<2x4xf32>
    %2420 = arith.mulf %2419, %2418 : vector<2x4xf32>
    %c0_908 = arith.constant 0 : index
    %c0_909 = arith.constant 0 : index
    %2421 = vector.load %arg19[%c0_908, %c0_909] : memref<2x8xf32, #tpu.memory_space<vmem>>, vector<2x4xf32>
    tpu.vector_store %arg19[%c0_908, %c0_909], %2248 {strides = array<i32>} : memref<2x8xf32, #tpu.memory_space<vmem>>, vector<2x4xf32>,
    %c0_910 = arith.constant 0 : index
    %c4_911 = arith.constant 4 : index
    %2422 = vector.load %arg19[%c0_910, %c4_911] : memref<2x8xf32, #tpu.memory_space<vmem>>, vector<2x4xf32>
    tpu.vector_store %arg19[%c0_910, %c4_911], %2420 {strides = array<i32>} : memref<2x8xf32, #tpu.memory_space<vmem>>, vector<2x4xf32>,
    %2423 = math.log %2418 : vector<2x4xf32>
    %cst_912 = arith.constant dense<0.000000e+00> : vector<2xf32>
    %2424 = vector.multi_reduction <add>, %2423, %cst_912 [1] : vector<2x4xf32> to vector<2xf32>
    %2425 = vector.shape_cast %2424 : vector<2xf32> to vector<2x1xf32>
    %cst_913 = arith.constant 0.000000e+00 : f32
    %2426 = vector.broadcast %cst_913 : f32 to vector<2x1xf32>
    %2427 = arith.addf %2426, %2425 : vector<2x1xf32>
    %2428 = arith.mulf %2248, %2248 : vector<2x4xf32>
    %cst_914 = arith.constant 1.83787704 : f32
    %2429 = vector.broadcast %cst_914 : f32 to vector<2x4xf32>
    %2430 = arith.addf %2428, %2429 : vector<2x4xf32>
    %cst_915 = arith.constant -5.000000e-01 : f32
    %2431 = vector.broadcast %cst_915 : f32 to vector<2x4xf32>
    %2432 = arith.mulf %2431, %2430 : vector<2x4xf32>
    %cst_916 = arith.constant dense<0.000000e+00> : vector<2xf32>
    %2433 = vector.multi_reduction <add>, %2432, %cst_916 [1] : vector<2x4xf32> to vector<2xf32>
    %2434 = vector.shape_cast %2433 : vector<2xf32> to vector<2x1xf32>
    %cst_917 = arith.constant 0.000000e+00 : f32
    %2435 = vector.broadcast %cst_917 : f32 to vector<2x1xf32>
    %2436 = arith.addf %2435, %2434 : vector<2x1xf32>
    %2437 = arith.mulf %2420, %2420 : vector<2x4xf32>
    %cst_918 = arith.constant 1.83787704 : f32
    %2438 = vector.broadcast %cst_918 : f32 to vector<2x4xf32>
    %2439 = arith.addf %2437, %2438 : vector<2x4xf32>
    %cst_919 = arith.constant -5.000000e-01 : f32
    %2440 = vector.broadcast %cst_919 : f32 to vector<2x4xf32>
    %2441 = arith.mulf %2440, %2439 : vector<2x4xf32>
    %cst_920 = arith.constant dense<0.000000e+00> : vector<2xf32>
    %2442 = vector.multi_reduction <add>, %2441, %cst_920 [1] : vector<2x4xf32> to vector<2xf32>
    %2443 = vector.shape_cast %2442 : vector<2xf32> to vector<2x1xf32>
    %2444 = arith.addf %2436, %2443 : vector<2x1xf32>
    %2445 = arith.addf %2444, %2427 : vector<2x1xf32>
    %cst_921 = arith.constant 0.111970529 : f32
    %2446 = vector.broadcast %cst_921 : f32 to vector<2x1xf32>
    %2447 = arith.addf %2445, %2446 : vector<2x1xf32>
    %cst_922 = arith.constant 0.000000e+00 : f32
    %2448 = vector.broadcast %cst_922 : f32 to vector<2x1xf32>
    %2449 = arith.subf %2448, %2447 : vector<2x1xf32>
    %cst_923 = arith.constant 0.180336878 : f32
    %2450 = vector.broadcast %cst_923 : f32 to vector<2x1xf32>
    %2451 = arith.mulf %2449, %2450 : vector<2x1xf32>
    %2452 = vector.shape_cast %2451 : vector<2x1xf32> to vector<2x1xf32>
    %2453 = vector.broadcast %2452 : vector<2x1xf32> to vector<2x128xf32>
    %c0_924 = arith.constant 0 : index
    %c0_925 = arith.constant 0 : index
    %2454 = vector.load %arg20[%c0_924, %c0_925] : memref<2x128xf32, #tpu.memory_space<vmem>>, vector<2x128xf32>
    tpu.vector_store %arg20[%c0_924, %c0_925], %2453 {strides = array<i32>} : memref<2x128xf32, #tpu.memory_space<vmem>>, vector<2x128xf32>,
    return
  }
}

</mosaic_0001>

<llo_original>
// kernel: forward.1
$region0: #{forward.1}
  #allocation0 [shape = 'u32[]', space=smem, size = 0x4, offset = 0x4, fixed_abs, tag = 'smem constant byte address 0x4 - core index']
  #allocation1 [shape = 'u32[144,128]{1,0:T(1,128)}', space=vmem, size = 0x12000, scoped, tag = 'internal scratch']
  %s0 = inlined_call_operand.vmem [shape: f32[2,256], index: 0, kind: input, shape index: {}]
  %s1 = inlined_call_operand.vmem [shape: bf16[256,64], index: 1, kind: input, shape index: {}]
  %s2 = inlined_call_operand.vmem [shape: bf16[256,64], index: 2, kind: input, shape index: {}]
  %s3 = inlined_call_operand.vmem [shape: bf16[256,64], index: 3, kind: input, shape index: {}]
  %s4 = inlined_call_operand.vmem [shape: bf16[256,64], index: 4, kind: input, shape index: {}]
  %s5 = inlined_call_operand.vmem [shape: bf16[64,512], index: 5, kind: input, shape index: {}]
  %s6 = inlined_call_operand.vmem [shape: bf16[64,16], index: 6, kind: input, shape index: {}]
  %s7 = inlined_call_operand.vmem [shape: bf16[64,16], index: 7, kind: input, shape index: {}]
  %s8 = inlined_call_operand.vmem [shape: bf16[64,16], index: 8, kind: input, shape index: {}]
  %s9 = inlined_call_operand.vmem [shape: bf16[64,16], index: 9, kind: input, shape index: {}]
  %s10 = inlined_call_operand.vmem [shape: bf16[16,128], index: 10, kind: input, shape index: {}]
  %s11 = inlined_call_operand.vmem [shape: bf16[16,4], index: 11, kind: input, shape index: {}]
  %s12 = inlined_call_operand.vmem [shape: bf16[16,4], index: 12, kind: input, shape index: {}]
  %s13 = inlined_call_operand.vmem [shape: bf16[16,4], index: 13, kind: input, shape index: {}]
  %s14 = inlined_call_operand.vmem [shape: bf16[16,4], index: 14, kind: input, shape index: {}]
  %s15 = inlined_call_operand.vmem [shape: bf16[4,32], index: 15, kind: input, shape index: {}]
  %s16 = inlined_call_operand.vmem [shape: f32[2,192], index: 16, kind: output, shape index: {0}]
  %s17 = inlined_call_operand.vmem [shape: f32[2,48], index: 17, kind: output, shape index: {1}]
  %s18 = inlined_call_operand.vmem [shape: f32[2,12], index: 18, kind: output, shape index: {2}]
  %s19 = inlined_call_operand.vmem [shape: f32[2,8], index: 19, kind: output, shape index: {3}]
  %s20 = inlined_call_operand.vmem [shape: f32[2,128], index: 20, kind: output, shape index: {4}]
  %21 = xla_tuple %s16, %s17, %s18, %s19, %s20
  %s22 = sld [smem:[#allocation0]]
  $region106: #{forward.1} parent=0
    _
  %s24 = ssub.s32 1, %s22
  %s25 = scalar_select 0, %s24, %s22
  // Predicated region
  $region2: #{forward.1} parent=0 // pred_check
    _
  $region3: #{forward.1} parent=0 // pred_check_branch
    %27 = sbr.rel (0) target = $region5
  $region4: #{forward.1} parent=0 // pred_region
    _
  $region5: #{forward.1} parent=0 // pred_fallthru
    _
  // Predicated region
  $region6: #{forward.1} parent=0 // pred_check
    _
  $region7: #{forward.1} parent=0 // pred_check_branch
    %29 = sbr.rel (0) target = $region9
  $region8: #{forward.1} parent=0 // pred_region
    _
  $region9: #{forward.1} parent=0 // pred_fallthru
    _
  // Predicated region
  $region10: #{forward.1} parent=0 // pred_check
    _
  $region11: #{forward.1} parent=0 // pred_check_branch
    %31 = sbr.rel (0) target = $region13
  $region12: #{forward.1} parent=0 // pred_region
    _
  $region13: #{forward.1} parent=0 // pred_fallthru
    _
  // Predicated region
  $region14: #{forward.1} parent=0 // pred_check
    _
  $region15: #{forward.1} parent=0 // pred_check_branch
    %33 = sbr.rel (0) target = $region17
  $region16: #{forward.1} parent=0 // pred_region
    _
  $region17: #{forward.1} parent=0 // pred_fallthru
    _
  // Predicated region
  $region18: #{forward.1} parent=0 // pred_check
    _
  $region19: #{forward.1} parent=0 // pred_check_branch
    %35 = sbr.rel (0) target = $region21
  $region20: #{forward.1} parent=0 // pred_region
    _
  $region21: #{forward.1} parent=0 // pred_fallthru
    _
  // Predicated region
  $region22: #{forward.1} parent=0 // pred_check
    _
  $region23: #{forward.1} parent=0 // pred_check_branch
    %37 = sbr.rel (0) target = $region25
  $region24: #{forward.1} parent=0 // pred_region
    _
  $region25: #{forward.1} parent=0 // pred_fallthru
    _
  // Predicated region
  $region26: #{forward.1} parent=0 // pred_check
    _
  $region27: #{forward.1} parent=0 // pred_check_branch
    %39 = sbr.rel (0) target = $region29
  $region28: #{forward.1} parent=0 // pred_region
    _
  $region29: #{forward.1} parent=0 // pred_fallthru
    _
  // Predicated region
  $region30: #{forward.1} parent=0 // pred_check
    _
  $region31: #{forward.1} parent=0 // pred_check_branch
    %41 = sbr.rel (0) target = $region33
  $region32: #{forward.1} parent=0 // pred_region
    _
  $region33: #{forward.1} parent=0 // pred_fallthru
    _
  // Predicated region
  $region34: #{forward.1} parent=0 // pred_check
    _
  $region35: #{forward.1} parent=0 // pred_check_branch
    %43 = sbr.rel (0) target = $region37
  $region36: #{forward.1} parent=0 // pred_region
    _
  $region37: #{forward.1} parent=0 // pred_fallthru
    _
  // Predicated region
  $region38: #{forward.1} parent=0 // pred_check
    _
  $region39: #{forward.1} parent=0 // pred_check_branch
    %45 = sbr.rel (0) target = $region41
  $region40: #{forward.1} parent=0 // pred_region
    _
  $region41: #{forward.1} parent=0 // pred_fallthru
    _
  // Predicated region
  $region42: #{forward.1} parent=0 // pred_check
    _
  $region43: #{forward.1} parent=0 // pred_check_branch
    %47 = sbr.rel (0) target = $region45
  $region44: #{forward.1} parent=0 // pred_region
    _
  $region45: #{forward.1} parent=0 // pred_fallthru
    _
  // Predicated region
  $region46: #{forward.1} parent=0 // pred_check
    _
  $region47: #{forward.1} parent=0 // pred_check_branch
    %49 = sbr.rel (0) target = $region49
  $region48: #{forward.1} parent=0 // pred_region
    _
  $region49: #{forward.1} parent=0 // pred_fallthru
    _
  // Predicated region
  $region50: #{forward.1} parent=0 // pred_check
    _
  $region51: #{forward.1} parent=0 // pred_check_branch
    %51 = sbr.rel (0) target = $region53
  $region52: #{forward.1} parent=0 // pred_region
    _
  $region53: #{forward.1} parent=0 // pred_fallthru
    _
  // Predicated region
  $region54: #{forward.1} parent=0 // pred_check
    _
  $region55: #{forward.1} parent=0 // pred_check_branch
    %53 = sbr.rel (0) target = $region57
  $region56: #{forward.1} parent=0 // pred_region
    _
  $region57: #{forward.1} parent=0 // pred_fallthru
    _
  // Predicated region
  $region58: #{forward.1} parent=0 // pred_check
    _
  $region59: #{forward.1} parent=0 // pred_check_branch
    %55 = sbr.rel (0) target = $region61
  $region60: #{forward.1} parent=0 // pred_region
    _
  $region61: #{forward.1} parent=0 // pred_fallthru
    _
  // Predicated region
  $region62: #{forward.1} parent=0 // pred_check
    _
  $region63: #{forward.1} parent=0 // pred_check_branch
    %57 = sbr.rel (0) target = $region65
  $region64: #{forward.1} parent=0 // pred_region
    _
  $region65: #{forward.1} parent=0 // pred_fallthru
    _
  %v59 = vld [vmem:[%s0] sm:$0xf]
  %v62 = vunpack.c.l.s4 1983009808
  %v63 = vunpack.c.0.s8 %v62
  %v64 = vlaneseq
  %v65 = vshrl.u32 %v64, 7
  %v66 = vsub.s32 %v63, %v65
  %v67 = vrot.slane %v59, %v66
  %v68 = vcombine.high %v67, %v67
  %v71 = vpack.c.bf16 %v67, %v67
  %v72 = vpack.c.bf16 %v68, %v68
  %v73 = vld [vmem:[%s1] sm:$0xf]
  %v74 = vld [vmem:[%s1 + $0x4] sm:$0xf]
  %v75 = vld [vmem:[%s1 + $0x8] sm:$0xf]
  %v76 = vld [vmem:[%s1 + $0xc] sm:$0xf]
  %v77 = vld [vmem:[%s1 + $0x10] sm:$0xf]
  %v78 = vld [vmem:[%s1 + $0x14] sm:$0xf]
  %v79 = vld [vmem:[%s1 + $0x18] sm:$0xf]
  %v80 = vld [vmem:[%s1 + $0x1c] sm:$0xf]
  %v81 = vld [vmem:[%s1 + $0x20] sm:$0xf]
  %v82 = vld [vmem:[%s1 + $0x24] sm:$0xf]
  %v83 = vld [vmem:[%s1 + $0x28] sm:$0xf]
  %v84 = vld [vmem:[%s1 + $0x2c] sm:$0xf]
  %v85 = vld [vmem:[%s1 + $0x30] sm:$0xf]
  %v86 = vld [vmem:[%s1 + $0x34] sm:$0xf]
  %v87 = vld [vmem:[%s1 + $0x38] sm:$0xf]
  %v88 = vld [vmem:[%s1 + $0x3c] sm:$0xf]
  %v89 = vld [vmem:[%s1 + $0x40] sm:$0xf]
  %v90 = vld [vmem:[%s1 + $0x44] sm:$0xf]
  %v91 = vld [vmem:[%s1 + $0x48] sm:$0xf]
  %v92 = vld [vmem:[%s1 + $0x4c] sm:$0xf]
  %v93 = vld [vmem:[%s1 + $0x50] sm:$0xf]
  %v94 = vld [vmem:[%s1 + $0x54] sm:$0xf]
  %v95 = vld [vmem:[%s1 + $0x58] sm:$0xf]
  %v96 = vld [vmem:[%s1 + $0x5c] sm:$0xf]
  %v97 = vld [vmem:[%s1 + $0x60] sm:$0xf]
  %v98 = vld [vmem:[%s1 + $0x64] sm:$0xf]
  %v99 = vld [vmem:[%s1 + $0x68] sm:$0xf]
  %v100 = vld [vmem:[%s1 + $0x6c] sm:$0xf]
  %v101 = vld [vmem:[%s1 + $0x70] sm:$0xf]
  %v102 = vld [vmem:[%s1 + $0x74] sm:$0xf]
  %v103 = vld [vmem:[%s1 + $0x78] sm:$0xf]
  %v104 = vld [vmem:[%s1 + $0x7c] sm:$0xf]
  %v137 = vunpack.c.l.b16 %v73
  %v138 = vunpack.c.l.b16 %v74
  %v139 = vunpack.c.l.b16 %v75
  %v140 = vunpack.c.l.b16 %v76
  %v141 = vunpack.c.l.b16 %v77
  %v142 = vunpack.c.l.b16 %v78
  %v143 = vunpack.c.l.b16 %v79
  %v144 = vunpack.c.l.b16 %v80
  %v145 = vunpack.c.l.b16 %v81
  %v146 = vunpack.c.l.b16 %v82
  %v147 = vunpack.c.l.b16 %v83
  %v148 = vunpack.c.l.b16 %v84
  %v149 = vunpack.c.l.b16 %v85
  %v150 = vunpack.c.l.b16 %v86
  %v151 = vunpack.c.l.b16 %v87
  %v152 = vunpack.c.l.b16 %v88
  %v153 = vunpack.c.l.b16 %v89
  %v154 = vunpack.c.l.b16 %v90
  %v155 = vunpack.c.l.b16 %v91
  %v156 = vunpack.c.l.b16 %v92
  %v157 = vunpack.c.l.b16 %v93
  %v158 = vunpack.c.l.b16 %v94
  %v159 = vunpack.c.l.b16 %v95
  %v160 = vunpack.c.l.b16 %v96
  %v161 = vunpack.c.l.b16 %v97
  %v162 = vunpack.c.l.b16 %v98
  %v163 = vunpack.c.l.b16 %v99
  %v164 = vunpack.c.l.b16 %v100
  %v165 = vunpack.c.l.b16 %v101
  %v166 = vunpack.c.l.b16 %v102
  %v167 = vunpack.c.l.b16 %v103
  %v168 = vunpack.c.l.b16 %v104
  %v169 = vpack.c.b16 %v138, %v137
  %v170 = vpack.c.b16 %v140, %v139
  %v171 = vpack.c.b16 %v142, %v141
  %v172 = vpack.c.b16 %v144, %v143
  %v173 = vpack.c.b16 %v146, %v145
  %v174 = vpack.c.b16 %v148, %v147
  %v175 = vpack.c.b16 %v150, %v149
  %v176 = vpack.c.b16 %v152, %v151
  %v177 = vpack.c.b16 %v154, %v153
  %v178 = vpack.c.b16 %v156, %v155
  %v179 = vpack.c.b16 %v158, %v157
  %v180 = vpack.c.b16 %v160, %v159
  %v181 = vpack.c.b16 %v162, %v161
  %v182 = vpack.c.b16 %v164, %v163
  %v183 = vpack.c.b16 %v166, %v165
  %v184 = vpack.c.b16 %v168, %v167
  %201 = vmatprep.subr.bf16.mxu0 0
  %202 = vmatpush1.bf16.msra.mxu0 %v169
  %203 = vmatprep.subr.bf16.mxu0 0
  %204 = vmatpush1.bf16.msra.mxu0 %v170
  %205 = vmatprep.subr.bf16.mxu0 0
  %206 = vmatpush1.bf16.msra.mxu0 %v171
  %207 = vmatprep.subr.bf16.mxu0 0
  %208 = vmatpush1.bf16.msra.mxu0 %v172
  %209 = vmatprep.subr.bf16.mxu0 0
  %210 = vmatpush1.bf16.msra.mxu0 %v173
  %211 = vmatprep.subr.bf16.mxu0 0
  %212 = vmatpush1.bf16.msra.mxu0 %v174
  %213 = vmatprep.subr.bf16.mxu0 0
  %214 = vmatpush1.bf16.msra.mxu0 %v175
  %215 = vmatprep.subr.bf16.mxu0 0
  %216 = vmatpush1.bf16.msra.mxu0 %v176
  %217 = vmatprep.subr.bf16.mxu0 0
  %218 = vmatpush1.bf16.msra.mxu0 %v177
  %219 = vmatprep.subr.bf16.mxu0 0
  %220 = vmatpush1.bf16.msra.mxu0 %v178
  %221 = vmatprep.subr.bf16.mxu0 0
  %222 = vmatpush1.bf16.msra.mxu0 %v179
  %223 = vmatprep.subr.bf16.mxu0 0
  %224 = vmatpush1.bf16.msra.mxu0 %v180
  %225 = vmatprep.subr.bf16.mxu0 0
  %226 = vmatpush1.bf16.msra.mxu0 %v181
  %227 = vmatprep.subr.bf16.mxu0 0
  %228 = vmatpush1.bf16.msra.mxu0 %v182
  %229 = vmatprep.subr.bf16.mxu0 0
  %230 = vmatpush1.bf16.msra.mxu0 %v183
  %231 = vmatprep.subr.bf16.mxu0 0
  %232 = vmatpush1.bf16.msra.mxu0 %v184
  %233 = vmatprep.mubr.bf16.mxu0 %v72
  %234 = vmatmul.mubr.bf16.gmra.mrb[0].mxu0 %v71
  %v235 = vpop.f32.mrb[0].mxu0
  %v236 = vadd.f32 0.0, %v235
  %v237 = vpop.f32.mrb[0].mxu0
  %v238 = vpop.f32.mrb[0].mxu0
  %v239 = vpop.f32.mrb[0].mxu0
  %240 = vdwg.mxu0
  %v241 = vld [vmem:[%s2] sm:$0xf]
  %v242 = vld [vmem:[%s2 + $0x4] sm:$0xf]
  %v243 = vld [vmem:[%s2 + $0x8] sm:$0xf]
  %v244 = vld [vmem:[%s2 + $0xc] sm:$0xf]
  %v245 = vld [vmem:[%s2 + $0x10] sm:$0xf]
  %v246 = vld [vmem:[%s2 + $0x14] sm:$0xf]
  %v247 = vld [vmem:[%s2 + $0x18] sm:$0xf]
  %v248 = vld [vmem:[%s2 + $0x1c] sm:$0xf]
  %v249 = vld [vmem:[%s2 + $0x20] sm:$0xf]
  %v250 = vld [vmem:[%s2 + $0x24] sm:$0xf]
  %v251 = vld [vmem:[%s2 + $0x28] sm:$0xf]
  %v252 = vld [vmem:[%s2 + $0x2c] sm:$0xf]
  %v253 = vld [vmem:[%s2 + $0x30] sm:$0xf]
  %v254 = vld [vmem:[%s2 + $0x34] sm:$0xf]
  %v255 = vld [vmem:[%s2 + $0x38] sm:$0xf]
  %v256 = vld [vmem:[%s2 + $0x3c] sm:$0xf]
  %v257 = vld [vmem:[%s2 + $0x40] sm:$0xf]
  %v258 = vld [vmem:[%s2 + $0x44] sm:$0xf]
  %v259 = vld [vmem:[%s2 + $0x48] sm:$0xf]
  %v260 = vld [vmem:[%s2 + $0x4c] sm:$0xf]
  %v261 = vld [vmem:[%s2 + $0x50] sm:$0xf]
  %v262 = vld [vmem:[%s2 + $0x54] sm:$0xf]
  %v263 = vld [vmem:[%s2 + $0x58] sm:$0xf]
  %v264 = vld [vmem:[%s2 + $0x5c] sm:$0xf]
  %v265 = vld [vmem:[%s2 + $0x60] sm:$0xf]
  %v266 = vld [vmem:[%s2 + $0x64] sm:$0xf]
  %v267 = vld [vmem:[%s2 + $0x68] sm:$0xf]
  %v268 = vld [vmem:[%s2 + $0x6c] sm:$0xf]
  %v269 = vld [vmem:[%s2 + $0x70] sm:$0xf]
  %v270 = vld [vmem:[%s2 + $0x74] sm:$0xf]
  %v271 = vld [vmem:[%s2 + $0x78] sm:$0xf]
  %v272 = vld [vmem:[%s2 + $0x7c] sm:$0xf]
  %v273 = vld [vmem:[%s3] sm:$0xf]
  %v274 = vld [vmem:[%s3 + $0x4] sm:$0xf]
  %v275 = vld [vmem:[%s3 + $0x8] sm:$0xf]
  %v276 = vld [vmem:[%s3 + $0xc] sm:$0xf]
  %v277 = vld [vmem:[%s3 + $0x10] sm:$0xf]
  %v278 = vld [vmem:[%s3 + $0x14] sm:$0xf]
  %v279 = vld [vmem:[%s3 + $0x18] sm:$0xf]
  %v280 = vld [vmem:[%s3 + $0x1c] sm:$0xf]
  %v281 = vld [vmem:[%s3 + $0x20] sm:$0xf]
  %v282 = vld [vmem:[%s3 + $0x24] sm:$0xf]
  %v283 = vld [vmem:[%s3 + $0x28] sm:$0xf]
  %v284 = vld [vmem:[%s3 + $0x2c] sm:$0xf]
  %v285 = vld [vmem:[%s3 + $0x30] sm:$0xf]
  %v286 = vld [vmem:[%s3 + $0x34] sm:$0xf]
  %v287 = vld [vmem:[%s3 + $0x38] sm:$0xf]
  %v288 = vld [vmem:[%s3 + $0x3c] sm:$0xf]
  %v289 = vld [vmem:[%s3 + $0x40] sm:$0xf]
  %v290 = vld [vmem:[%s3 + $0x44] sm:$0xf]
  %v291 = vld [vmem:[%s3 + $0x48] sm:$0xf]
  %v292 = vld [vmem:[%s3 + $0x4c] sm:$0xf]
  %v293 = vld [vmem:[%s3 + $0x50] sm:$0xf]
  %v294 = vld [vmem:[%s3 + $0x54] sm:$0xf]
  %v295 = vld [vmem:[%s3 + $0x58] sm:$0xf]
  %v296 = vld [vmem:[%s3 + $0x5c] sm:$0xf]
  %v297 = vld [vmem:[%s3 + $0x60] sm:$0xf]
  %v298 = vld [vmem:[%s3 + $0x64] sm:$0xf]
  %v299 = vld [vmem:[%s3 + $0x68] sm:$0xf]
  %v300 = vld [vmem:[%s3 + $0x6c] sm:$0xf]
  %v301 = vld [vmem:[%s3 + $0x70] sm:$0xf]
  %v302 = vld [vmem:[%s3 + $0x74] sm:$0xf]
  %v303 = vld [vmem:[%s3 + $0x78] sm:$0xf]
  %v304 = vld [vmem:[%s3 + $0x7c] sm:$0xf]
  %v305 = vld [vmem:[%s4] sm:$0xf]
  %v306 = vld [vmem:[%s4 + $0x4] sm:$0xf]
  %v307 = vld [vmem:[%s4 + $0x8] sm:$0xf]
  %v308 = vld [vmem:[%s4 + $0xc] sm:$0xf]
  %v309 = vld [vmem:[%s4 + $0x10] sm:$0xf]
  %v310 = vld [vmem:[%s4 + $0x14] sm:$0xf]
  %v311 = vld [vmem:[%s4 + $0x18] sm:$0xf]
  %v312 = vld [vmem:[%s4 + $0x1c] sm:$0xf]
  %v313 = vld [vmem:[%s4 + $0x20] sm:$0xf]
  %v314 = vld [vmem:[%s4 + $0x24] sm:$0xf]
  %v315 = vld [vmem:[%s4 + $0x28] sm:$0xf]
  %v316 = vld [vmem:[%s4 + $0x2c] sm:$0xf]
  %v317 = vld [vmem:[%s4 + $0x30] sm:$0xf]
  %v318 = vld [vmem:[%s4 + $0x34] sm:$0xf]
  %v319 = vld [vmem:[%s4 + $0x38] sm:$0xf]
  %v320 = vld [vmem:[%s4 + $0x3c] sm:$0xf]
  %v321 = vld [vmem:[%s4 + $0x40] sm:$0xf]
  %v322 = vld [vmem:[%s4 + $0x44] sm:$0xf]
  %v323 = vld [vmem:[%s4 + $0x48] sm:$0xf]
  %v324 = vld [vmem:[%s4 + $0x4c] sm:$0xf]
  %v325 = vld [vmem:[%s4 + $0x50] sm:$0xf]
  %v326 = vld [vmem:[%s4 + $0x54] sm:$0xf]
  %v327 = vld [vmem:[%s4 + $0x58] sm:$0xf]
  %v328 = vld [vmem:[%s4 + $0x5c] sm:$0xf]
  %v329 = vld [vmem:[%s4 + $0x60] sm:$0xf]
  %v330 = vld [vmem:[%s4 + $0x64] sm:$0xf]
  %v331 = vld [vmem:[%s4 + $0x68] sm:$0xf]
  %v332 = vld [vmem:[%s4 + $0x6c] sm:$0xf]
  %v333 = vld [vmem:[%s4 + $0x70] sm:$0xf]
  %v334 = vld [vmem:[%s4 + $0x74] sm:$0xf]
  %v335 = vld [vmem:[%s4 + $0x78] sm:$0xf]
  %v336 = vld [vmem:[%s4 + $0x7c] sm:$0xf]
  %v369 = vunpack.c.l.b16 %v241
  %v370 = vunpack.c.l.b16 %v242
  %v371 = vunpack.c.l.b16 %v243
  %v372 = vunpack.c.l.b16 %v244
  %v373 = vunpack.c.l.b16 %v245
  %v374 = vunpack.c.l.b16 %v246
  %v375 = vunpack.c.l.b16 %v247
  %v376 = vunpack.c.l.b16 %v248
  %v377 = vunpack.c.l.b16 %v249
  %v378 = vunpack.c.l.b16 %v250
  %v379 = vunpack.c.l.b16 %v251
  %v380 = vunpack.c.l.b16 %v252
  %v381 = vunpack.c.l.b16 %v253
  %v382 = vunpack.c.l.b16 %v254
  %v383 = vunpack.c.l.b16 %v255
  %v384 = vunpack.c.l.b16 %v256
  %v385 = vunpack.c.l.b16 %v257
  %v386 = vunpack.c.l.b16 %v258
  %v387 = vunpack.c.l.b16 %v259
  %v388 = vunpack.c.l.b16 %v260
  %v389 = vunpack.c.l.b16 %v261
  %v390 = vunpack.c.l.b16 %v262
  %v391 = vunpack.c.l.b16 %v263
  %v392 = vunpack.c.l.b16 %v264
  %v393 = vunpack.c.l.b16 %v265
  %v394 = vunpack.c.l.b16 %v266
  %v395 = vunpack.c.l.b16 %v267
  %v396 = vunpack.c.l.b16 %v268
  %v397 = vunpack.c.l.b16 %v269
  %v398 = vunpack.c.l.b16 %v270
  %v399 = vunpack.c.l.b16 %v271
  %v400 = vunpack.c.l.b16 %v272
  %v401 = vpack.c.b16 %v370, %v369
  %v402 = vpack.c.b16 %v372, %v371
  %v403 = vpack.c.b16 %v374, %v373
  %v404 = vpack.c.b16 %v376, %v375
  %v405 = vpack.c.b16 %v378, %v377
  %v406 = vpack.c.b16 %v380, %v379
  %v407 = vpack.c.b16 %v382, %v381
  %v408 = vpack.c.b16 %v384, %v383
  %v409 = vpack.c.b16 %v386, %v385
  %v410 = vpack.c.b16 %v388, %v387
  %v411 = vpack.c.b16 %v390, %v389
  %v412 = vpack.c.b16 %v392, %v391
  %v413 = vpack.c.b16 %v394, %v393
  %v414 = vpack.c.b16 %v396, %v395
  %v415 = vpack.c.b16 %v398, %v397
  %v416 = vpack.c.b16 %v400, %v399
  %433 = vmatprep.subr.bf16.mxu0 0
  %434 = vmatpush1.bf16.msra.mxu0 %v401
  %435 = vmatprep.subr.bf16.mxu0 0
  %436 = vmatpush1.bf16.msra.mxu0 %v402
  %437 = vmatprep.subr.bf16.mxu0 0
  %438 = vmatpush1.bf16.msra.mxu0 %v403
  %439 = vmatprep.subr.bf16.mxu0 0
  %440 = vmatpush1.bf16.msra.mxu0 %v404
  %441 = vmatprep.subr.bf16.mxu0 0
  %442 = vmatpush1.bf16.msra.mxu0 %v405
  %443 = vmatprep.subr.bf16.mxu0 0
  %444 = vmatpush1.bf16.msra.mxu0 %v406
  %445 = vmatprep.subr.bf16.mxu0 0
  %446 = vmatpush1.bf16.msra.mxu0 %v407
  %447 = vmatprep.subr.bf16.mxu0 0
  %448 = vmatpush1.bf16.msra.mxu0 %v408
  %449 = vmatprep.subr.bf16.mxu0 0
  %450 = vmatpush1.bf16.msra.mxu0 %v409
  %451 = vmatprep.subr.bf16.mxu0 0
  %452 = vmatpush1.bf16.msra.mxu0 %v410
  %453 = vmatprep.subr.bf16.mxu0 0
  %454 = vmatpush1.bf16.msra.mxu0 %v411
  %455 = vmatprep.subr.bf16.mxu0 0
  %456 = vmatpush1.bf16.msra.mxu0 %v412
  %457 = vmatprep.subr.bf16.mxu0 0
  %458 = vmatpush1.bf16.msra.mxu0 %v413
  %459 = vmatprep.subr.bf16.mxu0 0
  %460 = vmatpush1.bf16.msra.mxu0 %v414
  %461 = vmatprep.subr.bf16.mxu0 0
  %462 = vmatpush1.bf16.msra.mxu0 %v415
  %463 = vmatprep.subr.bf16.mxu0 0
  %464 = vmatpush1.bf16.msra.mxu0 %v416
  %465 = vmatprep.mubr.bf16.mxu0 %v72
  %466 = vmatmul.mubr.bf16.gmra.mrb[0].mxu0 %v71
  %v467 = vpop.f32.mrb[0].mxu0
  %v468 = vadd.f32 0.086556114, %v467
  %v469 = vpop.f32.mrb[0].mxu0
  %v470 = vpop.f32.mrb[0].mxu0
  %v471 = vpop.f32.mrb[0].mxu0
  %472 = vdwg.mxu0
  %v473 = vmul.f32 %v468, 1.0139996
  %v506 = vunpack.c.l.b16 %v273
  %v507 = vunpack.c.l.b16 %v274
  %v508 = vunpack.c.l.b16 %v275
  %v509 = vunpack.c.l.b16 %v276
  %v510 = vunpack.c.l.b16 %v277
  %v511 = vunpack.c.l.b16 %v278
  %v512 = vunpack.c.l.b16 %v279
  %v513 = vunpack.c.l.b16 %v280
  %v514 = vunpack.c.l.b16 %v281
  %v515 = vunpack.c.l.b16 %v282
  %v516 = vunpack.c.l.b16 %v283
  %v517 = vunpack.c.l.b16 %v284
  %v518 = vunpack.c.l.b16 %v285
  %v519 = vunpack.c.l.b16 %v286
  %v520 = vunpack.c.l.b16 %v287
  %v521 = vunpack.c.l.b16 %v288
  %v522 = vunpack.c.l.b16 %v289
  %v523 = vunpack.c.l.b16 %v290
  %v524 = vunpack.c.l.b16 %v291
  %v525 = vunpack.c.l.b16 %v292
  %v526 = vunpack.c.l.b16 %v293
  %v527 = vunpack.c.l.b16 %v294
  %v528 = vunpack.c.l.b16 %v295
  %v529 = vunpack.c.l.b16 %v296
  %v530 = vunpack.c.l.b16 %v297
  %v531 = vunpack.c.l.b16 %v298
  %v532 = vunpack.c.l.b16 %v299
  %v533 = vunpack.c.l.b16 %v300
  %v534 = vunpack.c.l.b16 %v301
  %v535 = vunpack.c.l.b16 %v302
  %v536 = vunpack.c.l.b16 %v303
  %v537 = vunpack.c.l.b16 %v304
  %v538 = vpack.c.b16 %v507, %v506
  %v539 = vpack.c.b16 %v509, %v508
  %v540 = vpack.c.b16 %v511, %v510
  %v541 = vpack.c.b16 %v513, %v512
  %v542 = vpack.c.b16 %v515, %v514
  %v543 = vpack.c.b16 %v517, %v516
  %v544 = vpack.c.b16 %v519, %v518
  %v545 = vpack.c.b16 %v521, %v520
  %v546 = vpack.c.b16 %v523, %v522
  %v547 = vpack.c.b16 %v525, %v524
  %v548 = vpack.c.b16 %v527, %v526
  %v549 = vpack.c.b16 %v529, %v528
  %v550 = vpack.c.b16 %v531, %v530
  %v551 = vpack.c.b16 %v533, %v532
  %v552 = vpack.c.b16 %v535, %v534
  %v553 = vpack.c.b16 %v537, %v536
  %570 = vmatprep.subr.bf16.mxu0 0
  %571 = vmatpush1.bf16.msra.mxu0 %v538
  %572 = vmatprep.subr.bf16.mxu0 0
  %573 = vmatpush1.bf16.msra.mxu0 %v539
  %574 = vmatprep.subr.bf16.mxu0 0
  %575 = vmatpush1.bf16.msra.mxu0 %v540
  %576 = vmatprep.subr.bf16.mxu0 0
  %577 = vmatpush1.bf16.msra.mxu0 %v541
  %578 = vmatprep.subr.bf16.mxu0 0
  %579 = vmatpush1.bf16.msra.mxu0 %v542
  %580 = vmatprep.subr.bf16.mxu0 0
  %581 = vmatpush1.bf16.msra.mxu0 %v543
  %582 = vmatprep.subr.bf16.mxu0 0
  %583 = vmatpush1.bf16.msra.mxu0 %v544
  %584 = vmatprep.subr.bf16.mxu0 0
  %585 = vmatpush1.bf16.msra.mxu0 %v545
  %586 = vmatprep.subr.bf16.mxu0 0
  %587 = vmatpush1.bf16.msra.mxu0 %v546
  %588 = vmatprep.subr.bf16.mxu0 0
  %589 = vmatpush1.bf16.msra.mxu0 %v547
  %590 = vmatprep.subr.bf16.mxu0 0
  %591 = vmatpush1.bf16.msra.mxu0 %v548
  %592 = vmatprep.subr.bf16.mxu0 0
  %593 = vmatpush1.bf16.msra.mxu0 %v549
  %594 = vmatprep.subr.bf16.mxu0 0
  %595 = vmatpush1.bf16.msra.mxu0 %v550
  %596 = vmatprep.subr.bf16.mxu0 0
  %597 = vmatpush1.bf16.msra.mxu0 %v551
  %598 = vmatprep.subr.bf16.mxu0 0
  %599 = vmatpush1.bf16.msra.mxu0 %v552
  %600 = vmatprep.subr.bf16.mxu0 0
  %601 = vmatpush1.bf16.msra.mxu0 %v553
  %602 = vmatprep.mubr.bf16.mxu0 %v72
  %603 = vmatmul.mubr.bf16.gmra.mrb[0].mxu0 %v71
  %v604 = vpop.f32.mrb[0].mxu0
  %v605 = vadd.f32 -0.12753372, %v604
  %v606 = vpop.f32.mrb[0].mxu0
  %v607 = vpop.f32.mrb[0].mxu0
  %v608 = vpop.f32.mrb[0].mxu0
  %609 = vdwg.mxu0
  %v610 = vmul.f32 %v605, 1.0314256
  %v643 = vunpack.c.l.b16 %v305
  %v644 = vunpack.c.l.b16 %v306
  %v645 = vunpack.c.l.b16 %v307
  %v646 = vunpack.c.l.b16 %v308
  %v647 = vunpack.c.l.b16 %v309
  %v648 = vunpack.c.l.b16 %v310
  %v649 = vunpack.c.l.b16 %v311
  %v650 = vunpack.c.l.b16 %v312
  %v651 = vunpack.c.l.b16 %v313
  %v652 = vunpack.c.l.b16 %v314
  %v653 = vunpack.c.l.b16 %v315
  %v654 = vunpack.c.l.b16 %v316
  %v655 = vunpack.c.l.b16 %v317
  %v656 = vunpack.c.l.b16 %v318
  %v657 = vunpack.c.l.b16 %v319
  %v658 = vunpack.c.l.b16 %v320
  %v659 = vunpack.c.l.b16 %v321
  %v660 = vunpack.c.l.b16 %v322
  %v661 = vunpack.c.l.b16 %v323
  %v662 = vunpack.c.l.b16 %v324
  %v663 = vunpack.c.l.b16 %v325
  %v664 = vunpack.c.l.b16 %v326
  %v665 = vunpack.c.l.b16 %v327
  %v666 = vunpack.c.l.b16 %v328
  %v667 = vunpack.c.l.b16 %v329
  %v668 = vunpack.c.l.b16 %v330
  %v669 = vunpack.c.l.b16 %v331
  %v670 = vunpack.c.l.b16 %v332
  %v671 = vunpack.c.l.b16 %v333
  %v672 = vunpack.c.l.b16 %v334
  %v673 = vunpack.c.l.b16 %v335
  %v674 = vunpack.c.l.b16 %v336
  %v675 = vpack.c.b16 %v644, %v643
  %v676 = vpack.c.b16 %v646, %v645
  %v677 = vpack.c.b16 %v648, %v647
  %v678 = vpack.c.b16 %v650, %v649
  %v679 = vpack.c.b16 %v652, %v651
  %v680 = vpack.c.b16 %v654, %v653
  %v681 = vpack.c.b16 %v656, %v655
  %v682 = vpack.c.b16 %v658, %v657
  %v683 = vpack.c.b16 %v660, %v659
  %v684 = vpack.c.b16 %v662, %v661
  %v685 = vpack.c.b16 %v664, %v663
  %v686 = vpack.c.b16 %v666, %v665
  %v687 = vpack.c.b16 %v668, %v667
  %v688 = vpack.c.b16 %v670, %v669
  %v689 = vpack.c.b16 %v672, %v671
  %v690 = vpack.c.b16 %v674, %v673
  %707 = vmatprep.subr.bf16.mxu0 0
  %708 = vmatpush1.bf16.msra.mxu0 %v675
  %709 = vmatprep.subr.bf16.mxu0 0
  %710 = vmatpush1.bf16.msra.mxu0 %v676
  %711 = vmatprep.subr.bf16.mxu0 0
  %712 = vmatpush1.bf16.msra.mxu0 %v677
  %713 = vmatprep.subr.bf16.mxu0 0
  %714 = vmatpush1.bf16.msra.mxu0 %v678
  %715 = vmatprep.subr.bf16.mxu0 0
  %716 = vmatpush1.bf16.msra.mxu0 %v679
  %717 = vmatprep.subr.bf16.mxu0 0
  %718 = vmatpush1.bf16.msra.mxu0 %v680
  %719 = vmatprep.subr.bf16.mxu0 0
  %720 = vmatpush1.bf16.msra.mxu0 %v681
  %721 = vmatprep.subr.bf16.mxu0 0
  %722 = vmatpush1.bf16.msra.mxu0 %v682
  %723 = vmatprep.subr.bf16.mxu0 0
  %724 = vmatpush1.bf16.msra.mxu0 %v683
  %725 = vmatprep.subr.bf16.mxu0 0
  %726 = vmatpush1.bf16.msra.mxu0 %v684
  %727 = vmatprep.subr.bf16.mxu0 0
  %728 = vmatpush1.bf16.msra.mxu0 %v685
  %729 = vmatprep.subr.bf16.mxu0 0
  %730 = vmatpush1.bf16.msra.mxu0 %v686
  %731 = vmatprep.subr.bf16.mxu0 0
  %732 = vmatpush1.bf16.msra.mxu0 %v687
  %733 = vmatprep.subr.bf16.mxu0 0
  %734 = vmatpush1.bf16.msra.mxu0 %v688
  %735 = vmatprep.subr.bf16.mxu0 0
  %736 = vmatpush1.bf16.msra.mxu0 %v689
  %737 = vmatprep.subr.bf16.mxu0 0
  %738 = vmatpush1.bf16.msra.mxu0 %v690
  %739 = vmatprep.mubr.bf16.mxu0 %v72
  %740 = vmatmul.mubr.bf16.gmra.mrb[0].mxu0 %v71
  %v741 = vpop.f32.mrb[0].mxu0
  %v742 = vadd.f32 -0.02453625, %v741
  %v743 = vpop.f32.mrb[0].mxu0
  %v744 = vpop.f32.mrb[0].mxu0
  %v745 = vpop.f32.mrb[0].mxu0
  %746 = vdwg.mxu0
  %v747 = vmul.f32 %v742, 0.9406991
  %v748 = vmul.f32 %v473, -0.81823754
  %v749 = vmul.f32 %v610, -0.00042902617
  %v750 = vadd.f32 %v748, %v749
  %v751 = vmul.f32 %v747, -0.57488006
  %v752 = vadd.f32 %v750, %v751
  %v753 = vmul.f32 %v473, 0.41967994
  %v754 = vmul.f32 %v610, -0.68386036
  %v755 = vadd.f32 %v753, %v754
  %v756 = vmul.f32 %v747, -0.59682804
  %v757 = vadd.f32 %v755, %v756
  %v758 = vmul.f32 %v473, -0.3928816
  %v759 = vmul.f32 %v610, -0.72961277
  %v760 = vadd.f32 %v758, %v759
  %v761 = vmul.f32 %v747, 0.55974036
  %v762 = vadd.f32 %v760, %v761
  %v763 = vpack.c.bf16 %v236, %v236
  %v764 = vld [vmem:[%s5] sm:$0xff]
  %v765 = vld [vmem:[%s5 + $0x8] sm:$0xff]
  %v766 = vld [vmem:[%s5 + $0x10] sm:$0xff]
  %v767 = vld [vmem:[%s5 + $0x18] sm:$0xff]
  %v768 = vld [vmem:[%s5 + $0x20] sm:$0xff]
  %v769 = vld [vmem:[%s5 + $0x28] sm:$0xff]
  %v770 = vld [vmem:[%s5 + $0x30] sm:$0xff]
  %v771 = vld [vmem:[%s5 + $0x38] sm:$0xff]
  %v772 = vld [vmem:[%s5 + $0x40] sm:$0xff]
  %v773 = vld [vmem:[%s5 + $0x48] sm:$0xff]
  %v774 = vld [vmem:[%s5 + $0x50] sm:$0xff]
  %v775 = vld [vmem:[%s5 + $0x58] sm:$0xff]
  %v776 = vld [vmem:[%s5 + $0x60] sm:$0xff]
  %v777 = vld [vmem:[%s5 + $0x68] sm:$0xff]
  %v778 = vld [vmem:[%s5 + $0x70] sm:$0xff]
  %v779 = vld [vmem:[%s5 + $0x78] sm:$0xff]
  %v796 = vunpack.c.l.b16 %v764
  %v797 = vunpack.c.h.b16 %v764
  %v798 = vunpack.c.l.b16 %v765
  %v799 = vunpack.c.h.b16 %v765
  %v800 = vunpack.c.l.b16 %v766
  %v801 = vunpack.c.h.b16 %v766
  %v802 = vunpack.c.l.b16 %v767
  %v803 = vunpack.c.h.b16 %v767
  %v804 = vunpack.c.l.b16 %v768
  %v805 = vunpack.c.h.b16 %v768
  %v806 = vunpack.c.l.b16 %v769
  %v807 = vunpack.c.h.b16 %v769
  %v808 = vunpack.c.l.b16 %v770
  %v809 = vunpack.c.h.b16 %v770
  %v810 = vunpack.c.l.b16 %v771
  %v811 = vunpack.c.h.b16 %v771
  %v812 = vunpack.c.l.b16 %v772
  %v813 = vunpack.c.h.b16 %v772
  %v814 = vunpack.c.l.b16 %v773
  %v815 = vunpack.c.h.b16 %v773
  %v816 = vunpack.c.l.b16 %v774
  %v817 = vunpack.c.h.b16 %v774
  %v818 = vunpack.c.l.b16 %v775
  %v819 = vunpack.c.h.b16 %v775
  %v820 = vunpack.c.l.b16 %v776
  %v821 = vunpack.c.h.b16 %v776
  %v822 = vunpack.c.l.b16 %v777
  %v823 = vunpack.c.h.b16 %v777
  %v824 = vunpack.c.l.b16 %v778
  %v825 = vunpack.c.h.b16 %v778
  %v826 = vunpack.c.l.b16 %v779
  %v827 = vunpack.c.h.b16 %v779
  %v828 = vpack.c.b16 %v800, %v796
  %v829 = vpack.c.b16 %v801, %v797
  %v830 = vpack.c.b16 %v802, %v798
  %v831 = vpack.c.b16 %v803, %v799
  %v832 = vpack.c.b16 %v808, %v804
  %v833 = vpack.c.b16 %v809, %v805
  %v834 = vpack.c.b16 %v810, %v806
  %v835 = vpack.c.b16 %v811, %v807
  %v836 = vpack.c.b16 %v816, %v812
  %v837 = vpack.c.b16 %v817, %v813
  %v838 = vpack.c.b16 %v818, %v814
  %v839 = vpack.c.b16 %v819, %v815
  %v840 = vpack.c.b16 %v824, %v820
  %v841 = vpack.c.b16 %v825, %v821
  %v842 = vpack.c.b16 %v826, %v822
  %v843 = vpack.c.b16 %v827, %v823
  %vm860 = vcmask 523264
  %v862 = vsel %vm860, %v763, 0
  %864 = vmatprep.subr.bf16.mxu0 %v829
  %865 = vmatpush1.bf16.msra.mxu0 %v828
  %866 = vmatprep.subr.bf16.mxu0 %v833
  %867 = vmatpush1.bf16.msra.mxu0 %v832
  %868 = vmatprep.subr.bf16.mxu0 %v837
  %869 = vmatpush1.bf16.msra.mxu0 %v836
  %870 = vmatprep.subr.bf16.mxu0 %v841
  %871 = vmatpush1.bf16.msra.mxu0 %v840
  %872 = vmatprep.subr.bf16.mxu0 0
  %873 = vmatpush1.bf16.msra.mxu0 0
  %874 = vmatprep.subr.bf16.mxu0 0
  %875 = vmatpush1.bf16.msra.mxu0 0
  %876 = vmatprep.subr.bf16.mxu0 0
  %877 = vmatpush1.bf16.msra.mxu0 0
  %878 = vmatprep.subr.bf16.mxu0 0
  %879 = vmatpush1.bf16.msra.mxu0 0
  %880 = vmatprep.subr.bf16.mxu0 0
  %881 = vmatpush1.bf16.msra.mxu0 0
  %882 = vmatprep.subr.bf16.mxu0 0
  %883 = vmatpush1.bf16.msra.mxu0 0
  %884 = vmatprep.subr.bf16.mxu0 0
  %885 = vmatpush1.bf16.msra.mxu0 0
  %886 = vmatprep.subr.bf16.mxu0 0
  %887 = vmatpush1.bf16.msra.mxu0 0
  %888 = vmatprep.subr.bf16.mxu0 0
  %889 = vmatpush1.bf16.msra.mxu0 0
  %890 = vmatprep.subr.bf16.mxu0 0
  %891 = vmatpush1.bf16.msra.mxu0 0
  %892 = vmatprep.subr.bf16.mxu0 0
  %893 = vmatpush1.bf16.msra.mxu0 0
  %894 = vmatprep.subr.bf16.mxu0 0
  %895 = vmatpush1.bf16.msra.mxu0 0
  %896 = vmatprep.mubr.bf16.mxu0 0
  %897 = vmatmul.mubr.bf16.gmra.mrb[0].mxu0 %v862
  %v898 = vpop.f32.mrb[0].mxu0
  %v899 = vadd.f32 0.0, %v898
  %v900 = vpop.f32.mrb[0].mxu0
  %v901 = vadd.f32 0.0, %v900
  %v902 = vpop.f32.mrb[0].mxu0
  %v903 = vpop.f32.mrb[0].mxu0
  %904 = vdwg.mxu0
  %905 = vmatprep.subr.bf16.mxu0 %v831
  %906 = vmatpush1.bf16.msra.mxu0 %v830
  %907 = vmatprep.subr.bf16.mxu0 %v835
  %908 = vmatpush1.bf16.msra.mxu0 %v834
  %909 = vmatprep.subr.bf16.mxu0 %v839
  %910 = vmatpush1.bf16.msra.mxu0 %v838
  %911 = vmatprep.subr.bf16.mxu0 %v843
  %912 = vmatpush1.bf16.msra.mxu0 %v842
  %913 = vmatprep.subr.bf16.mxu0 0
  %914 = vmatpush1.bf16.msra.mxu0 0
  %915 = vmatprep.subr.bf16.mxu0 0
  %916 = vmatpush1.bf16.msra.mxu0 0
  %917 = vmatprep.subr.bf16.mxu0 0
  %918 = vmatpush1.bf16.msra.mxu0 0
  %919 = vmatprep.subr.bf16.mxu0 0
  %920 = vmatpush1.bf16.msra.mxu0 0
  %921 = vmatprep.subr.bf16.mxu0 0
  %922 = vmatpush1.bf16.msra.mxu0 0
  %923 = vmatprep.subr.bf16.mxu0 0
  %924 = vmatpush1.bf16.msra.mxu0 0
  %925 = vmatprep.subr.bf16.mxu0 0
  %926 = vmatpush1.bf16.msra.mxu0 0
  %927 = vmatprep.subr.bf16.mxu0 0
  %928 = vmatpush1.bf16.msra.mxu0 0
  %929 = vmatprep.subr.bf16.mxu0 0
  %930 = vmatpush1.bf16.msra.mxu0 0
  %931 = vmatprep.subr.bf16.mxu0 0
  %932 = vmatpush1.bf16.msra.mxu0 0
  %933 = vmatprep.subr.bf16.mxu0 0
  %934 = vmatpush1.bf16.msra.mxu0 0
  %935 = vmatprep.subr.bf16.mxu0 0
  %936 = vmatpush1.bf16.msra.mxu0 0
  %937 = vmatprep.mubr.bf16.mxu0 0
  %938 = vmatmul.mubr.bf16.gmra.mrb[0].mxu0 %v862
  %v939 = vpop.f32.mrb[0].mxu0
  %v940 = vadd.f32 0.0, %v939
  %v941 = vpop.f32.mrb[0].mxu0
  %v942 = vadd.f32 0.0, %v941
  %v943 = vpop.f32.mrb[0].mxu0
  %v944 = vpop.f32.mrb[0].mxu0
  %945 = vdwg.mxu0
  %v946 = vadd.f32 %v899, 0.0
  %v947 = vmax.f32 %v946, 0.0
  %v948 = vadd.f32 %v901, 0.0
  %v949 = vmax.f32 %v948, 0.0
  %v950 = vadd.f32 %v940, 0.0
  %v951 = vmax.f32 %v950, 0.0
  %v952 = vadd.f32 %v942, 0.0
  %v953 = vmax.f32 %v952, 0.0
  %v954 = vmul.f32 %v752, 0.08526986
  %v955 = vmul.f32 %v947, -0.07825169
  %v956 = vadd.f32 %v954, %v955
  %v957 = vmul.f32 %v947, -0.06853744
  %959 = vrot.lane.b32.xlu0 %v957, 64
  %v960 = vpop.permute.xlu0 %959
  %v962 = vadd.f32 %v956, %v960
  %v963 = vmul.f32 %v949, 0.09132895
  %v964 = vadd.f32 %v962, %v963
  %v965 = vmul.f32 %v949, 0.03368217
  %967 = vrot.lane.b32.xlu0 %v965, 64
  %v968 = vpop.permute.xlu0 %967
  %v970 = vadd.f32 %v964, %v968
  %v971 = vmul.f32 %v951, -0.1566949
  %v972 = vadd.f32 %v970, %v971
  %v973 = vmul.f32 %v951, -0.055085294
  %975 = vrot.lane.b32.xlu0 %v973, 64
  %v976 = vpop.permute.xlu0 %975
  %v978 = vadd.f32 %v972, %v976
  %v979 = vmul.f32 %v953, -0.041586824
  %v980 = vadd.f32 %v978, %v979
  %v981 = vmul.f32 %v953, 0.03035409
  %983 = vrot.lane.b32.xlu0 %v981, 64
  %v984 = vpop.permute.xlu0 %983
  %v986 = vadd.f32 %v980, %v984
  %v987 = vmul.f32 %v752, 0.15110274
  %v988 = vmul.f32 %v947, -0.07486541
  %v989 = vadd.f32 %v987, %v988
  %v990 = vmul.f32 %v947, 0.08445618
  %992 = vrot.lane.b32.xlu0 %v990, 64
  %v993 = vpop.permute.xlu0 %992
  %v995 = vadd.f32 %v989, %v993
  %v996 = vmul.f32 %v949, -0.038484547
  %v997 = vadd.f32 %v995, %v996
  %v998 = vmul.f32 %v949, -0.19087033
  %1000 = vrot.lane.b32.xlu0 %v998, 64
  %v1001 = vpop.permute.xlu0 %1000
  %v1003 = vadd.f32 %v997, %v1001
  %v1004 = vmul.f32 %v951, 0.08737224
  %v1005 = vadd.f32 %v1003, %v1004
  %v1006 = vmul.f32 %v951, -0.0075081186
  %1008 = vrot.lane.b32.xlu0 %v1006, 64
  %v1009 = vpop.permute.xlu0 %1008
  %v1011 = vadd.f32 %v1005, %v1009
  %v1012 = vmul.f32 %v953, -0.09600734
  %v1013 = vadd.f32 %v1011, %v1012
  %v1014 = vmul.f32 %v953, -0.07397629
  %1016 = vrot.lane.b32.xlu0 %v1014, 64
  %v1017 = vpop.permute.xlu0 %1016
  %v1019 = vadd.f32 %v1013, %v1017
  %v1020 = vmul.f32 %v752, -0.18021242
  %v1021 = vmul.f32 %v947, -0.03887697
  %v1022 = vadd.f32 %v1020, %v1021
  %v1023 = vmul.f32 %v947, 0.19196746
  %1025 = vrot.lane.b32.xlu0 %v1023, 64
  %v1026 = vpop.permute.xlu0 %1025
  %v1028 = vadd.f32 %v1022, %v1026
  %v1029 = vmul.f32 %v949, -0.060054798
  %v1030 = vadd.f32 %v1028, %v1029
  %v1031 = vmul.f32 %v949, -0.04122352
  %1033 = vrot.lane.b32.xlu0 %v1031, 64
  %v1034 = vpop.permute.xlu0 %1033
  %v1036 = vadd.f32 %v1030, %v1034
  %v1037 = vmul.f32 %v951, -0.10473553
  %v1038 = vadd.f32 %v1036, %v1037
  %v1039 = vmul.f32 %v951, -0.075805746
  %1041 = vrot.lane.b32.xlu0 %v1039, 64
  %v1042 = vpop.permute.xlu0 %1041
  %v1044 = vadd.f32 %v1038, %v1042
  %v1045 = vmul.f32 %v953, -0.161355
  %v1046 = vadd.f32 %v1044, %v1045
  %v1047 = vmul.f32 %v953, -0.031943027
  %1049 = vrot.lane.b32.xlu0 %v1047, 64
  %v1050 = vpop.permute.xlu0 %1049
  %v1052 = vadd.f32 %v1046, %v1050
  %v1053 = vmul.f32 %v752, -0.63663715
  %v1054 = vmul.f32 %v947, 0.1832208
  %v1055 = vadd.f32 %v1053, %v1054
  %v1056 = vmul.f32 %v947, -0.08025599
  %1058 = vrot.lane.b32.xlu0 %v1056, 64
  %v1059 = vpop.permute.xlu0 %1058
  %v1061 = vadd.f32 %v1055, %v1059
  %v1062 = vmul.f32 %v949, -0.12821
  %v1063 = vadd.f32 %v1061, %v1062
  %v1064 = vmul.f32 %v949, -0.28063628
  %1066 = vrot.lane.b32.xlu0 %v1064, 64
  %v1067 = vpop.permute.xlu0 %1066
  %v1069 = vadd.f32 %v1063, %v1067
  %v1070 = vmul.f32 %v951, 0.15095156
  %v1071 = vadd.f32 %v1069, %v1070
  %v1072 = vmul.f32 %v951, -0.072985195
  %1074 = vrot.lane.b32.xlu0 %v1072, 64
  %v1075 = vpop.permute.xlu0 %1074
  %v1077 = vadd.f32 %v1071, %v1075
  %v1078 = vmul.f32 %v953, -0.14657238
  %v1079 = vadd.f32 %v1077, %v1078
  %v1080 = vmul.f32 %v953, 0.0067147966
  %1082 = vrot.lane.b32.xlu0 %v1080, 64
  %v1083 = vpop.permute.xlu0 %1082
  %v1085 = vadd.f32 %v1079, %v1083
  %v1086 = vmul.f32 %v752, -0.18714434
  %v1087 = vmul.f32 %v947, -0.060001425
  %v1088 = vadd.f32 %v1086, %v1087
  %v1089 = vmul.f32 %v947, 0.049400948
  %1091 = vrot.lane.b32.xlu0 %v1089, 64
  %v1092 = vpop.permute.xlu0 %1091
  %v1094 = vadd.f32 %v1088, %v1092
  %v1095 = vmul.f32 %v949, -0.04738553
  %v1096 = vadd.f32 %v1094, %v1095
  %v1097 = vmul.f32 %v949, -0.08151305
  %1099 = vrot.lane.b32.xlu0 %v1097, 64
  %v1100 = vpop.permute.xlu0 %1099
  %v1102 = vadd.f32 %v1096, %v1100
  %v1103 = vmul.f32 %v951, -0.15639105
  %v1104 = vadd.f32 %v1102, %v1103
  %v1105 = vmul.f32 %v951, -0.050115265
  %1107 = vrot.lane.b32.xlu0 %v1105, 64
  %v1108 = vpop.permute.xlu0 %1107
  %v1110 = vadd.f32 %v1104, %v1108
  %v1111 = vmul.f32 %v953, -0.030875478
  %v1112 = vadd.f32 %v1110, %v1111
  %v1113 = vmul.f32 %v953, -0.043759216
  %1115 = vrot.lane.b32.xlu0 %v1113, 64
  %v1116 = vpop.permute.xlu0 %1115
  %v1118 = vadd.f32 %v1112, %v1116
  %v1119 = vmul.f32 %v752, 0.15319122
  %v1120 = vmul.f32 %v947, 0.12248364
  %v1121 = vadd.f32 %v1119, %v1120
  %v1122 = vmul.f32 %v947, -0.17967498
  %1124 = vrot.lane.b32.xlu0 %v1122, 64
  %v1125 = vpop.permute.xlu0 %1124
  %v1127 = vadd.f32 %v1121, %v1125
  %v1128 = vmul.f32 %v949, 0.01321046
  %v1129 = vadd.f32 %v1127, %v1128
  %v1130 = vmul.f32 %v949, 0.17018086
  %1132 = vrot.lane.b32.xlu0 %v1130, 64
  %v1133 = vpop.permute.xlu0 %1132
  %v1135 = vadd.f32 %v1129, %v1133
  %v1136 = vmul.f32 %v951, -0.11994405
  %v1137 = vadd.f32 %v1135, %v1136
  %v1138 = vmul.f32 %v951, -0.03205564
  %1140 = vrot.lane.b32.xlu0 %v1138, 64
  %v1141 = vpop.permute.xlu0 %1140
  %v1143 = vadd.f32 %v1137, %v1141
  %v1144 = vmul.f32 %v953, -0.066153705
  %v1145 = vadd.f32 %v1143, %v1144
  %v1146 = vmul.f32 %v953, 0.12605278
  %1148 = vrot.lane.b32.xlu0 %v1146, 64
  %v1149 = vpop.permute.xlu0 %1148
  %v1151 = vadd.f32 %v1145, %v1149
  %v1152 = vmul.f32 %v752, 0.25010008
  %v1153 = vmul.f32 %v947, 0.081235
  %v1154 = vadd.f32 %v1152, %v1153
  %v1155 = vmul.f32 %v947, 0.04243295
  %1157 = vrot.lane.b32.xlu0 %v1155, 64
  %v1158 = vpop.permute.xlu0 %1157
  %v1160 = vadd.f32 %v1154, %v1158
  %v1161 = vmul.f32 %v949, 0.10023636
  %v1162 = vadd.f32 %v1160, %v1161
  %v1163 = vmul.f32 %v949, -0.14101437
  %1165 = vrot.lane.b32.xlu0 %v1163, 64
  %v1166 = vpop.permute.xlu0 %1165
  %v1168 = vadd.f32 %v1162, %v1166
  %v1169 = vmul.f32 %v951, -0.12758958
  %v1170 = vadd.f32 %v1168, %v1169
  %v1171 = vmul.f32 %v951, -0.08085897
  %1173 = vrot.lane.b32.xlu0 %v1171, 64
  %v1174 = vpop.permute.xlu0 %1173
  %v1176 = vadd.f32 %v1170, %v1174
  %v1177 = vmul.f32 %v953, 0.05118577
  %v1178 = vadd.f32 %v1176, %v1177
  %v1179 = vmul.f32 %v953, 0.031597905
  %1181 = vrot.lane.b32.xlu0 %v1179, 64
  %v1182 = vpop.permute.xlu0 %1181
  %v1184 = vadd.f32 %v1178, %v1182
  %v1185 = vmul.f32 %v752, -0.5741947
  %v1186 = vmul.f32 %v947, 0.14600901
  %v1187 = vadd.f32 %v1185, %v1186
  %v1188 = vmul.f32 %v947, -0.0640501
  %1190 = vrot.lane.b32.xlu0 %v1188, 64
  %v1191 = vpop.permute.xlu0 %1190
  %v1193 = vadd.f32 %v1187, %v1191
  %v1194 = vmul.f32 %v949, 0.040057715
  %v1195 = vadd.f32 %v1193, %v1194
  %v1196 = vmul.f32 %v949, 0.07010503
  %1198 = vrot.lane.b32.xlu0 %v1196, 64
  %v1199 = vpop.permute.xlu0 %1198
  %v1201 = vadd.f32 %v1195, %v1199
  %v1202 = vmul.f32 %v951, -0.11352856
  %v1203 = vadd.f32 %v1201, %v1202
  %v1204 = vmul.f32 %v951, 0.1448927
  %1206 = vrot.lane.b32.xlu0 %v1204, 64
  %v1207 = vpop.permute.xlu0 %1206
  %v1209 = vadd.f32 %v1203, %v1207
  %v1210 = vmul.f32 %v953, -0.12884182
  %v1211 = vadd.f32 %v1209, %v1210
  %v1212 = vmul.f32 %v953, -0.04208922
  %1214 = vrot.lane.b32.xlu0 %v1212, 64
  %v1215 = vpop.permute.xlu0 %1214
  %v1217 = vadd.f32 %v1211, %v1215
  %v1218 = vmul.f32 %v752, 0.007193926
  %v1219 = vmul.f32 %v947, 0.10617083
  %v1220 = vadd.f32 %v1218, %v1219
  %v1221 = vmul.f32 %v947, -0.040214792
  %1223 = vrot.lane.b32.xlu0 %v1221, 64
  %v1224 = vpop.permute.xlu0 %1223
  %v1226 = vadd.f32 %v1220, %v1224
  %v1227 = vmul.f32 %v949, 0.13643736
  %v1228 = vadd.f32 %v1226, %v1227
  %v1229 = vmul.f32 %v949, -0.07405614
  %1231 = vrot.lane.b32.xlu0 %v1229, 64
  %v1232 = vpop.permute.xlu0 %1231
  %v1234 = vadd.f32 %v1228, %v1232
  %v1235 = vmul.f32 %v951, 0.079682685
  %v1236 = vadd.f32 %v1234, %v1235
  %v1237 = vmul.f32 %v951, 0.06215623
  %1239 = vrot.lane.b32.xlu0 %v1237, 64
  %v1240 = vpop.permute.xlu0 %1239
  %v1242 = vadd.f32 %v1236, %v1240
  %v1243 = vmul.f32 %v953, 0.025710901
  %v1244 = vadd.f32 %v1242, %v1243
  %v1245 = vmul.f32 %v953, 0.064488895
  %1247 = vrot.lane.b32.xlu0 %v1245, 64
  %v1248 = vpop.permute.xlu0 %1247
  %v1250 = vadd.f32 %v1244, %v1248
  %v1251 = vmul.f32 %v752, 0.33578265
  %v1252 = vmul.f32 %v947, -0.111526854
  %v1253 = vadd.f32 %v1251, %v1252
  %v1254 = vmul.f32 %v947, 0.0101402225
  %1256 = vrot.lane.b32.xlu0 %v1254, 64
  %v1257 = vpop.permute.xlu0 %1256
  %v1259 = vadd.f32 %v1253, %v1257
  %v1260 = vmul.f32 %v949, -0.13341995
  %v1261 = vadd.f32 %v1259, %v1260
  %v1262 = vmul.f32 %v949, 0.2251333
  %1264 = vrot.lane.b32.xlu0 %v1262, 64
  %v1265 = vpop.permute.xlu0 %1264
  %v1267 = vadd.f32 %v1261, %v1265
  %v1268 = vmul.f32 %v951, 0.01041729
  %v1269 = vadd.f32 %v1267, %v1268
  %v1270 = vmul.f32 %v951, -0.05490402
  %1272 = vrot.lane.b32.xlu0 %v1270, 64
  %v1273 = vpop.permute.xlu0 %1272
  %v1275 = vadd.f32 %v1269, %v1273
  %v1276 = vmul.f32 %v953, 0.0023560445
  %v1277 = vadd.f32 %v1275, %v1276
  %v1278 = vmul.f32 %v953, 0.074058264
  %1280 = vrot.lane.b32.xlu0 %v1278, 64
  %v1281 = vpop.permute.xlu0 %1280
  %v1283 = vadd.f32 %v1277, %v1281
  %v1284 = vmul.f32 %v752, 0.38430828
  %v1285 = vmul.f32 %v947, -0.07560433
  %v1286 = vadd.f32 %v1284, %v1285
  %v1287 = vmul.f32 %v947, -0.0076130703
  %1289 = vrot.lane.b32.xlu0 %v1287, 64
  %v1290 = vpop.permute.xlu0 %1289
  %v1292 = vadd.f32 %v1286, %v1290
  %v1293 = vmul.f32 %v949, -0.10579878
  %v1294 = vadd.f32 %v1292, %v1293
  %v1295 = vmul.f32 %v949, 0.115566
  %1297 = vrot.lane.b32.xlu0 %v1295, 64
  %v1298 = vpop.permute.xlu0 %1297
  %v1300 = vadd.f32 %v1294, %v1298
  %v1301 = vmul.f32 %v951, 0.060088973
  %v1302 = vadd.f32 %v1300, %v1301
  %v1303 = vmul.f32 %v951, -0.024115052
  %1305 = vrot.lane.b32.xlu0 %v1303, 64
  %v1306 = vpop.permute.xlu0 %1305
  %v1308 = vadd.f32 %v1302, %v1306
  %v1309 = vmul.f32 %v953, -0.046163853
  %v1310 = vadd.f32 %v1308, %v1309
  %v1311 = vmul.f32 %v953, 0.08079551
  %1313 = vrot.lane.b32.xlu0 %v1311, 64
  %v1314 = vpop.permute.xlu0 %1313
  %v1316 = vadd.f32 %v1310, %v1314
  %v1317 = vmul.f32 %v752, -0.28542095
  %v1318 = vmul.f32 %v947, 0.034315966
  %v1319 = vadd.f32 %v1317, %v1318
  %v1320 = vmul.f32 %v947, -0.08587299
  %1322 = vrot.lane.b32.xlu0 %v1320, 64
  %v1323 = vpop.permute.xlu0 %1322
  %v1325 = vadd.f32 %v1319, %v1323
  %v1326 = vmul.f32 %v949, 0.0039968626
  %v1327 = vadd.f32 %v1325, %v1326
  %v1328 = vmul.f32 %v949, -0.09254053
  %1330 = vrot.lane.b32.xlu0 %v1328, 64
  %v1331 = vpop.permute.xlu0 %1330
  %v1333 = vadd.f32 %v1327, %v1331
  %v1334 = vmul.f32 %v951, -0.04381036
  %v1335 = vadd.f32 %v1333, %v1334
  %v1336 = vmul.f32 %v951, -0.025687646
  %1338 = vrot.lane.b32.xlu0 %v1336, 64
  %v1339 = vpop.permute.xlu0 %1338
  %v1341 = vadd.f32 %v1335, %v1339
  %v1342 = vmul.f32 %v953, 0.029807534
  %v1343 = vadd.f32 %v1341, %v1342
  %v1344 = vmul.f32 %v953, -0.011088284
  %1346 = vrot.lane.b32.xlu0 %v1344, 64
  %v1347 = vpop.permute.xlu0 %1346
  %v1349 = vadd.f32 %v1343, %v1347
  %v1350 = vmul.f32 %v752, 0.1778405
  %v1351 = vmul.f32 %v947, -0.07927295
  %v1352 = vadd.f32 %v1350, %v1351
  %v1353 = vmul.f32 %v947, 0.093110904
  %1355 = vrot.lane.b32.xlu0 %v1353, 64
  %v1356 = vpop.permute.xlu0 %1355
  %v1358 = vadd.f32 %v1352, %v1356
  %v1359 = vmul.f32 %v949, 0.017482564
  %v1360 = vadd.f32 %v1358, %v1359
  %v1361 = vmul.f32 %v949, -0.07944378
  %1363 = vrot.lane.b32.xlu0 %v1361, 64
  %v1364 = vpop.permute.xlu0 %1363
  %v1366 = vadd.f32 %v1360, %v1364
  %v1367 = vmul.f32 %v951, -0.021582756
  %v1368 = vadd.f32 %v1366, %v1367
  %v1369 = vmul.f32 %v951, -0.033522088
  %1371 = vrot.lane.b32.xlu0 %v1369, 64
  %v1372 = vpop.permute.xlu0 %1371
  %v1374 = vadd.f32 %v1368, %v1372
  %v1375 = vmul.f32 %v953, 0.13014525
  %v1376 = vadd.f32 %v1374, %v1375
  %v1377 = vmul.f32 %v953, 0.0015627344
  %1379 = vrot.lane.b32.xlu0 %v1377, 64
  %v1380 = vpop.permute.xlu0 %1379
  %v1382 = vadd.f32 %v1376, %v1380
  %v1383 = vmul.f32 %v752, 0.21018347
  %v1384 = vmul.f32 %v947, -0.060909435
  %v1385 = vadd.f32 %v1383, %v1384
  %v1386 = vmul.f32 %v947, 0.08233767
  %1388 = vrot.lane.b32.xlu0 %v1386, 64
  %v1389 = vpop.permute.xlu0 %1388
  %v1391 = vadd.f32 %v1385, %v1389
  %v1392 = vmul.f32 %v949, 0.07838624
  %v1393 = vadd.f32 %v1391, %v1392
  %v1394 = vmul.f32 %v949, -0.1750069
  %1396 = vrot.lane.b32.xlu0 %v1394, 64
  %v1397 = vpop.permute.xlu0 %1396
  %v1399 = vadd.f32 %v1393, %v1397
  %v1400 = vmul.f32 %v951, -0.054126207
  %v1401 = vadd.f32 %v1399, %v1400
  %v1402 = vmul.f32 %v951, 0.020121885
  %1404 = vrot.lane.b32.xlu0 %v1402, 64
  %v1405 = vpop.permute.xlu0 %1404
  %v1407 = vadd.f32 %v1401, %v1405
  %v1408 = vmul.f32 %v953, 0.04928027
  %v1409 = vadd.f32 %v1407, %v1408
  %v1410 = vmul.f32 %v953, 0.071669705
  %1412 = vrot.lane.b32.xlu0 %v1410, 64
  %v1413 = vpop.permute.xlu0 %1412
  %v1415 = vadd.f32 %v1409, %v1413
  %v1416 = vmul.f32 %v752, -0.049718287
  %v1417 = vmul.f32 %v947, 0.17705335
  %v1418 = vadd.f32 %v1416, %v1417
  %v1419 = vmul.f32 %v947, 0.042574026
  %1421 = vrot.lane.b32.xlu0 %v1419, 64
  %v1422 = vpop.permute.xlu0 %1421
  %v1424 = vadd.f32 %v1418, %v1422
  %v1425 = vmul.f32 %v949, -0.14109746
  %v1426 = vadd.f32 %v1424, %v1425
  %v1427 = vmul.f32 %v949, 0.17972247
  %1429 = vrot.lane.b32.xlu0 %v1427, 64
  %v1430 = vpop.permute.xlu0 %1429
  %v1432 = vadd.f32 %v1426, %v1430
  %v1433 = vmul.f32 %v951, 0.059568785
  %v1434 = vadd.f32 %v1432, %v1433
  %v1435 = vmul.f32 %v951, 0.05785028
  %1437 = vrot.lane.b32.xlu0 %v1435, 64
  %v1438 = vpop.permute.xlu0 %1437
  %v1440 = vadd.f32 %v1434, %v1438
  %v1441 = vmul.f32 %v953, -0.07451127
  %v1442 = vadd.f32 %v1440, %v1441
  %v1443 = vmul.f32 %v953, -0.24059454
  %1445 = vrot.lane.b32.xlu0 %v1443, 64
  %v1446 = vpop.permute.xlu0 %1445
  %v1448 = vadd.f32 %v1442, %v1446
  %v1449 = vmul.f32 %v752, 0.2553368
  %v1450 = vmul.f32 %v947, -0.06489568
  %v1451 = vadd.f32 %v1449, %v1450
  %v1452 = vmul.f32 %v947, 0.0896536
  %1454 = vrot.lane.b32.xlu0 %v1452, 64
  %v1455 = vpop.permute.xlu0 %1454
  %v1457 = vadd.f32 %v1451, %v1455
  %v1458 = vmul.f32 %v949, -0.082735345
  %v1459 = vadd.f32 %v1457, %v1458
  %v1460 = vmul.f32 %v949, -0.11372827
  %1462 = vrot.lane.b32.xlu0 %v1460, 64
  %v1463 = vpop.permute.xlu0 %1462
  %v1465 = vadd.f32 %v1459, %v1463
  %v1466 = vmul.f32 %v951, 0.03227876
  %v1467 = vadd.f32 %v1465, %v1466
  %v1468 = vmul.f32 %v951, 0.082591936
  %1470 = vrot.lane.b32.xlu0 %v1468, 64
  %v1471 = vpop.permute.xlu0 %1470
  %v1473 = vadd.f32 %v1467, %v1471
  %v1474 = vmul.f32 %v953, 0.0060616033
  %v1475 = vadd.f32 %v1473, %v1474
  %v1476 = vmul.f32 %v953, 0.08366046
  %1478 = vrot.lane.b32.xlu0 %v1476, 64
  %v1479 = vpop.permute.xlu0 %1478
  %v1481 = vadd.f32 %v1475, %v1479
  %v1482 = vmax.f32 %v986, 0.0
  %v1483 = vmax.f32 %v1019, 0.0
  %v1484 = vmax.f32 %v1052, 0.0
  %v1485 = vmax.f32 %v1085, 0.0
  %v1486 = vmax.f32 %v1118, 0.0
  %v1487 = vmax.f32 %v1151, 0.0
  %v1488 = vmax.f32 %v1184, 0.0
  %v1489 = vmax.f32 %v1217, 0.0
  %v1490 = vmax.f32 %v1250, 0.0
  %v1491 = vmax.f32 %v1283, 0.0
  %v1492 = vmax.f32 %v1316, 0.0
  %v1493 = vmax.f32 %v1349, 0.0
  %v1494 = vmax.f32 %v1382, 0.0
  %v1495 = vmax.f32 %v1415, 0.0
  %v1496 = vmax.f32 %v1448, 0.0
  %v1497 = vmax.f32 %v1481, 0.0
  %v1498 = vmul.f32 %v1482, 0.0795784
  %v1499 = vmul.f32 %v1483, -0.048849974
  %v1500 = vadd.f32 %v1498, %v1499
  %v1501 = vmul.f32 %v1484, -0.0039499886
  %v1502 = vadd.f32 %v1500, %v1501
  %v1503 = vmul.f32 %v1485, 0.12581661
  %v1504 = vadd.f32 %v1502, %v1503
  %v1505 = vmul.f32 %v1486, 0.10721287
  %v1506 = vadd.f32 %v1504, %v1505
  %v1507 = vmul.f32 %v1487, 0.106558464
  %v1508 = vadd.f32 %v1506, %v1507
  %v1509 = vmul.f32 %v1488, 0.07296944
  %v1510 = vadd.f32 %v1508, %v1509
  %v1511 = vmul.f32 %v1489, -0.11127907
  %v1512 = vadd.f32 %v1510, %v1511
  %v1513 = vmul.f32 %v1490, 0.010303217
  %v1514 = vadd.f32 %v1512, %v1513
  %v1515 = vmul.f32 %v1491, 0.02914613
  %v1516 = vadd.f32 %v1514, %v1515
  %v1517 = vmul.f32 %v1492, -0.10774198
  %v1518 = vadd.f32 %v1516, %v1517
  %v1519 = vmul.f32 %v1493, -0.013322975
  %v1520 = vadd.f32 %v1518, %v1519
  %v1521 = vmul.f32 %v1494, 0.044525012
  %v1522 = vadd.f32 %v1520, %v1521
  %v1523 = vmul.f32 %v1495, 0.024726272
  %v1524 = vadd.f32 %v1522, %v1523
  %v1525 = vmul.f32 %v1496, 0.048156966
  %v1526 = vadd.f32 %v1524, %v1525
  %v1527 = vmul.f32 %v1497, -0.09857633
  %v1528 = vadd.f32 %v1526, %v1527
  %v1529 = vmul.f32 %v1482, -0.0023625272
  %v1530 = vmul.f32 %v1483, -0.0053246114
  %v1531 = vadd.f32 %v1529, %v1530
  %v1532 = vmul.f32 %v1484, -0.009586343
  %v1533 = vadd.f32 %v1531, %v1532
  %v1534 = vmul.f32 %v1485, -0.14132
  %v1535 = vadd.f32 %v1533, %v1534
  %v1536 = vmul.f32 %v1486, -0.029377311
  %v1537 = vadd.f32 %v1535, %v1536
  %v1538 = vmul.f32 %v1487, -0.1629267
  %v1539 = vadd.f32 %v1537, %v1538
  %v1540 = vmul.f32 %v1488, -0.008893172
  %v1541 = vadd.f32 %v1539, %v1540
  %v1542 = vmul.f32 %v1489, -0.14589962
  %v1543 = vadd.f32 %v1541, %v1542
  %v1544 = vmul.f32 %v1490, -0.008299877
  %v1545 = vadd.f32 %v1543, %v1544
  %v1546 = vmul.f32 %v1491, -0.11412495
  %v1547 = vadd.f32 %v1545, %v1546
  %v1548 = vmul.f32 %v1492, -0.0410774
  %v1549 = vadd.f32 %v1547, %v1548
  %v1550 = vmul.f32 %v1493, -0.0043217693
  %v1551 = vadd.f32 %v1549, %v1550
  %v1552 = vmul.f32 %v1494, -0.014201545
  %v1553 = vadd.f32 %v1551, %v1552
  %v1554 = vmul.f32 %v1495, -0.0038183043
  %v1555 = vadd.f32 %v1553, %v1554
  %v1556 = vmul.f32 %v1496, 0.0020208035
  %v1557 = vadd.f32 %v1555, %v1556
  %v1558 = vmul.f32 %v1497, 0.10240068
  %v1559 = vadd.f32 %v1557, %v1558
  %v1560 = vmul.f32 %v1482, -0.00896533
  %v1561 = vmul.f32 %v1483, -0.039799776
  %v1562 = vadd.f32 %v1560, %v1561
  %v1563 = vmul.f32 %v1484, -0.039173864
  %v1564 = vadd.f32 %v1562, %v1563
  %v1565 = vmul.f32 %v1485, -0.036456224
  %v1566 = vadd.f32 %v1564, %v1565
  %v1567 = vmul.f32 %v1486, 0.0677393
  %v1568 = vadd.f32 %v1566, %v1567
  %v1569 = vmul.f32 %v1487, 0.055466622
  %v1570 = vadd.f32 %v1568, %v1569
  %v1571 = vmul.f32 %v1488, -0.06104004
  %v1572 = vadd.f32 %v1570, %v1571
  %v1573 = vmul.f32 %v1489, -0.10745554
  %v1574 = vadd.f32 %v1572, %v1573
  %v1575 = vmul.f32 %v1490, -0.067720175
  %v1576 = vadd.f32 %v1574, %v1575
  %v1577 = vmul.f32 %v1491, 0.007999223
  %v1578 = vadd.f32 %v1576, %v1577
  %v1579 = vmul.f32 %v1492, -0.0149595365
  %v1580 = vadd.f32 %v1578, %v1579
  %v1581 = vmul.f32 %v1493, 0.10227849
  %v1582 = vadd.f32 %v1580, %v1581
  %v1583 = vmul.f32 %v1494, 0.06259959
  %v1584 = vadd.f32 %v1582, %v1583
  %v1585 = vmul.f32 %v1495, 0.056301083
  %v1586 = vadd.f32 %v1584, %v1585
  %v1587 = vmul.f32 %v1496, 0.0067976383
  %v1588 = vadd.f32 %v1586, %v1587
  %v1589 = vmul.f32 %v1497, 0.09381269
  %v1590 = vadd.f32 %v1588, %v1589
  %v1591 = vmul.f32 %v1482, 0.07324114
  %v1592 = vmul.f32 %v1483, -0.05328081
  %v1593 = vadd.f32 %v1591, %v1592
  %v1594 = vmul.f32 %v1484, -0.0144391125
  %v1595 = vadd.f32 %v1593, %v1594
  %v1596 = vmul.f32 %v1485, -0.032472096
  %v1597 = vadd.f32 %v1595, %v1596
  %v1598 = vmul.f32 %v1486, -0.005932473
  %v1599 = vadd.f32 %v1597, %v1598
  %v1600 = vmul.f32 %v1487, -0.15419419
  %v1601 = vadd.f32 %v1599, %v1600
  %v1602 = vmul.f32 %v1488, -0.15652972
  %v1603 = vadd.f32 %v1601, %v1602
  %v1604 = vmul.f32 %v1489, 0.032689087
  %v1605 = vadd.f32 %v1603, %v1604
  %v1606 = vmul.f32 %v1490, 0.06445891
  %v1607 = vadd.f32 %v1605, %v1606
  %v1608 = vmul.f32 %v1491, -0.022193283
  %v1609 = vadd.f32 %v1607, %v1608
  %v1610 = vmul.f32 %v1492, 0.023400303
  %v1611 = vadd.f32 %v1609, %v1610
  %v1612 = vmul.f32 %v1493, 0.007977585
  %v1613 = vadd.f32 %v1611, %v1612
  %v1614 = vmul.f32 %v1494, 0.11020363
  %v1615 = vadd.f32 %v1613, %v1614
  %v1616 = vmul.f32 %v1495, -0.11314317
  %v1617 = vadd.f32 %v1615, %v1616
  %v1618 = vmul.f32 %v1496, 0.13249712
  %v1619 = vadd.f32 %v1617, %v1618
  %v1620 = vmul.f32 %v1497, 0.086156234
  %v1621 = vadd.f32 %v1619, %v1620
  %v1622 = vadd.f32 %v1590, 2.0
  %v1623 = vxor.u32 %v1622, 2147483648
  %v1624 = vmul.f32 %v1623, 1.442695
  %v1625 = vpow.pop %v1624
  %v1626 = vadd.f32 %v1625, 1.0
  %v1627 = vrcp.pop %v1626
  %v1628 = vmul.f32 1.0, %v1627
  %v1629 = vadd.f32 %v1621, 2.0
  %v1630 = vxor.u32 %v1629, 2147483648
  %v1631 = vmul.f32 %v1630, 1.442695
  %v1632 = vpow.pop %v1631
  %v1633 = vadd.f32 %v1632, 1.0
  %v1634 = vrcp.pop %v1633
  %v1635 = vmul.f32 1.0, %v1634
  %v1636 = vadd.f32 %v757, %v1528
  %v1637 = vmul.f32 %v1636, %v1628
  %v1638 = vadd.f32 %v762, %v1559
  %v1639 = vmul.f32 %v1638, %v1635
  %vm1640 = vcmask 517120
  %1641 = vst.msk [vmem:[%s16] sm:$0x3] %vm1640, %v752
  %v1644 = vunpack.c.l.s4 1983009808
  %v1645 = vunpack.c.0.s8 %v1644
  %v1646 = vlaneseq
  %v1647 = vshrl.u32 %v1646, 7
  %v1648 = vsub.s32 %v1645, %v1647
  %v1649 = vrot.slane %v1637, %v1648
  %1650 = vrot.lane.b32.xlu0 %v1649, 64
  %v1651 = vpop.permute.xlu0 %1650
  %vm1653 = vcmask 1041920
  %1654 = vst.msk [vmem:[%s16] sm:$0x3] %vm1653, %v1651
  %1655 = vst.msk [vmem:[%s16 + $0x2] sm:$0x3] %vm1640, %v1639
  %v1656 = vld [vmem:[%s6] sm:$0xf]
  %v1657 = vld [vmem:[%s6 + $0x4] sm:$0xf]
  %v1658 = vld [vmem:[%s6 + $0x8] sm:$0xf]
  %v1659 = vld [vmem:[%s6 + $0xc] sm:$0xf]
  %v1660 = vld [vmem:[%s6 + $0x10] sm:$0xf]
  %v1661 = vld [vmem:[%s6 + $0x14] sm:$0xf]
  %v1662 = vld [vmem:[%s6 + $0x18] sm:$0xf]
  %v1663 = vld [vmem:[%s6 + $0x1c] sm:$0xf]
  %v1672 = vunpack.c.l.b16 %v1656
  %v1673 = vunpack.c.l.b16 %v1657
  %v1674 = vunpack.c.l.b16 %v1658
  %v1675 = vunpack.c.l.b16 %v1659
  %v1676 = vunpack.c.l.b16 %v1660
  %v1677 = vunpack.c.l.b16 %v1661
  %v1678 = vunpack.c.l.b16 %v1662
  %v1679 = vunpack.c.l.b16 %v1663
  %v1680 = vpack.c.b16 %v1673, %v1672
  %v1681 = vpack.c.b16 %v1675, %v1674
  %v1682 = vpack.c.b16 %v1677, %v1676
  %v1683 = vpack.c.b16 %v1679, %v1678
  %1688 = vmatprep.subr.bf16.mxu0 0
  %1689 = vmatpush1.bf16.msra.mxu0 %v1680
  %1690 = vmatprep.subr.bf16.mxu0 0
  %1691 = vmatpush1.bf16.msra.mxu0 %v1681
  %1692 = vmatprep.subr.bf16.mxu0 0
  %1693 = vmatpush1.bf16.msra.mxu0 %v1682
  %1694 = vmatprep.subr.bf16.mxu0 0
  %1695 = vmatpush1.bf16.msra.mxu0 %v1683
  %1696 = vmatprep.subr.bf16.mxu0 0
  %1697 = vmatpush1.bf16.msra.mxu0 0
  %1698 = vmatprep.subr.bf16.mxu0 0
  %1699 = vmatpush1.bf16.msra.mxu0 0
  %1700 = vmatprep.subr.bf16.mxu0 0
  %1701 = vmatpush1.bf16.msra.mxu0 0
  %1702 = vmatprep.subr.bf16.mxu0 0
  %1703 = vmatpush1.bf16.msra.mxu0 0
  %1704 = vmatprep.subr.bf16.mxu0 0
  %1705 = vmatpush1.bf16.msra.mxu0 0
  %1706 = vmatprep.subr.bf16.mxu0 0
  %1707 = vmatpush1.bf16.msra.mxu0 0
  %1708 = vmatprep.subr.bf16.mxu0 0
  %1709 = vmatpush1.bf16.msra.mxu0 0
  %1710 = vmatprep.subr.bf16.mxu0 0
  %1711 = vmatpush1.bf16.msra.mxu0 0
  %1712 = vmatprep.subr.bf16.mxu0 0
  %1713 = vmatpush1.bf16.msra.mxu0 0
  %1714 = vmatprep.subr.bf16.mxu0 0
  %1715 = vmatpush1.bf16.msra.mxu0 0
  %1716 = vmatprep.subr.bf16.mxu0 0
  %1717 = vmatpush1.bf16.msra.mxu0 0
  %1718 = vmatprep.subr.bf16.mxu0 0
  %1719 = vmatpush1.bf16.msra.mxu0 0
  %1720 = vmatprep.mubr.bf16.mxu0 0
  %1721 = vmatmul.mubr.bf16.gmra.mrb[0].mxu0 %v862
  %v1722 = vpop.f32.mrb[0].mxu0
  %v1723 = vadd.f32 0.0, %v1722
  %v1724 = vpop.f32.mrb[0].mxu0
  %v1725 = vpop.f32.mrb[0].mxu0
  %v1726 = vpop.f32.mrb[0].mxu0
  %1727 = vdwg.mxu0
  %v1728 = vld [vmem:[%s7] sm:$0xf]
  %v1729 = vld [vmem:[%s7 + $0x4] sm:$0xf]
  %v1730 = vld [vmem:[%s7 + $0x8] sm:$0xf]
  %v1731 = vld [vmem:[%s7 + $0xc] sm:$0xf]
  %v1732 = vld [vmem:[%s7 + $0x10] sm:$0xf]
  %v1733 = vld [vmem:[%s7 + $0x14] sm:$0xf]
  %v1734 = vld [vmem:[%s7 + $0x18] sm:$0xf]
  %v1735 = vld [vmem:[%s7 + $0x1c] sm:$0xf]
  %v1736 = vld [vmem:[%s8] sm:$0xf]
  %v1737 = vld [vmem:[%s8 + $0x4] sm:$0xf]
  %v1738 = vld [vmem:[%s8 + $0x8] sm:$0xf]
  %v1739 = vld [vmem:[%s8 + $0xc] sm:$0xf]
  %v1740 = vld [vmem:[%s8 + $0x10] sm:$0xf]
  %v1741 = vld [vmem:[%s8 + $0x14] sm:$0xf]
  %v1742 = vld [vmem:[%s8 + $0x18] sm:$0xf]
  %v1743 = vld [vmem:[%s8 + $0x1c] sm:$0xf]
  %v1744 = vld [vmem:[%s9] sm:$0xf]
  %v1745 = vld [vmem:[%s9 + $0x4] sm:$0xf]
  %v1746 = vld [vmem:[%s9 + $0x8] sm:$0xf]
  %v1747 = vld [vmem:[%s9 + $0xc] sm:$0xf]
  %v1748 = vld [vmem:[%s9 + $0x10] sm:$0xf]
  %v1749 = vld [vmem:[%s9 + $0x14] sm:$0xf]
  %v1750 = vld [vmem:[%s9 + $0x18] sm:$0xf]
  %v1751 = vld [vmem:[%s9 + $0x1c] sm:$0xf]
  %v1760 = vunpack.c.l.b16 %v1728
  %v1761 = vunpack.c.l.b16 %v1729
  %v1762 = vunpack.c.l.b16 %v1730
  %v1763 = vunpack.c.l.b16 %v1731
  %v1764 = vunpack.c.l.b16 %v1732
  %v1765 = vunpack.c.l.b16 %v1733
  %v1766 = vunpack.c.l.b16 %v1734
  %v1767 = vunpack.c.l.b16 %v1735
  %v1768 = vpack.c.b16 %v1761, %v1760
  %v1769 = vpack.c.b16 %v1763, %v1762
  %v1770 = vpack.c.b16 %v1765, %v1764
  %v1771 = vpack.c.b16 %v1767, %v1766
  %1776 = vmatprep.subr.bf16.mxu0 0
  %1777 = vmatpush1.bf16.msra.mxu0 %v1768
  %1778 = vmatprep.subr.bf16.mxu0 0
  %1779 = vmatpush1.bf16.msra.mxu0 %v1769
  %1780 = vmatprep.subr.bf16.mxu0 0
  %1781 = vmatpush1.bf16.msra.mxu0 %v1770
  %1782 = vmatprep.subr.bf16.mxu0 0
  %1783 = vmatpush1.bf16.msra.mxu0 %v1771
  %1784 = vmatprep.subr.bf16.mxu0 0
  %1785 = vmatpush1.bf16.msra.mxu0 0
  %1786 = vmatprep.subr.bf16.mxu0 0
  %1787 = vmatpush1.bf16.msra.mxu0 0
  %1788 = vmatprep.subr.bf16.mxu0 0
  %1789 = vmatpush1.bf16.msra.mxu0 0
  %1790 = vmatprep.subr.bf16.mxu0 0
  %1791 = vmatpush1.bf16.msra.mxu0 0
  %1792 = vmatprep.subr.bf16.mxu0 0
  %1793 = vmatpush1.bf16.msra.mxu0 0
  %1794 = vmatprep.subr.bf16.mxu0 0
  %1795 = vmatpush1.bf16.msra.mxu0 0
  %1796 = vmatprep.subr.bf16.mxu0 0
  %1797 = vmatpush1.bf16.msra.mxu0 0
  %1798 = vmatprep.subr.bf16.mxu0 0
  %1799 = vmatpush1.bf16.msra.mxu0 0
  %1800 = vmatprep.subr.bf16.mxu0 0
  %1801 = vmatpush1.bf16.msra.mxu0 0
  %1802 = vmatprep.subr.bf16.mxu0 0
  %1803 = vmatpush1.bf16.msra.mxu0 0
  %1804 = vmatprep.subr.bf16.mxu0 0
  %1805 = vmatpush1.bf16.msra.mxu0 0
  %1806 = vmatprep.subr.bf16.mxu0 0
  %1807 = vmatpush1.bf16.msra.mxu0 0
  %1808 = vmatprep.mubr.bf16.mxu0 0
  %1809 = vmatmul.mubr.bf16.gmra.mrb[0].mxu0 %v862
  %v1810 = vpop.f32.mrb[0].mxu0
  %v1811 = vadd.f32 -0.1484403, %v1810
  %v1812 = vpop.f32.mrb[0].mxu0
  %v1813 = vpop.f32.mrb[0].mxu0
  %v1814 = vpop.f32.mrb[0].mxu0
  %1815 = vdwg.mxu0
  %v1816 = vmul.f32 %v1811, 1.0336012
  %v1825 = vunpack.c.l.b16 %v1736
  %v1826 = vunpack.c.l.b16 %v1737
  %v1827 = vunpack.c.l.b16 %v1738
  %v1828 = vunpack.c.l.b16 %v1739
  %v1829 = vunpack.c.l.b16 %v1740
  %v1830 = vunpack.c.l.b16 %v1741
  %v1831 = vunpack.c.l.b16 %v1742
  %v1832 = vunpack.c.l.b16 %v1743
  %v1833 = vpack.c.b16 %v1826, %v1825
  %v1834 = vpack.c.b16 %v1828, %v1827
  %v1835 = vpack.c.b16 %v1830, %v1829
  %v1836 = vpack.c.b16 %v1832, %v1831
  %1841 = vmatprep.subr.bf16.mxu0 0
  %1842 = vmatpush1.bf16.msra.mxu0 %v1833
  %1843 = vmatprep.subr.bf16.mxu0 0
  %1844 = vmatpush1.bf16.msra.mxu0 %v1834
  %1845 = vmatprep.subr.bf16.mxu0 0
  %1846 = vmatpush1.bf16.msra.mxu0 %v1835
  %1847 = vmatprep.subr.bf16.mxu0 0
  %1848 = vmatpush1.bf16.msra.mxu0 %v1836
  %1849 = vmatprep.subr.bf16.mxu0 0
  %1850 = vmatpush1.bf16.msra.mxu0 0
  %1851 = vmatprep.subr.bf16.mxu0 0
  %1852 = vmatpush1.bf16.msra.mxu0 0
  %1853 = vmatprep.subr.bf16.mxu0 0
  %1854 = vmatpush1.bf16.msra.mxu0 0
  %1855 = vmatprep.subr.bf16.mxu0 0
  %1856 = vmatpush1.bf16.msra.mxu0 0
  %1857 = vmatprep.subr.bf16.mxu0 0
  %1858 = vmatpush1.bf16.msra.mxu0 0
  %1859 = vmatprep.subr.bf16.mxu0 0
  %1860 = vmatpush1.bf16.msra.mxu0 0
  %1861 = vmatprep.subr.bf16.mxu0 0
  %1862 = vmatpush1.bf16.msra.mxu0 0
  %1863 = vmatprep.subr.bf16.mxu0 0
  %1864 = vmatpush1.bf16.msra.mxu0 0
  %1865 = vmatprep.subr.bf16.mxu0 0
  %1866 = vmatpush1.bf16.msra.mxu0 0
  %1867 = vmatprep.subr.bf16.mxu0 0
  %1868 = vmatpush1.bf16.msra.mxu0 0
  %1869 = vmatprep.subr.bf16.mxu0 0
  %1870 = vmatpush1.bf16.msra.mxu0 0
  %1871 = vmatprep.subr.bf16.mxu0 0
  %1872 = vmatpush1.bf16.msra.mxu0 0
  %1873 = vmatprep.mubr.bf16.mxu0 0
  %1874 = vmatmul.mubr.bf16.gmra.mrb[0].mxu0 %v862
  %v1875 = vpop.f32.mrb[0].mxu0
  %v1876 = vadd.f32 -0.08604644, %v1875
  %v1877 = vpop.f32.mrb[0].mxu0
  %v1878 = vpop.f32.mrb[0].mxu0
  %v1879 = vpop.f32.mrb[0].mxu0
  %1880 = vdwg.mxu0
  %v1881 = vmul.f32 %v1876, 0.98026055
  %v1890 = vunpack.c.l.b16 %v1744
  %v1891 = vunpack.c.l.b16 %v1745
  %v1892 = vunpack.c.l.b16 %v1746
  %v1893 = vunpack.c.l.b16 %v1747
  %v1894 = vunpack.c.l.b16 %v1748
  %v1895 = vunpack.c.l.b16 %v1749
  %v1896 = vunpack.c.l.b16 %v1750
  %v1897 = vunpack.c.l.b16 %v1751
  %v1898 = vpack.c.b16 %v1891, %v1890
  %v1899 = vpack.c.b16 %v1893, %v1892
  %v1900 = vpack.c.b16 %v1895, %v1894
  %v1901 = vpack.c.b16 %v1897, %v1896
  %1906 = vmatprep.subr.bf16.mxu0 0
  %1907 = vmatpush1.bf16.msra.mxu0 %v1898
  %1908 = vmatprep.subr.bf16.mxu0 0
  %1909 = vmatpush1.bf16.msra.mxu0 %v1899
  %1910 = vmatprep.subr.bf16.mxu0 0
  %1911 = vmatpush1.bf16.msra.mxu0 %v1900
  %1912 = vmatprep.subr.bf16.mxu0 0
  %1913 = vmatpush1.bf16.msra.mxu0 %v1901
  %1914 = vmatprep.subr.bf16.mxu0 0
  %1915 = vmatpush1.bf16.msra.mxu0 0
  %1916 = vmatprep.subr.bf16.mxu0 0
  %1917 = vmatpush1.bf16.msra.mxu0 0
  %1918 = vmatprep.subr.bf16.mxu0 0
  %1919 = vmatpush1.bf16.msra.mxu0 0
  %1920 = vmatprep.subr.bf16.mxu0 0
  %1921 = vmatpush1.bf16.msra.mxu0 0
  %1922 = vmatprep.subr.bf16.mxu0 0
  %1923 = vmatpush1.bf16.msra.mxu0 0
  %1924 = vmatprep.subr.bf16.mxu0 0
  %1925 = vmatpush1.bf16.msra.mxu0 0
  %1926 = vmatprep.subr.bf16.mxu0 0
  %1927 = vmatpush1.bf16.msra.mxu0 0
  %1928 = vmatprep.subr.bf16.mxu0 0
  %1929 = vmatpush1.bf16.msra.mxu0 0
  %1930 = vmatprep.subr.bf16.mxu0 0
  %1931 = vmatpush1.bf16.msra.mxu0 0
  %1932 = vmatprep.subr.bf16.mxu0 0
  %1933 = vmatpush1.bf16.msra.mxu0 0
  %1934 = vmatprep.subr.bf16.mxu0 0
  %1935 = vmatpush1.bf16.msra.mxu0 0
  %1936 = vmatprep.subr.bf16.mxu0 0
  %1937 = vmatpush1.bf16.msra.mxu0 0
  %1938 = vmatprep.mubr.bf16.mxu0 0
  %1939 = vmatmul.mubr.bf16.gmra.mrb[0].mxu0 %v862
  %v1940 = vpop.f32.mrb[0].mxu0
  %v1941 = vadd.f32 -0.067480594, %v1940
  %v1942 = vpop.f32.mrb[0].mxu0
  %v1943 = vpop.f32.mrb[0].mxu0
  %v1944 = vpop.f32.mrb[0].mxu0
  %1945 = vdwg.mxu0
  %v1946 = vmul.f32 %v1941, 1.0343348
  %v1947 = vmul.f32 %v1816, -0.9491193
  %v1948 = vmul.f32 %v1881, 0.31176418
  %v1949 = vadd.f32 %v1947, %v1948
  %v1950 = vmul.f32 %v1946, 0.044447154
  %v1951 = vadd.f32 %v1949, %v1950
  %v1952 = vmul.f32 %v1816, -0.08302996
  %v1953 = vmul.f32 %v1881, -0.3838824
  %v1954 = vadd.f32 %v1952, %v1953
  %v1955 = vmul.f32 %v1946, 0.9196413
  %v1956 = vadd.f32 %v1954, %v1955
  %v1957 = vmul.f32 %v1816, 0.3037737
  %v1958 = vmul.f32 %v1881, 0.8691589
  %v1959 = vadd.f32 %v1957, %v1958
  %v1960 = vmul.f32 %v1946, 0.39023614
  %v1961 = vadd.f32 %v1959, %v1960
  %v1962 = vpack.c.bf16 %v1723, %v1723
  %v1963 = vld [vmem:[%s10] sm:$0xf]
  %v1964 = vld [vmem:[%s10 + $0x4] sm:$0xf]
  %v1967 = vunpack.c.l.b16 %v1963
  %v1968 = vunpack.c.l.b16 %v1964
  %v1969 = vpack.c.b16 %v1968, %v1967
  %vm1971 = vcmask 130048
  %v1973 = vsel %vm1971, %v1962, 0
  %1975 = vmatprep.subr.bf16.mxu0 0
  %1976 = vmatpush1.bf16.msra.mxu0 %v1969
  %1977 = vmatprep.subr.bf16.mxu0 0
  %1978 = vmatpush1.bf16.msra.mxu0 0
  %1979 = vmatprep.subr.bf16.mxu0 0
  %1980 = vmatpush1.bf16.msra.mxu0 0
  %1981 = vmatprep.subr.bf16.mxu0 0
  %1982 = vmatpush1.bf16.msra.mxu0 0
  %1983 = vmatprep.subr.bf16.mxu0 0
  %1984 = vmatpush1.bf16.msra.mxu0 0
  %1985 = vmatprep.subr.bf16.mxu0 0
  %1986 = vmatpush1.bf16.msra.mxu0 0
  %1987 = vmatprep.subr.bf16.mxu0 0
  %1988 = vmatpush1.bf16.msra.mxu0 0
  %1989 = vmatprep.subr.bf16.mxu0 0
  %1990 = vmatpush1.bf16.msra.mxu0 0
  %1991 = vmatprep.subr.bf16.mxu0 0
  %1992 = vmatpush1.bf16.msra.mxu0 0
  %1993 = vmatprep.subr.bf16.mxu0 0
  %1994 = vmatpush1.bf16.msra.mxu0 0
  %1995 = vmatprep.subr.bf16.mxu0 0
  %1996 = vmatpush1.bf16.msra.mxu0 0
  %1997 = vmatprep.subr.bf16.mxu0 0
  %1998 = vmatpush1.bf16.msra.mxu0 0
  %1999 = vmatprep.subr.bf16.mxu0 0
  %2000 = vmatpush1.bf16.msra.mxu0 0
  %2001 = vmatprep.subr.bf16.mxu0 0
  %2002 = vmatpush1.bf16.msra.mxu0 0
  %2003 = vmatprep.subr.bf16.mxu0 0
  %2004 = vmatpush1.bf16.msra.mxu0 0
  %2005 = vmatprep.subr.bf16.mxu0 0
  %2006 = vmatpush1.bf16.msra.mxu0 0
  %2007 = vmatprep.mubr.bf16.mxu0 0
  %2008 = vmatmul.mubr.bf16.gmra.mrb[0].mxu0 %v1973
  %v2009 = vpop.f32.mrb[0].mxu0
  %v2010 = vadd.f32 0.0, %v2009
  %v2011 = vpop.f32.mrb[0].mxu0
  %v2012 = vpop.f32.mrb[0].mxu0
  %v2013 = vpop.f32.mrb[0].mxu0
  %2014 = vdwg.mxu0
  %v2015 = vadd.f32 %v2010, 0.0
  %v2016 = vmax.f32 %v2015, 0.0
  %v2017 = vmul.f32 %v1951, 0.046200022
  %v2018 = vmul.f32 %v2016, 0.013897819
  %v2019 = vadd.f32 %v2017, %v2018
  %v2020 = vmul.f32 %v2016, -0.08363116
  %2022 = vrot.lane.b32.xlu0 %v2020, 112
  %v2023 = vpop.permute.xlu0 %2022
  %v2025 = vadd.f32 %v2019, %v2023
  %v2026 = vmul.f32 %v2016, 0.021263344
  %2028 = vrot.lane.b32.xlu0 %v2026, 96
  %v2029 = vpop.permute.xlu0 %2028
  %v2031 = vadd.f32 %v2025, %v2029
  %v2032 = vmul.f32 %v2016, 0.13382994
  %2034 = vrot.lane.b32.xlu0 %v2032, 80
  %v2035 = vpop.permute.xlu0 %2034
  %v2037 = vadd.f32 %v2031, %v2035
  %v2038 = vmul.f32 %v2016, 0.051872447
  %2040 = vrot.lane.b32.xlu0 %v2038, 64
  %v2041 = vpop.permute.xlu0 %2040
  %v2043 = vadd.f32 %v2037, %v2041
  %v2044 = vmul.f32 %v2016, -0.043141164
  %2046 = vrot.lane.b32.xlu0 %v2044, 48
  %v2047 = vpop.permute.xlu0 %2046
  %v2049 = vadd.f32 %v2043, %v2047
  %v2050 = vmul.f32 %v2016, -0.029119847
  %2052 = vrot.lane.b32.xlu0 %v2050, 32
  %v2053 = vpop.permute.xlu0 %2052
  %v2055 = vadd.f32 %v2049, %v2053
  %v2056 = vmul.f32 %v2016, -0.10485278
  %2058 = vrot.lane.b32.xlu0 %v2056, 16
  %v2059 = vpop.permute.xlu0 %2058
  %v2061 = vadd.f32 %v2055, %v2059
  %v2062 = vmul.f32 %v1951, 0.41054755
  %v2063 = vmul.f32 %v2016, 0.02032877
  %v2064 = vadd.f32 %v2062, %v2063
  %v2065 = vmul.f32 %v2016, 0.092252485
  %2067 = vrot.lane.b32.xlu0 %v2065, 112
  %v2068 = vpop.permute.xlu0 %2067
  %v2070 = vadd.f32 %v2064, %v2068
  %v2071 = vmul.f32 %v2016, -0.08901874
  %2073 = vrot.lane.b32.xlu0 %v2071, 96
  %v2074 = vpop.permute.xlu0 %2073
  %v2076 = vadd.f32 %v2070, %v2074
  %v2077 = vmul.f32 %v2016, 0.03592281
  %2079 = vrot.lane.b32.xlu0 %v2077, 80
  %v2080 = vpop.permute.xlu0 %2079
  %v2082 = vadd.f32 %v2076, %v2080
  %v2083 = vmul.f32 %v2016, 0.041838113
  %2085 = vrot.lane.b32.xlu0 %v2083, 64
  %v2086 = vpop.permute.xlu0 %2085
  %v2088 = vadd.f32 %v2082, %v2086
  %v2089 = vmul.f32 %v2016, -0.10831092
  %2091 = vrot.lane.b32.xlu0 %v2089, 48
  %v2092 = vpop.permute.xlu0 %2091
  %v2094 = vadd.f32 %v2088, %v2092
  %v2095 = vmul.f32 %v2016, -0.029235484
  %2097 = vrot.lane.b32.xlu0 %v2095, 32
  %v2098 = vpop.permute.xlu0 %2097
  %v2100 = vadd.f32 %v2094, %v2098
  %v2101 = vmul.f32 %v2016, 0.040142037
  %2103 = vrot.lane.b32.xlu0 %v2101, 16
  %v2104 = vpop.permute.xlu0 %2103
  %v2106 = vadd.f32 %v2100, %v2104
  %v2107 = vmul.f32 %v1951, -0.31703225
  %v2108 = vmul.f32 %v2016, 0.040645882
  %v2109 = vadd.f32 %v2107, %v2108
  %v2110 = vmul.f32 %v2016, 0.012546635
  %2112 = vrot.lane.b32.xlu0 %v2110, 112
  %v2113 = vpop.permute.xlu0 %2112
  %v2115 = vadd.f32 %v2109, %v2113
  %v2116 = vmul.f32 %v2016, 0.13783935
  %2118 = vrot.lane.b32.xlu0 %v2116, 96
  %v2119 = vpop.permute.xlu0 %2118
  %v2121 = vadd.f32 %v2115, %v2119
  %v2122 = vmul.f32 %v2016, -0.076754734
  %2124 = vrot.lane.b32.xlu0 %v2122, 80
  %v2125 = vpop.permute.xlu0 %2124
  %v2127 = vadd.f32 %v2121, %v2125
  %v2128 = vmul.f32 %v2016, -0.018117767
  %2130 = vrot.lane.b32.xlu0 %v2128, 64
  %v2131 = vpop.permute.xlu0 %2130
  %v2133 = vadd.f32 %v2127, %v2131
  %v2134 = vmul.f32 %v2016, 0.052444756
  %2136 = vrot.lane.b32.xlu0 %v2134, 48
  %v2137 = vpop.permute.xlu0 %2136
  %v2139 = vadd.f32 %v2133, %v2137
  %v2140 = vmul.f32 %v2016, -0.10517036
  %2142 = vrot.lane.b32.xlu0 %v2140, 32
  %v2143 = vpop.permute.xlu0 %2142
  %v2145 = vadd.f32 %v2139, %v2143
  %v2146 = vmul.f32 %v2016, 0.114248835
  %2148 = vrot.lane.b32.xlu0 %v2146, 16
  %v2149 = vpop.permute.xlu0 %2148
  %v2151 = vadd.f32 %v2145, %v2149
  %v2152 = vmul.f32 %v1951, -0.07459757
  %v2153 = vmul.f32 %v2016, 0.32184058
  %v2154 = vadd.f32 %v2152, %v2153
  %v2155 = vmul.f32 %v2016, 0.031096008
  %2157 = vrot.lane.b32.xlu0 %v2155, 112
  %v2158 = vpop.permute.xlu0 %2157
  %v2160 = vadd.f32 %v2154, %v2158
  %v2161 = vmul.f32 %v2016, 0.27879414
  %2163 = vrot.lane.b32.xlu0 %v2161, 96
  %v2164 = vpop.permute.xlu0 %2163
  %v2166 = vadd.f32 %v2160, %v2164
  %v2167 = vmul.f32 %v2016, -0.10177164
  %2169 = vrot.lane.b32.xlu0 %v2167, 80
  %v2170 = vpop.permute.xlu0 %2169
  %v2172 = vadd.f32 %v2166, %v2170
  %v2173 = vmul.f32 %v2016, -0.19533046
  %2175 = vrot.lane.b32.xlu0 %v2173, 64
  %v2176 = vpop.permute.xlu0 %2175
  %v2178 = vadd.f32 %v2172, %v2176
  %v2179 = vmul.f32 %v2016, 0.0673964
  %2181 = vrot.lane.b32.xlu0 %v2179, 48
  %v2182 = vpop.permute.xlu0 %2181
  %v2184 = vadd.f32 %v2178, %v2182
  %v2185 = vmul.f32 %v2016, 0.1503688
  %2187 = vrot.lane.b32.xlu0 %v2185, 32
  %v2188 = vpop.permute.xlu0 %2187
  %v2190 = vadd.f32 %v2184, %v2188
  %v2191 = vmul.f32 %v2016, -0.01852041
  %2193 = vrot.lane.b32.xlu0 %v2191, 16
  %v2194 = vpop.permute.xlu0 %2193
  %v2196 = vadd.f32 %v2190, %v2194
  %v2197 = vmul.f32 %v1951, 0.13839908
  %v2198 = vmul.f32 %v2016, 0.039010365
  %v2199 = vadd.f32 %v2197, %v2198
  %v2200 = vmul.f32 %v2016, -0.1430549
  %2202 = vrot.lane.b32.xlu0 %v2200, 112
  %v2203 = vpop.permute.xlu0 %2202
  %v2205 = vadd.f32 %v2199, %v2203
  %v2206 = vmul.f32 %v2016, -0.047981232
  %2208 = vrot.lane.b32.xlu0 %v2206, 96
  %v2209 = vpop.permute.xlu0 %2208
  %v2211 = vadd.f32 %v2205, %v2209
  %v2212 = vmul.f32 %v2016, -0.01849473
  %2214 = vrot.lane.b32.xlu0 %v2212, 80
  %v2215 = vpop.permute.xlu0 %2214
  %v2217 = vadd.f32 %v2211, %v2215
  %v2218 = vmul.f32 %v2016, -0.10138653
  %2220 = vrot.lane.b32.xlu0 %v2218, 64
  %v2221 = vpop.permute.xlu0 %2220
  %v2223 = vadd.f32 %v2217, %v2221
  %v2224 = vmul.f32 %v2016, -0.13784881
  %2226 = vrot.lane.b32.xlu0 %v2224, 48
  %v2227 = vpop.permute.xlu0 %2226
  %v2229 = vadd.f32 %v2223, %v2227
  %v2230 = vmul.f32 %v2016, -0.18513139
  %2232 = vrot.lane.b32.xlu0 %v2230, 32
  %v2233 = vpop.permute.xlu0 %2232
  %v2235 = vadd.f32 %v2229, %v2233
  %v2236 = vmul.f32 %v2016, -0.006610333
  %2238 = vrot.lane.b32.xlu0 %v2236, 16
  %v2239 = vpop.permute.xlu0 %2238
  %v2241 = vadd.f32 %v2235, %v2239
  %v2242 = vmul.f32 %v1951, 0.9416461
  %v2243 = vmul.f32 %v2016, -0.057164848
  %v2244 = vadd.f32 %v2242, %v2243
  %v2245 = vmul.f32 %v2016, -0.04389018
  %2247 = vrot.lane.b32.xlu0 %v2245, 112
  %v2248 = vpop.permute.xlu0 %2247
  %v2250 = vadd.f32 %v2244, %v2248
  %v2251 = vmul.f32 %v2016, -0.19224371
  %2253 = vrot.lane.b32.xlu0 %v2251, 96
  %v2254 = vpop.permute.xlu0 %2253
  %v2256 = vadd.f32 %v2250, %v2254
  %v2257 = vmul.f32 %v2016, -0.15343505
  %2259 = vrot.lane.b32.xlu0 %v2257, 80
  %v2260 = vpop.permute.xlu0 %2259
  %v2262 = vadd.f32 %v2256, %v2260
  %v2263 = vmul.f32 %v2016, -0.0066396436
  %2265 = vrot.lane.b32.xlu0 %v2263, 64
  %v2266 = vpop.permute.xlu0 %2265
  %v2268 = vadd.f32 %v2262, %v2266
  %v2269 = vmul.f32 %v2016, 0.085718855
  %2271 = vrot.lane.b32.xlu0 %v2269, 48
  %v2272 = vpop.permute.xlu0 %2271
  %v2274 = vadd.f32 %v2268, %v2272
  %v2275 = vmul.f32 %v2016, -0.28002265
  %2277 = vrot.lane.b32.xlu0 %v2275, 32
  %v2278 = vpop.permute.xlu0 %2277
  %v2280 = vadd.f32 %v2274, %v2278
  %v2281 = vmul.f32 %v2016, -0.095112264
  %2283 = vrot.lane.b32.xlu0 %v2281, 16
  %v2284 = vpop.permute.xlu0 %2283
  %v2286 = vadd.f32 %v2280, %v2284
  %v2287 = vmul.f32 %v1951, 0.43810725
  %v2288 = vmul.f32 %v2016, 0.11855295
  %v2289 = vadd.f32 %v2287, %v2288
  %v2290 = vmul.f32 %v2016, -0.047519203
  %2292 = vrot.lane.b32.xlu0 %v2290, 112
  %v2293 = vpop.permute.xlu0 %2292
  %v2295 = vadd.f32 %v2289, %v2293
  %v2296 = vmul.f32 %v2016, -0.010405427
  %2298 = vrot.lane.b32.xlu0 %v2296, 96
  %v2299 = vpop.permute.xlu0 %2298
  %v2301 = vadd.f32 %v2295, %v2299
  %v2302 = vmul.f32 %v2016, 0.14378354
  %2304 = vrot.lane.b32.xlu0 %v2302, 80
  %v2305 = vpop.permute.xlu0 %2304
  %v2307 = vadd.f32 %v2301, %v2305
  %v2308 = vmul.f32 %v2016, -0.10773883
  %2310 = vrot.lane.b32.xlu0 %v2308, 64
  %v2311 = vpop.permute.xlu0 %2310
  %v2313 = vadd.f32 %v2307, %v2311
  %v2314 = vmul.f32 %v2016, 0.032272752
  %2316 = vrot.lane.b32.xlu0 %v2314, 48
  %v2317 = vpop.permute.xlu0 %2316
  %v2319 = vadd.f32 %v2313, %v2317
  %v2320 = vmul.f32 %v2016, 0.1355477
  %2322 = vrot.lane.b32.xlu0 %v2320, 32
  %v2323 = vpop.permute.xlu0 %2322
  %v2325 = vadd.f32 %v2319, %v2323
  %v2326 = vmul.f32 %v2016, 0.10827615
  %2328 = vrot.lane.b32.xlu0 %v2326, 16
  %v2329 = vpop.permute.xlu0 %2328
  %v2331 = vadd.f32 %v2325, %v2329
  %v2332 = vmul.f32 %v1951, 0.22297369
  %v2333 = vmul.f32 %v2016, -0.07593686
  %v2334 = vadd.f32 %v2332, %v2333
  %v2335 = vmul.f32 %v2016, -0.11993143
  %2337 = vrot.lane.b32.xlu0 %v2335, 112
  %v2338 = vpop.permute.xlu0 %2337
  %v2340 = vadd.f32 %v2334, %v2338
  %v2341 = vmul.f32 %v2016, -0.0019540342
  %2343 = vrot.lane.b32.xlu0 %v2341, 96
  %v2344 = vpop.permute.xlu0 %2343
  %v2346 = vadd.f32 %v2340, %v2344
  %v2347 = vmul.f32 %v2016, 0.24384557
  %2349 = vrot.lane.b32.xlu0 %v2347, 80
  %v2350 = vpop.permute.xlu0 %2349
  %v2352 = vadd.f32 %v2346, %v2350
  %v2353 = vmul.f32 %v2016, -0.005267947
  %2355 = vrot.lane.b32.xlu0 %v2353, 64
  %v2356 = vpop.permute.xlu0 %2355
  %v2358 = vadd.f32 %v2352, %v2356
  %v2359 = vmul.f32 %v2016, -0.10606954
  %2361 = vrot.lane.b32.xlu0 %v2359, 48
  %v2362 = vpop.permute.xlu0 %2361
  %v2364 = vadd.f32 %v2358, %v2362
  %v2365 = vmul.f32 %v2016, -0.017733607
  %2367 = vrot.lane.b32.xlu0 %v2365, 32
  %v2368 = vpop.permute.xlu0 %2367
  %v2370 = vadd.f32 %v2364, %v2368
  %v2371 = vmul.f32 %v2016, -0.042902593
  %2373 = vrot.lane.b32.xlu0 %v2371, 16
  %v2374 = vpop.permute.xlu0 %2373
  %v2376 = vadd.f32 %v2370, %v2374
  %v2377 = vmul.f32 %v1951, 0.039023273
  %v2378 = vmul.f32 %v2016, -0.10289985
  %v2379 = vadd.f32 %v2377, %v2378
  %v2380 = vmul.f32 %v2016, 0.019875659
  %2382 = vrot.lane.b32.xlu0 %v2380, 112
  %v2383 = vpop.permute.xlu0 %2382
  %v2385 = vadd.f32 %v2379, %v2383
  %v2386 = vmul.f32 %v2016, 0.040603243
  %2388 = vrot.lane.b32.xlu0 %v2386, 96
  %v2389 = vpop.permute.xlu0 %2388
  %v2391 = vadd.f32 %v2385, %v2389
  %v2392 = vmul.f32 %v2016, 0.031823043
  %2394 = vrot.lane.b32.xlu0 %v2392, 80
  %v2395 = vpop.permute.xlu0 %2394
  %v2397 = vadd.f32 %v2391, %v2395
  %v2398 = vmul.f32 %v2016, 0.08421201
  %2400 = vrot.lane.b32.xlu0 %v2398, 64
  %v2401 = vpop.permute.xlu0 %2400
  %v2403 = vadd.f32 %v2397, %v2401
  %v2404 = vmul.f32 %v2016, 0.17702334
  %2406 = vrot.lane.b32.xlu0 %v2404, 48
  %v2407 = vpop.permute.xlu0 %2406
  %v2409 = vadd.f32 %v2403, %v2407
  %v2410 = vmul.f32 %v2016, -0.036732055
  %2412 = vrot.lane.b32.xlu0 %v2410, 32
  %v2413 = vpop.permute.xlu0 %2412
  %v2415 = vadd.f32 %v2409, %v2413
  %v2416 = vmul.f32 %v2016, -0.046574403
  %2418 = vrot.lane.b32.xlu0 %v2416, 16
  %v2419 = vpop.permute.xlu0 %2418
  %v2421 = vadd.f32 %v2415, %v2419
  %v2422 = vmul.f32 %v1951, 0.5234245
  %v2423 = vmul.f32 %v2016, 0.1655681
  %v2424 = vadd.f32 %v2422, %v2423
  %v2425 = vmul.f32 %v2016, 0.009916576
  %2427 = vrot.lane.b32.xlu0 %v2425, 112
  %v2428 = vpop.permute.xlu0 %2427
  %v2430 = vadd.f32 %v2424, %v2428
  %v2431 = vmul.f32 %v2016, -0.07427226
  %2433 = vrot.lane.b32.xlu0 %v2431, 96
  %v2434 = vpop.permute.xlu0 %2433
  %v2436 = vadd.f32 %v2430, %v2434
  %v2437 = vmul.f32 %v2016, 0.111754656
  %2439 = vrot.lane.b32.xlu0 %v2437, 80
  %v2440 = vpop.permute.xlu0 %2439
  %v2442 = vadd.f32 %v2436, %v2440
  %v2443 = vmul.f32 %v2016, -0.060681928
  %2445 = vrot.lane.b32.xlu0 %v2443, 64
  %v2446 = vpop.permute.xlu0 %2445
  %v2448 = vadd.f32 %v2442, %v2446
  %v2449 = vmul.f32 %v2016, 0.009416176
  %2451 = vrot.lane.b32.xlu0 %v2449, 48
  %v2452 = vpop.permute.xlu0 %2451
  %v2454 = vadd.f32 %v2448, %v2452
  %v2455 = vmul.f32 %v2016, -0.10178111
  %2457 = vrot.lane.b32.xlu0 %v2455, 32
  %v2458 = vpop.permute.xlu0 %2457
  %v2460 = vadd.f32 %v2454, %v2458
  %v2461 = vmul.f32 %v2016, -0.004195843
  %2463 = vrot.lane.b32.xlu0 %v2461, 16
  %v2464 = vpop.permute.xlu0 %2463
  %v2466 = vadd.f32 %v2460, %v2464
  %v2467 = vmul.f32 %v1951, -0.2865277
  %v2468 = vmul.f32 %v2016, -0.08821879
  %v2469 = vadd.f32 %v2467, %v2468
  %v2470 = vmul.f32 %v2016, 0.0061709704
  %2472 = vrot.lane.b32.xlu0 %v2470, 112
  %v2473 = vpop.permute.xlu0 %2472
  %v2475 = vadd.f32 %v2469, %v2473
  %v2476 = vmul.f32 %v2016, 0.059810657
  %2478 = vrot.lane.b32.xlu0 %v2476, 96
  %v2479 = vpop.permute.xlu0 %2478
  %v2481 = vadd.f32 %v2475, %v2479
  %v2482 = vmul.f32 %v2016, 0.012542328
  %2484 = vrot.lane.b32.xlu0 %v2482, 80
  %v2485 = vpop.permute.xlu0 %2484
  %v2487 = vadd.f32 %v2481, %v2485
  %v2488 = vmul.f32 %v2016, 0.044566754
  %2490 = vrot.lane.b32.xlu0 %v2488, 64
  %v2491 = vpop.permute.xlu0 %2490
  %v2493 = vadd.f32 %v2487, %v2491
  %v2494 = vmul.f32 %v2016, 0.13794583
  %2496 = vrot.lane.b32.xlu0 %v2494, 48
  %v2497 = vpop.permute.xlu0 %2496
  %v2499 = vadd.f32 %v2493, %v2497
  %v2500 = vmul.f32 %v2016, 0.20597708
  %2502 = vrot.lane.b32.xlu0 %v2500, 32
  %v2503 = vpop.permute.xlu0 %2502
  %v2505 = vadd.f32 %v2499, %v2503
  %v2506 = vmul.f32 %v2016, -0.12940209
  %2508 = vrot.lane.b32.xlu0 %v2506, 16
  %v2509 = vpop.permute.xlu0 %2508
  %v2511 = vadd.f32 %v2505, %v2509
  %v2512 = vmul.f32 %v1951, -0.1998199
  %v2513 = vmul.f32 %v2016, 0.07205031
  %v2514 = vadd.f32 %v2512, %v2513
  %v2515 = vmul.f32 %v2016, 0.04166205
  %2517 = vrot.lane.b32.xlu0 %v2515, 112
  %v2518 = vpop.permute.xlu0 %2517
  %v2520 = vadd.f32 %v2514, %v2518
  %v2521 = vmul.f32 %v2016, 0.07707689
  %2523 = vrot.lane.b32.xlu0 %v2521, 96
  %v2524 = vpop.permute.xlu0 %2523
  %v2526 = vadd.f32 %v2520, %v2524
  %v2527 = vmul.f32 %v2016, -0.07975926
  %2529 = vrot.lane.b32.xlu0 %v2527, 80
  %v2530 = vpop.permute.xlu0 %2529
  %v2532 = vadd.f32 %v2526, %v2530
  %v2533 = vmul.f32 %v2016, -0.09261785
  %2535 = vrot.lane.b32.xlu0 %v2533, 64
  %v2536 = vpop.permute.xlu0 %2535
  %v2538 = vadd.f32 %v2532, %v2536
  %v2539 = vmul.f32 %v2016, 0.07920933
  %2541 = vrot.lane.b32.xlu0 %v2539, 48
  %v2542 = vpop.permute.xlu0 %2541
  %v2544 = vadd.f32 %v2538, %v2542
  %v2545 = vmul.f32 %v2016, -0.038012147
  %2547 = vrot.lane.b32.xlu0 %v2545, 32
  %v2548 = vpop.permute.xlu0 %2547
  %v2550 = vadd.f32 %v2544, %v2548
  %v2551 = vmul.f32 %v2016, 0.07969732
  %2553 = vrot.lane.b32.xlu0 %v2551, 16
  %v2554 = vpop.permute.xlu0 %2553
  %v2556 = vadd.f32 %v2550, %v2554
  %v2557 = vmul.f32 %v1951, 0.15606253
  %v2558 = vmul.f32 %v2016, -0.0021305387
  %v2559 = vadd.f32 %v2557, %v2558
  %v2560 = vmul.f32 %v2016, -0.036870163
  %2562 = vrot.lane.b32.xlu0 %v2560, 112
  %v2563 = vpop.permute.xlu0 %2562
  %v2565 = vadd.f32 %v2559, %v2563
  %v2566 = vmul.f32 %v2016, 0.10370861
  %2568 = vrot.lane.b32.xlu0 %v2566, 96
  %v2569 = vpop.permute.xlu0 %2568
  %v2571 = vadd.f32 %v2565, %v2569
  %v2572 = vmul.f32 %v2016, -0.01792172
  %2574 = vrot.lane.b32.xlu0 %v2572, 80
  %v2575 = vpop.permute.xlu0 %2574
  %v2577 = vadd.f32 %v2571, %v2575
  %v2578 = vmul.f32 %v2016, -0.13539404
  %2580 = vrot.lane.b32.xlu0 %v2578, 64
  %v2581 = vpop.permute.xlu0 %2580
  %v2583 = vadd.f32 %v2577, %v2581
  %v2584 = vmul.f32 %v2016, -0.057605892
  %2586 = vrot.lane.b32.xlu0 %v2584, 48
  %v2587 = vpop.permute.xlu0 %2586
  %v2589 = vadd.f32 %v2583, %v2587
  %v2590 = vmul.f32 %v2016, 0.0751121
  %2592 = vrot.lane.b32.xlu0 %v2590, 32
  %v2593 = vpop.permute.xlu0 %2592
  %v2595 = vadd.f32 %v2589, %v2593
  %v2596 = vmul.f32 %v2016, -0.03313763
  %2598 = vrot.lane.b32.xlu0 %v2596, 16
  %v2599 = vpop.permute.xlu0 %2598
  %v2601 = vadd.f32 %v2595, %v2599
  %v2602 = vmul.f32 %v1951, 0.38466656
  %v2603 = vmul.f32 %v2016, 0.15620132
  %v2604 = vadd.f32 %v2602, %v2603
  %v2605 = vmul.f32 %v2016, 0.0031537667
  %2607 = vrot.lane.b32.xlu0 %v2605, 112
  %v2608 = vpop.permute.xlu0 %2607
  %v2610 = vadd.f32 %v2604, %v2608
  %v2611 = vmul.f32 %v2016, -0.07570002
  %2613 = vrot.lane.b32.xlu0 %v2611, 96
  %v2614 = vpop.permute.xlu0 %2613
  %v2616 = vadd.f32 %v2610, %v2614
  %v2617 = vmul.f32 %v2016, -0.05689039
  %2619 = vrot.lane.b32.xlu0 %v2617, 80
  %v2620 = vpop.permute.xlu0 %2619
  %v2622 = vadd.f32 %v2616, %v2620
  %v2623 = vmul.f32 %v2016, 0.004092553
  %2625 = vrot.lane.b32.xlu0 %v2623, 64
  %v2626 = vpop.permute.xlu0 %2625
  %v2628 = vadd.f32 %v2622, %v2626
  %v2629 = vmul.f32 %v2016, -0.11405589
  %2631 = vrot.lane.b32.xlu0 %v2629, 48
  %v2632 = vpop.permute.xlu0 %2631
  %v2634 = vadd.f32 %v2628, %v2632
  %v2635 = vmul.f32 %v2016, -0.17864418
  %2637 = vrot.lane.b32.xlu0 %v2635, 32
  %v2638 = vpop.permute.xlu0 %2637
  %v2640 = vadd.f32 %v2634, %v2638
  %v2641 = vmul.f32 %v2016, 0.065424114
  %2643 = vrot.lane.b32.xlu0 %v2641, 16
  %v2644 = vpop.permute.xlu0 %2643
  %v2646 = vadd.f32 %v2640, %v2644
  %v2647 = vmul.f32 %v1951, -0.29504117
  %v2648 = vmul.f32 %v2016, -0.02953297
  %v2649 = vadd.f32 %v2647, %v2648
  %v2650 = vmul.f32 %v2016, -0.123025164
  %2652 = vrot.lane.b32.xlu0 %v2650, 112
  %v2653 = vpop.permute.xlu0 %2652
  %v2655 = vadd.f32 %v2649, %v2653
  %v2656 = vmul.f32 %v2016, -0.019728674
  %2658 = vrot.lane.b32.xlu0 %v2656, 96
  %v2659 = vpop.permute.xlu0 %2658
  %v2661 = vadd.f32 %v2655, %v2659
  %v2662 = vmul.f32 %v2016, -0.052545015
  %2664 = vrot.lane.b32.xlu0 %v2662, 80
  %v2665 = vpop.permute.xlu0 %2664
  %v2667 = vadd.f32 %v2661, %v2665
  %v2668 = vmul.f32 %v2016, -0.2115041
  %2670 = vrot.lane.b32.xlu0 %v2668, 64
  %v2671 = vpop.permute.xlu0 %2670
  %v2673 = vadd.f32 %v2667, %v2671
  %v2674 = vmul.f32 %v2016, 0.05145681
  %2676 = vrot.lane.b32.xlu0 %v2674, 48
  %v2677 = vpop.permute.xlu0 %2676
  %v2679 = vadd.f32 %v2673, %v2677
  %v2680 = vmul.f32 %v2016, -0.043254796
  %2682 = vrot.lane.b32.xlu0 %v2680, 32
  %v2683 = vpop.permute.xlu0 %2682
  %v2685 = vadd.f32 %v2679, %v2683
  %v2686 = vmul.f32 %v2016, 0.08801639
  %2688 = vrot.lane.b32.xlu0 %v2686, 16
  %v2689 = vpop.permute.xlu0 %2688
  %v2691 = vadd.f32 %v2685, %v2689
  %v2692 = vmul.f32 %v1951, 0.06954511
  %v2693 = vmul.f32 %v2016, 0.18397121
  %v2694 = vadd.f32 %v2692, %v2693
  %v2695 = vmul.f32 %v2016, -0.04902323
  %2697 = vrot.lane.b32.xlu0 %v2695, 112
  %v2698 = vpop.permute.xlu0 %2697
  %v2700 = vadd.f32 %v2694, %v2698
  %v2701 = vmul.f32 %v2016, 0.047415175
  %2703 = vrot.lane.b32.xlu0 %v2701, 96
  %v2704 = vpop.permute.xlu0 %2703
  %v2706 = vadd.f32 %v2700, %v2704
  %v2707 = vmul.f32 %v2016, -0.23508741
  %2709 = vrot.lane.b32.xlu0 %v2707, 80
  %v2710 = vpop.permute.xlu0 %2709
  %v2712 = vadd.f32 %v2706, %v2710
  %v2713 = vmul.f32 %v2016, -0.19371992
  %2715 = vrot.lane.b32.xlu0 %v2713, 64
  %v2716 = vpop.permute.xlu0 %2715
  %v2718 = vadd.f32 %v2712, %v2716
  %v2719 = vmul.f32 %v2016, -0.08959176
  %2721 = vrot.lane.b32.xlu0 %v2719, 48
  %v2722 = vpop.permute.xlu0 %2721
  %v2724 = vadd.f32 %v2718, %v2722
  %v2725 = vmul.f32 %v2016, -0.027004642
  %2727 = vrot.lane.b32.xlu0 %v2725, 32
  %v2728 = vpop.permute.xlu0 %2727
  %v2730 = vadd.f32 %v2724, %v2728
  %v2731 = vmul.f32 %v2016, -0.054921743
  %2733 = vrot.lane.b32.xlu0 %v2731, 16
  %v2734 = vpop.permute.xlu0 %2733
  %v2736 = vadd.f32 %v2730, %v2734
  %v2737 = vmax.f32 %v2061, 0.0
  %v2738 = vmax.f32 %v2106, 0.0
  %v2739 = vmax.f32 %v2151, 0.0
  %v2740 = vmax.f32 %v2196, 0.0
  %v2741 = vmax.f32 %v2241, 0.0
  %v2742 = vmax.f32 %v2286, 0.0
  %v2743 = vmax.f32 %v2331, 0.0
  %v2744 = vmax.f32 %v2376, 0.0
  %v2745 = vmax.f32 %v2421, 0.0
  %v2746 = vmax.f32 %v2466, 0.0
  %v2747 = vmax.f32 %v2511, 0.0
  %v2748 = vmax.f32 %v2556, 0.0
  %v2749 = vmax.f32 %v2601, 0.0
  %v2750 = vmax.f32 %v2646, 0.0
  %v2751 = vmax.f32 %v2691, 0.0
  %v2752 = vmax.f32 %v2736, 0.0
  %v2753 = vmul.f32 %v2737, 0.08303569
  %v2754 = vmul.f32 %v2738, 0.04760115
  %v2755 = vadd.f32 %v2753, %v2754
  %v2756 = vmul.f32 %v2739, -0.1178445
  %v2757 = vadd.f32 %v2755, %v2756
  %v2758 = vmul.f32 %v2740, -0.033179898
  %v2759 = vadd.f32 %v2757, %v2758
  %v2760 = vmul.f32 %v2741, -0.05961447
  %v2761 = vadd.f32 %v2759, %v2760
  %v2762 = vmul.f32 %v2742, -0.017163565
  %v2763 = vadd.f32 %v2761, %v2762
  %v2764 = vmul.f32 %v2743, -0.010642166
  %v2765 = vadd.f32 %v2763, %v2764
  %v2766 = vmul.f32 %v2744, -0.051514823
  %v2767 = vadd.f32 %v2765, %v2766
  %v2768 = vmul.f32 %v2745, -0.05929749
  %v2769 = vadd.f32 %v2767, %v2768
  %v2770 = vmul.f32 %v2746, -0.09491177
  %v2771 = vadd.f32 %v2769, %v2770
  %v2772 = vmul.f32 %v2747, -0.09496411
  %v2773 = vadd.f32 %v2771, %v2772
  %v2774 = vmul.f32 %v2748, -0.023091672
  %v2775 = vadd.f32 %v2773, %v2774
  %v2776 = vmul.f32 %v2749, -0.08687764
  %v2777 = vadd.f32 %v2775, %v2776
  %v2778 = vmul.f32 %v2750, -0.019360414
  %v2779 = vadd.f32 %v2777, %v2778
  %v2780 = vmul.f32 %v2751, -0.076693915
  %v2781 = vadd.f32 %v2779, %v2780
  %v2782 = vmul.f32 %v2752, -0.1812062
  %v2783 = vadd.f32 %v2781, %v2782
  %v2784 = vmul.f32 %v2737, -0.08879869
  %v2785 = vmul.f32 %v2738, 0.10005801
  %v2786 = vadd.f32 %v2784, %v2785
  %v2787 = vmul.f32 %v2739, -0.066475384
  %v2788 = vadd.f32 %v2786, %v2787
  %v2789 = vmul.f32 %v2740, 0.15998103
  %v2790 = vadd.f32 %v2788, %v2789
  %v2791 = vmul.f32 %v2741, -0.07540251
  %v2792 = vadd.f32 %v2790, %v2791
  %v2793 = vmul.f32 %v2742, -0.023537856
  %v2794 = vadd.f32 %v2792, %v2793
  %v2795 = vmul.f32 %v2743, 0.032907724
  %v2796 = vadd.f32 %v2794, %v2795
  %v2797 = vmul.f32 %v2744, -0.05358054
  %v2798 = vadd.f32 %v2796, %v2797
  %v2799 = vmul.f32 %v2745, 0.101538025
  %v2800 = vadd.f32 %v2798, %v2799
  %v2801 = vmul.f32 %v2746, 0.10119747
  %v2802 = vadd.f32 %v2800, %v2801
  %v2803 = vmul.f32 %v2747, -0.01471123
  %v2804 = vadd.f32 %v2802, %v2803
  %v2805 = vmul.f32 %v2748, 0.08263543
  %v2806 = vadd.f32 %v2804, %v2805
  %v2807 = vmul.f32 %v2749, -0.14441907
  %v2808 = vadd.f32 %v2806, %v2807
  %v2809 = vmul.f32 %v2750, -0.07297478
  %v2810 = vadd.f32 %v2808, %v2809
  %v2811 = vmul.f32 %v2751, -0.05660768
  %v2812 = vadd.f32 %v2810, %v2811
  %v2813 = vmul.f32 %v2752, 0.005273128
  %v2814 = vadd.f32 %v2812, %v2813
  %v2815 = vmul.f32 %v2737, 0.109184355
  %v2816 = vmul.f32 %v2738, 0.05721928
  %v2817 = vadd.f32 %v2815, %v2816
  %v2818 = vmul.f32 %v2739, -0.018337665
  %v2819 = vadd.f32 %v2817, %v2818
  %v2820 = vmul.f32 %v2740, 0.08167248
  %v2821 = vadd.f32 %v2819, %v2820
  %v2822 = vmul.f32 %v2741, 0.10853458
  %v2823 = vadd.f32 %v2821, %v2822
  %v2824 = vmul.f32 %v2742, 0.098985605
  %v2825 = vadd.f32 %v2823, %v2824
  %v2826 = vmul.f32 %v2743, -0.03453571
  %v2827 = vadd.f32 %v2825, %v2826
  %v2828 = vmul.f32 %v2744, 0.016743256
  %v2829 = vadd.f32 %v2827, %v2828
  %v2830 = vmul.f32 %v2745, 0.082962684
  %v2831 = vadd.f32 %v2829, %v2830
  %v2832 = vmul.f32 %v2746, -0.07797792
  %v2833 = vadd.f32 %v2831, %v2832
  %v2834 = vmul.f32 %v2747, -0.025673075
  %v2835 = vadd.f32 %v2833, %v2834
  %v2836 = vmul.f32 %v2748, 0.0313189
  %v2837 = vadd.f32 %v2835, %v2836
  %v2838 = vmul.f32 %v2749, 0.09765054
  %v2839 = vadd.f32 %v2837, %v2838
  %v2840 = vmul.f32 %v2750, -0.008463893
  %v2841 = vadd.f32 %v2839, %v2840
  %v2842 = vmul.f32 %v2751, -0.052536715
  %v2843 = vadd.f32 %v2841, %v2842
  %v2844 = vmul.f32 %v2752, -0.07050323
  %v2845 = vadd.f32 %v2843, %v2844
  %v2846 = vmul.f32 %v2737, 0.040726073
  %v2847 = vmul.f32 %v2738, -0.020881936
  %v2848 = vadd.f32 %v2846, %v2847
  %v2849 = vmul.f32 %v2739, -0.06372651
  %v2850 = vadd.f32 %v2848, %v2849
  %v2851 = vmul.f32 %v2740, -0.10786494
  %v2852 = vadd.f32 %v2850, %v2851
  %v2853 = vmul.f32 %v2741, 0.0036907045
  %v2854 = vadd.f32 %v2852, %v2853
  %v2855 = vmul.f32 %v2742, 0.09287045
  %v2856 = vadd.f32 %v2854, %v2855
  %v2857 = vmul.f32 %v2743, 0.043978684
  %v2858 = vadd.f32 %v2856, %v2857
  %v2859 = vmul.f32 %v2744, 0.09304916
  %v2860 = vadd.f32 %v2858, %v2859
  %v2861 = vmul.f32 %v2745, -0.031187547
  %v2862 = vadd.f32 %v2860, %v2861
  %v2863 = vmul.f32 %v2746, 0.09329715
  %v2864 = vadd.f32 %v2862, %v2863
  %v2865 = vmul.f32 %v2747, -0.17035729
  %v2866 = vadd.f32 %v2864, %v2865
  %v2867 = vmul.f32 %v2748, 0.07091677
  %v2868 = vadd.f32 %v2866, %v2867
  %v2869 = vmul.f32 %v2749, 0.021722168
  %v2870 = vadd.f32 %v2868, %v2869
  %v2871 = vmul.f32 %v2750, 0.017149061
  %v2872 = vadd.f32 %v2870, %v2871
  %v2873 = vmul.f32 %v2751, -0.08124543
  %v2874 = vadd.f32 %v2872, %v2873
  %v2875 = vmul.f32 %v2752, 0.053255446
  %v2876 = vadd.f32 %v2874, %v2875
  %v2877 = vadd.f32 %v2845, 2.0
  %v2878 = vxor.u32 %v2877, 2147483648
  %v2879 = vmul.f32 %v2878, 1.442695
  %v2880 = vpow.pop %v2879
  %v2881 = vadd.f32 %v2880, 1.0
  %v2882 = vrcp.pop %v2881
  %v2883 = vmul.f32 1.0, %v2882
  %v2884 = vadd.f32 %v2876, 2.0
  %v2885 = vxor.u32 %v2884, 2147483648
  %v2886 = vmul.f32 %v2885, 1.442695
  %v2887 = vpow.pop %v2886
  %v2888 = vadd.f32 %v2887, 1.0
  %v2889 = vrcp.pop %v2888
  %v2890 = vmul.f32 1.0, %v2889
  %v2891 = vadd.f32 %v1956, %v2783
  %v2892 = vmul.f32 %v2891, %v2883
  %v2893 = vadd.f32 %v1961, %v2814
  %v2894 = vmul.f32 %v2893, %v2890
  %vm2895 = vcmask 123904
  %2896 = vst.msk [vmem:[%s17] sm:$0x3] %vm2895, %v1951
  %2898 = vrot.lane.b32.xlu0 %v2892, 16
  %v2899 = vpop.permute.xlu0 %2898
  %vm2901 = vcmask 255104
  %2902 = vst.msk [vmem:[%s17] sm:$0x3] %vm2901, %v2899
  %2904 = vrot.lane.b32.xlu0 %v2894, 32
  %v2905 = vpop.permute.xlu0 %2904
  %vm2907 = vcmask 386304
  %2908 = vst.msk [vmem:[%s17] sm:$0x3] %vm2907, %v2905
  %v2909 = vld [vmem:[%s11] sm:$0xf]
  %v2910 = vld [vmem:[%s11 + $0x4] sm:$0xf]
  %v2913 = vunpack.c.l.b16 %v2909
  %v2914 = vunpack.c.l.b16 %v2910
  %v2915 = vpack.c.b16 %v2914, %v2913
  %2917 = vmatprep.subr.bf16.mxu0 0
  %2918 = vmatpush1.bf16.msra.mxu0 %v2915
  %2919 = vmatprep.subr.bf16.mxu0 0
  %2920 = vmatpush1.bf16.msra.mxu0 0
  %2921 = vmatprep.subr.bf16.mxu0 0
  %2922 = vmatpush1.bf16.msra.mxu0 0
  %2923 = vmatprep.subr.bf16.mxu0 0
  %2924 = vmatpush1.bf16.msra.mxu0 0
  %2925 = vmatprep.subr.bf16.mxu0 0
  %2926 = vmatpush1.bf16.msra.mxu0 0
  %2927 = vmatprep.subr.bf16.mxu0 0
  %2928 = vmatpush1.bf16.msra.mxu0 0
  %2929 = vmatprep.subr.bf16.mxu0 0
  %2930 = vmatpush1.bf16.msra.mxu0 0
  %2931 = vmatprep.subr.bf16.mxu0 0
  %2932 = vmatpush1.bf16.msra.mxu0 0
  %2933 = vmatprep.subr.bf16.mxu0 0
  %2934 = vmatpush1.bf16.msra.mxu0 0
  %2935 = vmatprep.subr.bf16.mxu0 0
  %2936 = vmatpush1.bf16.msra.mxu0 0
  %2937 = vmatprep.subr.bf16.mxu0 0
  %2938 = vmatpush1.bf16.msra.mxu0 0
  %2939 = vmatprep.subr.bf16.mxu0 0
  %2940 = vmatpush1.bf16.msra.mxu0 0
  %2941 = vmatprep.subr.bf16.mxu0 0
  %2942 = vmatpush1.bf16.msra.mxu0 0
  %2943 = vmatprep.subr.bf16.mxu0 0
  %2944 = vmatpush1.bf16.msra.mxu0 0
  %2945 = vmatprep.subr.bf16.mxu0 0
  %2946 = vmatpush1.bf16.msra.mxu0 0
  %2947 = vmatprep.subr.bf16.mxu0 0
  %2948 = vmatpush1.bf16.msra.mxu0 0
  %2949 = vmatprep.mubr.bf16.mxu0 0
  %2950 = vmatmul.mubr.bf16.gmra.mrb[0].mxu0 %v1973
  %v2951 = vpop.f32.mrb[0].mxu0
  %v2952 = vadd.f32 0.0, %v2951
  %v2953 = vpop.f32.mrb[0].mxu0
  %v2954 = vpop.f32.mrb[0].mxu0
  %v2955 = vpop.f32.mrb[0].mxu0
  %2956 = vdwg.mxu0
  %v2957 = vld [vmem:[%s12] sm:$0xf]
  %v2958 = vld [vmem:[%s12 + $0x4] sm:$0xf]
  %v2959 = vld [vmem:[%s13] sm:$0xf]
  %v2960 = vld [vmem:[%s13 + $0x4] sm:$0xf]
  %v2961 = vld [vmem:[%s14] sm:$0xf]
  %v2962 = vld [vmem:[%s14 + $0x4] sm:$0xf]
  %v2965 = vunpack.c.l.b16 %v2957
  %v2966 = vunpack.c.l.b16 %v2958
  %v2967 = vpack.c.b16 %v2966, %v2965
  %2969 = vmatprep.subr.bf16.mxu0 0
  %2970 = vmatpush1.bf16.msra.mxu0 %v2967
  %2971 = vmatprep.subr.bf16.mxu0 0
  %2972 = vmatpush1.bf16.msra.mxu0 0
  %2973 = vmatprep.subr.bf16.mxu0 0
  %2974 = vmatpush1.bf16.msra.mxu0 0
  %2975 = vmatprep.subr.bf16.mxu0 0
  %2976 = vmatpush1.bf16.msra.mxu0 0
  %2977 = vmatprep.subr.bf16.mxu0 0
  %2978 = vmatpush1.bf16.msra.mxu0 0
  %2979 = vmatprep.subr.bf16.mxu0 0
  %2980 = vmatpush1.bf16.msra.mxu0 0
  %2981 = vmatprep.subr.bf16.mxu0 0
  %2982 = vmatpush1.bf16.msra.mxu0 0
  %2983 = vmatprep.subr.bf16.mxu0 0
  %2984 = vmatpush1.bf16.msra.mxu0 0
  %2985 = vmatprep.subr.bf16.mxu0 0
  %2986 = vmatpush1.bf16.msra.mxu0 0
  %2987 = vmatprep.subr.bf16.mxu0 0
  %2988 = vmatpush1.bf16.msra.mxu0 0
  %2989 = vmatprep.subr.bf16.mxu0 0
  %2990 = vmatpush1.bf16.msra.mxu0 0
  %2991 = vmatprep.subr.bf16.mxu0 0
  %2992 = vmatpush1.bf16.msra.mxu0 0
  %2993 = vmatprep.subr.bf16.mxu0 0
  %2994 = vmatpush1.bf16.msra.mxu0 0
  %2995 = vmatprep.subr.bf16.mxu0 0
  %2996 = vmatpush1.bf16.msra.mxu0 0
  %2997 = vmatprep.subr.bf16.mxu0 0
  %2998 = vmatpush1.bf16.msra.mxu0 0
  %2999 = vmatprep.subr.bf16.mxu0 0
  %3000 = vmatpush1.bf16.msra.mxu0 0
  %3001 = vmatprep.mubr.bf16.mxu0 0
  %3002 = vmatmul.mubr.bf16.gmra.mrb[0].mxu0 %v1973
  %v3003 = vpop.f32.mrb[0].mxu0
  %v3004 = vadd.f32 -0.057478018, %v3003
  %v3005 = vpop.f32.mrb[0].mxu0
  %v3006 = vpop.f32.mrb[0].mxu0
  %v3007 = vpop.f32.mrb[0].mxu0
  %3008 = vdwg.mxu0
  %v3009 = vmul.f32 %v3004, 0.9390618
  %v3012 = vunpack.c.l.b16 %v2959
  %v3013 = vunpack.c.l.b16 %v2960
  %v3014 = vpack.c.b16 %v3013, %v3012
  %3016 = vmatprep.subr.bf16.mxu0 0
  %3017 = vmatpush1.bf16.msra.mxu0 %v3014
  %3018 = vmatprep.subr.bf16.mxu0 0
  %3019 = vmatpush1.bf16.msra.mxu0 0
  %3020 = vmatprep.subr.bf16.mxu0 0
  %3021 = vmatpush1.bf16.msra.mxu0 0
  %3022 = vmatprep.subr.bf16.mxu0 0
  %3023 = vmatpush1.bf16.msra.mxu0 0
  %3024 = vmatprep.subr.bf16.mxu0 0
  %3025 = vmatpush1.bf16.msra.mxu0 0
  %3026 = vmatprep.subr.bf16.mxu0 0
  %3027 = vmatpush1.bf16.msra.mxu0 0
  %3028 = vmatprep.subr.bf16.mxu0 0
  %3029 = vmatpush1.bf16.msra.mxu0 0
  %3030 = vmatprep.subr.bf16.mxu0 0
  %3031 = vmatpush1.bf16.msra.mxu0 0
  %3032 = vmatprep.subr.bf16.mxu0 0
  %3033 = vmatpush1.bf16.msra.mxu0 0
  %3034 = vmatprep.subr.bf16.mxu0 0
  %3035 = vmatpush1.bf16.msra.mxu0 0
  %3036 = vmatprep.subr.bf16.mxu0 0
  %3037 = vmatpush1.bf16.msra.mxu0 0
  %3038 = vmatprep.subr.bf16.mxu0 0
  %3039 = vmatpush1.bf16.msra.mxu0 0
  %3040 = vmatprep.subr.bf16.mxu0 0
  %3041 = vmatpush1.bf16.msra.mxu0 0
  %3042 = vmatprep.subr.bf16.mxu0 0
  %3043 = vmatpush1.bf16.msra.mxu0 0
  %3044 = vmatprep.subr.bf16.mxu0 0
  %3045 = vmatpush1.bf16.msra.mxu0 0
  %3046 = vmatprep.subr.bf16.mxu0 0
  %3047 = vmatpush1.bf16.msra.mxu0 0
  %3048 = vmatprep.mubr.bf16.mxu0 0
  %3049 = vmatmul.mubr.bf16.gmra.mrb[0].mxu0 %v1973
  %v3050 = vpop.f32.mrb[0].mxu0
  %v3051 = vadd.f32 0.07998367, %v3050
  %v3052 = vpop.f32.mrb[0].mxu0
  %v3053 = vpop.f32.mrb[0].mxu0
  %v3054 = vpop.f32.mrb[0].mxu0
  %3055 = vdwg.mxu0
  %v3056 = vmul.f32 %v3051, 0.9801201
  %v3059 = vunpack.c.l.b16 %v2961
  %v3060 = vunpack.c.l.b16 %v2962
  %v3061 = vpack.c.b16 %v3060, %v3059
  %3063 = vmatprep.subr.bf16.mxu0 0
  %3064 = vmatpush1.bf16.msra.mxu0 %v3061
  %3065 = vmatprep.subr.bf16.mxu0 0
  %3066 = vmatpush1.bf16.msra.mxu0 0
  %3067 = vmatprep.subr.bf16.mxu0 0
  %3068 = vmatpush1.bf16.msra.mxu0 0
  %3069 = vmatprep.subr.bf16.mxu0 0
  %3070 = vmatpush1.bf16.msra.mxu0 0
  %3071 = vmatprep.subr.bf16.mxu0 0
  %3072 = vmatpush1.bf16.msra.mxu0 0
  %3073 = vmatprep.subr.bf16.mxu0 0
  %3074 = vmatpush1.bf16.msra.mxu0 0
  %3075 = vmatprep.subr.bf16.mxu0 0
  %3076 = vmatpush1.bf16.msra.mxu0 0
  %3077 = vmatprep.subr.bf16.mxu0 0
  %3078 = vmatpush1.bf16.msra.mxu0 0
  %3079 = vmatprep.subr.bf16.mxu0 0
  %3080 = vmatpush1.bf16.msra.mxu0 0
  %3081 = vmatprep.subr.bf16.mxu0 0
  %3082 = vmatpush1.bf16.msra.mxu0 0
  %3083 = vmatprep.subr.bf16.mxu0 0
  %3084 = vmatpush1.bf16.msra.mxu0 0
  %3085 = vmatprep.subr.bf16.mxu0 0
  %3086 = vmatpush1.bf16.msra.mxu0 0
  %3087 = vmatprep.subr.bf16.mxu0 0
  %3088 = vmatpush1.bf16.msra.mxu0 0
  %3089 = vmatprep.subr.bf16.mxu0 0
  %3090 = vmatpush1.bf16.msra.mxu0 0
  %3091 = vmatprep.subr.bf16.mxu0 0
  %3092 = vmatpush1.bf16.msra.mxu0 0
  %3093 = vmatprep.subr.bf16.mxu0 0
  %3094 = vmatpush1.bf16.msra.mxu0 0
  %3095 = vmatprep.mubr.bf16.mxu0 0
  %3096 = vmatmul.mubr.bf16.gmra.mrb[0].mxu0 %v1973
  %v3097 = vpop.f32.mrb[0].mxu0
  %v3098 = vadd.f32 -0.025960688, %v3097
  %v3099 = vpop.f32.mrb[0].mxu0
  %v3100 = vpop.f32.mrb[0].mxu0
  %v3101 = vpop.f32.mrb[0].mxu0
  %3102 = vdwg.mxu0
  %v3103 = vmul.f32 %v3098, 0.94547486
  %v3104 = vmul.f32 %v3009, -0.78950715
  %v3105 = vmul.f32 %v3056, -0.2117088
  %v3106 = vadd.f32 %v3104, %v3105
  %v3107 = vmul.f32 %v3103, 0.57607114
  %v3108 = vadd.f32 %v3106, %v3107
  %v3109 = vmul.f32 %v3009, -0.15904048
  %v3110 = vmul.f32 %v3056, -0.8359883
  %v3111 = vadd.f32 %v3109, %v3110
  %v3112 = vmul.f32 %v3103, -0.52519494
  %v3113 = vadd.f32 %v3111, %v3112
  %v3114 = vmul.f32 %v3009, 0.5927771
  %v3115 = vmul.f32 %v3056, -0.5062638
  %v3116 = vadd.f32 %v3114, %v3115
  %v3117 = vmul.f32 %v3103, 0.62634844
  %v3118 = vadd.f32 %v3116, %v3117
  %v3119 = vpack.c.bf16 %v2952, %v2952
  %v3120 = vld [vmem:[%s15] sm:$0x3]
  %vm3121 = vcmask 31744
  %v3123 = vsel %vm3121, %v3119, 0
  %vm3125 = vcmask 1041408
  %v3127 = vsel %vm3125, %v3120, 0
  %3129 = vmatprep.subr.bf16.mxu0 0
  %3130 = vmatpush1.bf16.msra.mxu0 %v3127
  %3131 = vmatprep.subr.bf16.mxu0 0
  %3132 = vmatpush1.bf16.msra.mxu0 0
  %3133 = vmatprep.subr.bf16.mxu0 0
  %3134 = vmatpush1.bf16.msra.mxu0 0
  %3135 = vmatprep.subr.bf16.mxu0 0
  %3136 = vmatpush1.bf16.msra.mxu0 0
  %3137 = vmatprep.subr.bf16.mxu0 0
  %3138 = vmatpush1.bf16.msra.mxu0 0
  %3139 = vmatprep.subr.bf16.mxu0 0
  %3140 = vmatpush1.bf16.msra.mxu0 0
  %3141 = vmatprep.subr.bf16.mxu0 0
  %3142 = vmatpush1.bf16.msra.mxu0 0
  %3143 = vmatprep.subr.bf16.mxu0 0
  %3144 = vmatpush1.bf16.msra.mxu0 0
  %3145 = vmatprep.subr.bf16.mxu0 0
  %3146 = vmatpush1.bf16.msra.mxu0 0
  %3147 = vmatprep.subr.bf16.mxu0 0
  %3148 = vmatpush1.bf16.msra.mxu0 0
  %3149 = vmatprep.subr.bf16.mxu0 0
  %3150 = vmatpush1.bf16.msra.mxu0 0
  %3151 = vmatprep.subr.bf16.mxu0 0
  %3152 = vmatpush1.bf16.msra.mxu0 0
  %3153 = vmatprep.subr.bf16.mxu0 0
  %3154 = vmatpush1.bf16.msra.mxu0 0
  %3155 = vmatprep.subr.bf16.mxu0 0
  %3156 = vmatpush1.bf16.msra.mxu0 0
  %3157 = vmatprep.subr.bf16.mxu0 0
  %3158 = vmatpush1.bf16.msra.mxu0 0
  %3159 = vmatprep.subr.bf16.mxu0 0
  %3160 = vmatpush1.bf16.msra.mxu0 0
  %3161 = vmatprep.mubr.bf16.mxu0 0
  %3162 = vmatmul.mubr.bf16.gmra.mrb[0].mxu0 %v3123
  %v3163 = vpop.f32.mrb[0].mxu0
  %v3164 = vadd.f32 0.0, %v3163
  %v3165 = vpop.f32.mrb[0].mxu0
  %v3166 = vpop.f32.mrb[0].mxu0
  %v3167 = vpop.f32.mrb[0].mxu0
  %3168 = vdwg.mxu0
  %v3169 = vadd.f32 %v3164, 0.0
  %v3170 = vmax.f32 %v3169, 0.0
  %v3171 = vmul.f32 %v3108, 0.10197338
  %v3172 = vmul.f32 %v3170, 0.13380532
  %v3173 = vadd.f32 %v3171, %v3172
  %v3174 = vmul.f32 %v3170, -0.0073780757
  %3176 = vrot.lane.b32.xlu0 %v3174, 124
  %v3177 = vpop.permute.xlu0 %3176
  %v3179 = vadd.f32 %v3173, %v3177
  %v3180 = vmul.f32 %v3170, -0.08799267
  %3182 = vrot.lane.b32.xlu0 %v3180, 120
  %v3183 = vpop.permute.xlu0 %3182
  %v3185 = vadd.f32 %v3179, %v3183
  %v3186 = vmul.f32 %v3170, -0.10235397
  %3188 = vrot.lane.b32.xlu0 %v3186, 116
  %v3189 = vpop.permute.xlu0 %3188
  %v3191 = vadd.f32 %v3185, %v3189
  %v3192 = vmul.f32 %v3170, 0.034385104
  %3194 = vrot.lane.b32.xlu0 %v3192, 112
  %v3195 = vpop.permute.xlu0 %3194
  %v3197 = vadd.f32 %v3191, %v3195
  %v3198 = vmul.f32 %v3170, -0.1205531
  %3200 = vrot.lane.b32.xlu0 %v3198, 108
  %v3201 = vpop.permute.xlu0 %3200
  %v3203 = vadd.f32 %v3197, %v3201
  %v3204 = vmul.f32 %v3170, 0.019387553
  %3206 = vrot.lane.b32.xlu0 %v3204, 104
  %v3207 = vpop.permute.xlu0 %3206
  %v3209 = vadd.f32 %v3203, %v3207
  %v3210 = vmul.f32 %v3170, 0.21850783
  %3212 = vrot.lane.b32.xlu0 %v3210, 100
  %v3213 = vpop.permute.xlu0 %3212
  %v3215 = vadd.f32 %v3209, %v3213
  %v3216 = vmul.f32 %v3108, 0.31011766
  %v3217 = vmul.f32 %v3170, -0.042924397
  %v3218 = vadd.f32 %v3216, %v3217
  %v3219 = vmul.f32 %v3170, -0.11257317
  %3221 = vrot.lane.b32.xlu0 %v3219, 124
  %v3222 = vpop.permute.xlu0 %3221
  %v3224 = vadd.f32 %v3218, %v3222
  %v3225 = vmul.f32 %v3170, 0.09734521
  %3227 = vrot.lane.b32.xlu0 %v3225, 120
  %v3228 = vpop.permute.xlu0 %3227
  %v3230 = vadd.f32 %v3224, %v3228
  %v3231 = vmul.f32 %v3170, -0.017866971
  %3233 = vrot.lane.b32.xlu0 %v3231, 116
  %v3234 = vpop.permute.xlu0 %3233
  %v3236 = vadd.f32 %v3230, %v3234
  %v3237 = vmul.f32 %v3170, -0.05986839
  %3239 = vrot.lane.b32.xlu0 %v3237, 112
  %v3240 = vpop.permute.xlu0 %3239
  %v3242 = vadd.f32 %v3236, %v3240
  %v3243 = vmul.f32 %v3170, -0.083385125
  %3245 = vrot.lane.b32.xlu0 %v3243, 108
  %v3246 = vpop.permute.xlu0 %3245
  %v3248 = vadd.f32 %v3242, %v3246
  %v3249 = vmul.f32 %v3170, -0.085852586
  %3251 = vrot.lane.b32.xlu0 %v3249, 104
  %v3252 = vpop.permute.xlu0 %3251
  %v3254 = vadd.f32 %v3248, %v3252
  %v3255 = vmul.f32 %v3170, 0.24173331
  %3257 = vrot.lane.b32.xlu0 %v3255, 100
  %v3258 = vpop.permute.xlu0 %3257
  %v3260 = vadd.f32 %v3254, %v3258
  %v3261 = vmul.f32 %v3108, -0.10183487
  %v3262 = vmul.f32 %v3170, 0.00074368075
  %v3263 = vadd.f32 %v3261, %v3262
  %v3264 = vmul.f32 %v3170, 0.087730534
  %3266 = vrot.lane.b32.xlu0 %v3264, 124
  %v3267 = vpop.permute.xlu0 %3266
  %v3269 = vadd.f32 %v3263, %v3267
  %v3270 = vmul.f32 %v3170, 0.06333114
  %3272 = vrot.lane.b32.xlu0 %v3270, 120
  %v3273 = vpop.permute.xlu0 %3272
  %v3275 = vadd.f32 %v3269, %v3273
  %v3276 = vmul.f32 %v3170, -0.13459465
  %3278 = vrot.lane.b32.xlu0 %v3276, 116
  %v3279 = vpop.permute.xlu0 %3278
  %v3281 = vadd.f32 %v3275, %v3279
  %v3282 = vmul.f32 %v3170, -0.06954197
  %3284 = vrot.lane.b32.xlu0 %v3282, 112
  %v3285 = vpop.permute.xlu0 %3284
  %v3287 = vadd.f32 %v3281, %v3285
  %v3288 = vmul.f32 %v3170, -0.013516877
  %3290 = vrot.lane.b32.xlu0 %v3288, 108
  %v3291 = vpop.permute.xlu0 %3290
  %v3293 = vadd.f32 %v3287, %v3291
  %v3294 = vmul.f32 %v3170, 0.060250647
  %3296 = vrot.lane.b32.xlu0 %v3294, 104
  %v3297 = vpop.permute.xlu0 %3296
  %v3299 = vadd.f32 %v3293, %v3297
  %v3300 = vmul.f32 %v3170, -0.19304994
  %3302 = vrot.lane.b32.xlu0 %v3300, 100
  %v3303 = vpop.permute.xlu0 %3302
  %v3305 = vadd.f32 %v3299, %v3303
  %v3306 = vmul.f32 %v3108, 0.1669567
  %v3307 = vmul.f32 %v3170, -0.06339552
  %v3308 = vadd.f32 %v3306, %v3307
  %v3309 = vmul.f32 %v3170, -0.003069789
  %3311 = vrot.lane.b32.xlu0 %v3309, 124
  %v3312 = vpop.permute.xlu0 %3311
  %v3314 = vadd.f32 %v3308, %v3312
  %v3315 = vmul.f32 %v3170, 0.10307603
  %3317 = vrot.lane.b32.xlu0 %v3315, 120
  %v3318 = vpop.permute.xlu0 %3317
  %v3320 = vadd.f32 %v3314, %v3318
  %v3321 = vmul.f32 %v3170, -0.0366984
  %3323 = vrot.lane.b32.xlu0 %v3321, 116
  %v3324 = vpop.permute.xlu0 %3323
  %v3326 = vadd.f32 %v3320, %v3324
  %v3327 = vmul.f32 %v3170, 0.10330976
  %3329 = vrot.lane.b32.xlu0 %v3327, 112
  %v3330 = vpop.permute.xlu0 %3329
  %v3332 = vadd.f32 %v3326, %v3330
  %v3333 = vmul.f32 %v3170, 0.13094395
  %3335 = vrot.lane.b32.xlu0 %v3333, 108
  %v3336 = vpop.permute.xlu0 %3335
  %v3338 = vadd.f32 %v3332, %v3336
  %v3339 = vmul.f32 %v3170, -0.0072414037
  %3341 = vrot.lane.b32.xlu0 %v3339, 104
  %v3342 = vpop.permute.xlu0 %3341
  %v3344 = vadd.f32 %v3338, %v3342
  %v3345 = vmul.f32 %v3170, -0.09335829
  %3347 = vrot.lane.b32.xlu0 %v3345, 100
  %v3348 = vpop.permute.xlu0 %3347
  %v3350 = vadd.f32 %v3344, %v3348
  %v3351 = vmul.f32 %v3108, 0.11798517
  %v3352 = vmul.f32 %v3170, -0.014671947
  %v3353 = vadd.f32 %v3351, %v3352
  %v3354 = vmul.f32 %v3170, -0.048332863
  %3356 = vrot.lane.b32.xlu0 %v3354, 124
  %v3357 = vpop.permute.xlu0 %3356
  %v3359 = vadd.f32 %v3353, %v3357
  %v3360 = vmul.f32 %v3170, -0.004573863
  %3362 = vrot.lane.b32.xlu0 %v3360, 120
  %v3363 = vpop.permute.xlu0 %3362
  %v3365 = vadd.f32 %v3359, %v3363
  %v3366 = vmul.f32 %v3170, -0.13084713
  %3368 = vrot.lane.b32.xlu0 %v3366, 116
  %v3369 = vpop.permute.xlu0 %3368
  %v3371 = vadd.f32 %v3365, %v3369
  %v3372 = vmul.f32 %v3170, -0.19064178
  %3374 = vrot.lane.b32.xlu0 %v3372, 112
  %v3375 = vpop.permute.xlu0 %3374
  %v3377 = vadd.f32 %v3371, %v3375
  %v3378 = vmul.f32 %v3170, 0.026761157
  %3380 = vrot.lane.b32.xlu0 %v3378, 108
  %v3381 = vpop.permute.xlu0 %3380
  %v3383 = vadd.f32 %v3377, %v3381
  %v3384 = vmul.f32 %v3170, 0.066800736
  %3386 = vrot.lane.b32.xlu0 %v3384, 104
  %v3387 = vpop.permute.xlu0 %3386
  %v3389 = vadd.f32 %v3383, %v3387
  %v3390 = vmul.f32 %v3170, 0.07002827
  %3392 = vrot.lane.b32.xlu0 %v3390, 100
  %v3393 = vpop.permute.xlu0 %3392
  %v3395 = vadd.f32 %v3389, %v3393
  %v3396 = vmul.f32 %v3108, -0.5231547
  %v3397 = vmul.f32 %v3170, -0.033997167
  %v3398 = vadd.f32 %v3396, %v3397
  %v3399 = vmul.f32 %v3170, -0.06491671
  %3401 = vrot.lane.b32.xlu0 %v3399, 124
  %v3402 = vpop.permute.xlu0 %3401
  %v3404 = vadd.f32 %v3398, %v3402
  %v3405 = vmul.f32 %v3170, 0.06399344
  %3407 = vrot.lane.b32.xlu0 %v3405, 120
  %v3408 = vpop.permute.xlu0 %3407
  %v3410 = vadd.f32 %v3404, %v3408
  %v3411 = vmul.f32 %v3170, -0.037288368
  %3413 = vrot.lane.b32.xlu0 %v3411, 116
  %v3414 = vpop.permute.xlu0 %3413
  %v3416 = vadd.f32 %v3410, %v3414
  %v3417 = vmul.f32 %v3170, 0.087219
  %3419 = vrot.lane.b32.xlu0 %v3417, 112
  %v3420 = vpop.permute.xlu0 %3419
  %v3422 = vadd.f32 %v3416, %v3420
  %v3423 = vmul.f32 %v3170, 0.080649905
  %3425 = vrot.lane.b32.xlu0 %v3423, 108
  %v3426 = vpop.permute.xlu0 %3425
  %v3428 = vadd.f32 %v3422, %v3426
  %v3429 = vmul.f32 %v3170, -0.03410181
  %3431 = vrot.lane.b32.xlu0 %v3429, 104
  %v3432 = vpop.permute.xlu0 %3431
  %v3434 = vadd.f32 %v3428, %v3432
  %v3435 = vmul.f32 %v3170, -0.059025176
  %3437 = vrot.lane.b32.xlu0 %v3435, 100
  %v3438 = vpop.permute.xlu0 %3437
  %v3440 = vadd.f32 %v3434, %v3438
  %v3441 = vmul.f32 %v3108, -0.5342533
  %v3442 = vmul.f32 %v3170, 0.07268948
  %v3443 = vadd.f32 %v3441, %v3442
  %v3444 = vmul.f32 %v3170, 0.13101122
  %3446 = vrot.lane.b32.xlu0 %v3444, 124
  %v3447 = vpop.permute.xlu0 %3446
  %v3449 = vadd.f32 %v3443, %v3447
  %v3450 = vmul.f32 %v3170, -0.14277764
  %3452 = vrot.lane.b32.xlu0 %v3450, 120
  %v3453 = vpop.permute.xlu0 %3452
  %v3455 = vadd.f32 %v3449, %v3453
  %v3456 = vmul.f32 %v3170, -0.04186996
  %3458 = vrot.lane.b32.xlu0 %v3456, 116
  %v3459 = vpop.permute.xlu0 %3458
  %v3461 = vadd.f32 %v3455, %v3459
  %v3462 = vmul.f32 %v3170, 0.14676206
  %3464 = vrot.lane.b32.xlu0 %v3462, 112
  %v3465 = vpop.permute.xlu0 %3464
  %v3467 = vadd.f32 %v3461, %v3465
  %v3468 = vmul.f32 %v3170, 0.07375452
  %3470 = vrot.lane.b32.xlu0 %v3468, 108
  %v3471 = vpop.permute.xlu0 %3470
  %v3473 = vadd.f32 %v3467, %v3471
  %v3474 = vmul.f32 %v3170, -0.048999283
  %3476 = vrot.lane.b32.xlu0 %v3474, 104
  %v3477 = vpop.permute.xlu0 %3476
  %v3479 = vadd.f32 %v3473, %v3477
  %v3480 = vmul.f32 %v3170, -0.06885641
  %3482 = vrot.lane.b32.xlu0 %v3480, 100
  %v3483 = vpop.permute.xlu0 %3482
  %v3485 = vadd.f32 %v3479, %v3483
  %v3486 = vmul.f32 %v3108, 0.14294462
  %v3487 = vmul.f32 %v3170, 0.03633291
  %v3488 = vadd.f32 %v3486, %v3487
  %v3489 = vmul.f32 %v3170, 0.052448124
  %3491 = vrot.lane.b32.xlu0 %v3489, 124
  %v3492 = vpop.permute.xlu0 %3491
  %v3494 = vadd.f32 %v3488, %v3492
  %v3495 = vmul.f32 %v3170, 0.0017949218
  %3497 = vrot.lane.b32.xlu0 %v3495, 120
  %v3498 = vpop.permute.xlu0 %3497
  %v3500 = vadd.f32 %v3494, %v3498
  %v3501 = vmul.f32 %v3170, -0.09231069
  %3503 = vrot.lane.b32.xlu0 %v3501, 116
  %v3504 = vpop.permute.xlu0 %3503
  %v3506 = vadd.f32 %v3500, %v3504
  %v3507 = vmul.f32 %v3170, -0.12333479
  %3509 = vrot.lane.b32.xlu0 %v3507, 112
  %v3510 = vpop.permute.xlu0 %3509
  %v3512 = vadd.f32 %v3506, %v3510
  %v3513 = vmul.f32 %v3170, 0.002404675
  %3515 = vrot.lane.b32.xlu0 %v3513, 108
  %v3516 = vpop.permute.xlu0 %3515
  %v3518 = vadd.f32 %v3512, %v3516
  %v3519 = vmul.f32 %v3170, 0.040944796
  %3521 = vrot.lane.b32.xlu0 %v3519, 104
  %v3522 = vpop.permute.xlu0 %3521
  %v3524 = vadd.f32 %v3518, %v3522
  %v3525 = vmul.f32 %v3170, 0.09007635
  %3527 = vrot.lane.b32.xlu0 %v3525, 100
  %v3528 = vpop.permute.xlu0 %3527
  %v3530 = vadd.f32 %v3524, %v3528
  %v3531 = vmul.f32 %v3108, -0.17944232
  %v3532 = vmul.f32 %v3170, -0.17657381
  %v3533 = vadd.f32 %v3531, %v3532
  %v3534 = vmul.f32 %v3170, -0.050868962
  %3536 = vrot.lane.b32.xlu0 %v3534, 124
  %v3537 = vpop.permute.xlu0 %3536
  %v3539 = vadd.f32 %v3533, %v3537
  %v3540 = vmul.f32 %v3170, 0.049405042
  %3542 = vrot.lane.b32.xlu0 %v3540, 120
  %v3543 = vpop.permute.xlu0 %3542
  %v3545 = vadd.f32 %v3539, %v3543
  %v3546 = vmul.f32 %v3170, 0.1166491
  %3548 = vrot.lane.b32.xlu0 %v3546, 116
  %v3549 = vpop.permute.xlu0 %3548
  %v3551 = vadd.f32 %v3545, %v3549
  %v3552 = vmul.f32 %v3170, -0.012093614
  %3554 = vrot.lane.b32.xlu0 %v3552, 112
  %v3555 = vpop.permute.xlu0 %3554
  %v3557 = vadd.f32 %v3551, %v3555
  %v3558 = vmul.f32 %v3170, -0.030922895
  %3560 = vrot.lane.b32.xlu0 %v3558, 108
  %v3561 = vpop.permute.xlu0 %3560
  %v3563 = vadd.f32 %v3557, %v3561
  %v3564 = vmul.f32 %v3170, 0.058828957
  %3566 = vrot.lane.b32.xlu0 %v3564, 104
  %v3567 = vpop.permute.xlu0 %3566
  %v3569 = vadd.f32 %v3563, %v3567
  %v3570 = vmul.f32 %v3170, 0.038332246
  %3572 = vrot.lane.b32.xlu0 %v3570, 100
  %v3573 = vpop.permute.xlu0 %3572
  %v3575 = vadd.f32 %v3569, %v3573
  %v3576 = vmul.f32 %v3108, 0.039984304
  %v3577 = vmul.f32 %v3170, 0.1152834
  %v3578 = vadd.f32 %v3576, %v3577
  %v3579 = vmul.f32 %v3170, 0.08581066
  %3581 = vrot.lane.b32.xlu0 %v3579, 124
  %v3582 = vpop.permute.xlu0 %3581
  %v3584 = vadd.f32 %v3578, %v3582
  %v3585 = vmul.f32 %v3170, -0.024224473
  %3587 = vrot.lane.b32.xlu0 %v3585, 120
  %v3588 = vpop.permute.xlu0 %3587
  %v3590 = vadd.f32 %v3584, %v3588
  %v3591 = vmul.f32 %v3170, 0.025948608
  %3593 = vrot.lane.b32.xlu0 %v3591, 116
  %v3594 = vpop.permute.xlu0 %3593
  %v3596 = vadd.f32 %v3590, %v3594
  %v3597 = vmul.f32 %v3170, 0.22397482
  %3599 = vrot.lane.b32.xlu0 %v3597, 112
  %v3600 = vpop.permute.xlu0 %3599
  %v3602 = vadd.f32 %v3596, %v3600
  %v3603 = vmul.f32 %v3170, 0.06539222
  %3605 = vrot.lane.b32.xlu0 %v3603, 108
  %v3606 = vpop.permute.xlu0 %3605
  %v3608 = vadd.f32 %v3602, %v3606
  %v3609 = vmul.f32 %v3170, 0.103891775
  %3611 = vrot.lane.b32.xlu0 %v3609, 104
  %v3612 = vpop.permute.xlu0 %3611
  %v3614 = vadd.f32 %v3608, %v3612
  %v3615 = vmul.f32 %v3170, 0.09564662
  %3617 = vrot.lane.b32.xlu0 %v3615, 100
  %v3618 = vpop.permute.xlu0 %3617
  %v3620 = vadd.f32 %v3614, %v3618
  %v3621 = vmul.f32 %v3108, -0.040288623
  %v3622 = vmul.f32 %v3170, 0.07931736
  %v3623 = vadd.f32 %v3621, %v3622
  %v3624 = vmul.f32 %v3170, 0.08058843
  %3626 = vrot.lane.b32.xlu0 %v3624, 124
  %v3627 = vpop.permute.xlu0 %3626
  %v3629 = vadd.f32 %v3623, %v3627
  %v3630 = vmul.f32 %v3170, -0.08178942
  %3632 = vrot.lane.b32.xlu0 %v3630, 120
  %v3633 = vpop.permute.xlu0 %3632
  %v3635 = vadd.f32 %v3629, %v3633
  %v3636 = vmul.f32 %v3170, -0.05621789
  %3638 = vrot.lane.b32.xlu0 %v3636, 116
  %v3639 = vpop.permute.xlu0 %3638
  %v3641 = vadd.f32 %v3635, %v3639
  %v3642 = vmul.f32 %v3170, -0.1411759
  %3644 = vrot.lane.b32.xlu0 %v3642, 112
  %v3645 = vpop.permute.xlu0 %3644
  %v3647 = vadd.f32 %v3641, %v3645
  %v3648 = vmul.f32 %v3170, 0.00913582
  %3650 = vrot.lane.b32.xlu0 %v3648, 108
  %v3651 = vpop.permute.xlu0 %3650
  %v3653 = vadd.f32 %v3647, %v3651
  %v3654 = vmul.f32 %v3170, 0.07994215
  %3656 = vrot.lane.b32.xlu0 %v3654, 104
  %v3657 = vpop.permute.xlu0 %3656
  %v3659 = vadd.f32 %v3653, %v3657
  %v3660 = vmul.f32 %v3170, 0.06351214
  %3662 = vrot.lane.b32.xlu0 %v3660, 100
  %v3663 = vpop.permute.xlu0 %3662
  %v3665 = vadd.f32 %v3659, %v3663
  %v3666 = vmul.f32 %v3108, -0.2036517
  %v3667 = vmul.f32 %v3170, 0.09985737
  %v3668 = vadd.f32 %v3666, %v3667
  %v3669 = vmul.f32 %v3170, 0.06469055
  %3671 = vrot.lane.b32.xlu0 %v3669, 124
  %v3672 = vpop.permute.xlu0 %3671
  %v3674 = vadd.f32 %v3668, %v3672
  %v3675 = vmul.f32 %v3170, 0.09752012
  %3677 = vrot.lane.b32.xlu0 %v3675, 120
  %v3678 = vpop.permute.xlu0 %3677
  %v3680 = vadd.f32 %v3674, %v3678
  %v3681 = vmul.f32 %v3170, 0.038535517
  %3683 = vrot.lane.b32.xlu0 %v3681, 116
  %v3684 = vpop.permute.xlu0 %3683
  %v3686 = vadd.f32 %v3680, %v3684
  %v3687 = vmul.f32 %v3170, 0.046520192
  %3689 = vrot.lane.b32.xlu0 %v3687, 112
  %v3690 = vpop.permute.xlu0 %3689
  %v3692 = vadd.f32 %v3686, %v3690
  %v3693 = vmul.f32 %v3170, 0.09447666
  %3695 = vrot.lane.b32.xlu0 %v3693, 108
  %v3696 = vpop.permute.xlu0 %3695
  %v3698 = vadd.f32 %v3692, %v3696
  %v3699 = vmul.f32 %v3170, -0.21863592
  %3701 = vrot.lane.b32.xlu0 %v3699, 104
  %v3702 = vpop.permute.xlu0 %3701
  %v3704 = vadd.f32 %v3698, %v3702
  %v3705 = vmul.f32 %v3170, 0.07322178
  %3707 = vrot.lane.b32.xlu0 %v3705, 100
  %v3708 = vpop.permute.xlu0 %3707
  %v3710 = vadd.f32 %v3704, %v3708
  %v3711 = vmul.f32 %v3108, 0.2319887
  %v3712 = vmul.f32 %v3170, -0.06726344
  %v3713 = vadd.f32 %v3711, %v3712
  %v3714 = vmul.f32 %v3170, 0.012652988
  %3716 = vrot.lane.b32.xlu0 %v3714, 124
  %v3717 = vpop.permute.xlu0 %3716
  %v3719 = vadd.f32 %v3713, %v3717
  %v3720 = vmul.f32 %v3170, 0.069822356
  %3722 = vrot.lane.b32.xlu0 %v3720, 120
  %v3723 = vpop.permute.xlu0 %3722
  %v3725 = vadd.f32 %v3719, %v3723
  %v3726 = vmul.f32 %v3170, 0.06380723
  %3728 = vrot.lane.b32.xlu0 %v3726, 116
  %v3729 = vpop.permute.xlu0 %3728
  %v3731 = vadd.f32 %v3725, %v3729
  %v3732 = vmul.f32 %v3170, -0.14268295
  %3734 = vrot.lane.b32.xlu0 %v3732, 112
  %v3735 = vpop.permute.xlu0 %3734
  %v3737 = vadd.f32 %v3731, %v3735
  %v3738 = vmul.f32 %v3170, -0.11829442
  %3740 = vrot.lane.b32.xlu0 %v3738, 108
  %v3741 = vpop.permute.xlu0 %3740
  %v3743 = vadd.f32 %v3737, %v3741
  %v3744 = vmul.f32 %v3170, -0.08355852
  %3746 = vrot.lane.b32.xlu0 %v3744, 104
  %v3747 = vpop.permute.xlu0 %3746
  %v3749 = vadd.f32 %v3743, %v3747
  %v3750 = vmul.f32 %v3170, 0.09110465
  %3752 = vrot.lane.b32.xlu0 %v3750, 100
  %v3753 = vpop.permute.xlu0 %3752
  %v3755 = vadd.f32 %v3749, %v3753
  %v3756 = vmul.f32 %v3108, 0.39391235
  %v3757 = vmul.f32 %v3170, 0.06333042
  %v3758 = vadd.f32 %v3756, %v3757
  %v3759 = vmul.f32 %v3170, -0.07552137
  %3761 = vrot.lane.b32.xlu0 %v3759, 124
  %v3762 = vpop.permute.xlu0 %3761
  %v3764 = vadd.f32 %v3758, %v3762
  %v3765 = vmul.f32 %v3170, 0.1355919
  %3767 = vrot.lane.b32.xlu0 %v3765, 120
  %v3768 = vpop.permute.xlu0 %3767
  %v3770 = vadd.f32 %v3764, %v3768
  %v3771 = vmul.f32 %v3170, 0.21004637
  %3773 = vrot.lane.b32.xlu0 %v3771, 116
  %v3774 = vpop.permute.xlu0 %3773
  %v3776 = vadd.f32 %v3770, %v3774
  %v3777 = vmul.f32 %v3170, 0.1267632
  %3779 = vrot.lane.b32.xlu0 %v3777, 112
  %v3780 = vpop.permute.xlu0 %3779
  %v3782 = vadd.f32 %v3776, %v3780
  %v3783 = vmul.f32 %v3170, 0.15877593
  %3785 = vrot.lane.b32.xlu0 %v3783, 108
  %v3786 = vpop.permute.xlu0 %3785
  %v3788 = vadd.f32 %v3782, %v3786
  %v3789 = vmul.f32 %v3170, 0.028174251
  %3791 = vrot.lane.b32.xlu0 %v3789, 104
  %v3792 = vpop.permute.xlu0 %3791
  %v3794 = vadd.f32 %v3788, %v3792
  %v3795 = vmul.f32 %v3170, -0.1041642
  %3797 = vrot.lane.b32.xlu0 %v3795, 100
  %v3798 = vpop.permute.xlu0 %3797
  %v3800 = vadd.f32 %v3794, %v3798
  %v3801 = vmul.f32 %v3108, -0.35860997
  %v3802 = vmul.f32 %v3170, 0.17445615
  %v3803 = vadd.f32 %v3801, %v3802
  %v3804 = vmul.f32 %v3170, 0.032462355
  %3806 = vrot.lane.b32.xlu0 %v3804, 124
  %v3807 = vpop.permute.xlu0 %3806
  %v3809 = vadd.f32 %v3803, %v3807
  %v3810 = vmul.f32 %v3170, -0.06099254
  %3812 = vrot.lane.b32.xlu0 %v3810, 120
  %v3813 = vpop.permute.xlu0 %3812
  %v3815 = vadd.f32 %v3809, %v3813
  %v3816 = vmul.f32 %v3170, 0.0006208007
  %3818 = vrot.lane.b32.xlu0 %v3816, 116
  %v3819 = vpop.permute.xlu0 %3818
  %v3821 = vadd.f32 %v3815, %v3819
  %v3822 = vmul.f32 %v3170, -0.09030677
  %3824 = vrot.lane.b32.xlu0 %v3822, 112
  %v3825 = vpop.permute.xlu0 %3824
  %v3827 = vadd.f32 %v3821, %v3825
  %v3828 = vmul.f32 %v3170, 0.054113768
  %3830 = vrot.lane.b32.xlu0 %v3828, 108
  %v3831 = vpop.permute.xlu0 %3830
  %v3833 = vadd.f32 %v3827, %v3831
  %v3834 = vmul.f32 %v3170, 0.059431832
  %3836 = vrot.lane.b32.xlu0 %v3834, 104
  %v3837 = vpop.permute.xlu0 %3836
  %v3839 = vadd.f32 %v3833, %v3837
  %v3840 = vmul.f32 %v3170, -0.0031642143
  %3842 = vrot.lane.b32.xlu0 %v3840, 100
  %v3843 = vpop.permute.xlu0 %3842
  %v3845 = vadd.f32 %v3839, %v3843
  %v3846 = vmul.f32 %v3108, 0.29197833
  %v3847 = vmul.f32 %v3170, -0.103424385
  %v3848 = vadd.f32 %v3846, %v3847
  %v3849 = vmul.f32 %v3170, 0.12149959
  %3851 = vrot.lane.b32.xlu0 %v3849, 124
  %v3852 = vpop.permute.xlu0 %3851
  %v3854 = vadd.f32 %v3848, %v3852
  %v3855 = vmul.f32 %v3170, 0.19531983
  %3857 = vrot.lane.b32.xlu0 %v3855, 120
  %v3858 = vpop.permute.xlu0 %3857
  %v3860 = vadd.f32 %v3854, %v3858
  %v3861 = vmul.f32 %v3170, -0.0049985824
  %3863 = vrot.lane.b32.xlu0 %v3861, 116
  %v3864 = vpop.permute.xlu0 %3863
  %v3866 = vadd.f32 %v3860, %v3864
  %v3867 = vmul.f32 %v3170, 0.10681985
  %3869 = vrot.lane.b32.xlu0 %v3867, 112
  %v3870 = vpop.permute.xlu0 %3869
  %v3872 = vadd.f32 %v3866, %v3870
  %v3873 = vmul.f32 %v3170, 0.171044
  %3875 = vrot.lane.b32.xlu0 %v3873, 108
  %v3876 = vpop.permute.xlu0 %3875
  %v3878 = vadd.f32 %v3872, %v3876
  %v3879 = vmul.f32 %v3170, -0.03020542
  %3881 = vrot.lane.b32.xlu0 %v3879, 104
  %v3882 = vpop.permute.xlu0 %3881
  %v3884 = vadd.f32 %v3878, %v3882
  %v3885 = vmul.f32 %v3170, -0.037963685
  %3887 = vrot.lane.b32.xlu0 %v3885, 100
  %v3888 = vpop.permute.xlu0 %3887
  %v3890 = vadd.f32 %v3884, %v3888
  %v3891 = vmax.f32 %v3215, 0.0
  %v3892 = vmax.f32 %v3260, 0.0
  %v3893 = vmax.f32 %v3305, 0.0
  %v3894 = vmax.f32 %v3350, 0.0
  %v3895 = vmax.f32 %v3395, 0.0
  %v3896 = vmax.f32 %v3440, 0.0
  %v3897 = vmax.f32 %v3485, 0.0
  %v3898 = vmax.f32 %v3530, 0.0
  %v3899 = vmax.f32 %v3575, 0.0
  %v3900 = vmax.f32 %v3620, 0.0
  %v3901 = vmax.f32 %v3665, 0.0
  %v3902 = vmax.f32 %v3710, 0.0
  %v3903 = vmax.f32 %v3755, 0.0
  %v3904 = vmax.f32 %v3800, 0.0
  %v3905 = vmax.f32 %v3845, 0.0
  %v3906 = vmax.f32 %v3890, 0.0
  %v3907 = vmul.f32 %v3891, 0.078986675
  %v3908 = vmul.f32 %v3892, 0.115613855
  %v3909 = vadd.f32 %v3907, %v3908
  %v3910 = vmul.f32 %v3893, 0.05518376
  %v3911 = vadd.f32 %v3909, %v3910
  %v3912 = vmul.f32 %v3894, -0.03497587
  %v3913 = vadd.f32 %v3911, %v3912
  %v3914 = vmul.f32 %v3895, -0.022715533
  %v3915 = vadd.f32 %v3913, %v3914
  %v3916 = vmul.f32 %v3896, -0.053330347
  %v3917 = vadd.f32 %v3915, %v3916
  %v3918 = vmul.f32 %v3897, -0.030413194
  %v3919 = vadd.f32 %v3917, %v3918
  %v3920 = vmul.f32 %v3898, -0.0004436676
  %v3921 = vadd.f32 %v3919, %v3920
  %v3922 = vmul.f32 %v3899, -0.023079993
  %v3923 = vadd.f32 %v3921, %v3922
  %v3924 = vmul.f32 %v3900, 0.18146604
  %v3925 = vadd.f32 %v3923, %v3924
  %v3926 = vmul.f32 %v3901, 0.08787026
  %v3927 = vadd.f32 %v3925, %v3926
  %v3928 = vmul.f32 %v3902, -0.008389852
  %v3929 = vadd.f32 %v3927, %v3928
  %v3930 = vmul.f32 %v3903, -0.08927346
  %v3931 = vadd.f32 %v3929, %v3930
  %v3932 = vmul.f32 %v3904, 0.11055683
  %v3933 = vadd.f32 %v3931, %v3932
  %v3934 = vmul.f32 %v3905, -0.03843752
  %v3935 = vadd.f32 %v3933, %v3934
  %v3936 = vmul.f32 %v3906, -0.020314466
  %v3937 = vadd.f32 %v3935, %v3936
  %v3938 = vmul.f32 %v3891, 0.17253147
  %v3939 = vmul.f32 %v3892, 0.120742105
  %v3940 = vadd.f32 %v3938, %v3939
  %v3941 = vmul.f32 %v3893, 0.074721314
  %v3942 = vadd.f32 %v3940, %v3941
  %v3943 = vmul.f32 %v3894, -0.051963024
  %v3944 = vadd.f32 %v3942, %v3943
  %v3945 = vmul.f32 %v3895, 0.056100573
  %v3946 = vadd.f32 %v3944, %v3945
  %v3947 = vmul.f32 %v3896, -0.03695392
  %v3948 = vadd.f32 %v3946, %v3947
  %v3949 = vmul.f32 %v3897, 0.08634174
  %v3950 = vadd.f32 %v3948, %v3949
  %v3951 = vmul.f32 %v3898, 0.025156228
  %v3952 = vadd.f32 %v3950, %v3951
  %v3953 = vmul.f32 %v3899, 0.042648923
  %v3954 = vadd.f32 %v3952, %v3953
  %v3955 = vmul.f32 %v3900, -0.068255916
  %v3956 = vadd.f32 %v3954, %v3955
  %v3957 = vmul.f32 %v3901, -0.032492824
  %v3958 = vadd.f32 %v3956, %v3957
  %v3959 = vmul.f32 %v3902, 0.0775241
  %v3960 = vadd.f32 %v3958, %v3959
  %v3961 = vmul.f32 %v3903, -0.008640831
  %v3962 = vadd.f32 %v3960, %v3961
  %v3963 = vmul.f32 %v3904, -0.087654166
  %v3964 = vadd.f32 %v3962, %v3963
  %v3965 = vmul.f32 %v3905, 0.17920926
  %v3966 = vadd.f32 %v3964, %v3965
  %v3967 = vmul.f32 %v3906, -0.020728575
  %v3968 = vadd.f32 %v3966, %v3967
  %v3969 = vmul.f32 %v3891, -0.08250826
  %v3970 = vmul.f32 %v3892, 0.13246779
  %v3971 = vadd.f32 %v3969, %v3970
  %v3972 = vmul.f32 %v3893, -0.038503855
  %v3973 = vadd.f32 %v3971, %v3972
  %v3974 = vmul.f32 %v3894, -0.05092083
  %v3975 = vadd.f32 %v3973, %v3974
  %v3976 = vmul.f32 %v3895, 0.06052519
  %v3977 = vadd.f32 %v3975, %v3976
  %v3978 = vmul.f32 %v3896, 0.083842725
  %v3979 = vadd.f32 %v3977, %v3978
  %v3980 = vmul.f32 %v3897, 0.029146371
  %v3981 = vadd.f32 %v3979, %v3980
  %v3982 = vmul.f32 %v3898, -0.12357135
  %v3983 = vadd.f32 %v3981, %v3982
  %v3984 = vmul.f32 %v3899, 0.012310179
  %v3985 = vadd.f32 %v3983, %v3984
  %v3986 = vmul.f32 %v3900, -0.032222133
  %v3987 = vadd.f32 %v3985, %v3986
  %v3988 = vmul.f32 %v3901, -0.008989934
  %v3989 = vadd.f32 %v3987, %v3988
  %v3990 = vmul.f32 %v3902, 0.045868736
  %v3991 = vadd.f32 %v3989, %v3990
  %v3992 = vmul.f32 %v3903, -0.040302858
  %v3993 = vadd.f32 %v3991, %v3992
  %v3994 = vmul.f32 %v3904, 0.024062404
  %v3995 = vadd.f32 %v3993, %v3994
  %v3996 = vmul.f32 %v3905, 0.09551537
  %v3997 = vadd.f32 %v3995, %v3996
  %v3998 = vmul.f32 %v3906, 0.012504318
  %v3999 = vadd.f32 %v3997, %v3998
  %v4000 = vmul.f32 %v3891, 0.088387504
  %v4001 = vmul.f32 %v3892, -0.08888829
  %v4002 = vadd.f32 %v4000, %v4001
  %v4003 = vmul.f32 %v3893, 0.06719925
  %v4004 = vadd.f32 %v4002, %v4003
  %v4005 = vmul.f32 %v3894, 0.03450555
  %v4006 = vadd.f32 %v4004, %v4005
  %v4007 = vmul.f32 %v3895, -0.014314161
  %v4008 = vadd.f32 %v4006, %v4007
  %v4009 = vmul.f32 %v3896, -0.03452699
  %v4010 = vadd.f32 %v4008, %v4009
  %v4011 = vmul.f32 %v3897, -0.01498146
  %v4012 = vadd.f32 %v4010, %v4011
  %v4013 = vmul.f32 %v3898, -0.0065493183
  %v4014 = vadd.f32 %v4012, %v4013
  %v4015 = vmul.f32 %v3899, 0.035496052
  %v4016 = vadd.f32 %v4014, %v4015
  %v4017 = vmul.f32 %v3900, -0.03844961
  %v4018 = vadd.f32 %v4016, %v4017
  %v4019 = vmul.f32 %v3901, -0.039450057
  %v4020 = vadd.f32 %v4018, %v4019
  %v4021 = vmul.f32 %v3902, 0.055955384
  %v4022 = vadd.f32 %v4020, %v4021
  %v4023 = vmul.f32 %v3903, -0.03899766
  %v4024 = vadd.f32 %v4022, %v4023
  %v4025 = vmul.f32 %v3904, -0.0548869
  %v4026 = vadd.f32 %v4024, %v4025
  %v4027 = vmul.f32 %v3905, -0.052612845
  %v4028 = vadd.f32 %v4026, %v4027
  %v4029 = vmul.f32 %v3906, 0.0939924
  %v4030 = vadd.f32 %v4028, %v4029
  %v4031 = vadd.f32 %v3999, 2.0
  %v4032 = vxor.u32 %v4031, 2147483648
  %v4033 = vmul.f32 %v4032, 1.442695
  %v4034 = vpow.pop %v4033
  %v4035 = vadd.f32 %v4034, 1.0
  %v4036 = vrcp.pop %v4035
  %v4037 = vmul.f32 1.0, %v4036
  %v4038 = vadd.f32 %v4030, 2.0
  %v4039 = vxor.u32 %v4038, 2147483648
  %v4040 = vmul.f32 %v4039, 1.442695
  %v4041 = vpow.pop %v4040
  %v4042 = vadd.f32 %v4041, 1.0
  %v4043 = vrcp.pop %v4042
  %v4044 = vmul.f32 1.0, %v4043
  %v4045 = vadd.f32 %v3113, %v3937
  %v4046 = vmul.f32 %v4045, %v4037
  %v4047 = vadd.f32 %v3118, %v3968
  %v4048 = vmul.f32 %v4047, %v4044
  %vm4049 = vcmask 25600
  %4050 = vst.msk [vmem:[%s18] sm:$0x3] %vm4049, %v3108
  %4052 = vrot.lane.b32.xlu0 %v4046, 4
  %v4053 = vpop.permute.xlu0 %4052
  %vm4055 = vcmask 58400
  %4056 = vst.msk [vmem:[%s18] sm:$0x3] %vm4055, %v4053
  %4058 = vrot.lane.b32.xlu0 %v4048, 8
  %v4059 = vpop.permute.xlu0 %4058
  %vm4061 = vcmask 91200
  %4062 = vst.msk [vmem:[%s18] sm:$0x3] %vm4061, %v4059
  %v4063 = vadd.f32 %v2952, -0.103372216
  %v4064 = vmul.f32 %v4063, 0.98422223
  %v4065 = vadd.f32 %v2952, 0.094621174
  %v4066 = vmul.f32 %v4065, 1.0448738
  %v4067 = vmul.f32 %v4064, -0.82973766
  %v4068 = vmul.f32 %v4066, -0.5581536
  %v4069 = vadd.f32 %v4067, %v4068
  %v4070 = vmul.f32 %v4064, -0.5581536
  %v4071 = vmul.f32 %v4066, 0.8297376
  %v4072 = vadd.f32 %v4070, %v4071
  %v4073 = vmul.f32 %v4069, 0.325034
  %v4074 = vmul.f32 %v4069, -0.28829572
  %v4075 = vmul.f32 %v4069, -0.09019938
  %v4076 = vmul.f32 %v4069, 0.32222065
  %v4077 = vmul.f32 %v4069, 0.7986365
  %v4078 = vmul.f32 %v4069, 0.14118598
  %v4079 = vmul.f32 %v4069, -0.15765108
  %v4080 = vmul.f32 %v4069, -0.52012235
  %v4081 = vmul.f32 %v4069, 0.17870203
  %v4082 = vmul.f32 %v4069, 0.3426149
  %v4083 = vmul.f32 %v4069, -0.5331734
  %v4084 = vmul.f32 %v4069, 0.16129766
  %v4085 = vmul.f32 %v4069, -0.558945
  %v4086 = vmul.f32 %v4069, 0.054302294
  %v4087 = vmul.f32 %v4069, 0.16986184
  %v4088 = vmul.f32 %v4069, -0.12609644
  %v4089 = vmax.f32 %v4073, 0.0
  %v4090 = vmax.f32 %v4074, 0.0
  %v4091 = vmax.f32 %v4075, 0.0
  %v4092 = vmax.f32 %v4076, 0.0
  %v4093 = vmax.f32 %v4077, 0.0
  %v4094 = vmax.f32 %v4078, 0.0
  %v4095 = vmax.f32 %v4079, 0.0
  %v4096 = vmax.f32 %v4080, 0.0
  %v4097 = vmax.f32 %v4081, 0.0
  %v4098 = vmax.f32 %v4082, 0.0
  %v4099 = vmax.f32 %v4083, 0.0
  %v4100 = vmax.f32 %v4084, 0.0
  %v4101 = vmax.f32 %v4085, 0.0
  %v4102 = vmax.f32 %v4086, 0.0
  %v4103 = vmax.f32 %v4087, 0.0
  %v4104 = vmax.f32 %v4088, 0.0
  %v4105 = vmul.f32 %v4089, 0.005043658
  %v4106 = vmul.f32 %v4090, 0.024107216
  %v4107 = vadd.f32 %v4105, %v4106
  %v4108 = vmul.f32 %v4091, -0.09827776
  %v4109 = vadd.f32 %v4107, %v4108
  %v4110 = vmul.f32 %v4092, 0.014885691
  %v4111 = vadd.f32 %v4109, %v4110
  %v4112 = vmul.f32 %v4093, 0.18542555
  %v4113 = vadd.f32 %v4111, %v4112
  %v4114 = vmul.f32 %v4094, -0.034580644
  %v4115 = vadd.f32 %v4113, %v4114
  %v4116 = vmul.f32 %v4095, -0.008836685
  %v4117 = vadd.f32 %v4115, %v4116
  %v4118 = vmul.f32 %v4096, -0.022718629
  %v4119 = vadd.f32 %v4117, %v4118
  %v4120 = vmul.f32 %v4097, 0.14107351
  %v4121 = vadd.f32 %v4119, %v4120
  %v4122 = vmul.f32 %v4098, 0.026572587
  %v4123 = vadd.f32 %v4121, %v4122
  %v4124 = vmul.f32 %v4099, -0.037405573
  %v4125 = vadd.f32 %v4123, %v4124
  %v4126 = vmul.f32 %v4100, -0.1211108
  %v4127 = vadd.f32 %v4125, %v4126
  %v4128 = vmul.f32 %v4101, -0.00398722
  %v4129 = vadd.f32 %v4127, %v4128
  %v4130 = vmul.f32 %v4102, 0.06159006
  %v4131 = vadd.f32 %v4129, %v4130
  %v4132 = vmul.f32 %v4103, 0.06510569
  %v4133 = vadd.f32 %v4131, %v4132
  %v4134 = vmul.f32 %v4104, -0.10950088
  %v4135 = vadd.f32 %v4133, %v4134
  %v4136 = vmul.f32 %v4089, 0.020037284
  %v4137 = vmul.f32 %v4090, -0.044247977
  %v4138 = vadd.f32 %v4136, %v4137
  %v4139 = vmul.f32 %v4091, 0.0004118771
  %v4140 = vadd.f32 %v4138, %v4139
  %v4141 = vmul.f32 %v4092, 0.058768194
  %v4142 = vadd.f32 %v4140, %v4141
  %v4143 = vmul.f32 %v4093, 0.22614354
  %v4144 = vadd.f32 %v4142, %v4143
  %v4145 = vmul.f32 %v4094, 0.047948223
  %v4146 = vadd.f32 %v4144, %v4145
  %v4147 = vmul.f32 %v4095, 0.011039282
  %v4148 = vadd.f32 %v4146, %v4147
  %v4149 = vmul.f32 %v4096, -0.02161054
  %v4150 = vadd.f32 %v4148, %v4149
  %v4151 = vmul.f32 %v4097, 0.044760425
  %v4152 = vadd.f32 %v4150, %v4151
  %v4153 = vmul.f32 %v4098, 0.03336728
  %v4154 = vadd.f32 %v4152, %v4153
  %v4155 = vmul.f32 %v4099, -0.13837783
  %v4156 = vadd.f32 %v4154, %v4155
  %v4157 = vmul.f32 %v4100, 0.06958508
  %v4158 = vadd.f32 %v4156, %v4157
  %v4159 = vmul.f32 %v4101, 0.021143002
  %v4160 = vadd.f32 %v4158, %v4159
  %v4161 = vmul.f32 %v4102, 0.08557634
  %v4162 = vadd.f32 %v4160, %v4161
  %v4163 = vmul.f32 %v4103, -0.048690908
  %v4164 = vadd.f32 %v4162, %v4163
  %v4165 = vmul.f32 %v4104, 0.13430089
  %v4166 = vadd.f32 %v4164, %v4165
  %v4167 = vadd.f32 %v4166, 2.0
  %v4168 = vxor.u32 %v4167, 2147483648
  %v4169 = vmul.f32 %v4168, 1.442695
  %v4170 = vpow.pop %v4169
  %v4171 = vadd.f32 %v4170, 1.0
  %v4172 = vrcp.pop %v4171
  %v4173 = vmul.f32 1.0, %v4172
  %v4174 = vadd.f32 %v4072, %v4135
  %v4175 = vmul.f32 %v4174, %v4173
  %4176 = vst.msk [vmem:[%s19] sm:$0x3] %vm4049, %v4069
  %4178 = vrot.lane.b32.xlu0 %v4175, 4
  %v4179 = vpop.permute.xlu0 %4178
  %4181 = vst.msk [vmem:[%s19] sm:$0x3] %vm4055, %v4179
  %v4182 = vlog2.pop %v4173
  %v4183 = vmul.f32 %v4182, 0.6931472
  %v4184 = vsel %vm4049, %v4183, 0.0
  %4185 = vadd.xlane.f32.xlu0 %v4184
  %v4186 = vpop.xlane.xlu0 %4185
  %v4187 = vadd.f32 %v4186, 0.0
  %v4188 = vmul.f32 %v4069, %v4069
  %v4189 = vadd.f32 %v4188, 1.837877
  %v4190 = vmul.f32 %v4189, -0.5
  %v4191 = vsel %vm4049, %v4190, 0.0
  %4192 = vadd.xlane.f32.xlu0 %v4191
  %v4193 = vpop.xlane.xlu0 %4192
  %v4194 = vadd.f32 %v4193, 0.0
  %v4195 = vmul.f32 %v4175, %v4175
  %v4196 = vadd.f32 %v4195, 1.837877
  %v4197 = vmul.f32 %v4196, -0.5
  %v4198 = vsel %vm4049, %v4197, 0.0
  %4199 = vadd.xlane.f32.xlu0 %v4198
  %v4200 = vpop.xlane.xlu0 %4199
  %v4201 = vadd.f32 %v4194, %v4200
  %v4202 = vadd.f32 %v4201, %v4187
  %v4203 = vadd.f32 %v4202, 0.11197053
  %v4204 = vsub.f32 0.0, %v4203
  %v4205 = vmul.f32 %v4204, 0.18033688
  %4206 = vst [vmem:[%s20] sm:$0x3] %v4205
  // Predicated region
  $region66: #{forward.1} parent=0 // pred_check
    _
  $region67: #{forward.1} parent=0 // pred_check_branch
    %4208 = sbr.rel (0) target = $region69
  $region68: #{forward.1} parent=0 // pred_region
    _
  $region69: #{forward.1} parent=0 // pred_fallthru
    _
  // Predicated region
  $region70: #{forward.1} parent=0 // pred_check
    _
  $region71: #{forward.1} parent=0 // pred_check_branch
    %4210 = sbr.rel (0) target = $region73
  $region72: #{forward.1} parent=0 // pred_region
    _
  $region73: #{forward.1} parent=0 // pred_fallthru
    _
  // Predicated region
  $region74: #{forward.1} parent=0 // pred_check
    _
  $region75: #{forward.1} parent=0 // pred_check_branch
    %4212 = sbr.rel (0) target = $region77
  $region76: #{forward.1} parent=0 // pred_region
    _
  $region77: #{forward.1} parent=0 // pred_fallthru
    _
  // Predicated region
  $region78: #{forward.1} parent=0 // pred_check
    _
  $region79: #{forward.1} parent=0 // pred_check_branch
    %4214 = sbr.rel (0) target = $region81
  $region80: #{forward.1} parent=0 // pred_region
    _
  $region81: #{forward.1} parent=0 // pred_fallthru
    _
  // Predicated region
  $region82: #{forward.1} parent=0 // pred_check
    _
  $region83: #{forward.1} parent=0 // pred_check_branch
    %4216 = sbr.rel (0) target = $region85
  $region84: #{forward.1} parent=0 // pred_region
    _
  $region85: #{forward.1} parent=0 // pred_fallthru
    _
  // Predicated region
  $region86: #{forward.1} parent=0 // pred_check
    _
  $region87: #{forward.1} parent=0 // pred_check_branch
    %4218 = sbr.rel (0) target = $region89
  $region88: #{forward.1} parent=0 // pred_region
    _
  $region89: #{forward.1} parent=0 // pred_fallthru
    _
  // Predicated region
  $region90: #{forward.1} parent=0 // pred_check
    _
  $region91: #{forward.1} parent=0 // pred_check_branch
    %4220 = sbr.rel (0) target = $region93
  $region92: #{forward.1} parent=0 // pred_region
    _
  $region93: #{forward.1} parent=0 // pred_fallthru
    _
  // Predicated region
  $region94: #{forward.1} parent=0 // pred_check
    _
  $region95: #{forward.1} parent=0 // pred_check_branch
    %4222 = sbr.rel (0) target = $region97
  $region96: #{forward.1} parent=0 // pred_region
    _
  $region97: #{forward.1} parent=0 // pred_fallthru
    _
  // Predicated region
  $region98: #{forward.1} parent=0 // pred_check
    _
  $region99: #{forward.1} parent=0 // pred_check_branch
    %4224 = sbr.rel (0) target = $region101
  $region100: #{forward.1} parent=0 // pred_region
    _
  $region101: #{forward.1} parent=0 // pred_fallthru
    _
  // Predicated region
  $region102: #{forward.1} parent=0 // pred_check
    _
  $region103: #{forward.1} parent=0 // pred_check_branch
    %4226 = sbr.rel (0) target = $region105
  $region104: #{forward.1} parent=0 // pred_region
    _
  $region105: #{forward.1} parent=0 // pred_fallthru
    _

</llo_original>
